<compile_context>
chip_gen: v7x
topology: tpu7x:2x2x1
jax: 0.10.0
libtpu: 0.0.40
codegen_flags: <defaults>
</compile_context>

<pallas_src>
import functools

import jax
import jax.numpy as jnp
from jax.experimental import pallas as pl
from jax.experimental.pallas import tpu as pltpu


C_PAD = 128      # lane-dense channel padding used for all kernel outputs
_EPS = 1e-5


def _round_up(a, b):
    return -(-a // b) * b


# ---------------------------------------------------------------------------
# Pallas kernel: out = relu( sum_t X[p_t, off_t : off_t + rows, :] @ W[t] + b )
# ---------------------------------------------------------------------------
def _taps_matmul_kernel(x_ref, w_ref, b_ref, o_ref, *, taps, block_rows, single):
    cout = o_ref.shape[-1]
    if single:
        base = 0                                            # static slicing path
    else:
        base = pl.multiple_of(pl.program_id(0) * block_rows, block_rows)
    acc = jnp.zeros((block_rows, cout), jnp.float32)
    for t, (phase, off) in enumerate(taps):                 # static, fully unrolled
        if single:
            xt = x_ref[phase, off:off + block_rows, :]
        else:
            xt = x_ref[phase, pl.ds(base + off, block_rows), :]
        acc = acc + jnp.dot(xt, w_ref[t], preferred_element_type=jnp.float32)
    o_ref[...] = jnp.maximum(acc + b_ref[...], 0.0).astype(o_ref.dtype)


def _taps_matmul(phases, w_taps, bias, *, taps, rows, max_off, out_dtype):
    """phases: (P, L, K) bf16, w_taps: (T, K, Cout) bf16, bias: (1, Cout) f32.

    Computes rows [0, rows) of relu(sum_t phases[p_t, r + off_t] @ w[t] + bias)
    (plus a few rounding rows of garbage that the caller slices off).
    """
    P, L, K = phases.shape
    T, Kw, Cout = w_taps.shape
    assert K == Kw and len(taps) == T

    # Largest row tile that fits comfortably; grid=(1,) at these problem sizes.
    block_rows = _round_up(rows, 16) if rows <= 1024 else 1024
    padded_rows = _round_up(rows, block_rows)
    grid = padded_rows // block_rows
    need = padded_rows + max_off
    if L < need:                 # tiny flat tail pad so every tap window is in-bounds
        phases = jnp.pad(phases, ((0, 0), (0, need - L), (0, 0)))
    Lp = phases.shape[1]

    kernel = functools.partial(_taps_matmul_kernel, taps=tuple(taps),
                               block_rows=block_rows, single=(grid == 1))
    return pl.pallas_call(
        kernel,
        out_shape=jax.ShapeDtypeStruct((padded_rows, Cout), out_dtype),
        grid_spec=pltpu.PrefetchScalarGridSpec(
            num_scalar_prefetch=0,
            grid=(grid,),
            in_specs=[
                pl.BlockSpec((P, Lp, K), lambda i: (0, 0, 0)),    # resident activations
                pl.BlockSpec((T, K, Cout), lambda i: (0, 0, 0)),  # resident tap weights
                pl.BlockSpec((1, Cout), lambda i: (0, 0)),        # bias
            ],
            out_specs=pl.BlockSpec((block_rows, Cout), lambda i: (i, 0)),
        ),
        compiler_params=pltpu.CompilerParams(
            dimension_semantics=("parallel",)),
    )(phases, w_taps, bias)


# ---------------------------------------------------------------------------
# Host-side prep / glue
# ---------------------------------------------------------------------------
def _fold_bn(gamma, beta, mean, var, eps=_EPS):
    scale = gamma / jnp.sqrt(var + eps)
    return scale, beta - mean * scale


def _ft_fused(xs_nhwc, ft_params, fea_channel):
    """All 1x1 BasicConvs + upsamples + channel concat as ONE fused GEMM."""
    n, h0, w0, _ = xs_nhwc[0].shape
    ups, w_blocks, b_blocks, cins = [], [], [], []
    for x, p in zip(xs_nhwc, ft_params):
        sf = int(p["scale_factor"])
        if sf > 1:  # nearest upsample commutes with 1x1 conv / BN / ReLU
            x = jnp.repeat(jnp.repeat(x, sf, axis=1), sf, axis=2)
        assert x.shape[1] == h0 and x.shape[2] == w0
        ups.append(x.astype(jnp.bfloat16))
        cin = p["w"].shape[2]
        cins.append(cin)
        scale, bias = _fold_bn(p["gamma"], p["beta"], p["mean"], p["var"])
        w_blocks.append(p["w"].reshape(cin, fea_channel) * scale[None, :])
        b_blocks.append(bias)

    k_total = sum(cins)
    w_bd = jnp.zeros((k_total, C_PAD), jnp.float32)   # block-diagonal fused weight
    b_bd = jnp.zeros((C_PAD,), jnp.float32)
    r = c = 0
    for cin, wb, bb in zip(cins, w_blocks, b_blocks):
        w_bd = w_bd.at[r:r + cin, c:c + fea_channel].set(wb)
        b_bd = b_bd.at[c:c + fea_channel].set(bb)
        r += cin
        c += fea_channel

    rows = n * h0 * w0
    x2d = jnp.concatenate(ups, axis=-1).reshape(rows, k_total)
    out = _taps_matmul(x2d[None], w_bd.astype(jnp.bfloat16)[None],
                       b_bd.reshape(1, C_PAD),
                       taps=[(0, 0)], rows=rows, max_off=0,
                       out_dtype=jnp.bfloat16)
    # channels >= len(channels)*fea_channel are exactly zero (zero W cols / bias)
    return out[:rows].reshape(n, h0, w0, C_PAD)


def _prep_pyramid(p):
    """Fold BN scale into the 3x3 weights, pad to (9, 128, 128) / (1, 128)."""
    w = p["w"]
    kh, kw, cin, cout = w.shape
    scale, bias = _fold_bn(p["gamma"], p["beta"], p["mean"], p["var"])
    wt = (w * scale[None, None, None, :]).reshape(kh * kw, cin, cout)
    w_taps = jnp.zeros((kh * kw, C_PAD, C_PAD), jnp.float32)
    w_taps = w_taps.at[:, :cin, :cout].set(wt)
    b = jnp.zeros((C_PAD,), jnp.float32).at[:cout].set(bias)
    return w_taps.astype(jnp.bfloat16), b.reshape(1, C_PAD)


def _conv3x3_bn_relu(x_nhwc, w_taps, bias, stride):
    """3x3 conv (pad=1) + folded BN + ReLU on 128-channel-padded NHWC input."""
    n, h, w, c = x_nhwc.shape
    assert c == C_PAD
    x = x_nhwc.astype(jnp.bfloat16)
    xp = jnp.pad(x, ((0, 0), (1, 1), (1, 1), (0, 0)))        # spatial zero pad

    if stride == 1:
        ho, wo = h, w
        hq, wq = h + 2, w + 2
        phases = xp.reshape(1, n * hq * wq, c)
        taps = [(0, ky * wq + kx) for ky in range(3) for kx in range(3)]
        max_off = 2 * wq + 2
    else:  # stride == 2: 2x2 phase split keeps every tap window contiguous
        ho, wo = (h - 1) // 2 + 1, (w - 1) // 2 + 1
        he, we = _round_up(h + 2, 2), _round_up(w + 2, 2)
        xp = jnp.pad(xp, ((0, 0), (0, he - (h + 2)), (0, we - (w + 2)), (0, 0)))
        hq, wq = he // 2, we // 2
        phases = jnp.stack(
            [xp[:, qy::2, qx::2, :].reshape(n * hq * wq, c)
             for qy in (0, 1) for qx in (0, 1)], axis=0)
        taps = [((ky % 2) * 2 + (kx % 2), (ky // 2) * wq + (kx // 2))
                for ky in range(3) for kx in range(3)]
        max_off = wq + 1

    rows = n * hq * wq
    out = _taps_matmul(phases, w_taps, bias, taps=taps, rows=rows,
                       max_off=max_off, out_dtype=jnp.float32)
    # rows r with (r % wq) >= wo or (r // wq) % hq >= ho are wrap-around garbage.
    return out[:rows].reshape(n, hq, wq, C_PAD)[:, :ho, :wo, :]


# ---------------------------------------------------------------------------
# Parameter init (deterministic, synthetic)
# ---------------------------------------------------------------------------
def init_ssd_neck_params(key, channels, fea_channel, fpn_level):
    def conv_bn(key, kh, kw, cin, cout, wscale):
        k1, k2, k3 = jax.random.split(key, 3)
        return dict(
            w=jax.random.normal(k1, (kh, kw, cin, cout), jnp.float32) * wscale,
            gamma=1.0 + 0.1 * jax.random.normal(k2, (cout,), jnp.float32),
            beta=0.1 * jax.random.normal(k3, (cout,), jnp.float32),
            mean=jnp.zeros((cout,), jnp.float32),
            var=jnp.ones((cout,), jnp.float32),
        )

    params = {"ft": [], "pyr": []}
    for i, c in enumerate(channels):
        key, sub = jax.random.split(key)
        p = conv_bn(sub, 1, 1, c, fea_channel, 0.1)
        p["scale_factor"] = 2 ** i
        params["ft"].append(p)

    in_ch = fea_channel * len(channels)
    strides = [1] + [2] * (fpn_level - 1)
    for s in strides:
        key, sub = jax.random.split(key)
        p = conv_bn(sub, 3, 3, in_ch, fea_channel, 0.05)
        p["stride"] = s
        params["pyr"].append(p)
        in_ch = fea_channel
    return params


# ---------------------------------------------------------------------------
# SSDNeck forward (matches the PyTorch module semantics)
# ---------------------------------------------------------------------------
def ssd_neck_forward(xs_nchw, params, fea_channel):
    # public boundary: NCHW -> NHWC once
    xs = [jnp.transpose(x, (0, 2, 3, 1)).astype(jnp.float32) for x in xs_nchw]
    # feature transform: fused 1x1 convs + BN + ReLU + nearest upsample + concat
    x = _ft_fused(xs, params["ft"], fea_channel)          # (N, H0, W0, 128) bf16
    # FPN feature extractor: 3x3 convs (stride 1 then stride 2 ...)
    outs = []
    for p in params["pyr"]:
        w_taps, bias = _prep_pyramid(p)
        x = _conv3x3_bn_relu(x, w_taps, bias, int(p["stride"]))  # f32, 128-ch padded
        outs.append(jnp.transpose(x[..., :fea_channel], (0, 3, 1, 2)))  # -> NCHW
    return outs


# ---------------------------------------------------------------------------
# Pure-JAX reference (for a numerical sanity check)
# ---------------------------------------------------------------------------
def _ref_forward(xs_nchw, params, fea_channel):
    dn = ("NHWC", "HWIO", "NHWC")

    def bn_relu(y, p):
        scale = p["gamma"] / jnp.sqrt(p["var"] + _EPS)
        return jnp.maximum(y * scale + (p["beta"] - p["mean"] * scale), 0.0)

    feats = []
    for x, p in zip(xs_nchw, params["ft"]):
        xn = jnp.transpose(x, (0, 2, 3, 1)).astype(jnp.float32)
        y = jax.lax.conv_general_dilated(xn, p["w"], (1, 1), "VALID",
                                         dimension_numbers=dn)
        y = bn_relu(y, p)
        sf = int(p["scale_factor"])
        if sf > 1:
            y = jnp.repeat(jnp.repeat(y, sf, axis=1), sf, axis=2)
        feats.append(y)
    x = jnp.concatenate(feats, axis=-1)
    outs = []
    for p in params["pyr"]:
        s = int(p["stride"])
        y = jax.lax.conv_general_dilated(x, p["w"], (s, s), [(1, 1), (1, 1)],
                                         dimension_numbers=dn)
        x = bn_relu(y, p)
        outs.append(jnp.transpose(x, (0, 3, 1, 2)))
    return outs


# ---------------------------------------------------------------------------
if __name__ == "__main__":
    key = jax.random.PRNGKey(0)

    channels = (4, 8)
    fea_channel = 32
    fpn_level = 3

    kx0, kx1, kp = jax.random.split(key, 3)
    x0 = jax.random.normal(kx0, (2, channels[0], 16, 16), jnp.float32)  # NCHW
    x1 = jax.random.normal(kx1, (2, channels[1], 8, 8), jnp.float32)    # NCHW

    params = init_ssd_neck_params(kp, channels, fea_channel, fpn_level)

    fwd = jax.jit(lambda a, b: ssd_neck_forward([a, b], params, fea_channel))
    outs = fwd(x0, x1)
    for o in outs:
        jax.block_until_ready(o)

    expected = [(2, fea_channel, 16, 16), (2, fea_channel, 8, 8),
                (2, fea_channel, 4, 4)]
    assert [tuple(o.shape) for o in outs] == expected, \
        f"unexpected output shapes: {[o.shape for o in outs]}"
    assert all(o.dtype == jnp.float32 for o in outs)
    assert all(bool(jnp.all(o >= 0.0)) for o in outs)  # ReLU outputs

    # numerical check vs a plain-JAX f32 reference (bf16 MXU operands -> loose tol)
    refs = _ref_forward([x0, x1], params, fea_channel)
    for o, r in zip(outs, refs):
        assert jnp.allclose(o, r, atol=5e-2, rtol=5e-2), \
            f"max abs err {float(jnp.max(jnp.abs(o - r)))}"

    print("KERNEL_OK")
</pallas_src>

<mosaic_0001>
module attributes {stable_mosaic.version = 11 : i64} {
  func.func @_taps_matmul_kernel(%arg0: i32, %arg1: memref<1x512x12xbf16, #tpu.memory_space<vmem>>, %arg2: memref<1x12x128xbf16, #tpu.memory_space<vmem>>, %arg3: memref<1x128xf32, #tpu.memory_space<vmem>>, %arg4: memref<512x128xbf16, #tpu.memory_space<vmem>>) attributes {dimension_semantics = [#tpu.dimension_semantics<parallel>], iteration_bounds = array<i64: 1>, scalar_prefetch = 0 : i64, scratch_operands = 0 : i64, tpu.core_type = #tpu.core_type<tc>, window_params = [{pipeline_mode = #tpu.pipeline_mode<synchronous>, transform_indices = @transform_0, window_bounds = array<i64: 1, 512, 12>}, {pipeline_mode = #tpu.pipeline_mode<synchronous>, transform_indices = @transform_1, window_bounds = array<i64: 1, 12, 128>}, {pipeline_mode = #tpu.pipeline_mode<synchronous>, transform_indices = @transform_2, window_bounds = array<i64: 1, 128>}, {transform_indices = @transform_3, window_bounds = array<i64: 512, 128>}]} {
    %cst = arith.constant 0.000000e+00 : f32
    %0 = vector.broadcast %cst : f32 to vector<512x128xf32>
    %c0 = arith.constant 0 : index
    %c0_0 = arith.constant 0 : index
    %c0_1 = arith.constant 0 : index
    %1 = vector.load %arg1[%c0, %c0_0, %c0_1] : memref<1x512x12xbf16, #tpu.memory_space<vmem>>, vector<1x512x12xbf16>
    %2 = vector.shape_cast %1 : vector<1x512x12xbf16> to vector<512x12xbf16>
    %c0_2 = arith.constant 0 : index
    %c0_3 = arith.constant 0 : index
    %c0_4 = arith.constant 0 : index
    %3 = vector.load %arg2[%c0_2, %c0_3, %c0_4] : memref<1x12x128xbf16, #tpu.memory_space<vmem>>, vector<1x12x128xbf16>
    %4 = vector.shape_cast %3 : vector<1x12x128xbf16> to vector<12x128xbf16>
    %cst_5 = arith.constant dense<0.000000e+00> : vector<512x128xf32>
    %5 = tpu.matmul %2, %4, %cst_5 {dimension_numbers = #tpu.dot_dimension_numbers<[1], [0], [0], [1], [0, 0, 1, 1], [], []>} : vector<512x12xbf16>, vector<12x128xbf16>, vector<512x128xf32> -> vector<512x128xf32>
    %6 = arith.addf %0, %5 : vector<512x128xf32>
    %c0_6 = arith.constant 0 : index
    %c0_7 = arith.constant 0 : index
    %7 = vector.load %arg3[%c0_6, %c0_7] : memref<1x128xf32, #tpu.memory_space<vmem>>, vector<1x128xf32>
    %8 = vector.broadcast %7 : vector<1x128xf32> to vector<512x128xf32>
    %9 = arith.addf %6, %8 : vector<512x128xf32>
    %cst_8 = arith.constant 0.000000e+00 : f32
    %10 = vector.broadcast %cst_8 : f32 to vector<512x128xf32>
    %11 = arith.maximumf %9, %10 : vector<512x128xf32>
    %12 = arith.truncf %11 : vector<512x128xf32> to vector<512x128xbf16>
    %c0_9 = arith.constant 0 : index
    %c0_10 = arith.constant 0 : index
    %13 = vector.load %arg4[%c0_9, %c0_10] : memref<512x128xbf16, #tpu.memory_space<vmem>>, vector<512x128xbf16>
    tpu.vector_store %arg4[%c0_9, %c0_10], %12 {strides = array<i32>} : memref<512x128xbf16, #tpu.memory_space<vmem>>, vector<512x128xbf16>,
    return
  }
  func.func @transform_0(%arg0: i32) -> (i32, i32, i32) {
    %c0_i32 = arith.constant 0 : i32
    %c0_i32_0 = arith.constant 0 : i32
    %c0_i32_1 = arith.constant 0 : i32
    %c0_i32_2 = arith.constant 0 : i32
    return %c0_i32, %c0_i32_0, %c0_i32_1 : i32, i32, i32
  }
  func.func @transform_1(%arg0: i32) -> (i32, i32, i32) {
    %c0_i32 = arith.constant 0 : i32
    %c0_i32_0 = arith.constant 0 : i32
    %c0_i32_1 = arith.constant 0 : i32
    %c0_i32_2 = arith.constant 0 : i32
    return %c0_i32, %c0_i32_0, %c0_i32_1 : i32, i32, i32
  }
  func.func @transform_2(%arg0: i32) -> (i32, i32) {
    %c0_i32 = arith.constant 0 : i32
    %c0_i32_0 = arith.constant 0 : i32
    %c0_i32_1 = arith.constant 0 : i32
    return %c0_i32, %c0_i32_0 : i32, i32
  }
  func.func @transform_3(%arg0: i32) -> (i32, i32) {
    %c0_i32 = arith.constant 0 : i32
    %c0_i32_0 = arith.constant 0 : i32
    return %arg0, %c0_i32 : i32, i32
  }
}

module attributes {stable_mosaic.version = 11 : i64} {
  func.func @_taps_matmul_kernel(%arg0: i32, %arg1: memref<1x694x128xbf16, #tpu.memory_space<vmem>>, %arg2: memref<9x128x128xbf16, #tpu.memory_space<vmem>>, %arg3: memref<1x128xf32, #tpu.memory_space<vmem>>, %arg4: memref<656x128xf32, #tpu.memory_space<vmem>>) attributes {dimension_semantics = [#tpu.dimension_semantics<parallel>], iteration_bounds = array<i64: 1>, scalar_prefetch = 0 : i64, scratch_operands = 0 : i64, tpu.core_type = #tpu.core_type<tc>, window_params = [{pipeline_mode = #tpu.pipeline_mode<synchronous>, transform_indices = @transform_0, window_bounds = array<i64: 1, 694, 128>}, {pipeline_mode = #tpu.pipeline_mode<synchronous>, transform_indices = @transform_1, window_bounds = array<i64: 9, 128, 128>}, {pipeline_mode = #tpu.pipeline_mode<synchronous>, transform_indices = @transform_2, window_bounds = array<i64: 1, 128>}, {transform_indices = @transform_3, window_bounds = array<i64: 656, 128>}]} {
    %cst = arith.constant 0.000000e+00 : f32
    %0 = vector.broadcast %cst : f32 to vector<656x128xf32>
    %c0 = arith.constant 0 : index
    %c0_0 = arith.constant 0 : index
    %c0_1 = arith.constant 0 : index
    %1 = vector.load %arg1[%c0, %c0_0, %c0_1] : memref<1x694x128xbf16, #tpu.memory_space<vmem>>, vector<1x656x128xbf16>
    %2 = vector.shape_cast %1 : vector<1x656x128xbf16> to vector<656x128xbf16>
    %c0_2 = arith.constant 0 : index
    %c0_3 = arith.constant 0 : index
    %c0_4 = arith.constant 0 : index
    %3 = vector.load %arg2[%c0_2, %c0_3, %c0_4] : memref<9x128x128xbf16, #tpu.memory_space<vmem>>, vector<1x128x128xbf16>
    %4 = vector.shape_cast %3 : vector<1x128x128xbf16> to vector<128x128xbf16>
    %cst_5 = arith.constant dense<0.000000e+00> : vector<656x128xf32>
    %5 = tpu.matmul %2, %4, %cst_5 {dimension_numbers = #tpu.dot_dimension_numbers<[1], [0], [0], [1], [0, 0, 1, 1], [], []>} : vector<656x128xbf16>, vector<128x128xbf16>, vector<656x128xf32> -> vector<656x128xf32>
    %6 = arith.addf %0, %5 : vector<656x128xf32>
    %c0_6 = arith.constant 0 : index
    %c1 = arith.constant 1 : index
    %c0_7 = arith.constant 0 : index
    %7 = vector.load %arg1[%c0_6, %c1, %c0_7] : memref<1x694x128xbf16, #tpu.memory_space<vmem>>, vector<1x656x128xbf16>
    %8 = vector.shape_cast %7 : vector<1x656x128xbf16> to vector<656x128xbf16>
    %c1_8 = arith.constant 1 : index
    %c0_9 = arith.constant 0 : index
    %c0_10 = arith.constant 0 : index
    %9 = vector.load %arg2[%c1_8, %c0_9, %c0_10] : memref<9x128x128xbf16, #tpu.memory_space<vmem>>, vector<1x128x128xbf16>
    %10 = vector.shape_cast %9 : vector<1x128x128xbf16> to vector<128x128xbf16>
    %cst_11 = arith.constant dense<0.000000e+00> : vector<656x128xf32>
    %11 = tpu.matmul %8, %10, %cst_11 {dimension_numbers = #tpu.dot_dimension_numbers<[1], [0], [0], [1], [0, 0, 1, 1], [], []>} : vector<656x128xbf16>, vector<128x128xbf16>, vector<656x128xf32> -> vector<656x128xf32>
    %12 = arith.addf %6, %11 : vector<656x128xf32>
    %c0_12 = arith.constant 0 : index
    %c2 = arith.constant 2 : index
    %c0_13 = arith.constant 0 : index
    %13 = vector.load %arg1[%c0_12, %c2, %c0_13] : memref<1x694x128xbf16, #tpu.memory_space<vmem>>, vector<1x656x128xbf16>
    %14 = vector.shape_cast %13 : vector<1x656x128xbf16> to vector<656x128xbf16>
    %c2_14 = arith.constant 2 : index
    %c0_15 = arith.constant 0 : index
    %c0_16 = arith.constant 0 : index
    %15 = vector.load %arg2[%c2_14, %c0_15, %c0_16] : memref<9x128x128xbf16, #tpu.memory_space<vmem>>, vector<1x128x128xbf16>
    %16 = vector.shape_cast %15 : vector<1x128x128xbf16> to vector<128x128xbf16>
    %cst_17 = arith.constant dense<0.000000e+00> : vector<656x128xf32>
    %17 = tpu.matmul %14, %16, %cst_17 {dimension_numbers = #tpu.dot_dimension_numbers<[1], [0], [0], [1], [0, 0, 1, 1], [], []>} : vector<656x128xbf16>, vector<128x128xbf16>, vector<656x128xf32> -> vector<656x128xf32>
    %18 = arith.addf %12, %17 : vector<656x128xf32>
    %c0_18 = arith.constant 0 : index
    %c18 = arith.constant 18 : index
    %c0_19 = arith.constant 0 : index
    %19 = vector.load %arg1[%c0_18, %c18, %c0_19] : memref<1x694x128xbf16, #tpu.memory_space<vmem>>, vector<1x656x128xbf16>
    %20 = vector.shape_cast %19 : vector<1x656x128xbf16> to vector<656x128xbf16>
    %c3 = arith.constant 3 : index
    %c0_20 = arith.constant 0 : index
    %c0_21 = arith.constant 0 : index
    %21 = vector.load %arg2[%c3, %c0_20, %c0_21] : memref<9x128x128xbf16, #tpu.memory_space<vmem>>, vector<1x128x128xbf16>
    %22 = vector.shape_cast %21 : vector<1x128x128xbf16> to vector<128x128xbf16>
    %cst_22 = arith.constant dense<0.000000e+00> : vector<656x128xf32>
    %23 = tpu.matmul %20, %22, %cst_22 {dimension_numbers = #tpu.dot_dimension_numbers<[1], [0], [0], [1], [0, 0, 1, 1], [], []>} : vector<656x128xbf16>, vector<128x128xbf16>, vector<656x128xf32> -> vector<656x128xf32>
    %24 = arith.addf %18, %23 : vector<656x128xf32>
    %c0_23 = arith.constant 0 : index
    %c19 = arith.constant 19 : index
    %c0_24 = arith.constant 0 : index
    %25 = vector.load %arg1[%c0_23, %c19, %c0_24] : memref<1x694x128xbf16, #tpu.memory_space<vmem>>, vector<1x656x128xbf16>
    %26 = vector.shape_cast %25 : vector<1x656x128xbf16> to vector<656x128xbf16>
    %c4 = arith.constant 4 : index
    %c0_25 = arith.constant 0 : index
    %c0_26 = arith.constant 0 : index
    %27 = vector.load %arg2[%c4, %c0_25, %c0_26] : memref<9x128x128xbf16, #tpu.memory_space<vmem>>, vector<1x128x128xbf16>
    %28 = vector.shape_cast %27 : vector<1x128x128xbf16> to vector<128x128xbf16>
    %cst_27 = arith.constant dense<0.000000e+00> : vector<656x128xf32>
    %29 = tpu.matmul %26, %28, %cst_27 {dimension_numbers = #tpu.dot_dimension_numbers<[1], [0], [0], [1], [0, 0, 1, 1], [], []>} : vector<656x128xbf16>, vector<128x128xbf16>, vector<656x128xf32> -> vector<656x128xf32>
    %30 = arith.addf %24, %29 : vector<656x128xf32>
    %c0_28 = arith.constant 0 : index
    %c20 = arith.constant 20 : index
    %c0_29 = arith.constant 0 : index
    %31 = vector.load %arg1[%c0_28, %c20, %c0_29] : memref<1x694x128xbf16, #tpu.memory_space<vmem>>, vector<1x656x128xbf16>
    %32 = vector.shape_cast %31 : vector<1x656x128xbf16> to vector<656x128xbf16>
    %c5 = arith.constant 5 : index
    %c0_30 = arith.constant 0 : index
    %c0_31 = arith.constant 0 : index
    %33 = vector.load %arg2[%c5, %c0_30, %c0_31] : memref<9x128x128xbf16, #tpu.memory_space<vmem>>, vector<1x128x128xbf16>
    %34 = vector.shape_cast %33 : vector<1x128x128xbf16> to vector<128x128xbf16>
    %cst_32 = arith.constant dense<0.000000e+00> : vector<656x128xf32>
    %35 = tpu.matmul %32, %34, %cst_32 {dimension_numbers = #tpu.dot_dimension_numbers<[1], [0], [0], [1], [0, 0, 1, 1], [], []>} : vector<656x128xbf16>, vector<128x128xbf16>, vector<656x128xf32> -> vector<656x128xf32>
    %36 = arith.addf %30, %35 : vector<656x128xf32>
    %c0_33 = arith.constant 0 : index
    %c36 = arith.constant 36 : index
    %c0_34 = arith.constant 0 : index
    %37 = vector.load %arg1[%c0_33, %c36, %c0_34] : memref<1x694x128xbf16, #tpu.memory_space<vmem>>, vector<1x656x128xbf16>
    %38 = vector.shape_cast %37 : vector<1x656x128xbf16> to vector<656x128xbf16>
    %c6 = arith.constant 6 : index
    %c0_35 = arith.constant 0 : index
    %c0_36 = arith.constant 0 : index
    %39 = vector.load %arg2[%c6, %c0_35, %c0_36] : memref<9x128x128xbf16, #tpu.memory_space<vmem>>, vector<1x128x128xbf16>
    %40 = vector.shape_cast %39 : vector<1x128x128xbf16> to vector<128x128xbf16>
    %cst_37 = arith.constant dense<0.000000e+00> : vector<656x128xf32>
    %41 = tpu.matmul %38, %40, %cst_37 {dimension_numbers = #tpu.dot_dimension_numbers<[1], [0], [0], [1], [0, 0, 1, 1], [], []>} : vector<656x128xbf16>, vector<128x128xbf16>, vector<656x128xf32> -> vector<656x128xf32>
    %42 = arith.addf %36, %41 : vector<656x128xf32>
    %c0_38 = arith.constant 0 : index
    %c37 = arith.constant 37 : index
    %c0_39 = arith.constant 0 : index
    %43 = vector.load %arg1[%c0_38, %c37, %c0_39] : memref<1x694x128xbf16, #tpu.memory_space<vmem>>, vector<1x656x128xbf16>
    %44 = vector.shape_cast %43 : vector<1x656x128xbf16> to vector<656x128xbf16>
    %c7 = arith.constant 7 : index
    %c0_40 = arith.constant 0 : index
    %c0_41 = arith.constant 0 : index
    %45 = vector.load %arg2[%c7, %c0_40, %c0_41] : memref<9x128x128xbf16, #tpu.memory_space<vmem>>, vector<1x128x128xbf16>
    %46 = vector.shape_cast %45 : vector<1x128x128xbf16> to vector<128x128xbf16>
    %cst_42 = arith.constant dense<0.000000e+00> : vector<656x128xf32>
    %47 = tpu.matmul %44, %46, %cst_42 {dimension_numbers = #tpu.dot_dimension_numbers<[1], [0], [0], [1], [0, 0, 1, 1], [], []>} : vector<656x128xbf16>, vector<128x128xbf16>, vector<656x128xf32> -> vector<656x128xf32>
    %48 = arith.addf %42, %47 : vector<656x128xf32>
    %c0_43 = arith.constant 0 : index
    %c38 = arith.constant 38 : index
    %c0_44 = arith.constant 0 : index
    %49 = vector.load %arg1[%c0_43, %c38, %c0_44] : memref<1x694x128xbf16, #tpu.memory_space<vmem>>, vector<1x656x128xbf16>
    %50 = vector.shape_cast %49 : vector<1x656x128xbf16> to vector<656x128xbf16>
    %c8 = arith.constant 8 : index
    %c0_45 = arith.constant 0 : index
    %c0_46 = arith.constant 0 : index
    %51 = vector.load %arg2[%c8, %c0_45, %c0_46] : memref<9x128x128xbf16, #tpu.memory_space<vmem>>, vector<1x128x128xbf16>
    %52 = vector.shape_cast %51 : vector<1x128x128xbf16> to vector<128x128xbf16>
    %cst_47 = arith.constant dense<0.000000e+00> : vector<656x128xf32>
    %53 = tpu.matmul %50, %52, %cst_47 {dimension_numbers = #tpu.dot_dimension_numbers<[1], [0], [0], [1], [0, 0, 1, 1], [], []>} : vector<656x128xbf16>, vector<128x128xbf16>, vector<656x128xf32> -> vector<656x128xf32>
    %54 = arith.addf %48, %53 : vector<656x128xf32>
    %c0_48 = arith.constant 0 : index
    %c0_49 = arith.constant 0 : index
    %55 = vector.load %arg3[%c0_48, %c0_49] : memref<1x128xf32, #tpu.memory_space<vmem>>, vector<1x128xf32>
    %56 = vector.broadcast %55 : vector<1x128xf32> to vector<656x128xf32>
    %57 = arith.addf %54, %56 : vector<656x128xf32>
    %cst_50 = arith.constant 0.000000e+00 : f32
    %58 = vector.broadcast %cst_50 : f32 to vector<656x128xf32>
    %59 = arith.maximumf %57, %58 : vector<656x128xf32>
    %c0_51 = arith.constant 0 : index
    %c0_52 = arith.constant 0 : index
    %60 = vector.load %arg4[%c0_51, %c0_52] : memref<656x128xf32, #tpu.memory_space<vmem>>, vector<656x128xf32>
    tpu.vector_store %arg4[%c0_51, %c0_52], %59 {strides = array<i32>} : memref<656x128xf32, #tpu.memory_space<vmem>>, vector<656x128xf32>,
    return
  }
  func.func @transform_0(%arg0: i32) -> (i32, i32, i32) {
    %c0_i32 = arith.constant 0 : i32
    %c0_i32_0 = arith.constant 0 : i32
    %c0_i32_1 = arith.constant 0 : i32
    %c0_i32_2 = arith.constant 0 : i32
    return %c0_i32, %c0_i32_0, %c0_i32_1 : i32, i32, i32
  }
  func.func @transform_1(%arg0: i32) -> (i32, i32, i32) {
    %c0_i32 = arith.constant 0 : i32
    %c0_i32_0 = arith.constant 0 : i32
    %c0_i32_1 = arith.constant 0 : i32
    %c0_i32_2 = arith.constant 0 : i32
    return %c0_i32, %c0_i32_0, %c0_i32_1 : i32, i32, i32
  }
  func.func @transform_2(%arg0: i32) -> (i32, i32) {
    %c0_i32 = arith.constant 0 : i32
    %c0_i32_0 = arith.constant 0 : i32
    %c0_i32_1 = arith.constant 0 : i32
    return %c0_i32, %c0_i32_0 : i32, i32
  }
  func.func @transform_3(%arg0: i32) -> (i32, i32) {
    %c0_i32 = arith.constant 0 : i32
    %c0_i32_0 = arith.constant 0 : i32
    return %arg0, %c0_i32 : i32, i32
  }
}

module attributes {stable_mosaic.version = 11 : i64} {
  func.func @_taps_matmul_kernel(%arg0: i32, %arg1: memref<4x186x128xbf16, #tpu.memory_space<vmem>>, %arg2: memref<9x128x128xbf16, #tpu.memory_space<vmem>>, %arg3: memref<1x128xf32, #tpu.memory_space<vmem>>, %arg4: memref<176x128xf32, #tpu.memory_space<vmem>>) attributes {dimension_semantics = [#tpu.dimension_semantics<parallel>], iteration_bounds = array<i64: 1>, scalar_prefetch = 0 : i64, scratch_operands = 0 : i64, tpu.core_type = #tpu.core_type<tc>, window_params = [{pipeline_mode = #tpu.pipeline_mode<synchronous>, transform_indices = @transform_0, window_bounds = array<i64: 4, 186, 128>}, {pipeline_mode = #tpu.pipeline_mode<synchronous>, transform_indices = @transform_1, window_bounds = array<i64: 9, 128, 128>}, {pipeline_mode = #tpu.pipeline_mode<synchronous>, transform_indices = @transform_2, window_bounds = array<i64: 1, 128>}, {transform_indices = @transform_3, window_bounds = array<i64: 176, 128>}]} {
    %cst = arith.constant 0.000000e+00 : f32
    %0 = vector.broadcast %cst : f32 to vector<176x128xf32>
    %c0 = arith.constant 0 : index
    %c0_0 = arith.constant 0 : index
    %c0_1 = arith.constant 0 : index
    %1 = vector.load %arg1[%c0, %c0_0, %c0_1] : memref<4x186x128xbf16, #tpu.memory_space<vmem>>, vector<1x176x128xbf16>
    %2 = vector.shape_cast %1 : vector<1x176x128xbf16> to vector<176x128xbf16>
    %c0_2 = arith.constant 0 : index
    %c0_3 = arith.constant 0 : index
    %c0_4 = arith.constant 0 : index
    %3 = vector.load %arg2[%c0_2, %c0_3, %c0_4] : memref<9x128x128xbf16, #tpu.memory_space<vmem>>, vector<1x128x128xbf16>
    %4 = vector.shape_cast %3 : vector<1x128x128xbf16> to vector<128x128xbf16>
    %cst_5 = arith.constant dense<0.000000e+00> : vector<176x128xf32>
    %5 = tpu.matmul %2, %4, %cst_5 {dimension_numbers = #tpu.dot_dimension_numbers<[1], [0], [0], [1], [0, 0, 1, 1], [], []>} : vector<176x128xbf16>, vector<128x128xbf16>, vector<176x128xf32> -> vector<176x128xf32>
    %6 = arith.addf %0, %5 : vector<176x128xf32>
    %c1 = arith.constant 1 : index
    %c0_6 = arith.constant 0 : index
    %c0_7 = arith.constant 0 : index
    %7 = vector.load %arg1[%c1, %c0_6, %c0_7] : memref<4x186x128xbf16, #tpu.memory_space<vmem>>, vector<1x176x128xbf16>
    %8 = vector.shape_cast %7 : vector<1x176x128xbf16> to vector<176x128xbf16>
    %c1_8 = arith.constant 1 : index
    %c0_9 = arith.constant 0 : index
    %c0_10 = arith.constant 0 : index
    %9 = vector.load %arg2[%c1_8, %c0_9, %c0_10] : memref<9x128x128xbf16, #tpu.memory_space<vmem>>, vector<1x128x128xbf16>
    %10 = vector.shape_cast %9 : vector<1x128x128xbf16> to vector<128x128xbf16>
    %cst_11 = arith.constant dense<0.000000e+00> : vector<176x128xf32>
    %11 = tpu.matmul %8, %10, %cst_11 {dimension_numbers = #tpu.dot_dimension_numbers<[1], [0], [0], [1], [0, 0, 1, 1], [], []>} : vector<176x128xbf16>, vector<128x128xbf16>, vector<176x128xf32> -> vector<176x128xf32>
    %12 = arith.addf %6, %11 : vector<176x128xf32>
    %c0_12 = arith.constant 0 : index
    %c1_13 = arith.constant 1 : index
    %c0_14 = arith.constant 0 : index
    %13 = vector.load %arg1[%c0_12, %c1_13, %c0_14] : memref<4x186x128xbf16, #tpu.memory_space<vmem>>, vector<1x176x128xbf16>
    %14 = vector.shape_cast %13 : vector<1x176x128xbf16> to vector<176x128xbf16>
    %c2 = arith.constant 2 : index
    %c0_15 = arith.constant 0 : index
    %c0_16 = arith.constant 0 : index
    %15 = vector.load %arg2[%c2, %c0_15, %c0_16] : memref<9x128x128xbf16, #tpu.memory_space<vmem>>, vector<1x128x128xbf16>
    %16 = vector.shape_cast %15 : vector<1x128x128xbf16> to vector<128x128xbf16>
    %cst_17 = arith.constant dense<0.000000e+00> : vector<176x128xf32>
    %17 = tpu.matmul %14, %16, %cst_17 {dimension_numbers = #tpu.dot_dimension_numbers<[1], [0], [0], [1], [0, 0, 1, 1], [], []>} : vector<176x128xbf16>, vector<128x128xbf16>, vector<176x128xf32> -> vector<176x128xf32>
    %18 = arith.addf %12, %17 : vector<176x128xf32>
    %c2_18 = arith.constant 2 : index
    %c0_19 = arith.constant 0 : index
    %c0_20 = arith.constant 0 : index
    %19 = vector.load %arg1[%c2_18, %c0_19, %c0_20] : memref<4x186x128xbf16, #tpu.memory_space<vmem>>, vector<1x176x128xbf16>
    %20 = vector.shape_cast %19 : vector<1x176x128xbf16> to vector<176x128xbf16>
    %c3 = arith.constant 3 : index
    %c0_21 = arith.constant 0 : index
    %c0_22 = arith.constant 0 : index
    %21 = vector.load %arg2[%c3, %c0_21, %c0_22] : memref<9x128x128xbf16, #tpu.memory_space<vmem>>, vector<1x128x128xbf16>
    %22 = vector.shape_cast %21 : vector<1x128x128xbf16> to vector<128x128xbf16>
    %cst_23 = arith.constant dense<0.000000e+00> : vector<176x128xf32>
    %23 = tpu.matmul %20, %22, %cst_23 {dimension_numbers = #tpu.dot_dimension_numbers<[1], [0], [0], [1], [0, 0, 1, 1], [], []>} : vector<176x128xbf16>, vector<128x128xbf16>, vector<176x128xf32> -> vector<176x128xf32>
    %24 = arith.addf %18, %23 : vector<176x128xf32>
    %c3_24 = arith.constant 3 : index
    %c0_25 = arith.constant 0 : index
    %c0_26 = arith.constant 0 : index
    %25 = vector.load %arg1[%c3_24, %c0_25, %c0_26] : memref<4x186x128xbf16, #tpu.memory_space<vmem>>, vector<1x176x128xbf16>
    %26 = vector.shape_cast %25 : vector<1x176x128xbf16> to vector<176x128xbf16>
    %c4 = arith.constant 4 : index
    %c0_27 = arith.constant 0 : index
    %c0_28 = arith.constant 0 : index
    %27 = vector.load %arg2[%c4, %c0_27, %c0_28] : memref<9x128x128xbf16, #tpu.memory_space<vmem>>, vector<1x128x128xbf16>
    %28 = vector.shape_cast %27 : vector<1x128x128xbf16> to vector<128x128xbf16>
    %cst_29 = arith.constant dense<0.000000e+00> : vector<176x128xf32>
    %29 = tpu.matmul %26, %28, %cst_29 {dimension_numbers = #tpu.dot_dimension_numbers<[1], [0], [0], [1], [0, 0, 1, 1], [], []>} : vector<176x128xbf16>, vector<128x128xbf16>, vector<176x128xf32> -> vector<176x128xf32>
    %30 = arith.addf %24, %29 : vector<176x128xf32>
    %c2_30 = arith.constant 2 : index
    %c1_31 = arith.constant 1 : index
    %c0_32 = arith.constant 0 : index
    %31 = vector.load %arg1[%c2_30, %c1_31, %c0_32] : memref<4x186x128xbf16, #tpu.memory_space<vmem>>, vector<1x176x128xbf16>
    %32 = vector.shape_cast %31 : vector<1x176x128xbf16> to vector<176x128xbf16>
    %c5 = arith.constant 5 : index
    %c0_33 = arith.constant 0 : index
    %c0_34 = arith.constant 0 : index
    %33 = vector.load %arg2[%c5, %c0_33, %c0_34] : memref<9x128x128xbf16, #tpu.memory_space<vmem>>, vector<1x128x128xbf16>
    %34 = vector.shape_cast %33 : vector<1x128x128xbf16> to vector<128x128xbf16>
    %cst_35 = arith.constant dense<0.000000e+00> : vector<176x128xf32>
    %35 = tpu.matmul %32, %34, %cst_35 {dimension_numbers = #tpu.dot_dimension_numbers<[1], [0], [0], [1], [0, 0, 1, 1], [], []>} : vector<176x128xbf16>, vector<128x128xbf16>, vector<176x128xf32> -> vector<176x128xf32>
    %36 = arith.addf %30, %35 : vector<176x128xf32>
    %c0_36 = arith.constant 0 : index
    %c9 = arith.constant 9 : index
    %c0_37 = arith.constant 0 : index
    %37 = vector.load %arg1[%c0_36, %c9, %c0_37] : memref<4x186x128xbf16, #tpu.memory_space<vmem>>, vector<1x176x128xbf16>
    %38 = vector.shape_cast %37 : vector<1x176x128xbf16> to vector<176x128xbf16>
    %c6 = arith.constant 6 : index
    %c0_38 = arith.constant 0 : index
    %c0_39 = arith.constant 0 : index
    %39 = vector.load %arg2[%c6, %c0_38, %c0_39] : memref<9x128x128xbf16, #tpu.memory_space<vmem>>, vector<1x128x128xbf16>
    %40 = vector.shape_cast %39 : vector<1x128x128xbf16> to vector<128x128xbf16>
    %cst_40 = arith.constant dense<0.000000e+00> : vector<176x128xf32>
    %41 = tpu.matmul %38, %40, %cst_40 {dimension_numbers = #tpu.dot_dimension_numbers<[1], [0], [0], [1], [0, 0, 1, 1], [], []>} : vector<176x128xbf16>, vector<128x128xbf16>, vector<176x128xf32> -> vector<176x128xf32>
    %42 = arith.addf %36, %41 : vector<176x128xf32>
    %c1_41 = arith.constant 1 : index
    %c9_42 = arith.constant 9 : index
    %c0_43 = arith.constant 0 : index
    %43 = vector.load %arg1[%c1_41, %c9_42, %c0_43] : memref<4x186x128xbf16, #tpu.memory_space<vmem>>, vector<1x176x128xbf16>
    %44 = vector.shape_cast %43 : vector<1x176x128xbf16> to vector<176x128xbf16>
    %c7 = arith.constant 7 : index
    %c0_44 = arith.constant 0 : index
    %c0_45 = arith.constant 0 : index
    %45 = vector.load %arg2[%c7, %c0_44, %c0_45] : memref<9x128x128xbf16, #tpu.memory_space<vmem>>, vector<1x128x128xbf16>
    %46 = vector.shape_cast %45 : vector<1x128x128xbf16> to vector<128x128xbf16>
    %cst_46 = arith.constant dense<0.000000e+00> : vector<176x128xf32>
    %47 = tpu.matmul %44, %46, %cst_46 {dimension_numbers = #tpu.dot_dimension_numbers<[1], [0], [0], [1], [0, 0, 1, 1], [], []>} : vector<176x128xbf16>, vector<128x128xbf16>, vector<176x128xf32> -> vector<176x128xf32>
    %48 = arith.addf %42, %47 : vector<176x128xf32>
    %c0_47 = arith.constant 0 : index
    %c10 = arith.constant 10 : index
    %c0_48 = arith.constant 0 : index
    %49 = vector.load %arg1[%c0_47, %c10, %c0_48] : memref<4x186x128xbf16, #tpu.memory_space<vmem>>, vector<1x176x128xbf16>
    %50 = vector.shape_cast %49 : vector<1x176x128xbf16> to vector<176x128xbf16>
    %c8 = arith.constant 8 : index
    %c0_49 = arith.constant 0 : index
    %c0_50 = arith.constant 0 : index
    %51 = vector.load %arg2[%c8, %c0_49, %c0_50] : memref<9x128x128xbf16, #tpu.memory_space<vmem>>, vector<1x128x128xbf16>
    %52 = vector.shape_cast %51 : vector<1x128x128xbf16> to vector<128x128xbf16>
    %cst_51 = arith.constant dense<0.000000e+00> : vector<176x128xf32>
    %53 = tpu.matmul %50, %52, %cst_51 {dimension_numbers = #tpu.dot_dimension_numbers<[1], [0], [0], [1], [0, 0, 1, 1], [], []>} : vector<176x128xbf16>, vector<128x128xbf16>, vector<176x128xf32> -> vector<176x128xf32>
    %54 = arith.addf %48, %53 : vector<176x128xf32>
    %c0_52 = arith.constant 0 : index
    %c0_53 = arith.constant 0 : index
    %55 = vector.load %arg3[%c0_52, %c0_53] : memref<1x128xf32, #tpu.memory_space<vmem>>, vector<1x128xf32>
    %56 = vector.broadcast %55 : vector<1x128xf32> to vector<176x128xf32>
    %57 = arith.addf %54, %56 : vector<176x128xf32>
    %cst_54 = arith.constant 0.000000e+00 : f32
    %58 = vector.broadcast %cst_54 : f32 to vector<176x128xf32>
    %59 = arith.maximumf %57, %58 : vector<176x128xf32>
    %c0_55 = arith.constant 0 : index
    %c0_56 = arith.constant 0 : index
    %60 = vector.load %arg4[%c0_55, %c0_56] : memref<176x128xf32, #tpu.memory_space<vmem>>, vector<176x128xf32>
    tpu.vector_store %arg4[%c0_55, %c0_56], %59 {strides = array<i32>} : memref<176x128xf32, #tpu.memory_space<vmem>>, vector<176x128xf32>,
    return
  }
  func.func @transform_0(%arg0: i32) -> (i32, i32, i32) {
    %c0_i32 = arith.constant 0 : i32
    %c0_i32_0 = arith.constant 0 : i32
    %c0_i32_1 = arith.constant 0 : i32
    %c0_i32_2 = arith.constant 0 : i32
    return %c0_i32, %c0_i32_0, %c0_i32_1 : i32, i32, i32
  }
  func.func @transform_1(%arg0: i32) -> (i32, i32, i32) {
    %c0_i32 = arith.constant 0 : i32
    %c0_i32_0 = arith.constant 0 : i32
    %c0_i32_1 = arith.constant 0 : i32
    %c0_i32_2 = arith.constant 0 : i32
    return %c0_i32, %c0_i32_0, %c0_i32_1 : i32, i32, i32
  }
  func.func @transform_2(%arg0: i32) -> (i32, i32) {
    %c0_i32 = arith.constant 0 : i32
    %c0_i32_0 = arith.constant 0 : i32
    %c0_i32_1 = arith.constant 0 : i32
    return %c0_i32, %c0_i32_0 : i32, i32
  }
  func.func @transform_3(%arg0: i32) -> (i32, i32) {
    %c0_i32 = arith.constant 0 : i32
    %c0_i32_0 = arith.constant 0 : i32
    return %arg0, %c0_i32 : i32, i32
  }
}

module attributes {stable_mosaic.version = 11 : i64} {
  func.func @_taps_matmul_kernel(%arg0: i32, %arg1: memref<4x70x128xbf16, #tpu.memory_space<vmem>>, %arg2: memref<9x128x128xbf16, #tpu.memory_space<vmem>>, %arg3: memref<1x128xf32, #tpu.memory_space<vmem>>, %arg4: memref<64x128xf32, #tpu.memory_space<vmem>>) attributes {dimension_semantics = [#tpu.dimension_semantics<parallel>], iteration_bounds = array<i64: 1>, scalar_prefetch = 0 : i64, scratch_operands = 0 : i64, tpu.core_type = #tpu.core_type<tc>, window_params = [{pipeline_mode = #tpu.pipeline_mode<synchronous>, transform_indices = @transform_0, window_bounds = array<i64: 4, 70, 128>}, {pipeline_mode = #tpu.pipeline_mode<synchronous>, transform_indices = @transform_1, window_bounds = array<i64: 9, 128, 128>}, {pipeline_mode = #tpu.pipeline_mode<synchronous>, transform_indices = @transform_2, window_bounds = array<i64: 1, 128>}, {transform_indices = @transform_3, window_bounds = array<i64: 64, 128>}]} {
    %cst = arith.constant 0.000000e+00 : f32
    %0 = vector.broadcast %cst : f32 to vector<64x128xf32>
    %c0 = arith.constant 0 : index
    %c0_0 = arith.constant 0 : index
    %c0_1 = arith.constant 0 : index
    %1 = vector.load %arg1[%c0, %c0_0, %c0_1] : memref<4x70x128xbf16, #tpu.memory_space<vmem>>, vector<1x64x128xbf16>
    %2 = vector.shape_cast %1 : vector<1x64x128xbf16> to vector<64x128xbf16>
    %c0_2 = arith.constant 0 : index
    %c0_3 = arith.constant 0 : index
    %c0_4 = arith.constant 0 : index
    %3 = vector.load %arg2[%c0_2, %c0_3, %c0_4] : memref<9x128x128xbf16, #tpu.memory_space<vmem>>, vector<1x128x128xbf16>
    %4 = vector.shape_cast %3 : vector<1x128x128xbf16> to vector<128x128xbf16>
    %cst_5 = arith.constant dense<0.000000e+00> : vector<64x128xf32>
    %5 = tpu.matmul %2, %4, %cst_5 {dimension_numbers = #tpu.dot_dimension_numbers<[1], [0], [0], [1], [0, 0, 1, 1], [], []>} : vector<64x128xbf16>, vector<128x128xbf16>, vector<64x128xf32> -> vector<64x128xf32>
    %6 = arith.addf %0, %5 : vector<64x128xf32>
    %c1 = arith.constant 1 : index
    %c0_6 = arith.constant 0 : index
    %c0_7 = arith.constant 0 : index
    %7 = vector.load %arg1[%c1, %c0_6, %c0_7] : memref<4x70x128xbf16, #tpu.memory_space<vmem>>, vector<1x64x128xbf16>
    %8 = vector.shape_cast %7 : vector<1x64x128xbf16> to vector<64x128xbf16>
    %c1_8 = arith.constant 1 : index
    %c0_9 = arith.constant 0 : index
    %c0_10 = arith.constant 0 : index
    %9 = vector.load %arg2[%c1_8, %c0_9, %c0_10] : memref<9x128x128xbf16, #tpu.memory_space<vmem>>, vector<1x128x128xbf16>
    %10 = vector.shape_cast %9 : vector<1x128x128xbf16> to vector<128x128xbf16>
    %cst_11 = arith.constant dense<0.000000e+00> : vector<64x128xf32>
    %11 = tpu.matmul %8, %10, %cst_11 {dimension_numbers = #tpu.dot_dimension_numbers<[1], [0], [0], [1], [0, 0, 1, 1], [], []>} : vector<64x128xbf16>, vector<128x128xbf16>, vector<64x128xf32> -> vector<64x128xf32>
    %12 = arith.addf %6, %11 : vector<64x128xf32>
    %c0_12 = arith.constant 0 : index
    %c1_13 = arith.constant 1 : index
    %c0_14 = arith.constant 0 : index
    %13 = vector.load %arg1[%c0_12, %c1_13, %c0_14] : memref<4x70x128xbf16, #tpu.memory_space<vmem>>, vector<1x64x128xbf16>
    %14 = vector.shape_cast %13 : vector<1x64x128xbf16> to vector<64x128xbf16>
    %c2 = arith.constant 2 : index
    %c0_15 = arith.constant 0 : index
    %c0_16 = arith.constant 0 : index
    %15 = vector.load %arg2[%c2, %c0_15, %c0_16] : memref<9x128x128xbf16, #tpu.memory_space<vmem>>, vector<1x128x128xbf16>
    %16 = vector.shape_cast %15 : vector<1x128x128xbf16> to vector<128x128xbf16>
    %cst_17 = arith.constant dense<0.000000e+00> : vector<64x128xf32>
    %17 = tpu.matmul %14, %16, %cst_17 {dimension_numbers = #tpu.dot_dimension_numbers<[1], [0], [0], [1], [0, 0, 1, 1], [], []>} : vector<64x128xbf16>, vector<128x128xbf16>, vector<64x128xf32> -> vector<64x128xf32>
    %18 = arith.addf %12, %17 : vector<64x128xf32>
    %c2_18 = arith.constant 2 : index
    %c0_19 = arith.constant 0 : index
    %c0_20 = arith.constant 0 : index
    %19 = vector.load %arg1[%c2_18, %c0_19, %c0_20] : memref<4x70x128xbf16, #tpu.memory_space<vmem>>, vector<1x64x128xbf16>
    %20 = vector.shape_cast %19 : vector<1x64x128xbf16> to vector<64x128xbf16>
    %c3 = arith.constant 3 : index
    %c0_21 = arith.constant 0 : index
    %c0_22 = arith.constant 0 : index
    %21 = vector.load %arg2[%c3, %c0_21, %c0_22] : memref<9x128x128xbf16, #tpu.memory_space<vmem>>, vector<1x128x128xbf16>
    %22 = vector.shape_cast %21 : vector<1x128x128xbf16> to vector<128x128xbf16>
    %cst_23 = arith.constant dense<0.000000e+00> : vector<64x128xf32>
    %23 = tpu.matmul %20, %22, %cst_23 {dimension_numbers = #tpu.dot_dimension_numbers<[1], [0], [0], [1], [0, 0, 1, 1], [], []>} : vector<64x128xbf16>, vector<128x128xbf16>, vector<64x128xf32> -> vector<64x128xf32>
    %24 = arith.addf %18, %23 : vector<64x128xf32>
    %c3_24 = arith.constant 3 : index
    %c0_25 = arith.constant 0 : index
    %c0_26 = arith.constant 0 : index
    %25 = vector.load %arg1[%c3_24, %c0_25, %c0_26] : memref<4x70x128xbf16, #tpu.memory_space<vmem>>, vector<1x64x128xbf16>
    %26 = vector.shape_cast %25 : vector<1x64x128xbf16> to vector<64x128xbf16>
    %c4 = arith.constant 4 : index
    %c0_27 = arith.constant 0 : index
    %c0_28 = arith.constant 0 : index
    %27 = vector.load %arg2[%c4, %c0_27, %c0_28] : memref<9x128x128xbf16, #tpu.memory_space<vmem>>, vector<1x128x128xbf16>
    %28 = vector.shape_cast %27 : vector<1x128x128xbf16> to vector<128x128xbf16>
    %cst_29 = arith.constant dense<0.000000e+00> : vector<64x128xf32>
    %29 = tpu.matmul %26, %28, %cst_29 {dimension_numbers = #tpu.dot_dimension_numbers<[1], [0], [0], [1], [0, 0, 1, 1], [], []>} : vector<64x128xbf16>, vector<128x128xbf16>, vector<64x128xf32> -> vector<64x128xf32>
    %30 = arith.addf %24, %29 : vector<64x128xf32>
    %c2_30 = arith.constant 2 : index
    %c1_31 = arith.constant 1 : index
    %c0_32 = arith.constant 0 : index
    %31 = vector.load %arg1[%c2_30, %c1_31, %c0_32] : memref<4x70x128xbf16, #tpu.memory_space<vmem>>, vector<1x64x128xbf16>
    %32 = vector.shape_cast %31 : vector<1x64x128xbf16> to vector<64x128xbf16>
    %c5 = arith.constant 5 : index
    %c0_33 = arith.constant 0 : index
    %c0_34 = arith.constant 0 : index
    %33 = vector.load %arg2[%c5, %c0_33, %c0_34] : memref<9x128x128xbf16, #tpu.memory_space<vmem>>, vector<1x128x128xbf16>
    %34 = vector.shape_cast %33 : vector<1x128x128xbf16> to vector<128x128xbf16>
    %cst_35 = arith.constant dense<0.000000e+00> : vector<64x128xf32>
    %35 = tpu.matmul %32, %34, %cst_35 {dimension_numbers = #tpu.dot_dimension_numbers<[1], [0], [0], [1], [0, 0, 1, 1], [], []>} : vector<64x128xbf16>, vector<128x128xbf16>, vector<64x128xf32> -> vector<64x128xf32>
    %36 = arith.addf %30, %35 : vector<64x128xf32>
    %c0_36 = arith.constant 0 : index
    %c5_37 = arith.constant 5 : index
    %c0_38 = arith.constant 0 : index
    %37 = vector.load %arg1[%c0_36, %c5_37, %c0_38] : memref<4x70x128xbf16, #tpu.memory_space<vmem>>, vector<1x64x128xbf16>
    %38 = vector.shape_cast %37 : vector<1x64x128xbf16> to vector<64x128xbf16>
    %c6 = arith.constant 6 : index
    %c0_39 = arith.constant 0 : index
    %c0_40 = arith.constant 0 : index
    %39 = vector.load %arg2[%c6, %c0_39, %c0_40] : memref<9x128x128xbf16, #tpu.memory_space<vmem>>, vector<1x128x128xbf16>
    %40 = vector.shape_cast %39 : vector<1x128x128xbf16> to vector<128x128xbf16>
    %cst_41 = arith.constant dense<0.000000e+00> : vector<64x128xf32>
    %41 = tpu.matmul %38, %40, %cst_41 {dimension_numbers = #tpu.dot_dimension_numbers<[1], [0], [0], [1], [0, 0, 1, 1], [], []>} : vector<64x128xbf16>, vector<128x128xbf16>, vector<64x128xf32> -> vector<64x128xf32>
    %42 = arith.addf %36, %41 : vector<64x128xf32>
    %c1_42 = arith.constant 1 : index
    %c5_43 = arith.constant 5 : index
    %c0_44 = arith.constant 0 : index
    %43 = vector.load %arg1[%c1_42, %c5_43, %c0_44] : memref<4x70x128xbf16, #tpu.memory_space<vmem>>, vector<1x64x128xbf16>
    %44 = vector.shape_cast %43 : vector<1x64x128xbf16> to vector<64x128xbf16>
    %c7 = arith.constant 7 : index
    %c0_45 = arith.constant 0 : index
    %c0_46 = arith.constant 0 : index
    %45 = vector.load %arg2[%c7, %c0_45, %c0_46] : memref<9x128x128xbf16, #tpu.memory_space<vmem>>, vector<1x128x128xbf16>
    %46 = vector.shape_cast %45 : vector<1x128x128xbf16> to vector<128x128xbf16>
    %cst_47 = arith.constant dense<0.000000e+00> : vector<64x128xf32>
    %47 = tpu.matmul %44, %46, %cst_47 {dimension_numbers = #tpu.dot_dimension_numbers<[1], [0], [0], [1], [0, 0, 1, 1], [], []>} : vector<64x128xbf16>, vector<128x128xbf16>, vector<64x128xf32> -> vector<64x128xf32>
    %48 = arith.addf %42, %47 : vector<64x128xf32>
    %c0_48 = arith.constant 0 : index
    %c6_49 = arith.constant 6 : index
    %c0_50 = arith.constant 0 : index
    %49 = vector.load %arg1[%c0_48, %c6_49, %c0_50] : memref<4x70x128xbf16, #tpu.memory_space<vmem>>, vector<1x64x128xbf16>
    %50 = vector.shape_cast %49 : vector<1x64x128xbf16> to vector<64x128xbf16>
    %c8 = arith.constant 8 : index
    %c0_51 = arith.constant 0 : index
    %c0_52 = arith.constant 0 : index
    %51 = vector.load %arg2[%c8, %c0_51, %c0_52] : memref<9x128x128xbf16, #tpu.memory_space<vmem>>, vector<1x128x128xbf16>
    %52 = vector.shape_cast %51 : vector<1x128x128xbf16> to vector<128x128xbf16>
    %cst_53 = arith.constant dense<0.000000e+00> : vector<64x128xf32>
    %53 = tpu.matmul %50, %52, %cst_53 {dimension_numbers = #tpu.dot_dimension_numbers<[1], [0], [0], [1], [0, 0, 1, 1], [], []>} : vector<64x128xbf16>, vector<128x128xbf16>, vector<64x128xf32> -> vector<64x128xf32>
    %54 = arith.addf %48, %53 : vector<64x128xf32>
    %c0_54 = arith.constant 0 : index
    %c0_55 = arith.constant 0 : index
    %55 = vector.load %arg3[%c0_54, %c0_55] : memref<1x128xf32, #tpu.memory_space<vmem>>, vector<1x128xf32>
    %56 = vector.broadcast %55 : vector<1x128xf32> to vector<64x128xf32>
    %57 = arith.addf %54, %56 : vector<64x128xf32>
    %cst_56 = arith.constant 0.000000e+00 : f32
    %58 = vector.broadcast %cst_56 : f32 to vector<64x128xf32>
    %59 = arith.maximumf %57, %58 : vector<64x128xf32>
    %c0_57 = arith.constant 0 : index
    %c0_58 = arith.constant 0 : index
    %60 = vector.load %arg4[%c0_57, %c0_58] : memref<64x128xf32, #tpu.memory_space<vmem>>, vector<64x128xf32>
    tpu.vector_store %arg4[%c0_57, %c0_58], %59 {strides = array<i32>} : memref<64x128xf32, #tpu.memory_space<vmem>>, vector<64x128xf32>,
    return
  }
  func.func @transform_0(%arg0: i32) -> (i32, i32, i32) {
    %c0_i32 = arith.constant 0 : i32
    %c0_i32_0 = arith.constant 0 : i32
    %c0_i32_1 = arith.constant 0 : i32
    %c0_i32_2 = arith.constant 0 : i32
    return %c0_i32, %c0_i32_0, %c0_i32_1 : i32, i32, i32
  }
  func.func @transform_1(%arg0: i32) -> (i32, i32, i32) {
    %c0_i32 = arith.constant 0 : i32
    %c0_i32_0 = arith.constant 0 : i32
    %c0_i32_1 = arith.constant 0 : i32
    %c0_i32_2 = arith.constant 0 : i32
    return %c0_i32, %c0_i32_0, %c0_i32_1 : i32, i32, i32
  }
  func.func @transform_2(%arg0: i32) -> (i32, i32) {
    %c0_i32 = arith.constant 0 : i32
    %c0_i32_0 = arith.constant 0 : i32
    %c0_i32_1 = arith.constant 0 : i32
    return %c0_i32, %c0_i32_0 : i32, i32
  }
  func.func @transform_3(%arg0: i32) -> (i32, i32) {
    %c0_i32 = arith.constant 0 : i32
    %c0_i32_0 = arith.constant 0 : i32
    return %arg0, %c0_i32 : i32, i32
  }
}

</mosaic_0001>

<llo_original>
// kernel: _lambda_.4
$region0: #{_lambda_.4}
  #allocation0 [shape = 'u32[]', space=smem, size = 0x4, offset = 0x4, fixed_abs, tag = 'smem constant byte address 0x4 - core index']
  #allocation1 [shape = 'u32[144,128]{1,0:T(1,128)}', space=vmem, size = 0x12000, scoped, tag = 'internal scratch']
  %s0 = inlined_call_operand.vmem [shape: bf16[1,512,12], index: 0, kind: input, shape index: {}]
  %s1 = inlined_call_operand.vmem [shape: bf16[1,12,128], index: 1, kind: input, shape index: {}]
  %s2 = inlined_call_operand.vmem [shape: f32[1,128], index: 2, kind: input, shape index: {}]
  %s3 = inlined_call_operand.vmem [shape: bf16[512,128], index: 3, kind: output, shape index: {}]
  %s4 = sld [smem:[#allocation0]]
  $region22: #{_lambda_.4} parent=0
    _
  %s6 = ssub.s32 1, %s4
  %s7 = scalar_select 0, %s6, %s4
  // Predicated region
  $region2: #{_lambda_.4} parent=0 // pred_check
    _
  $region3: #{_lambda_.4} parent=0 // pred_check_branch
    %9 = sbr.rel (0) target = $region5
  $region4: #{_lambda_.4} parent=0 // pred_region
    _
  $region5: #{_lambda_.4} parent=0 // pred_fallthru
    _
  // Predicated region
  $region6: #{_lambda_.4} parent=0 // pred_check
    _
  $region7: #{_lambda_.4} parent=0 // pred_check_branch
    %11 = sbr.rel (0) target = $region9
  $region8: #{_lambda_.4} parent=0 // pred_region
    _
  $region9: #{_lambda_.4} parent=0 // pred_fallthru
    _
  // Predicated region
  $region10: #{_lambda_.4} parent=0 // pred_check
    _
  $region11: #{_lambda_.4} parent=0 // pred_check_branch
    %13 = sbr.rel (0) target = $region13
  $region12: #{_lambda_.4} parent=0 // pred_region
    _
  $region13: #{_lambda_.4} parent=0 // pred_fallthru
    _
  %v15 = vld [vmem:[%s0] sm:$0xf]
  %v16 = vld [vmem:[%s0 + $0x4] sm:$0xf]
  %v17 = vld [vmem:[%s0 + $0x8] sm:$0xf]
  %v18 = vld [vmem:[%s0 + $0xc] sm:$0xf]
  %v19 = vld [vmem:[%s0 + $0x10] sm:$0xf]
  %v20 = vld [vmem:[%s0 + $0x14] sm:$0xf]
  %v21 = vld [vmem:[%s0 + $0x18] sm:$0xf]
  %v22 = vld [vmem:[%s0 + $0x1c] sm:$0xf]
  %v23 = vld [vmem:[%s0 + $0x20] sm:$0xf]
  %v24 = vld [vmem:[%s0 + $0x24] sm:$0xf]
  %v25 = vld [vmem:[%s0 + $0x28] sm:$0xf]
  %v26 = vld [vmem:[%s0 + $0x2c] sm:$0xf]
  %v27 = vld [vmem:[%s0 + $0x30] sm:$0xf]
  %v28 = vld [vmem:[%s0 + $0x34] sm:$0xf]
  %v29 = vld [vmem:[%s0 + $0x38] sm:$0xf]
  %v30 = vld [vmem:[%s0 + $0x3c] sm:$0xf]
  %v31 = vld [vmem:[%s0 + $0x40] sm:$0xf]
  %v32 = vld [vmem:[%s0 + $0x44] sm:$0xf]
  %v33 = vld [vmem:[%s0 + $0x48] sm:$0xf]
  %v34 = vld [vmem:[%s0 + $0x4c] sm:$0xf]
  %v35 = vld [vmem:[%s0 + $0x50] sm:$0xf]
  %v36 = vld [vmem:[%s0 + $0x54] sm:$0xf]
  %v37 = vld [vmem:[%s0 + $0x58] sm:$0xf]
  %v38 = vld [vmem:[%s0 + $0x5c] sm:$0xf]
  %v39 = vld [vmem:[%s0 + $0x60] sm:$0xf]
  %v40 = vld [vmem:[%s0 + $0x64] sm:$0xf]
  %v41 = vld [vmem:[%s0 + $0x68] sm:$0xf]
  %v42 = vld [vmem:[%s0 + $0x6c] sm:$0xf]
  %v43 = vld [vmem:[%s0 + $0x70] sm:$0xf]
  %v44 = vld [vmem:[%s0 + $0x74] sm:$0xf]
  %v45 = vld [vmem:[%s0 + $0x78] sm:$0xf]
  %v46 = vld [vmem:[%s0 + $0x7c] sm:$0xf]
  %v47 = vld [vmem:[%s0 + $0x80] sm:$0xf]
  %v48 = vld [vmem:[%s0 + $0x84] sm:$0xf]
  %v49 = vld [vmem:[%s0 + $0x88] sm:$0xf]
  %v50 = vld [vmem:[%s0 + $0x8c] sm:$0xf]
  %v51 = vld [vmem:[%s0 + $0x90] sm:$0xf]
  %v52 = vld [vmem:[%s0 + $0x94] sm:$0xf]
  %v53 = vld [vmem:[%s0 + $0x98] sm:$0xf]
  %v54 = vld [vmem:[%s0 + $0x9c] sm:$0xf]
  %v55 = vld [vmem:[%s0 + $0xa0] sm:$0xf]
  %v56 = vld [vmem:[%s0 + $0xa4] sm:$0xf]
  %v57 = vld [vmem:[%s0 + $0xa8] sm:$0xf]
  %v58 = vld [vmem:[%s0 + $0xac] sm:$0xf]
  %v59 = vld [vmem:[%s0 + $0xb0] sm:$0xf]
  %v60 = vld [vmem:[%s0 + $0xb4] sm:$0xf]
  %v61 = vld [vmem:[%s0 + $0xb8] sm:$0xf]
  %v62 = vld [vmem:[%s0 + $0xbc] sm:$0xf]
  %v63 = vld [vmem:[%s0 + $0xc0] sm:$0xf]
  %v64 = vld [vmem:[%s0 + $0xc4] sm:$0xf]
  %v65 = vld [vmem:[%s0 + $0xc8] sm:$0xf]
  %v66 = vld [vmem:[%s0 + $0xcc] sm:$0xf]
  %v67 = vld [vmem:[%s0 + $0xd0] sm:$0xf]
  %v68 = vld [vmem:[%s0 + $0xd4] sm:$0xf]
  %v69 = vld [vmem:[%s0 + $0xd8] sm:$0xf]
  %v70 = vld [vmem:[%s0 + $0xdc] sm:$0xf]
  %v71 = vld [vmem:[%s0 + $0xe0] sm:$0xf]
  %v72 = vld [vmem:[%s0 + $0xe4] sm:$0xf]
  %v73 = vld [vmem:[%s0 + $0xe8] sm:$0xf]
  %v74 = vld [vmem:[%s0 + $0xec] sm:$0xf]
  %v75 = vld [vmem:[%s0 + $0xf0] sm:$0xf]
  %v76 = vld [vmem:[%s0 + $0xf4] sm:$0xf]
  %v77 = vld [vmem:[%s0 + $0xf8] sm:$0xf]
  %v78 = vld [vmem:[%s0 + $0xfc] sm:$0xf]
  %v79 = vld [vmem:[%s1] sm:$0xf]
  %v80 = vld [vmem:[%s1 + $0x4] sm:$0x3]
  %v81 = vld [vmem:[%s2] sm:$0x1]
  %v83 = vlaneseq
  %v84 = vshrl.u32 %v83, 7
  %v85 = vsub.s32 0, %v84
  %v86 = vrot.slane %v81, %v85
  %v152 = vunpack.c.l.b16 %v15
  %v153 = vunpack.c.l.b16 %v16
  %v154 = vunpack.c.l.b16 %v17
  %v155 = vunpack.c.l.b16 %v18
  %v156 = vunpack.c.l.b16 %v19
  %v157 = vunpack.c.l.b16 %v20
  %v158 = vunpack.c.l.b16 %v21
  %v159 = vunpack.c.l.b16 %v22
  %v160 = vunpack.c.l.b16 %v23
  %v161 = vunpack.c.l.b16 %v24
  %v162 = vunpack.c.l.b16 %v25
  %v163 = vunpack.c.l.b16 %v26
  %v164 = vunpack.c.l.b16 %v27
  %v165 = vunpack.c.l.b16 %v28
  %v166 = vunpack.c.l.b16 %v29
  %v167 = vunpack.c.l.b16 %v30
  %v168 = vunpack.c.l.b16 %v31
  %v169 = vunpack.c.l.b16 %v32
  %v170 = vunpack.c.l.b16 %v33
  %v171 = vunpack.c.l.b16 %v34
  %v172 = vunpack.c.l.b16 %v35
  %v173 = vunpack.c.l.b16 %v36
  %v174 = vunpack.c.l.b16 %v37
  %v175 = vunpack.c.l.b16 %v38
  %v176 = vunpack.c.l.b16 %v39
  %v177 = vunpack.c.l.b16 %v40
  %v178 = vunpack.c.l.b16 %v41
  %v179 = vunpack.c.l.b16 %v42
  %v180 = vunpack.c.l.b16 %v43
  %v181 = vunpack.c.l.b16 %v44
  %v182 = vunpack.c.l.b16 %v45
  %v183 = vunpack.c.l.b16 %v46
  %v184 = vunpack.c.l.b16 %v47
  %v185 = vunpack.c.l.b16 %v48
  %v186 = vunpack.c.l.b16 %v49
  %v187 = vunpack.c.l.b16 %v50
  %v188 = vunpack.c.l.b16 %v51
  %v189 = vunpack.c.l.b16 %v52
  %v190 = vunpack.c.l.b16 %v53
  %v191 = vunpack.c.l.b16 %v54
  %v192 = vunpack.c.l.b16 %v55
  %v193 = vunpack.c.l.b16 %v56
  %v194 = vunpack.c.l.b16 %v57
  %v195 = vunpack.c.l.b16 %v58
  %v196 = vunpack.c.l.b16 %v59
  %v197 = vunpack.c.l.b16 %v60
  %v198 = vunpack.c.l.b16 %v61
  %v199 = vunpack.c.l.b16 %v62
  %v200 = vunpack.c.l.b16 %v63
  %v201 = vunpack.c.l.b16 %v64
  %v202 = vunpack.c.l.b16 %v65
  %v203 = vunpack.c.l.b16 %v66
  %v204 = vunpack.c.l.b16 %v67
  %v205 = vunpack.c.l.b16 %v68
  %v206 = vunpack.c.l.b16 %v69
  %v207 = vunpack.c.l.b16 %v70
  %v208 = vunpack.c.l.b16 %v71
  %v209 = vunpack.c.l.b16 %v72
  %v210 = vunpack.c.l.b16 %v73
  %v211 = vunpack.c.l.b16 %v74
  %v212 = vunpack.c.l.b16 %v75
  %v213 = vunpack.c.l.b16 %v76
  %v214 = vunpack.c.l.b16 %v77
  %v215 = vunpack.c.l.b16 %v78
  %v216 = vpack.c.b16 %v153, %v152
  %v217 = vpack.c.b16 %v155, %v154
  %v218 = vpack.c.b16 %v157, %v156
  %v219 = vpack.c.b16 %v159, %v158
  %v220 = vpack.c.b16 %v161, %v160
  %v221 = vpack.c.b16 %v163, %v162
  %v222 = vpack.c.b16 %v165, %v164
  %v223 = vpack.c.b16 %v167, %v166
  %v224 = vpack.c.b16 %v169, %v168
  %v225 = vpack.c.b16 %v171, %v170
  %v226 = vpack.c.b16 %v173, %v172
  %v227 = vpack.c.b16 %v175, %v174
  %v228 = vpack.c.b16 %v177, %v176
  %v229 = vpack.c.b16 %v179, %v178
  %v230 = vpack.c.b16 %v181, %v180
  %v231 = vpack.c.b16 %v183, %v182
  %v232 = vpack.c.b16 %v185, %v184
  %v233 = vpack.c.b16 %v187, %v186
  %v234 = vpack.c.b16 %v189, %v188
  %v235 = vpack.c.b16 %v191, %v190
  %v236 = vpack.c.b16 %v193, %v192
  %v237 = vpack.c.b16 %v195, %v194
  %v238 = vpack.c.b16 %v197, %v196
  %v239 = vpack.c.b16 %v199, %v198
  %v240 = vpack.c.b16 %v201, %v200
  %v241 = vpack.c.b16 %v203, %v202
  %v242 = vpack.c.b16 %v205, %v204
  %v243 = vpack.c.b16 %v207, %v206
  %v244 = vpack.c.b16 %v209, %v208
  %v245 = vpack.c.b16 %v211, %v210
  %v246 = vpack.c.b16 %v213, %v212
  %v247 = vpack.c.b16 %v215, %v214
  %v250 = vunpack.c.l.b16 %v79
  %v251 = vunpack.c.l.b16 %v80
  %v252 = vpack.c.b16 %v251, %v250
  %vm253 = vcmask 97280
  %v255 = vsel %vm253, %v216, 0
  %v258 = vsel %vm253, %v217, 0
  %v261 = vsel %vm253, %v218, 0
  %v264 = vsel %vm253, %v219, 0
  %v267 = vsel %vm253, %v220, 0
  %v270 = vsel %vm253, %v221, 0
  %v273 = vsel %vm253, %v222, 0
  %v276 = vsel %vm253, %v223, 0
  %v279 = vsel %vm253, %v224, 0
  %v282 = vsel %vm253, %v225, 0
  %v285 = vsel %vm253, %v226, 0
  %v288 = vsel %vm253, %v227, 0
  %v291 = vsel %vm253, %v228, 0
  %v294 = vsel %vm253, %v229, 0
  %v297 = vsel %vm253, %v230, 0
  %v300 = vsel %vm253, %v231, 0
  %v303 = vsel %vm253, %v232, 0
  %v306 = vsel %vm253, %v233, 0
  %v309 = vsel %vm253, %v234, 0
  %v312 = vsel %vm253, %v235, 0
  %v315 = vsel %vm253, %v236, 0
  %v318 = vsel %vm253, %v237, 0
  %v321 = vsel %vm253, %v238, 0
  %v324 = vsel %vm253, %v239, 0
  %v327 = vsel %vm253, %v240, 0
  %v330 = vsel %vm253, %v241, 0
  %v333 = vsel %vm253, %v242, 0
  %v336 = vsel %vm253, %v243, 0
  %v339 = vsel %vm253, %v244, 0
  %v342 = vsel %vm253, %v245, 0
  %v345 = vsel %vm253, %v246, 0
  %v348 = vsel %vm253, %v247, 0
  %vm350 = vcmask 1045504
  %v352 = vsel %vm350, %v252, 0
  %354 = vmatprep.subr.bf16.mxu0 0
  %355 = vmatpush1.bf16.msra.mxu0 %v352
  %356 = vmatprep.subr.bf16.mxu0 0
  %357 = vmatpush1.bf16.msra.mxu0 0
  %358 = vmatprep.subr.bf16.mxu0 0
  %359 = vmatpush1.bf16.msra.mxu0 0
  %360 = vmatprep.subr.bf16.mxu0 0
  %361 = vmatpush1.bf16.msra.mxu0 0
  %362 = vmatprep.subr.bf16.mxu0 0
  %363 = vmatpush1.bf16.msra.mxu0 0
  %364 = vmatprep.subr.bf16.mxu0 0
  %365 = vmatpush1.bf16.msra.mxu0 0
  %366 = vmatprep.subr.bf16.mxu0 0
  %367 = vmatpush1.bf16.msra.mxu0 0
  %368 = vmatprep.subr.bf16.mxu0 0
  %369 = vmatpush1.bf16.msra.mxu0 0
  %370 = vmatprep.subr.bf16.mxu0 0
  %371 = vmatpush1.bf16.msra.mxu0 0
  %372 = vmatprep.subr.bf16.mxu0 0
  %373 = vmatpush1.bf16.msra.mxu0 0
  %374 = vmatprep.subr.bf16.mxu0 0
  %375 = vmatpush1.bf16.msra.mxu0 0
  %376 = vmatprep.subr.bf16.mxu0 0
  %377 = vmatpush1.bf16.msra.mxu0 0
  %378 = vmatprep.subr.bf16.mxu0 0
  %379 = vmatpush1.bf16.msra.mxu0 0
  %380 = vmatprep.subr.bf16.mxu0 0
  %381 = vmatpush1.bf16.msra.mxu0 0
  %382 = vmatprep.subr.bf16.mxu0 0
  %383 = vmatpush1.bf16.msra.mxu0 0
  %384 = vmatprep.subr.bf16.mxu0 0
  %385 = vmatpush1.bf16.msra.mxu0 0
  %386 = vmatprep.mubr.bf16.mxu0 0
  %387 = vmatmul.mubr.bf16.gmra.mrb[0].mxu0 %v255
  %v388 = vpop.f32.mrb[0].mxu0
  %v389 = vadd.f32 %v86, %v388
  %v390 = vpop.f32.mrb[0].mxu0
  %v391 = vpop.f32.mrb[0].mxu0
  %v392 = vadd.f32 %v86, %v391
  %v393 = vpop.f32.mrb[0].mxu0
  %394 = vmatprep.mubr.bf16.mxu0 0
  %395 = vmatmul.mubr.bf16.gmra.mrb[0].mxu0 %v258
  %v396 = vpop.f32.mrb[0].mxu0
  %v397 = vadd.f32 %v86, %v396
  %v398 = vpop.f32.mrb[0].mxu0
  %v399 = vpop.f32.mrb[0].mxu0
  %v400 = vadd.f32 %v86, %v399
  %v401 = vpop.f32.mrb[0].mxu0
  %402 = vmatprep.mubr.bf16.mxu0 0
  %403 = vmatmul.mubr.bf16.gmra.mrb[0].mxu0 %v261
  %v404 = vpop.f32.mrb[0].mxu0
  %v405 = vadd.f32 %v86, %v404
  %v406 = vpop.f32.mrb[0].mxu0
  %v407 = vpop.f32.mrb[0].mxu0
  %v408 = vadd.f32 %v86, %v407
  %v409 = vpop.f32.mrb[0].mxu0
  %410 = vmatprep.mubr.bf16.mxu0 0
  %411 = vmatmul.mubr.bf16.gmra.mrb[0].mxu0 %v264
  %v412 = vpop.f32.mrb[0].mxu0
  %v413 = vadd.f32 %v86, %v412
  %v414 = vpop.f32.mrb[0].mxu0
  %v415 = vpop.f32.mrb[0].mxu0
  %v416 = vadd.f32 %v86, %v415
  %v417 = vpop.f32.mrb[0].mxu0
  %418 = vmatprep.mubr.bf16.mxu0 0
  %419 = vmatmul.mubr.bf16.gmra.mrb[0].mxu0 %v267
  %v420 = vpop.f32.mrb[0].mxu0
  %v421 = vadd.f32 %v86, %v420
  %v422 = vpop.f32.mrb[0].mxu0
  %v423 = vpop.f32.mrb[0].mxu0
  %v424 = vadd.f32 %v86, %v423
  %v425 = vpop.f32.mrb[0].mxu0
  %426 = vmatprep.mubr.bf16.mxu0 0
  %427 = vmatmul.mubr.bf16.gmra.mrb[0].mxu0 %v270
  %v428 = vpop.f32.mrb[0].mxu0
  %v429 = vadd.f32 %v86, %v428
  %v430 = vpop.f32.mrb[0].mxu0
  %v431 = vpop.f32.mrb[0].mxu0
  %v432 = vadd.f32 %v86, %v431
  %v433 = vpop.f32.mrb[0].mxu0
  %434 = vmatprep.mubr.bf16.mxu0 0
  %435 = vmatmul.mubr.bf16.gmra.mrb[0].mxu0 %v273
  %v436 = vpop.f32.mrb[0].mxu0
  %v437 = vadd.f32 %v86, %v436
  %v438 = vpop.f32.mrb[0].mxu0
  %v439 = vpop.f32.mrb[0].mxu0
  %v440 = vadd.f32 %v86, %v439
  %v441 = vpop.f32.mrb[0].mxu0
  %442 = vmatprep.mubr.bf16.mxu0 0
  %443 = vmatmul.mubr.bf16.gmra.mrb[0].mxu0 %v276
  %v444 = vpop.f32.mrb[0].mxu0
  %v445 = vadd.f32 %v86, %v444
  %v446 = vpop.f32.mrb[0].mxu0
  %v447 = vpop.f32.mrb[0].mxu0
  %v448 = vadd.f32 %v86, %v447
  %v449 = vpop.f32.mrb[0].mxu0
  %450 = vmatprep.mubr.bf16.mxu0 0
  %451 = vmatmul.mubr.bf16.gmra.mrb[0].mxu0 %v279
  %v452 = vpop.f32.mrb[0].mxu0
  %v453 = vadd.f32 %v86, %v452
  %v454 = vpop.f32.mrb[0].mxu0
  %v455 = vpop.f32.mrb[0].mxu0
  %v456 = vadd.f32 %v86, %v455
  %v457 = vpop.f32.mrb[0].mxu0
  %458 = vmatprep.mubr.bf16.mxu0 0
  %459 = vmatmul.mubr.bf16.gmra.mrb[0].mxu0 %v282
  %v460 = vpop.f32.mrb[0].mxu0
  %v461 = vadd.f32 %v86, %v460
  %v462 = vpop.f32.mrb[0].mxu0
  %v463 = vpop.f32.mrb[0].mxu0
  %v464 = vadd.f32 %v86, %v463
  %v465 = vpop.f32.mrb[0].mxu0
  %466 = vmatprep.mubr.bf16.mxu0 0
  %467 = vmatmul.mubr.bf16.gmra.mrb[0].mxu0 %v285
  %v468 = vpop.f32.mrb[0].mxu0
  %v469 = vadd.f32 %v86, %v468
  %v470 = vpop.f32.mrb[0].mxu0
  %v471 = vpop.f32.mrb[0].mxu0
  %v472 = vadd.f32 %v86, %v471
  %v473 = vpop.f32.mrb[0].mxu0
  %474 = vmatprep.mubr.bf16.mxu0 0
  %475 = vmatmul.mubr.bf16.gmra.mrb[0].mxu0 %v288
  %v476 = vpop.f32.mrb[0].mxu0
  %v477 = vadd.f32 %v86, %v476
  %v478 = vpop.f32.mrb[0].mxu0
  %v479 = vpop.f32.mrb[0].mxu0
  %v480 = vadd.f32 %v86, %v479
  %v481 = vpop.f32.mrb[0].mxu0
  %482 = vmatprep.mubr.bf16.mxu0 0
  %483 = vmatmul.mubr.bf16.gmra.mrb[0].mxu0 %v291
  %v484 = vpop.f32.mrb[0].mxu0
  %v485 = vadd.f32 %v86, %v484
  %v486 = vpop.f32.mrb[0].mxu0
  %v487 = vpop.f32.mrb[0].mxu0
  %v488 = vadd.f32 %v86, %v487
  %v489 = vpop.f32.mrb[0].mxu0
  %490 = vmatprep.mubr.bf16.mxu0 0
  %491 = vmatmul.mubr.bf16.gmra.mrb[0].mxu0 %v294
  %v492 = vpop.f32.mrb[0].mxu0
  %v493 = vadd.f32 %v86, %v492
  %v494 = vpop.f32.mrb[0].mxu0
  %v495 = vpop.f32.mrb[0].mxu0
  %v496 = vadd.f32 %v86, %v495
  %v497 = vpop.f32.mrb[0].mxu0
  %498 = vmatprep.mubr.bf16.mxu0 0
  %499 = vmatmul.mubr.bf16.gmra.mrb[0].mxu0 %v297
  %v500 = vpop.f32.mrb[0].mxu0
  %v501 = vadd.f32 %v86, %v500
  %v502 = vpop.f32.mrb[0].mxu0
  %v503 = vpop.f32.mrb[0].mxu0
  %v504 = vadd.f32 %v86, %v503
  %v505 = vpop.f32.mrb[0].mxu0
  %506 = vmatprep.mubr.bf16.mxu0 0
  %507 = vmatmul.mubr.bf16.gmra.mrb[0].mxu0 %v300
  %v508 = vpop.f32.mrb[0].mxu0
  %v509 = vadd.f32 %v86, %v508
  %v510 = vpop.f32.mrb[0].mxu0
  %v511 = vpop.f32.mrb[0].mxu0
  %v512 = vadd.f32 %v86, %v511
  %v513 = vpop.f32.mrb[0].mxu0
  %514 = vmatprep.mubr.bf16.mxu0 0
  %515 = vmatmul.mubr.bf16.gmra.mrb[0].mxu0 %v303
  %v516 = vpop.f32.mrb[0].mxu0
  %v517 = vadd.f32 %v86, %v516
  %v518 = vpop.f32.mrb[0].mxu0
  %v519 = vpop.f32.mrb[0].mxu0
  %v520 = vadd.f32 %v86, %v519
  %v521 = vpop.f32.mrb[0].mxu0
  %522 = vmatprep.mubr.bf16.mxu0 0
  %523 = vmatmul.mubr.bf16.gmra.mrb[0].mxu0 %v306
  %v524 = vpop.f32.mrb[0].mxu0
  %v525 = vadd.f32 %v86, %v524
  %v526 = vpop.f32.mrb[0].mxu0
  %v527 = vpop.f32.mrb[0].mxu0
  %v528 = vadd.f32 %v86, %v527
  %v529 = vpop.f32.mrb[0].mxu0
  %530 = vmatprep.mubr.bf16.mxu0 0
  %531 = vmatmul.mubr.bf16.gmra.mrb[0].mxu0 %v309
  %v532 = vpop.f32.mrb[0].mxu0
  %v533 = vadd.f32 %v86, %v532
  %v534 = vpop.f32.mrb[0].mxu0
  %v535 = vpop.f32.mrb[0].mxu0
  %v536 = vadd.f32 %v86, %v535
  %v537 = vpop.f32.mrb[0].mxu0
  %538 = vmatprep.mubr.bf16.mxu0 0
  %539 = vmatmul.mubr.bf16.gmra.mrb[0].mxu0 %v312
  %v540 = vpop.f32.mrb[0].mxu0
  %v541 = vadd.f32 %v86, %v540
  %v542 = vpop.f32.mrb[0].mxu0
  %v543 = vpop.f32.mrb[0].mxu0
  %v544 = vadd.f32 %v86, %v543
  %v545 = vpop.f32.mrb[0].mxu0
  %546 = vmatprep.mubr.bf16.mxu0 0
  %547 = vmatmul.mubr.bf16.gmra.mrb[0].mxu0 %v315
  %v548 = vpop.f32.mrb[0].mxu0
  %v549 = vadd.f32 %v86, %v548
  %v550 = vpop.f32.mrb[0].mxu0
  %v551 = vpop.f32.mrb[0].mxu0
  %v552 = vadd.f32 %v86, %v551
  %v553 = vpop.f32.mrb[0].mxu0
  %554 = vmatprep.mubr.bf16.mxu0 0
  %555 = vmatmul.mubr.bf16.gmra.mrb[0].mxu0 %v318
  %v556 = vpop.f32.mrb[0].mxu0
  %v557 = vadd.f32 %v86, %v556
  %v558 = vpop.f32.mrb[0].mxu0
  %v559 = vpop.f32.mrb[0].mxu0
  %v560 = vadd.f32 %v86, %v559
  %v561 = vpop.f32.mrb[0].mxu0
  %562 = vmatprep.mubr.bf16.mxu0 0
  %563 = vmatmul.mubr.bf16.gmra.mrb[0].mxu0 %v321
  %v564 = vpop.f32.mrb[0].mxu0
  %v565 = vadd.f32 %v86, %v564
  %v566 = vpop.f32.mrb[0].mxu0
  %v567 = vpop.f32.mrb[0].mxu0
  %v568 = vadd.f32 %v86, %v567
  %v569 = vpop.f32.mrb[0].mxu0
  %570 = vmatprep.mubr.bf16.mxu0 0
  %571 = vmatmul.mubr.bf16.gmra.mrb[0].mxu0 %v324
  %v572 = vpop.f32.mrb[0].mxu0
  %v573 = vadd.f32 %v86, %v572
  %v574 = vpop.f32.mrb[0].mxu0
  %v575 = vpop.f32.mrb[0].mxu0
  %v576 = vadd.f32 %v86, %v575
  %v577 = vpop.f32.mrb[0].mxu0
  %578 = vmatprep.mubr.bf16.mxu0 0
  %579 = vmatmul.mubr.bf16.gmra.mrb[0].mxu0 %v327
  %v580 = vpop.f32.mrb[0].mxu0
  %v581 = vadd.f32 %v86, %v580
  %v582 = vpop.f32.mrb[0].mxu0
  %v583 = vpop.f32.mrb[0].mxu0
  %v584 = vadd.f32 %v86, %v583
  %v585 = vpop.f32.mrb[0].mxu0
  %586 = vmatprep.mubr.bf16.mxu0 0
  %587 = vmatmul.mubr.bf16.gmra.mrb[0].mxu0 %v330
  %v588 = vpop.f32.mrb[0].mxu0
  %v589 = vadd.f32 %v86, %v588
  %v590 = vpop.f32.mrb[0].mxu0
  %v591 = vpop.f32.mrb[0].mxu0
  %v592 = vadd.f32 %v86, %v591
  %v593 = vpop.f32.mrb[0].mxu0
  %594 = vmatprep.mubr.bf16.mxu0 0
  %595 = vmatmul.mubr.bf16.gmra.mrb[0].mxu0 %v333
  %v596 = vpop.f32.mrb[0].mxu0
  %v597 = vadd.f32 %v86, %v596
  %v598 = vpop.f32.mrb[0].mxu0
  %v599 = vpop.f32.mrb[0].mxu0
  %v600 = vadd.f32 %v86, %v599
  %v601 = vpop.f32.mrb[0].mxu0
  %602 = vmatprep.mubr.bf16.mxu0 0
  %603 = vmatmul.mubr.bf16.gmra.mrb[0].mxu0 %v336
  %v604 = vpop.f32.mrb[0].mxu0
  %v605 = vadd.f32 %v86, %v604
  %v606 = vpop.f32.mrb[0].mxu0
  %v607 = vpop.f32.mrb[0].mxu0
  %v608 = vadd.f32 %v86, %v607
  %v609 = vpop.f32.mrb[0].mxu0
  %610 = vmatprep.mubr.bf16.mxu0 0
  %611 = vmatmul.mubr.bf16.gmra.mrb[0].mxu0 %v339
  %v612 = vpop.f32.mrb[0].mxu0
  %v613 = vadd.f32 %v86, %v612
  %v614 = vpop.f32.mrb[0].mxu0
  %v615 = vpop.f32.mrb[0].mxu0
  %v616 = vadd.f32 %v86, %v615
  %v617 = vpop.f32.mrb[0].mxu0
  %618 = vmatprep.mubr.bf16.mxu0 0
  %619 = vmatmul.mubr.bf16.gmra.mrb[0].mxu0 %v342
  %v620 = vpop.f32.mrb[0].mxu0
  %v621 = vadd.f32 %v86, %v620
  %v622 = vpop.f32.mrb[0].mxu0
  %v623 = vpop.f32.mrb[0].mxu0
  %v624 = vadd.f32 %v86, %v623
  %v625 = vpop.f32.mrb[0].mxu0
  %626 = vmatprep.mubr.bf16.mxu0 0
  %627 = vmatmul.mubr.bf16.gmra.mrb[0].mxu0 %v345
  %v628 = vpop.f32.mrb[0].mxu0
  %v629 = vadd.f32 %v86, %v628
  %v630 = vpop.f32.mrb[0].mxu0
  %v631 = vpop.f32.mrb[0].mxu0
  %v632 = vadd.f32 %v86, %v631
  %v633 = vpop.f32.mrb[0].mxu0
  %634 = vmatprep.mubr.bf16.mxu0 0
  %635 = vmatmul.mubr.bf16.gmra.mrb[0].mxu0 %v348
  %v636 = vpop.f32.mrb[0].mxu0
  %v637 = vadd.f32 %v86, %v636
  %v638 = vpop.f32.mrb[0].mxu0
  %v639 = vpop.f32.mrb[0].mxu0
  %v640 = vadd.f32 %v86, %v639
  %v641 = vpop.f32.mrb[0].mxu0
  %642 = vdwg.mxu0
  %v643 = vmax.f32 %v389, 0.0
  %v644 = vmax.f32 %v392, 0.0
  %v645 = vmax.f32 %v397, 0.0
  %v646 = vmax.f32 %v400, 0.0
  %v647 = vmax.f32 %v405, 0.0
  %v648 = vmax.f32 %v408, 0.0
  %v649 = vmax.f32 %v413, 0.0
  %v650 = vmax.f32 %v416, 0.0
  %v651 = vmax.f32 %v421, 0.0
  %v652 = vmax.f32 %v424, 0.0
  %v653 = vmax.f32 %v429, 0.0
  %v654 = vmax.f32 %v432, 0.0
  %v655 = vmax.f32 %v437, 0.0
  %v656 = vmax.f32 %v440, 0.0
  %v657 = vmax.f32 %v445, 0.0
  %v658 = vmax.f32 %v448, 0.0
  %v659 = vmax.f32 %v453, 0.0
  %v660 = vmax.f32 %v456, 0.0
  %v661 = vmax.f32 %v461, 0.0
  %v662 = vmax.f32 %v464, 0.0
  %v663 = vmax.f32 %v469, 0.0
  %v664 = vmax.f32 %v472, 0.0
  %v665 = vmax.f32 %v477, 0.0
  %v666 = vmax.f32 %v480, 0.0
  %v667 = vmax.f32 %v485, 0.0
  %v668 = vmax.f32 %v488, 0.0
  %v669 = vmax.f32 %v493, 0.0
  %v670 = vmax.f32 %v496, 0.0
  %v671 = vmax.f32 %v501, 0.0
  %v672 = vmax.f32 %v504, 0.0
  %v673 = vmax.f32 %v509, 0.0
  %v674 = vmax.f32 %v512, 0.0
  %v675 = vmax.f32 %v517, 0.0
  %v676 = vmax.f32 %v520, 0.0
  %v677 = vmax.f32 %v525, 0.0
  %v678 = vmax.f32 %v528, 0.0
  %v679 = vmax.f32 %v533, 0.0
  %v680 = vmax.f32 %v536, 0.0
  %v681 = vmax.f32 %v541, 0.0
  %v682 = vmax.f32 %v544, 0.0
  %v683 = vmax.f32 %v549, 0.0
  %v684 = vmax.f32 %v552, 0.0
  %v685 = vmax.f32 %v557, 0.0
  %v686 = vmax.f32 %v560, 0.0
  %v687 = vmax.f32 %v565, 0.0
  %v688 = vmax.f32 %v568, 0.0
  %v689 = vmax.f32 %v573, 0.0
  %v690 = vmax.f32 %v576, 0.0
  %v691 = vmax.f32 %v581, 0.0
  %v692 = vmax.f32 %v584, 0.0
  %v693 = vmax.f32 %v589, 0.0
  %v694 = vmax.f32 %v592, 0.0
  %v695 = vmax.f32 %v597, 0.0
  %v696 = vmax.f32 %v600, 0.0
  %v697 = vmax.f32 %v605, 0.0
  %v698 = vmax.f32 %v608, 0.0
  %v699 = vmax.f32 %v613, 0.0
  %v700 = vmax.f32 %v616, 0.0
  %v701 = vmax.f32 %v621, 0.0
  %v702 = vmax.f32 %v624, 0.0
  %v703 = vmax.f32 %v629, 0.0
  %v704 = vmax.f32 %v632, 0.0
  %v705 = vmax.f32 %v637, 0.0
  %v706 = vmax.f32 %v640, 0.0
  %v707 = vpack.c.bf16 %v644, %v643
  %v708 = vpack.c.bf16 %v646, %v645
  %v709 = vpack.c.bf16 %v648, %v647
  %v710 = vpack.c.bf16 %v650, %v649
  %v711 = vpack.c.bf16 %v652, %v651
  %v712 = vpack.c.bf16 %v654, %v653
  %v713 = vpack.c.bf16 %v656, %v655
  %v714 = vpack.c.bf16 %v658, %v657
  %v715 = vpack.c.bf16 %v660, %v659
  %v716 = vpack.c.bf16 %v662, %v661
  %v717 = vpack.c.bf16 %v664, %v663
  %v718 = vpack.c.bf16 %v666, %v665
  %v719 = vpack.c.bf16 %v668, %v667
  %v720 = vpack.c.bf16 %v670, %v669
  %v721 = vpack.c.bf16 %v672, %v671
  %v722 = vpack.c.bf16 %v674, %v673
  %v723 = vpack.c.bf16 %v676, %v675
  %v724 = vpack.c.bf16 %v678, %v677
  %v725 = vpack.c.bf16 %v680, %v679
  %v726 = vpack.c.bf16 %v682, %v681
  %v727 = vpack.c.bf16 %v684, %v683
  %v728 = vpack.c.bf16 %v686, %v685
  %v729 = vpack.c.bf16 %v688, %v687
  %v730 = vpack.c.bf16 %v690, %v689
  %v731 = vpack.c.bf16 %v692, %v691
  %v732 = vpack.c.bf16 %v694, %v693
  %v733 = vpack.c.bf16 %v696, %v695
  %v734 = vpack.c.bf16 %v698, %v697
  %v735 = vpack.c.bf16 %v700, %v699
  %v736 = vpack.c.bf16 %v702, %v701
  %v737 = vpack.c.bf16 %v704, %v703
  %v738 = vpack.c.bf16 %v706, %v705
  %v771 = vunpack.c.l.b16 %v707
  %v772 = vunpack.c.h.b16 %v707
  %v773 = vunpack.c.l.b16 %v708
  %v774 = vunpack.c.h.b16 %v708
  %v775 = vunpack.c.l.b16 %v709
  %v776 = vunpack.c.h.b16 %v709
  %v777 = vunpack.c.l.b16 %v710
  %v778 = vunpack.c.h.b16 %v710
  %v779 = vunpack.c.l.b16 %v711
  %v780 = vunpack.c.h.b16 %v711
  %v781 = vunpack.c.l.b16 %v712
  %v782 = vunpack.c.h.b16 %v712
  %v783 = vunpack.c.l.b16 %v713
  %v784 = vunpack.c.h.b16 %v713
  %v785 = vunpack.c.l.b16 %v714
  %v786 = vunpack.c.h.b16 %v714
  %v787 = vunpack.c.l.b16 %v715
  %v788 = vunpack.c.h.b16 %v715
  %v789 = vunpack.c.l.b16 %v716
  %v790 = vunpack.c.h.b16 %v716
  %v791 = vunpack.c.l.b16 %v717
  %v792 = vunpack.c.h.b16 %v717
  %v793 = vunpack.c.l.b16 %v718
  %v794 = vunpack.c.h.b16 %v718
  %v795 = vunpack.c.l.b16 %v719
  %v796 = vunpack.c.h.b16 %v719
  %v797 = vunpack.c.l.b16 %v720
  %v798 = vunpack.c.h.b16 %v720
  %v799 = vunpack.c.l.b16 %v721
  %v800 = vunpack.c.h.b16 %v721
  %v801 = vunpack.c.l.b16 %v722
  %v802 = vunpack.c.h.b16 %v722
  %v803 = vunpack.c.l.b16 %v723
  %v804 = vunpack.c.h.b16 %v723
  %v805 = vunpack.c.l.b16 %v724
  %v806 = vunpack.c.h.b16 %v724
  %v807 = vunpack.c.l.b16 %v725
  %v808 = vunpack.c.h.b16 %v725
  %v809 = vunpack.c.l.b16 %v726
  %v810 = vunpack.c.h.b16 %v726
  %v811 = vunpack.c.l.b16 %v727
  %v812 = vunpack.c.h.b16 %v727
  %v813 = vunpack.c.l.b16 %v728
  %v814 = vunpack.c.h.b16 %v728
  %v815 = vunpack.c.l.b16 %v729
  %v816 = vunpack.c.h.b16 %v729
  %v817 = vunpack.c.l.b16 %v730
  %v818 = vunpack.c.h.b16 %v730
  %v819 = vunpack.c.l.b16 %v731
  %v820 = vunpack.c.h.b16 %v731
  %v821 = vunpack.c.l.b16 %v732
  %v822 = vunpack.c.h.b16 %v732
  %v823 = vunpack.c.l.b16 %v733
  %v824 = vunpack.c.h.b16 %v733
  %v825 = vunpack.c.l.b16 %v734
  %v826 = vunpack.c.h.b16 %v734
  %v827 = vunpack.c.l.b16 %v735
  %v828 = vunpack.c.h.b16 %v735
  %v829 = vunpack.c.l.b16 %v736
  %v830 = vunpack.c.h.b16 %v736
  %v831 = vunpack.c.l.b16 %v737
  %v832 = vunpack.c.h.b16 %v737
  %v833 = vunpack.c.l.b16 %v738
  %v834 = vunpack.c.h.b16 %v738
  %v835 = vpack.c.b16 %v771, %v771
  %v836 = vpack.c.b16 %v772, %v772
  %v837 = vpack.c.b16 %v773, %v773
  %v838 = vpack.c.b16 %v774, %v774
  %v839 = vpack.c.b16 %v775, %v775
  %v840 = vpack.c.b16 %v776, %v776
  %v841 = vpack.c.b16 %v777, %v777
  %v842 = vpack.c.b16 %v778, %v778
  %v843 = vpack.c.b16 %v779, %v779
  %v844 = vpack.c.b16 %v780, %v780
  %v845 = vpack.c.b16 %v781, %v781
  %v846 = vpack.c.b16 %v782, %v782
  %v847 = vpack.c.b16 %v783, %v783
  %v848 = vpack.c.b16 %v784, %v784
  %v849 = vpack.c.b16 %v785, %v785
  %v850 = vpack.c.b16 %v786, %v786
  %v851 = vpack.c.b16 %v787, %v787
  %v852 = vpack.c.b16 %v788, %v788
  %v853 = vpack.c.b16 %v789, %v789
  %v854 = vpack.c.b16 %v790, %v790
  %v855 = vpack.c.b16 %v791, %v791
  %v856 = vpack.c.b16 %v792, %v792
  %v857 = vpack.c.b16 %v793, %v793
  %v858 = vpack.c.b16 %v794, %v794
  %v859 = vpack.c.b16 %v795, %v795
  %v860 = vpack.c.b16 %v796, %v796
  %v861 = vpack.c.b16 %v797, %v797
  %v862 = vpack.c.b16 %v798, %v798
  %v863 = vpack.c.b16 %v799, %v799
  %v864 = vpack.c.b16 %v800, %v800
  %v865 = vpack.c.b16 %v801, %v801
  %v866 = vpack.c.b16 %v802, %v802
  %v867 = vpack.c.b16 %v803, %v803
  %v868 = vpack.c.b16 %v804, %v804
  %v869 = vpack.c.b16 %v805, %v805
  %v870 = vpack.c.b16 %v806, %v806
  %v871 = vpack.c.b16 %v807, %v807
  %v872 = vpack.c.b16 %v808, %v808
  %v873 = vpack.c.b16 %v809, %v809
  %v874 = vpack.c.b16 %v810, %v810
  %v875 = vpack.c.b16 %v811, %v811
  %v876 = vpack.c.b16 %v812, %v812
  %v877 = vpack.c.b16 %v813, %v813
  %v878 = vpack.c.b16 %v814, %v814
  %v879 = vpack.c.b16 %v815, %v815
  %v880 = vpack.c.b16 %v816, %v816
  %v881 = vpack.c.b16 %v817, %v817
  %v882 = vpack.c.b16 %v818, %v818
  %v883 = vpack.c.b16 %v819, %v819
  %v884 = vpack.c.b16 %v820, %v820
  %v885 = vpack.c.b16 %v821, %v821
  %v886 = vpack.c.b16 %v822, %v822
  %v887 = vpack.c.b16 %v823, %v823
  %v888 = vpack.c.b16 %v824, %v824
  %v889 = vpack.c.b16 %v825, %v825
  %v890 = vpack.c.b16 %v826, %v826
  %v891 = vpack.c.b16 %v827, %v827
  %v892 = vpack.c.b16 %v828, %v828
  %v893 = vpack.c.b16 %v829, %v829
  %v894 = vpack.c.b16 %v830, %v830
  %v895 = vpack.c.b16 %v831, %v831
  %v896 = vpack.c.b16 %v832, %v832
  %v897 = vpack.c.b16 %v833, %v833
  %v898 = vpack.c.b16 %v834, %v834
  %963 = vst [vmem:[%s3] sm:$0xf] %v835
  %964 = vst [vmem:[%s3 + $0x4] sm:$0xf] %v836
  %965 = vst [vmem:[%s3 + $0x8] sm:$0xf] %v837
  %966 = vst [vmem:[%s3 + $0xc] sm:$0xf] %v838
  %967 = vst [vmem:[%s3 + $0x10] sm:$0xf] %v839
  %968 = vst [vmem:[%s3 + $0x14] sm:$0xf] %v840
  %969 = vst [vmem:[%s3 + $0x18] sm:$0xf] %v841
  %970 = vst [vmem:[%s3 + $0x1c] sm:$0xf] %v842
  %971 = vst [vmem:[%s3 + $0x20] sm:$0xf] %v843
  %972 = vst [vmem:[%s3 + $0x24] sm:$0xf] %v844
  %973 = vst [vmem:[%s3 + $0x28] sm:$0xf] %v845
  %974 = vst [vmem:[%s3 + $0x2c] sm:$0xf] %v846
  %975 = vst [vmem:[%s3 + $0x30] sm:$0xf] %v847
  %976 = vst [vmem:[%s3 + $0x34] sm:$0xf] %v848
  %977 = vst [vmem:[%s3 + $0x38] sm:$0xf] %v849
  %978 = vst [vmem:[%s3 + $0x3c] sm:$0xf] %v850
  %979 = vst [vmem:[%s3 + $0x40] sm:$0xf] %v851
  %980 = vst [vmem:[%s3 + $0x44] sm:$0xf] %v852
  %981 = vst [vmem:[%s3 + $0x48] sm:$0xf] %v853
  %982 = vst [vmem:[%s3 + $0x4c] sm:$0xf] %v854
  %983 = vst [vmem:[%s3 + $0x50] sm:$0xf] %v855
  %984 = vst [vmem:[%s3 + $0x54] sm:$0xf] %v856
  %985 = vst [vmem:[%s3 + $0x58] sm:$0xf] %v857
  %986 = vst [vmem:[%s3 + $0x5c] sm:$0xf] %v858
  %987 = vst [vmem:[%s3 + $0x60] sm:$0xf] %v859
  %988 = vst [vmem:[%s3 + $0x64] sm:$0xf] %v860
  %989 = vst [vmem:[%s3 + $0x68] sm:$0xf] %v861
  %990 = vst [vmem:[%s3 + $0x6c] sm:$0xf] %v862
  %991 = vst [vmem:[%s3 + $0x70] sm:$0xf] %v863
  %992 = vst [vmem:[%s3 + $0x74] sm:$0xf] %v864
  %993 = vst [vmem:[%s3 + $0x78] sm:$0xf] %v865
  %994 = vst [vmem:[%s3 + $0x7c] sm:$0xf] %v866
  %995 = vst [vmem:[%s3 + $0x80] sm:$0xf] %v867
  %996 = vst [vmem:[%s3 + $0x84] sm:$0xf] %v868
  %997 = vst [vmem:[%s3 + $0x88] sm:$0xf] %v869
  %998 = vst [vmem:[%s3 + $0x8c] sm:$0xf] %v870
  %999 = vst [vmem:[%s3 + $0x90] sm:$0xf] %v871
  %1000 = vst [vmem:[%s3 + $0x94] sm:$0xf] %v872
  %1001 = vst [vmem:[%s3 + $0x98] sm:$0xf] %v873
  %1002 = vst [vmem:[%s3 + $0x9c] sm:$0xf] %v874
  %1003 = vst [vmem:[%s3 + $0xa0] sm:$0xf] %v875
  %1004 = vst [vmem:[%s3 + $0xa4] sm:$0xf] %v876
  %1005 = vst [vmem:[%s3 + $0xa8] sm:$0xf] %v877
  %1006 = vst [vmem:[%s3 + $0xac] sm:$0xf] %v878
  %1007 = vst [vmem:[%s3 + $0xb0] sm:$0xf] %v879
  %1008 = vst [vmem:[%s3 + $0xb4] sm:$0xf] %v880
  %1009 = vst [vmem:[%s3 + $0xb8] sm:$0xf] %v881
  %1010 = vst [vmem:[%s3 + $0xbc] sm:$0xf] %v882
  %1011 = vst [vmem:[%s3 + $0xc0] sm:$0xf] %v883
  %1012 = vst [vmem:[%s3 + $0xc4] sm:$0xf] %v884
  %1013 = vst [vmem:[%s3 + $0xc8] sm:$0xf] %v885
  %1014 = vst [vmem:[%s3 + $0xcc] sm:$0xf] %v886
  %1015 = vst [vmem:[%s3 + $0xd0] sm:$0xf] %v887
  %1016 = vst [vmem:[%s3 + $0xd4] sm:$0xf] %v888
  %1017 = vst [vmem:[%s3 + $0xd8] sm:$0xf] %v889
  %1018 = vst [vmem:[%s3 + $0xdc] sm:$0xf] %v890
  %1019 = vst [vmem:[%s3 + $0xe0] sm:$0xf] %v891
  %1020 = vst [vmem:[%s3 + $0xe4] sm:$0xf] %v892
  %1021 = vst [vmem:[%s3 + $0xe8] sm:$0xf] %v893
  %1022 = vst [vmem:[%s3 + $0xec] sm:$0xf] %v894
  %1023 = vst [vmem:[%s3 + $0xf0] sm:$0xf] %v895
  %1024 = vst [vmem:[%s3 + $0xf4] sm:$0xf] %v896
  %1025 = vst [vmem:[%s3 + $0xf8] sm:$0xf] %v897
  %1026 = vst [vmem:[%s3 + $0xfc] sm:$0xf] %v898
  // Predicated region
  $region14: #{_lambda_.4} parent=0 // pred_check
    _
  $region15: #{_lambda_.4} parent=0 // pred_check_branch
    %1028 = sbr.rel (0) target = $region17
  $region16: #{_lambda_.4} parent=0 // pred_region
    _
  $region17: #{_lambda_.4} parent=0 // pred_fallthru
    _
  // Predicated region
  $region18: #{_lambda_.4} parent=0 // pred_check
    _
  $region19: #{_lambda_.4} parent=0 // pred_check_branch
    %1030 = sbr.rel (0) target = $region21
  $region20: #{_lambda_.4} parent=0 // pred_region
    _
  $region21: #{_lambda_.4} parent=0 // pred_fallthru
    _

// kernel: _lambda_.6
$region0: #{_lambda_.6}
  #allocation0 [shape = 'u32[]', space=smem, size = 0x4, offset = 0x4, fixed_abs, tag = 'smem constant byte address 0x4 - core index']
  #allocation1 [shape = 'u32[144,128]{1,0:T(1,128)}', space=vmem, size = 0x12000, scoped, tag = 'internal scratch']
  %s0 = inlined_call_operand.vmem [shape: bf16[4,186,128], index: 0, kind: input, shape index: {}]
  %s1 = inlined_call_operand.vmem [shape: bf16[9,128,128], index: 1, kind: input, shape index: {}]
  %s2 = inlined_call_operand.vmem [shape: f32[1,128], index: 2, kind: input, shape index: {}]
  %s3 = inlined_call_operand.vmem [shape: f32[176,128], index: 3, kind: output, shape index: {}]
  %s4 = sld [smem:[#allocation0]]
  $region22: #{_lambda_.6} parent=0
    _
  %s6 = ssub.s32 1, %s4
  %s7 = scalar_select 0, %s6, %s4
  // Predicated region
  $region2: #{_lambda_.6} parent=0 // pred_check
    _
  $region3: #{_lambda_.6} parent=0 // pred_check_branch
    %9 = sbr.rel (0) target = $region5
  $region4: #{_lambda_.6} parent=0 // pred_region
    _
  $region5: #{_lambda_.6} parent=0 // pred_fallthru
    _
  // Predicated region
  $region6: #{_lambda_.6} parent=0 // pred_check
    _
  $region7: #{_lambda_.6} parent=0 // pred_check_branch
    %11 = sbr.rel (0) target = $region9
  $region8: #{_lambda_.6} parent=0 // pred_region
    _
  $region9: #{_lambda_.6} parent=0 // pred_fallthru
    _
  // Predicated region
  $region10: #{_lambda_.6} parent=0 // pred_check
    _
  $region11: #{_lambda_.6} parent=0 // pred_check_branch
    %13 = sbr.rel (0) target = $region13
  $region12: #{_lambda_.6} parent=0 // pred_region
    _
  $region13: #{_lambda_.6} parent=0 // pred_fallthru
    _
  %v15 = vld [vmem:[%s0] sm:$0xf]
  %v16 = vld [vmem:[%s0 + $0x4] sm:$0xf]
  %v17 = vld [vmem:[%s0 + $0x8] sm:$0xf]
  %v18 = vld [vmem:[%s0 + $0xc] sm:$0xf]
  %v19 = vld [vmem:[%s0 + $0x10] sm:$0xf]
  %v20 = vld [vmem:[%s0 + $0x14] sm:$0xf]
  %v21 = vld [vmem:[%s0 + $0x18] sm:$0xf]
  %v22 = vld [vmem:[%s0 + $0x1c] sm:$0xf]
  %v23 = vld [vmem:[%s0 + $0x20] sm:$0xf]
  %v24 = vld [vmem:[%s0 + $0x24] sm:$0xf]
  %v25 = vld [vmem:[%s0 + $0x28] sm:$0xf]
  %v26 = vld [vmem:[%s0 + $0x2c] sm:$0xf]
  %v27 = vld [vmem:[%s0 + $0x30] sm:$0xf]
  %v28 = vld [vmem:[%s0 + $0x34] sm:$0xf]
  %v29 = vld [vmem:[%s0 + $0x38] sm:$0xf]
  %v30 = vld [vmem:[%s0 + $0x3c] sm:$0xf]
  %v31 = vld [vmem:[%s0 + $0x40] sm:$0xf]
  %v32 = vld [vmem:[%s0 + $0x44] sm:$0xf]
  %v33 = vld [vmem:[%s0 + $0x48] sm:$0xf]
  %v34 = vld [vmem:[%s0 + $0x4c] sm:$0xf]
  %v35 = vld [vmem:[%s0 + $0x50] sm:$0xf]
  %v36 = vld [vmem:[%s0 + $0x54] sm:$0xf]
  %v37 = vld [vmem:[%s1] sm:$0xf]
  %v38 = vld [vmem:[%s1 + $0x4] sm:$0xf]
  %v39 = vld [vmem:[%s1 + $0x8] sm:$0xf]
  %v40 = vld [vmem:[%s1 + $0xc] sm:$0xf]
  %v41 = vld [vmem:[%s1 + $0x10] sm:$0xf]
  %v42 = vld [vmem:[%s1 + $0x14] sm:$0xf]
  %v43 = vld [vmem:[%s1 + $0x18] sm:$0xf]
  %v44 = vld [vmem:[%s1 + $0x1c] sm:$0xf]
  %v45 = vld [vmem:[%s1 + $0x20] sm:$0xf]
  %v46 = vld [vmem:[%s1 + $0x24] sm:$0xf]
  %v47 = vld [vmem:[%s1 + $0x28] sm:$0xf]
  %v48 = vld [vmem:[%s1 + $0x2c] sm:$0xf]
  %v49 = vld [vmem:[%s1 + $0x30] sm:$0xf]
  %v50 = vld [vmem:[%s1 + $0x34] sm:$0xf]
  %v51 = vld [vmem:[%s1 + $0x38] sm:$0xf]
  %v52 = vld [vmem:[%s1 + $0x3c] sm:$0xf]
  %s53 = scalar_lea.vmem %s0, 96
  %v54 = vld [vmem:[%s53] sm:$0xf]
  %v55 = vld [vmem:[%s53 + $0x4] sm:$0xf]
  %v56 = vld [vmem:[%s53 + $0x8] sm:$0xf]
  %v57 = vld [vmem:[%s53 + $0xc] sm:$0xf]
  %v58 = vld [vmem:[%s53 + $0x10] sm:$0xf]
  %v59 = vld [vmem:[%s53 + $0x14] sm:$0xf]
  %v60 = vld [vmem:[%s53 + $0x18] sm:$0xf]
  %v61 = vld [vmem:[%s53 + $0x1c] sm:$0xf]
  %v62 = vld [vmem:[%s53 + $0x20] sm:$0xf]
  %v63 = vld [vmem:[%s53 + $0x24] sm:$0xf]
  %v64 = vld [vmem:[%s53 + $0x28] sm:$0xf]
  %v65 = vld [vmem:[%s53 + $0x2c] sm:$0xf]
  %v66 = vld [vmem:[%s53 + $0x30] sm:$0xf]
  %v67 = vld [vmem:[%s53 + $0x34] sm:$0xf]
  %v68 = vld [vmem:[%s53 + $0x38] sm:$0xf]
  %v69 = vld [vmem:[%s53 + $0x3c] sm:$0xf]
  %v70 = vld [vmem:[%s53 + $0x40] sm:$0xf]
  %v71 = vld [vmem:[%s53 + $0x44] sm:$0xf]
  %v72 = vld [vmem:[%s53 + $0x48] sm:$0xf]
  %v73 = vld [vmem:[%s53 + $0x4c] sm:$0xf]
  %v74 = vld [vmem:[%s53 + $0x50] sm:$0xf]
  %v75 = vld [vmem:[%s53 + $0x54] sm:$0xf]
  %s76 = scalar_lea.vmem %s1, 64
  %v77 = vld [vmem:[%s76] sm:$0xf]
  %v78 = vld [vmem:[%s76 + $0x4] sm:$0xf]
  %v79 = vld [vmem:[%s76 + $0x8] sm:$0xf]
  %v80 = vld [vmem:[%s76 + $0xc] sm:$0xf]
  %v81 = vld [vmem:[%s76 + $0x10] sm:$0xf]
  %v82 = vld [vmem:[%s76 + $0x14] sm:$0xf]
  %v83 = vld [vmem:[%s76 + $0x18] sm:$0xf]
  %v84 = vld [vmem:[%s76 + $0x1c] sm:$0xf]
  %v85 = vld [vmem:[%s76 + $0x20] sm:$0xf]
  %v86 = vld [vmem:[%s76 + $0x24] sm:$0xf]
  %v87 = vld [vmem:[%s76 + $0x28] sm:$0xf]
  %v88 = vld [vmem:[%s76 + $0x2c] sm:$0xf]
  %v89 = vld [vmem:[%s76 + $0x30] sm:$0xf]
  %v90 = vld [vmem:[%s76 + $0x34] sm:$0xf]
  %v91 = vld [vmem:[%s76 + $0x38] sm:$0xf]
  %v92 = vld [vmem:[%s76 + $0x3c] sm:$0xf]
  %v115 = vunpack.c.l.b16 %v54
  %v116 = vunpack.c.l.b16 %v55
  %v117 = vunpack.c.l.b16 %v56
  %v118 = vunpack.c.l.b16 %v57
  %v119 = vunpack.c.l.b16 %v58
  %v120 = vunpack.c.l.b16 %v59
  %v121 = vunpack.c.l.b16 %v60
  %v122 = vunpack.c.l.b16 %v61
  %v123 = vunpack.c.l.b16 %v62
  %v124 = vunpack.c.l.b16 %v63
  %v125 = vunpack.c.l.b16 %v64
  %v126 = vunpack.c.l.b16 %v65
  %v127 = vunpack.c.l.b16 %v66
  %v128 = vunpack.c.l.b16 %v67
  %v129 = vunpack.c.l.b16 %v68
  %v130 = vunpack.c.l.b16 %v69
  %v131 = vunpack.c.l.b16 %v70
  %v132 = vunpack.c.l.b16 %v71
  %v133 = vunpack.c.l.b16 %v72
  %v134 = vunpack.c.l.b16 %v73
  %v135 = vunpack.c.l.b16 %v74
  %v136 = vunpack.c.l.b16 %v75
  %v137 = vpack.c.b16 %v116, %v115
  %v138 = vpack.c.b16 %v118, %v117
  %v139 = vpack.c.b16 %v120, %v119
  %v140 = vpack.c.b16 %v122, %v121
  %v141 = vpack.c.b16 %v124, %v123
  %v142 = vpack.c.b16 %v126, %v125
  %v143 = vpack.c.b16 %v128, %v127
  %v144 = vpack.c.b16 %v130, %v129
  %v145 = vpack.c.b16 %v132, %v131
  %v146 = vpack.c.b16 %v134, %v133
  %v147 = vpack.c.b16 %v136, %v135
  %v175 = vunpack.c.l.b16 %v77
  %v176 = vunpack.c.l.b16 %v78
  %v177 = vunpack.c.l.b16 %v79
  %v178 = vunpack.c.l.b16 %v80
  %v179 = vunpack.c.l.b16 %v81
  %v180 = vunpack.c.l.b16 %v82
  %v181 = vunpack.c.l.b16 %v83
  %v182 = vunpack.c.l.b16 %v84
  %v183 = vunpack.c.l.b16 %v85
  %v184 = vunpack.c.l.b16 %v86
  %v185 = vunpack.c.l.b16 %v87
  %v186 = vunpack.c.l.b16 %v88
  %v187 = vunpack.c.l.b16 %v89
  %v188 = vunpack.c.l.b16 %v90
  %v189 = vunpack.c.l.b16 %v91
  %v190 = vunpack.c.l.b16 %v92
  %v191 = vpack.c.b16 %v176, %v175
  %v192 = vpack.c.b16 %v178, %v177
  %v193 = vpack.c.b16 %v180, %v179
  %v194 = vpack.c.b16 %v182, %v181
  %v195 = vpack.c.b16 %v184, %v183
  %v196 = vpack.c.b16 %v186, %v185
  %v197 = vpack.c.b16 %v188, %v187
  %v198 = vpack.c.b16 %v190, %v189
  %207 = vmatprep.subr.bf16.mxu0 0
  %208 = vmatpush1.bf16.msra.mxu0 %v191
  %209 = vmatprep.subr.bf16.mxu0 0
  %210 = vmatpush1.bf16.msra.mxu0 %v192
  %211 = vmatprep.subr.bf16.mxu0 0
  %212 = vmatpush1.bf16.msra.mxu0 %v193
  %213 = vmatprep.subr.bf16.mxu0 0
  %214 = vmatpush1.bf16.msra.mxu0 %v194
  %215 = vmatprep.subr.bf16.mxu0 0
  %216 = vmatpush1.bf16.msra.mxu0 %v195
  %217 = vmatprep.subr.bf16.mxu0 0
  %218 = vmatpush1.bf16.msra.mxu0 %v196
  %219 = vmatprep.subr.bf16.mxu0 0
  %220 = vmatpush1.bf16.msra.mxu0 %v197
  %221 = vmatprep.subr.bf16.mxu0 0
  %222 = vmatpush1.bf16.msra.mxu0 %v198
  %223 = vmatprep.subr.bf16.mxu0 0
  %224 = vmatpush1.bf16.msra.mxu0 0
  %225 = vmatprep.subr.bf16.mxu0 0
  %226 = vmatpush1.bf16.msra.mxu0 0
  %227 = vmatprep.subr.bf16.mxu0 0
  %228 = vmatpush1.bf16.msra.mxu0 0
  %229 = vmatprep.subr.bf16.mxu0 0
  %230 = vmatpush1.bf16.msra.mxu0 0
  %231 = vmatprep.subr.bf16.mxu0 0
  %232 = vmatpush1.bf16.msra.mxu0 0
  %233 = vmatprep.subr.bf16.mxu0 0
  %234 = vmatpush1.bf16.msra.mxu0 0
  %235 = vmatprep.subr.bf16.mxu0 0
  %236 = vmatpush1.bf16.msra.mxu0 0
  %237 = vmatprep.subr.bf16.mxu0 0
  %238 = vmatpush1.bf16.msra.mxu0 0
  %239 = vmatprep.mubr.bf16.mxu0 0
  %240 = vmatmul.mubr.bf16.gmra.mrb[0].mxu0 %v137
  %v241 = vpop.f32.mrb[0].mxu0
  %v242 = vadd.f32 0.0, %v241
  %v243 = vpop.f32.mrb[0].mxu0
  %v244 = vpop.f32.mrb[0].mxu0
  %v245 = vadd.f32 0.0, %v244
  %v246 = vpop.f32.mrb[0].mxu0
  %247 = vmatprep.mubr.bf16.mxu0 0
  %248 = vmatmul.mubr.bf16.gmra.mrb[0].mxu0 %v138
  %v249 = vpop.f32.mrb[0].mxu0
  %v250 = vadd.f32 0.0, %v249
  %v251 = vpop.f32.mrb[0].mxu0
  %v252 = vpop.f32.mrb[0].mxu0
  %v253 = vadd.f32 0.0, %v252
  %v254 = vpop.f32.mrb[0].mxu0
  %255 = vmatprep.mubr.bf16.mxu0 0
  %256 = vmatmul.mubr.bf16.gmra.mrb[0].mxu0 %v139
  %v257 = vpop.f32.mrb[0].mxu0
  %v258 = vadd.f32 0.0, %v257
  %v259 = vpop.f32.mrb[0].mxu0
  %v260 = vpop.f32.mrb[0].mxu0
  %v261 = vadd.f32 0.0, %v260
  %v262 = vpop.f32.mrb[0].mxu0
  %263 = vmatprep.mubr.bf16.mxu0 0
  %264 = vmatmul.mubr.bf16.gmra.mrb[0].mxu0 %v140
  %v265 = vpop.f32.mrb[0].mxu0
  %v266 = vadd.f32 0.0, %v265
  %v267 = vpop.f32.mrb[0].mxu0
  %v268 = vpop.f32.mrb[0].mxu0
  %v269 = vadd.f32 0.0, %v268
  %v270 = vpop.f32.mrb[0].mxu0
  %271 = vmatprep.mubr.bf16.mxu0 0
  %272 = vmatmul.mubr.bf16.gmra.mrb[0].mxu0 %v141
  %v273 = vpop.f32.mrb[0].mxu0
  %v274 = vadd.f32 0.0, %v273
  %v275 = vpop.f32.mrb[0].mxu0
  %v276 = vpop.f32.mrb[0].mxu0
  %v277 = vadd.f32 0.0, %v276
  %v278 = vpop.f32.mrb[0].mxu0
  %279 = vmatprep.mubr.bf16.mxu0 0
  %280 = vmatmul.mubr.bf16.gmra.mrb[0].mxu0 %v142
  %v281 = vpop.f32.mrb[0].mxu0
  %v282 = vadd.f32 0.0, %v281
  %v283 = vpop.f32.mrb[0].mxu0
  %v284 = vpop.f32.mrb[0].mxu0
  %v285 = vadd.f32 0.0, %v284
  %v286 = vpop.f32.mrb[0].mxu0
  %287 = vmatprep.mubr.bf16.mxu0 0
  %288 = vmatmul.mubr.bf16.gmra.mrb[0].mxu0 %v143
  %v289 = vpop.f32.mrb[0].mxu0
  %v290 = vadd.f32 0.0, %v289
  %v291 = vpop.f32.mrb[0].mxu0
  %v292 = vpop.f32.mrb[0].mxu0
  %v293 = vadd.f32 0.0, %v292
  %v294 = vpop.f32.mrb[0].mxu0
  %295 = vmatprep.mubr.bf16.mxu0 0
  %296 = vmatmul.mubr.bf16.gmra.mrb[0].mxu0 %v144
  %v297 = vpop.f32.mrb[0].mxu0
  %v298 = vadd.f32 0.0, %v297
  %v299 = vpop.f32.mrb[0].mxu0
  %v300 = vpop.f32.mrb[0].mxu0
  %v301 = vadd.f32 0.0, %v300
  %v302 = vpop.f32.mrb[0].mxu0
  %303 = vmatprep.mubr.bf16.mxu0 0
  %304 = vmatmul.mubr.bf16.gmra.mrb[0].mxu0 %v145
  %v305 = vpop.f32.mrb[0].mxu0
  %v306 = vadd.f32 0.0, %v305
  %v307 = vpop.f32.mrb[0].mxu0
  %v308 = vpop.f32.mrb[0].mxu0
  %v309 = vadd.f32 0.0, %v308
  %v310 = vpop.f32.mrb[0].mxu0
  %311 = vmatprep.mubr.bf16.mxu0 0
  %312 = vmatmul.mubr.bf16.gmra.mrb[0].mxu0 %v146
  %v313 = vpop.f32.mrb[0].mxu0
  %v314 = vadd.f32 0.0, %v313
  %v315 = vpop.f32.mrb[0].mxu0
  %v316 = vpop.f32.mrb[0].mxu0
  %v317 = vadd.f32 0.0, %v316
  %v318 = vpop.f32.mrb[0].mxu0
  %319 = vmatprep.mubr.bf16.mxu0 0
  %320 = vmatmul.mubr.bf16.gmra.mrb[0].mxu0 %v147
  %v321 = vpop.f32.mrb[0].mxu0
  %v322 = vadd.f32 0.0, %v321
  %v323 = vpop.f32.mrb[0].mxu0
  %v324 = vpop.f32.mrb[0].mxu0
  %v325 = vadd.f32 0.0, %v324
  %v326 = vpop.f32.mrb[0].mxu0
  %327 = vdwg.mxu0
  %v350 = vunpack.c.l.b16 %v15
  %v351 = vunpack.c.l.b16 %v16
  %v352 = vunpack.c.l.b16 %v17
  %v353 = vunpack.c.l.b16 %v18
  %v354 = vunpack.c.l.b16 %v19
  %v355 = vunpack.c.l.b16 %v20
  %v356 = vunpack.c.l.b16 %v21
  %v357 = vunpack.c.l.b16 %v22
  %v358 = vunpack.c.l.b16 %v23
  %v359 = vunpack.c.l.b16 %v24
  %v360 = vunpack.c.l.b16 %v25
  %v361 = vunpack.c.l.b16 %v26
  %v362 = vunpack.c.l.b16 %v27
  %v363 = vunpack.c.l.b16 %v28
  %v364 = vunpack.c.l.b16 %v29
  %v365 = vunpack.c.l.b16 %v30
  %v366 = vunpack.c.l.b16 %v31
  %v367 = vunpack.c.l.b16 %v32
  %v368 = vunpack.c.l.b16 %v33
  %v369 = vunpack.c.l.b16 %v34
  %v370 = vunpack.c.l.b16 %v35
  %v371 = vunpack.c.l.b16 %v36
  %v372 = vpack.c.b16 %v351, %v350
  %v373 = vpack.c.b16 %v353, %v352
  %v374 = vpack.c.b16 %v355, %v354
  %v375 = vpack.c.b16 %v357, %v356
  %v376 = vpack.c.b16 %v359, %v358
  %v377 = vpack.c.b16 %v361, %v360
  %v378 = vpack.c.b16 %v363, %v362
  %v379 = vpack.c.b16 %v365, %v364
  %v380 = vpack.c.b16 %v367, %v366
  %v381 = vpack.c.b16 %v369, %v368
  %v382 = vpack.c.b16 %v371, %v370
  %v410 = vunpack.c.l.b16 %v37
  %v411 = vunpack.c.l.b16 %v38
  %v412 = vunpack.c.l.b16 %v39
  %v413 = vunpack.c.l.b16 %v40
  %v414 = vunpack.c.l.b16 %v41
  %v415 = vunpack.c.l.b16 %v42
  %v416 = vunpack.c.l.b16 %v43
  %v417 = vunpack.c.l.b16 %v44
  %v418 = vunpack.c.l.b16 %v45
  %v419 = vunpack.c.l.b16 %v46
  %v420 = vunpack.c.l.b16 %v47
  %v421 = vunpack.c.l.b16 %v48
  %v422 = vunpack.c.l.b16 %v49
  %v423 = vunpack.c.l.b16 %v50
  %v424 = vunpack.c.l.b16 %v51
  %v425 = vunpack.c.l.b16 %v52
  %v426 = vpack.c.b16 %v411, %v410
  %v427 = vpack.c.b16 %v413, %v412
  %v428 = vpack.c.b16 %v415, %v414
  %v429 = vpack.c.b16 %v417, %v416
  %v430 = vpack.c.b16 %v419, %v418
  %v431 = vpack.c.b16 %v421, %v420
  %v432 = vpack.c.b16 %v423, %v422
  %v433 = vpack.c.b16 %v425, %v424
  %442 = vmatprep.subr.bf16.mxu0 0
  %443 = vmatpush1.bf16.msra.mxu0 %v426
  %444 = vmatprep.subr.bf16.mxu0 0
  %445 = vmatpush1.bf16.msra.mxu0 %v427
  %446 = vmatprep.subr.bf16.mxu0 0
  %447 = vmatpush1.bf16.msra.mxu0 %v428
  %448 = vmatprep.subr.bf16.mxu0 0
  %449 = vmatpush1.bf16.msra.mxu0 %v429
  %450 = vmatprep.subr.bf16.mxu0 0
  %451 = vmatpush1.bf16.msra.mxu0 %v430
  %452 = vmatprep.subr.bf16.mxu0 0
  %453 = vmatpush1.bf16.msra.mxu0 %v431
  %454 = vmatprep.subr.bf16.mxu0 0
  %455 = vmatpush1.bf16.msra.mxu0 %v432
  %456 = vmatprep.subr.bf16.mxu0 0
  %457 = vmatpush1.bf16.msra.mxu0 %v433
  %458 = vmatprep.subr.bf16.mxu0 0
  %459 = vmatpush1.bf16.msra.mxu0 0
  %460 = vmatprep.subr.bf16.mxu0 0
  %461 = vmatpush1.bf16.msra.mxu0 0
  %462 = vmatprep.subr.bf16.mxu0 0
  %463 = vmatpush1.bf16.msra.mxu0 0
  %464 = vmatprep.subr.bf16.mxu0 0
  %465 = vmatpush1.bf16.msra.mxu0 0
  %466 = vmatprep.subr.bf16.mxu0 0
  %467 = vmatpush1.bf16.msra.mxu0 0
  %468 = vmatprep.subr.bf16.mxu0 0
  %469 = vmatpush1.bf16.msra.mxu0 0
  %470 = vmatprep.subr.bf16.mxu0 0
  %471 = vmatpush1.bf16.msra.mxu0 0
  %472 = vmatprep.subr.bf16.mxu0 0
  %473 = vmatpush1.bf16.msra.mxu0 0
  %474 = vmatprep.mubr.bf16.mxu0 0
  %475 = vmatmul.mubr.bf16.gmra.mrb[0].mxu0 %v372
  %v476 = vpop.f32.mrb[0].mxu0
  %v477 = vadd.f32 %v242, %v476
  %v478 = vpop.f32.mrb[0].mxu0
  %v479 = vpop.f32.mrb[0].mxu0
  %v480 = vadd.f32 %v245, %v479
  %v481 = vpop.f32.mrb[0].mxu0
  %482 = vmatprep.mubr.bf16.mxu0 0
  %483 = vmatmul.mubr.bf16.gmra.mrb[0].mxu0 %v373
  %v484 = vpop.f32.mrb[0].mxu0
  %v485 = vadd.f32 %v250, %v484
  %v486 = vpop.f32.mrb[0].mxu0
  %v487 = vpop.f32.mrb[0].mxu0
  %v488 = vadd.f32 %v253, %v487
  %v489 = vpop.f32.mrb[0].mxu0
  %490 = vmatprep.mubr.bf16.mxu0 0
  %491 = vmatmul.mubr.bf16.gmra.mrb[0].mxu0 %v374
  %v492 = vpop.f32.mrb[0].mxu0
  %v493 = vadd.f32 %v258, %v492
  %v494 = vpop.f32.mrb[0].mxu0
  %v495 = vpop.f32.mrb[0].mxu0
  %v496 = vadd.f32 %v261, %v495
  %v497 = vpop.f32.mrb[0].mxu0
  %498 = vmatprep.mubr.bf16.mxu0 0
  %499 = vmatmul.mubr.bf16.gmra.mrb[0].mxu0 %v375
  %v500 = vpop.f32.mrb[0].mxu0
  %v501 = vadd.f32 %v266, %v500
  %v502 = vpop.f32.mrb[0].mxu0
  %v503 = vpop.f32.mrb[0].mxu0
  %v504 = vadd.f32 %v269, %v503
  %v505 = vpop.f32.mrb[0].mxu0
  %506 = vmatprep.mubr.bf16.mxu0 0
  %507 = vmatmul.mubr.bf16.gmra.mrb[0].mxu0 %v376
  %v508 = vpop.f32.mrb[0].mxu0
  %v509 = vadd.f32 %v274, %v508
  %v510 = vpop.f32.mrb[0].mxu0
  %v511 = vpop.f32.mrb[0].mxu0
  %v512 = vadd.f32 %v277, %v511
  %v513 = vpop.f32.mrb[0].mxu0
  %514 = vmatprep.mubr.bf16.mxu0 0
  %515 = vmatmul.mubr.bf16.gmra.mrb[0].mxu0 %v377
  %v516 = vpop.f32.mrb[0].mxu0
  %v517 = vadd.f32 %v282, %v516
  %v518 = vpop.f32.mrb[0].mxu0
  %v519 = vpop.f32.mrb[0].mxu0
  %v520 = vadd.f32 %v285, %v519
  %v521 = vpop.f32.mrb[0].mxu0
  %522 = vmatprep.mubr.bf16.mxu0 0
  %523 = vmatmul.mubr.bf16.gmra.mrb[0].mxu0 %v378
  %v524 = vpop.f32.mrb[0].mxu0
  %v525 = vadd.f32 %v290, %v524
  %v526 = vpop.f32.mrb[0].mxu0
  %v527 = vpop.f32.mrb[0].mxu0
  %v528 = vadd.f32 %v293, %v527
  %v529 = vpop.f32.mrb[0].mxu0
  %530 = vmatprep.mubr.bf16.mxu0 0
  %531 = vmatmul.mubr.bf16.gmra.mrb[0].mxu0 %v379
  %v532 = vpop.f32.mrb[0].mxu0
  %v533 = vadd.f32 %v298, %v532
  %v534 = vpop.f32.mrb[0].mxu0
  %v535 = vpop.f32.mrb[0].mxu0
  %v536 = vadd.f32 %v301, %v535
  %v537 = vpop.f32.mrb[0].mxu0
  %538 = vmatprep.mubr.bf16.mxu0 0
  %539 = vmatmul.mubr.bf16.gmra.mrb[0].mxu0 %v380
  %v540 = vpop.f32.mrb[0].mxu0
  %v541 = vadd.f32 %v306, %v540
  %v542 = vpop.f32.mrb[0].mxu0
  %v543 = vpop.f32.mrb[0].mxu0
  %v544 = vadd.f32 %v309, %v543
  %v545 = vpop.f32.mrb[0].mxu0
  %546 = vmatprep.mubr.bf16.mxu0 0
  %547 = vmatmul.mubr.bf16.gmra.mrb[0].mxu0 %v381
  %v548 = vpop.f32.mrb[0].mxu0
  %v549 = vadd.f32 %v314, %v548
  %v550 = vpop.f32.mrb[0].mxu0
  %v551 = vpop.f32.mrb[0].mxu0
  %v552 = vadd.f32 %v317, %v551
  %v553 = vpop.f32.mrb[0].mxu0
  %554 = vmatprep.mubr.bf16.mxu0 0
  %555 = vmatmul.mubr.bf16.gmra.mrb[0].mxu0 %v382
  %v556 = vpop.f32.mrb[0].mxu0
  %v557 = vadd.f32 %v322, %v556
  %v558 = vpop.f32.mrb[0].mxu0
  %v559 = vpop.f32.mrb[0].mxu0
  %v560 = vadd.f32 %v325, %v559
  %v561 = vpop.f32.mrb[0].mxu0
  %562 = vdwg.mxu0
  %v563 = vld [vmem:[%s0] sm:$0xf]
  %v564 = vld [vmem:[%s0 + $0x4] sm:$0xf]
  %v565 = vld [vmem:[%s0 + $0x8] sm:$0xf]
  %v566 = vld [vmem:[%s0 + $0xc] sm:$0xf]
  %v567 = vld [vmem:[%s0 + $0x10] sm:$0xf]
  %v568 = vld [vmem:[%s0 + $0x14] sm:$0xf]
  %v569 = vld [vmem:[%s0 + $0x18] sm:$0xf]
  %v570 = vld [vmem:[%s0 + $0x1c] sm:$0xf]
  %v571 = vld [vmem:[%s0 + $0x20] sm:$0xf]
  %v572 = vld [vmem:[%s0 + $0x24] sm:$0xf]
  %v573 = vld [vmem:[%s0 + $0x28] sm:$0xf]
  %v574 = vld [vmem:[%s0 + $0x2c] sm:$0xf]
  %v575 = vld [vmem:[%s0 + $0x30] sm:$0xf]
  %v576 = vld [vmem:[%s0 + $0x34] sm:$0xf]
  %v577 = vld [vmem:[%s0 + $0x38] sm:$0xf]
  %v578 = vld [vmem:[%s0 + $0x3c] sm:$0xf]
  %v579 = vld [vmem:[%s0 + $0x40] sm:$0xf]
  %v580 = vld [vmem:[%s0 + $0x44] sm:$0xf]
  %v581 = vld [vmem:[%s0 + $0x48] sm:$0xf]
  %v582 = vld [vmem:[%s0 + $0x4c] sm:$0xf]
  %v583 = vld [vmem:[%s0 + $0x50] sm:$0xf]
  %v584 = vld [vmem:[%s0 + $0x54] sm:$0xf]
  %v585 = vld [vmem:[%s0 + $0x58] sm:$0x1]
  %s586 = scalar_lea.vmem %s1, 128
  %v587 = vld [vmem:[%s586] sm:$0xf]
  %v588 = vld [vmem:[%s586 + $0x4] sm:$0xf]
  %v589 = vld [vmem:[%s586 + $0x8] sm:$0xf]
  %v590 = vld [vmem:[%s586 + $0xc] sm:$0xf]
  %v591 = vld [vmem:[%s586 + $0x10] sm:$0xf]
  %v592 = vld [vmem:[%s586 + $0x14] sm:$0xf]
  %v593 = vld [vmem:[%s586 + $0x18] sm:$0xf]
  %v594 = vld [vmem:[%s586 + $0x1c] sm:$0xf]
  %v595 = vld [vmem:[%s586 + $0x20] sm:$0xf]
  %v596 = vld [vmem:[%s586 + $0x24] sm:$0xf]
  %v597 = vld [vmem:[%s586 + $0x28] sm:$0xf]
  %v598 = vld [vmem:[%s586 + $0x2c] sm:$0xf]
  %v599 = vld [vmem:[%s586 + $0x30] sm:$0xf]
  %v600 = vld [vmem:[%s586 + $0x34] sm:$0xf]
  %v601 = vld [vmem:[%s586 + $0x38] sm:$0xf]
  %v602 = vld [vmem:[%s586 + $0x3c] sm:$0xf]
  %v626 = vunpack.c.l.b16 %v563
  %v627 = vunpack.c.l.b16 %v564
  %v628 = vunpack.c.l.b16 %v565
  %v629 = vunpack.c.l.b16 %v566
  %v630 = vunpack.c.l.b16 %v567
  %v631 = vunpack.c.l.b16 %v568
  %v632 = vunpack.c.l.b16 %v569
  %v633 = vunpack.c.l.b16 %v570
  %v634 = vunpack.c.l.b16 %v571
  %v635 = vunpack.c.l.b16 %v572
  %v636 = vunpack.c.l.b16 %v573
  %v637 = vunpack.c.l.b16 %v574
  %v638 = vunpack.c.l.b16 %v575
  %v639 = vunpack.c.l.b16 %v576
  %v640 = vunpack.c.l.b16 %v577
  %v641 = vunpack.c.l.b16 %v578
  %v642 = vunpack.c.l.b16 %v579
  %v643 = vunpack.c.l.b16 %v580
  %v644 = vunpack.c.l.b16 %v581
  %v645 = vunpack.c.l.b16 %v582
  %v646 = vunpack.c.l.b16 %v583
  %v647 = vunpack.c.l.b16 %v584
  %v648 = vunpack.c.l.b16 %v585
  %v649 = vpack.c.b16 %v627, %v626
  %v650 = vpack.c.b16 %v629, %v628
  %v651 = vpack.c.b16 %v631, %v630
  %v652 = vpack.c.b16 %v633, %v632
  %v653 = vpack.c.b16 %v635, %v634
  %v654 = vpack.c.b16 %v637, %v636
  %v655 = vpack.c.b16 %v639, %v638
  %v656 = vpack.c.b16 %v641, %v640
  %v657 = vpack.c.b16 %v643, %v642
  %v658 = vpack.c.b16 %v645, %v644
  %v659 = vpack.c.b16 %v647, %v646
  %v660 = vpack.c.b16 %v648, %v648
  %vm661 = vsmask.f32 7424
  %v663 = vshrl.u32 %v649, 16
  %v665 = vshll.u32 %v649, 16
  %v667 = vrot.slane %v665, 1
  %v668 = vor.u32 %v663, %v667
  %v670 = vshll.u32 %v650, 16
  %v672 = vrot.slane %v670, 1
  %v673 = vsel %vm661, %v668, %v672
  %v674 = vshrl.u32 %v650, 16
  %v676 = vor.u32 %v674, %v672
  %v678 = vshll.u32 %v651, 16
  %v680 = vrot.slane %v678, 1
  %v681 = vsel %vm661, %v676, %v680
  %v682 = vshrl.u32 %v651, 16
  %v684 = vor.u32 %v682, %v680
  %v686 = vshll.u32 %v652, 16
  %v688 = vrot.slane %v686, 1
  %v689 = vsel %vm661, %v684, %v688
  %v690 = vshrl.u32 %v652, 16
  %v692 = vor.u32 %v690, %v688
  %v694 = vshll.u32 %v653, 16
  %v696 = vrot.slane %v694, 1
  %v697 = vsel %vm661, %v692, %v696
  %v698 = vshrl.u32 %v653, 16
  %v700 = vor.u32 %v698, %v696
  %v702 = vshll.u32 %v654, 16
  %v704 = vrot.slane %v702, 1
  %v705 = vsel %vm661, %v700, %v704
  %v706 = vshrl.u32 %v654, 16
  %v708 = vor.u32 %v706, %v704
  %v710 = vshll.u32 %v655, 16
  %v712 = vrot.slane %v710, 1
  %v713 = vsel %vm661, %v708, %v712
  %v714 = vshrl.u32 %v655, 16
  %v716 = vor.u32 %v714, %v712
  %v718 = vshll.u32 %v656, 16
  %v720 = vrot.slane %v718, 1
  %v721 = vsel %vm661, %v716, %v720
  %v722 = vshrl.u32 %v656, 16
  %v724 = vor.u32 %v722, %v720
  %v726 = vshll.u32 %v657, 16
  %v728 = vrot.slane %v726, 1
  %v729 = vsel %vm661, %v724, %v728
  %v730 = vshrl.u32 %v657, 16
  %v732 = vor.u32 %v730, %v728
  %v734 = vshll.u32 %v658, 16
  %v736 = vrot.slane %v734, 1
  %v737 = vsel %vm661, %v732, %v736
  %v738 = vshrl.u32 %v658, 16
  %v740 = vor.u32 %v738, %v736
  %v742 = vshll.u32 %v659, 16
  %v744 = vrot.slane %v742, 1
  %v745 = vsel %vm661, %v740, %v744
  %v746 = vshrl.u32 %v659, 16
  %v748 = vor.u32 %v746, %v744
  %v750 = vshll.u32 %v660, 16
  %v752 = vrot.slane %v750, 1
  %v753 = vsel %vm661, %v748, %v752
  %v781 = vunpack.c.l.b16 %v587
  %v782 = vunpack.c.l.b16 %v588
  %v783 = vunpack.c.l.b16 %v589
  %v784 = vunpack.c.l.b16 %v590
  %v785 = vunpack.c.l.b16 %v591
  %v786 = vunpack.c.l.b16 %v592
  %v787 = vunpack.c.l.b16 %v593
  %v788 = vunpack.c.l.b16 %v594
  %v789 = vunpack.c.l.b16 %v595
  %v790 = vunpack.c.l.b16 %v596
  %v791 = vunpack.c.l.b16 %v597
  %v792 = vunpack.c.l.b16 %v598
  %v793 = vunpack.c.l.b16 %v599
  %v794 = vunpack.c.l.b16 %v600
  %v795 = vunpack.c.l.b16 %v601
  %v796 = vunpack.c.l.b16 %v602
  %v797 = vpack.c.b16 %v782, %v781
  %v798 = vpack.c.b16 %v784, %v783
  %v799 = vpack.c.b16 %v786, %v785
  %v800 = vpack.c.b16 %v788, %v787
  %v801 = vpack.c.b16 %v790, %v789
  %v802 = vpack.c.b16 %v792, %v791
  %v803 = vpack.c.b16 %v794, %v793
  %v804 = vpack.c.b16 %v796, %v795
  %813 = vmatprep.subr.bf16.mxu0 0
  %814 = vmatpush1.bf16.msra.mxu0 %v797
  %815 = vmatprep.subr.bf16.mxu0 0
  %816 = vmatpush1.bf16.msra.mxu0 %v798
  %817 = vmatprep.subr.bf16.mxu0 0
  %818 = vmatpush1.bf16.msra.mxu0 %v799
  %819 = vmatprep.subr.bf16.mxu0 0
  %820 = vmatpush1.bf16.msra.mxu0 %v800
  %821 = vmatprep.subr.bf16.mxu0 0
  %822 = vmatpush1.bf16.msra.mxu0 %v801
  %823 = vmatprep.subr.bf16.mxu0 0
  %824 = vmatpush1.bf16.msra.mxu0 %v802
  %825 = vmatprep.subr.bf16.mxu0 0
  %826 = vmatpush1.bf16.msra.mxu0 %v803
  %827 = vmatprep.subr.bf16.mxu0 0
  %828 = vmatpush1.bf16.msra.mxu0 %v804
  %829 = vmatprep.subr.bf16.mxu0 0
  %830 = vmatpush1.bf16.msra.mxu0 0
  %831 = vmatprep.subr.bf16.mxu0 0
  %832 = vmatpush1.bf16.msra.mxu0 0
  %833 = vmatprep.subr.bf16.mxu0 0
  %834 = vmatpush1.bf16.msra.mxu0 0
  %835 = vmatprep.subr.bf16.mxu0 0
  %836 = vmatpush1.bf16.msra.mxu0 0
  %837 = vmatprep.subr.bf16.mxu0 0
  %838 = vmatpush1.bf16.msra.mxu0 0
  %839 = vmatprep.subr.bf16.mxu0 0
  %840 = vmatpush1.bf16.msra.mxu0 0
  %841 = vmatprep.subr.bf16.mxu0 0
  %842 = vmatpush1.bf16.msra.mxu0 0
  %843 = vmatprep.subr.bf16.mxu0 0
  %844 = vmatpush1.bf16.msra.mxu0 0
  %845 = vmatprep.mubr.bf16.mxu0 0
  %846 = vmatmul.mubr.bf16.gmra.mrb[0].mxu0 %v673
  %v847 = vpop.f32.mrb[0].mxu0
  %v848 = vadd.f32 0.0, %v847
  %v849 = vpop.f32.mrb[0].mxu0
  %v850 = vpop.f32.mrb[0].mxu0
  %v851 = vadd.f32 0.0, %v850
  %v852 = vpop.f32.mrb[0].mxu0
  %853 = vmatprep.mubr.bf16.mxu0 0
  %854 = vmatmul.mubr.bf16.gmra.mrb[0].mxu0 %v681
  %v855 = vpop.f32.mrb[0].mxu0
  %v856 = vadd.f32 0.0, %v855
  %v857 = vpop.f32.mrb[0].mxu0
  %v858 = vpop.f32.mrb[0].mxu0
  %v859 = vadd.f32 0.0, %v858
  %v860 = vpop.f32.mrb[0].mxu0
  %861 = vmatprep.mubr.bf16.mxu0 0
  %862 = vmatmul.mubr.bf16.gmra.mrb[0].mxu0 %v689
  %v863 = vpop.f32.mrb[0].mxu0
  %v864 = vadd.f32 0.0, %v863
  %v865 = vpop.f32.mrb[0].mxu0
  %v866 = vpop.f32.mrb[0].mxu0
  %v867 = vadd.f32 0.0, %v866
  %v868 = vpop.f32.mrb[0].mxu0
  %869 = vmatprep.mubr.bf16.mxu0 0
  %870 = vmatmul.mubr.bf16.gmra.mrb[0].mxu0 %v697
  %v871 = vpop.f32.mrb[0].mxu0
  %v872 = vadd.f32 0.0, %v871
  %v873 = vpop.f32.mrb[0].mxu0
  %v874 = vpop.f32.mrb[0].mxu0
  %v875 = vadd.f32 0.0, %v874
  %v876 = vpop.f32.mrb[0].mxu0
  %877 = vmatprep.mubr.bf16.mxu0 0
  %878 = vmatmul.mubr.bf16.gmra.mrb[0].mxu0 %v705
  %v879 = vpop.f32.mrb[0].mxu0
  %v880 = vadd.f32 0.0, %v879
  %v881 = vpop.f32.mrb[0].mxu0
  %v882 = vpop.f32.mrb[0].mxu0
  %v883 = vadd.f32 0.0, %v882
  %v884 = vpop.f32.mrb[0].mxu0
  %885 = vmatprep.mubr.bf16.mxu0 0
  %886 = vmatmul.mubr.bf16.gmra.mrb[0].mxu0 %v713
  %v887 = vpop.f32.mrb[0].mxu0
  %v888 = vadd.f32 0.0, %v887
  %v889 = vpop.f32.mrb[0].mxu0
  %v890 = vpop.f32.mrb[0].mxu0
  %v891 = vadd.f32 0.0, %v890
  %v892 = vpop.f32.mrb[0].mxu0
  %893 = vmatprep.mubr.bf16.mxu0 0
  %894 = vmatmul.mubr.bf16.gmra.mrb[0].mxu0 %v721
  %v895 = vpop.f32.mrb[0].mxu0
  %v896 = vadd.f32 0.0, %v895
  %v897 = vpop.f32.mrb[0].mxu0
  %v898 = vpop.f32.mrb[0].mxu0
  %v899 = vadd.f32 0.0, %v898
  %v900 = vpop.f32.mrb[0].mxu0
  %901 = vmatprep.mubr.bf16.mxu0 0
  %902 = vmatmul.mubr.bf16.gmra.mrb[0].mxu0 %v729
  %v903 = vpop.f32.mrb[0].mxu0
  %v904 = vadd.f32 0.0, %v903
  %v905 = vpop.f32.mrb[0].mxu0
  %v906 = vpop.f32.mrb[0].mxu0
  %v907 = vadd.f32 0.0, %v906
  %v908 = vpop.f32.mrb[0].mxu0
  %909 = vmatprep.mubr.bf16.mxu0 0
  %910 = vmatmul.mubr.bf16.gmra.mrb[0].mxu0 %v737
  %v911 = vpop.f32.mrb[0].mxu0
  %v912 = vadd.f32 0.0, %v911
  %v913 = vpop.f32.mrb[0].mxu0
  %v914 = vpop.f32.mrb[0].mxu0
  %v915 = vadd.f32 0.0, %v914
  %v916 = vpop.f32.mrb[0].mxu0
  %917 = vmatprep.mubr.bf16.mxu0 0
  %918 = vmatmul.mubr.bf16.gmra.mrb[0].mxu0 %v745
  %v919 = vpop.f32.mrb[0].mxu0
  %v920 = vadd.f32 0.0, %v919
  %v921 = vpop.f32.mrb[0].mxu0
  %v922 = vpop.f32.mrb[0].mxu0
  %v923 = vadd.f32 0.0, %v922
  %v924 = vpop.f32.mrb[0].mxu0
  %925 = vmatprep.mubr.bf16.mxu0 0
  %926 = vmatmul.mubr.bf16.gmra.mrb[0].mxu0 %v753
  %v927 = vpop.f32.mrb[0].mxu0
  %v928 = vadd.f32 0.0, %v927
  %v929 = vpop.f32.mrb[0].mxu0
  %v930 = vpop.f32.mrb[0].mxu0
  %v931 = vadd.f32 0.0, %v930
  %v932 = vpop.f32.mrb[0].mxu0
  %933 = vdwg.mxu0
  %v934 = vadd.f32 %v477, %v848
  %v935 = vadd.f32 %v480, %v851
  %v936 = vadd.f32 %v485, %v856
  %v937 = vadd.f32 %v488, %v859
  %v938 = vadd.f32 %v493, %v864
  %v939 = vadd.f32 %v496, %v867
  %v940 = vadd.f32 %v501, %v872
  %v941 = vadd.f32 %v504, %v875
  %v942 = vadd.f32 %v509, %v880
  %v943 = vadd.f32 %v512, %v883
  %v944 = vadd.f32 %v517, %v888
  %v945 = vadd.f32 %v520, %v891
  %v946 = vadd.f32 %v525, %v896
  %v947 = vadd.f32 %v528, %v899
  %v948 = vadd.f32 %v533, %v904
  %v949 = vadd.f32 %v536, %v907
  %v950 = vadd.f32 %v541, %v912
  %v951 = vadd.f32 %v544, %v915
  %v952 = vadd.f32 %v549, %v920
  %v953 = vadd.f32 %v552, %v923
  %v954 = vadd.f32 %v557, %v928
  %v955 = vadd.f32 %v560, %v931
  %s956 = scalar_lea.vmem %s0, 192
  %v957 = vld [vmem:[%s956] sm:$0xf]
  %v958 = vld [vmem:[%s956 + $0x4] sm:$0xf]
  %v959 = vld [vmem:[%s956 + $0x8] sm:$0xf]
  %v960 = vld [vmem:[%s956 + $0xc] sm:$0xf]
  %v961 = vld [vmem:[%s956 + $0x10] sm:$0xf]
  %v962 = vld [vmem:[%s956 + $0x14] sm:$0xf]
  %v963 = vld [vmem:[%s956 + $0x18] sm:$0xf]
  %v964 = vld [vmem:[%s956 + $0x1c] sm:$0xf]
  %v965 = vld [vmem:[%s956 + $0x20] sm:$0xf]
  %v966 = vld [vmem:[%s956 + $0x24] sm:$0xf]
  %v967 = vld [vmem:[%s956 + $0x28] sm:$0xf]
  %v968 = vld [vmem:[%s956 + $0x2c] sm:$0xf]
  %v969 = vld [vmem:[%s956 + $0x30] sm:$0xf]
  %v970 = vld [vmem:[%s956 + $0x34] sm:$0xf]
  %v971 = vld [vmem:[%s956 + $0x38] sm:$0xf]
  %v972 = vld [vmem:[%s956 + $0x3c] sm:$0xf]
  %v973 = vld [vmem:[%s956 + $0x40] sm:$0xf]
  %v974 = vld [vmem:[%s956 + $0x44] sm:$0xf]
  %v975 = vld [vmem:[%s956 + $0x48] sm:$0xf]
  %v976 = vld [vmem:[%s956 + $0x4c] sm:$0xf]
  %v977 = vld [vmem:[%s956 + $0x50] sm:$0xf]
  %v978 = vld [vmem:[%s956 + $0x54] sm:$0xf]
  %s979 = scalar_lea.vmem %s1, 192
  %v980 = vld [vmem:[%s979] sm:$0xf]
  %v981 = vld [vmem:[%s979 + $0x4] sm:$0xf]
  %v982 = vld [vmem:[%s979 + $0x8] sm:$0xf]
  %v983 = vld [vmem:[%s979 + $0xc] sm:$0xf]
  %v984 = vld [vmem:[%s979 + $0x10] sm:$0xf]
  %v985 = vld [vmem:[%s979 + $0x14] sm:$0xf]
  %v986 = vld [vmem:[%s979 + $0x18] sm:$0xf]
  %v987 = vld [vmem:[%s979 + $0x1c] sm:$0xf]
  %v988 = vld [vmem:[%s979 + $0x20] sm:$0xf]
  %v989 = vld [vmem:[%s979 + $0x24] sm:$0xf]
  %v990 = vld [vmem:[%s979 + $0x28] sm:$0xf]
  %v991 = vld [vmem:[%s979 + $0x2c] sm:$0xf]
  %v992 = vld [vmem:[%s979 + $0x30] sm:$0xf]
  %v993 = vld [vmem:[%s979 + $0x34] sm:$0xf]
  %v994 = vld [vmem:[%s979 + $0x38] sm:$0xf]
  %v995 = vld [vmem:[%s979 + $0x3c] sm:$0xf]
  %v1018 = vunpack.c.l.b16 %v957
  %v1019 = vunpack.c.l.b16 %v958
  %v1020 = vunpack.c.l.b16 %v959
  %v1021 = vunpack.c.l.b16 %v960
  %v1022 = vunpack.c.l.b16 %v961
  %v1023 = vunpack.c.l.b16 %v962
  %v1024 = vunpack.c.l.b16 %v963
  %v1025 = vunpack.c.l.b16 %v964
  %v1026 = vunpack.c.l.b16 %v965
  %v1027 = vunpack.c.l.b16 %v966
  %v1028 = vunpack.c.l.b16 %v967
  %v1029 = vunpack.c.l.b16 %v968
  %v1030 = vunpack.c.l.b16 %v969
  %v1031 = vunpack.c.l.b16 %v970
  %v1032 = vunpack.c.l.b16 %v971
  %v1033 = vunpack.c.l.b16 %v972
  %v1034 = vunpack.c.l.b16 %v973
  %v1035 = vunpack.c.l.b16 %v974
  %v1036 = vunpack.c.l.b16 %v975
  %v1037 = vunpack.c.l.b16 %v976
  %v1038 = vunpack.c.l.b16 %v977
  %v1039 = vunpack.c.l.b16 %v978
  %v1040 = vpack.c.b16 %v1019, %v1018
  %v1041 = vpack.c.b16 %v1021, %v1020
  %v1042 = vpack.c.b16 %v1023, %v1022
  %v1043 = vpack.c.b16 %v1025, %v1024
  %v1044 = vpack.c.b16 %v1027, %v1026
  %v1045 = vpack.c.b16 %v1029, %v1028
  %v1046 = vpack.c.b16 %v1031, %v1030
  %v1047 = vpack.c.b16 %v1033, %v1032
  %v1048 = vpack.c.b16 %v1035, %v1034
  %v1049 = vpack.c.b16 %v1037, %v1036
  %v1050 = vpack.c.b16 %v1039, %v1038
  %v1078 = vunpack.c.l.b16 %v980
  %v1079 = vunpack.c.l.b16 %v981
  %v1080 = vunpack.c.l.b16 %v982
  %v1081 = vunpack.c.l.b16 %v983
  %v1082 = vunpack.c.l.b16 %v984
  %v1083 = vunpack.c.l.b16 %v985
  %v1084 = vunpack.c.l.b16 %v986
  %v1085 = vunpack.c.l.b16 %v987
  %v1086 = vunpack.c.l.b16 %v988
  %v1087 = vunpack.c.l.b16 %v989
  %v1088 = vunpack.c.l.b16 %v990
  %v1089 = vunpack.c.l.b16 %v991
  %v1090 = vunpack.c.l.b16 %v992
  %v1091 = vunpack.c.l.b16 %v993
  %v1092 = vunpack.c.l.b16 %v994
  %v1093 = vunpack.c.l.b16 %v995
  %v1094 = vpack.c.b16 %v1079, %v1078
  %v1095 = vpack.c.b16 %v1081, %v1080
  %v1096 = vpack.c.b16 %v1083, %v1082
  %v1097 = vpack.c.b16 %v1085, %v1084
  %v1098 = vpack.c.b16 %v1087, %v1086
  %v1099 = vpack.c.b16 %v1089, %v1088
  %v1100 = vpack.c.b16 %v1091, %v1090
  %v1101 = vpack.c.b16 %v1093, %v1092
  %1110 = vmatprep.subr.bf16.mxu0 0
  %1111 = vmatpush1.bf16.msra.mxu0 %v1094
  %1112 = vmatprep.subr.bf16.mxu0 0
  %1113 = vmatpush1.bf16.msra.mxu0 %v1095
  %1114 = vmatprep.subr.bf16.mxu0 0
  %1115 = vmatpush1.bf16.msra.mxu0 %v1096
  %1116 = vmatprep.subr.bf16.mxu0 0
  %1117 = vmatpush1.bf16.msra.mxu0 %v1097
  %1118 = vmatprep.subr.bf16.mxu0 0
  %1119 = vmatpush1.bf16.msra.mxu0 %v1098
  %1120 = vmatprep.subr.bf16.mxu0 0
  %1121 = vmatpush1.bf16.msra.mxu0 %v1099
  %1122 = vmatprep.subr.bf16.mxu0 0
  %1123 = vmatpush1.bf16.msra.mxu0 %v1100
  %1124 = vmatprep.subr.bf16.mxu0 0
  %1125 = vmatpush1.bf16.msra.mxu0 %v1101
  %1126 = vmatprep.subr.bf16.mxu0 0
  %1127 = vmatpush1.bf16.msra.mxu0 0
  %1128 = vmatprep.subr.bf16.mxu0 0
  %1129 = vmatpush1.bf16.msra.mxu0 0
  %1130 = vmatprep.subr.bf16.mxu0 0
  %1131 = vmatpush1.bf16.msra.mxu0 0
  %1132 = vmatprep.subr.bf16.mxu0 0
  %1133 = vmatpush1.bf16.msra.mxu0 0
  %1134 = vmatprep.subr.bf16.mxu0 0
  %1135 = vmatpush1.bf16.msra.mxu0 0
  %1136 = vmatprep.subr.bf16.mxu0 0
  %1137 = vmatpush1.bf16.msra.mxu0 0
  %1138 = vmatprep.subr.bf16.mxu0 0
  %1139 = vmatpush1.bf16.msra.mxu0 0
  %1140 = vmatprep.subr.bf16.mxu0 0
  %1141 = vmatpush1.bf16.msra.mxu0 0
  %1142 = vmatprep.mubr.bf16.mxu0 0
  %1143 = vmatmul.mubr.bf16.gmra.mrb[0].mxu0 %v1040
  %v1144 = vpop.f32.mrb[0].mxu0
  %v1145 = vadd.f32 0.0, %v1144
  %v1146 = vpop.f32.mrb[0].mxu0
  %v1147 = vpop.f32.mrb[0].mxu0
  %v1148 = vadd.f32 0.0, %v1147
  %v1149 = vpop.f32.mrb[0].mxu0
  %1150 = vmatprep.mubr.bf16.mxu0 0
  %1151 = vmatmul.mubr.bf16.gmra.mrb[0].mxu0 %v1041
  %v1152 = vpop.f32.mrb[0].mxu0
  %v1153 = vadd.f32 0.0, %v1152
  %v1154 = vpop.f32.mrb[0].mxu0
  %v1155 = vpop.f32.mrb[0].mxu0
  %v1156 = vadd.f32 0.0, %v1155
  %v1157 = vpop.f32.mrb[0].mxu0
  %1158 = vmatprep.mubr.bf16.mxu0 0
  %1159 = vmatmul.mubr.bf16.gmra.mrb[0].mxu0 %v1042
  %v1160 = vpop.f32.mrb[0].mxu0
  %v1161 = vadd.f32 0.0, %v1160
  %v1162 = vpop.f32.mrb[0].mxu0
  %v1163 = vpop.f32.mrb[0].mxu0
  %v1164 = vadd.f32 0.0, %v1163
  %v1165 = vpop.f32.mrb[0].mxu0
  %1166 = vmatprep.mubr.bf16.mxu0 0
  %1167 = vmatmul.mubr.bf16.gmra.mrb[0].mxu0 %v1043
  %v1168 = vpop.f32.mrb[0].mxu0
  %v1169 = vadd.f32 0.0, %v1168
  %v1170 = vpop.f32.mrb[0].mxu0
  %v1171 = vpop.f32.mrb[0].mxu0
  %v1172 = vadd.f32 0.0, %v1171
  %v1173 = vpop.f32.mrb[0].mxu0
  %1174 = vmatprep.mubr.bf16.mxu0 0
  %1175 = vmatmul.mubr.bf16.gmra.mrb[0].mxu0 %v1044
  %v1176 = vpop.f32.mrb[0].mxu0
  %v1177 = vadd.f32 0.0, %v1176
  %v1178 = vpop.f32.mrb[0].mxu0
  %v1179 = vpop.f32.mrb[0].mxu0
  %v1180 = vadd.f32 0.0, %v1179
  %v1181 = vpop.f32.mrb[0].mxu0
  %1182 = vmatprep.mubr.bf16.mxu0 0
  %1183 = vmatmul.mubr.bf16.gmra.mrb[0].mxu0 %v1045
  %v1184 = vpop.f32.mrb[0].mxu0
  %v1185 = vadd.f32 0.0, %v1184
  %v1186 = vpop.f32.mrb[0].mxu0
  %v1187 = vpop.f32.mrb[0].mxu0
  %v1188 = vadd.f32 0.0, %v1187
  %v1189 = vpop.f32.mrb[0].mxu0
  %1190 = vmatprep.mubr.bf16.mxu0 0
  %1191 = vmatmul.mubr.bf16.gmra.mrb[0].mxu0 %v1046
  %v1192 = vpop.f32.mrb[0].mxu0
  %v1193 = vadd.f32 0.0, %v1192
  %v1194 = vpop.f32.mrb[0].mxu0
  %v1195 = vpop.f32.mrb[0].mxu0
  %v1196 = vadd.f32 0.0, %v1195
  %v1197 = vpop.f32.mrb[0].mxu0
  %1198 = vmatprep.mubr.bf16.mxu0 0
  %1199 = vmatmul.mubr.bf16.gmra.mrb[0].mxu0 %v1047
  %v1200 = vpop.f32.mrb[0].mxu0
  %v1201 = vadd.f32 0.0, %v1200
  %v1202 = vpop.f32.mrb[0].mxu0
  %v1203 = vpop.f32.mrb[0].mxu0
  %v1204 = vadd.f32 0.0, %v1203
  %v1205 = vpop.f32.mrb[0].mxu0
  %1206 = vmatprep.mubr.bf16.mxu0 0
  %1207 = vmatmul.mubr.bf16.gmra.mrb[0].mxu0 %v1048
  %v1208 = vpop.f32.mrb[0].mxu0
  %v1209 = vadd.f32 0.0, %v1208
  %v1210 = vpop.f32.mrb[0].mxu0
  %v1211 = vpop.f32.mrb[0].mxu0
  %v1212 = vadd.f32 0.0, %v1211
  %v1213 = vpop.f32.mrb[0].mxu0
  %1214 = vmatprep.mubr.bf16.mxu0 0
  %1215 = vmatmul.mubr.bf16.gmra.mrb[0].mxu0 %v1049
  %v1216 = vpop.f32.mrb[0].mxu0
  %v1217 = vadd.f32 0.0, %v1216
  %v1218 = vpop.f32.mrb[0].mxu0
  %v1219 = vpop.f32.mrb[0].mxu0
  %v1220 = vadd.f32 0.0, %v1219
  %v1221 = vpop.f32.mrb[0].mxu0
  %1222 = vmatprep.mubr.bf16.mxu0 0
  %1223 = vmatmul.mubr.bf16.gmra.mrb[0].mxu0 %v1050
  %v1224 = vpop.f32.mrb[0].mxu0
  %v1225 = vadd.f32 0.0, %v1224
  %v1226 = vpop.f32.mrb[0].mxu0
  %v1227 = vpop.f32.mrb[0].mxu0
  %v1228 = vadd.f32 0.0, %v1227
  %v1229 = vpop.f32.mrb[0].mxu0
  %1230 = vdwg.mxu0
  %v1231 = vadd.f32 %v934, %v1145
  %v1232 = vadd.f32 %v935, %v1148
  %v1233 = vadd.f32 %v936, %v1153
  %v1234 = vadd.f32 %v937, %v1156
  %v1235 = vadd.f32 %v938, %v1161
  %v1236 = vadd.f32 %v939, %v1164
  %v1237 = vadd.f32 %v940, %v1169
  %v1238 = vadd.f32 %v941, %v1172
  %v1239 = vadd.f32 %v942, %v1177
  %v1240 = vadd.f32 %v943, %v1180
  %v1241 = vadd.f32 %v944, %v1185
  %v1242 = vadd.f32 %v945, %v1188
  %v1243 = vadd.f32 %v946, %v1193
  %v1244 = vadd.f32 %v947, %v1196
  %v1245 = vadd.f32 %v948, %v1201
  %v1246 = vadd.f32 %v949, %v1204
  %v1247 = vadd.f32 %v950, %v1209
  %v1248 = vadd.f32 %v951, %v1212
  %v1249 = vadd.f32 %v952, %v1217
  %v1250 = vadd.f32 %v953, %v1220
  %v1251 = vadd.f32 %v954, %v1225
  %v1252 = vadd.f32 %v955, %v1228
  %s1253 = scalar_lea.vmem %s0, 288
  %v1254 = vld [vmem:[%s1253] sm:$0xf]
  %v1255 = vld [vmem:[%s1253 + $0x4] sm:$0xf]
  %v1256 = vld [vmem:[%s1253 + $0x8] sm:$0xf]
  %v1257 = vld [vmem:[%s1253 + $0xc] sm:$0xf]
  %v1258 = vld [vmem:[%s1253 + $0x10] sm:$0xf]
  %v1259 = vld [vmem:[%s1253 + $0x14] sm:$0xf]
  %v1260 = vld [vmem:[%s1253 + $0x18] sm:$0xf]
  %v1261 = vld [vmem:[%s1253 + $0x1c] sm:$0xf]
  %v1262 = vld [vmem:[%s1253 + $0x20] sm:$0xf]
  %v1263 = vld [vmem:[%s1253 + $0x24] sm:$0xf]
  %v1264 = vld [vmem:[%s1253 + $0x28] sm:$0xf]
  %v1265 = vld [vmem:[%s1253 + $0x2c] sm:$0xf]
  %v1266 = vld [vmem:[%s1253 + $0x30] sm:$0xf]
  %v1267 = vld [vmem:[%s1253 + $0x34] sm:$0xf]
  %v1268 = vld [vmem:[%s1253 + $0x38] sm:$0xf]
  %v1269 = vld [vmem:[%s1253 + $0x3c] sm:$0xf]
  %v1270 = vld [vmem:[%s1253 + $0x40] sm:$0xf]
  %v1271 = vld [vmem:[%s1253 + $0x44] sm:$0xf]
  %v1272 = vld [vmem:[%s1253 + $0x48] sm:$0xf]
  %v1273 = vld [vmem:[%s1253 + $0x4c] sm:$0xf]
  %v1274 = vld [vmem:[%s1253 + $0x50] sm:$0xf]
  %v1275 = vld [vmem:[%s1253 + $0x54] sm:$0xf]
  %s1276 = scalar_lea.vmem %s1, 256
  %v1277 = vld [vmem:[%s1276] sm:$0xf]
  %v1278 = vld [vmem:[%s1276 + $0x4] sm:$0xf]
  %v1279 = vld [vmem:[%s1276 + $0x8] sm:$0xf]
  %v1280 = vld [vmem:[%s1276 + $0xc] sm:$0xf]
  %v1281 = vld [vmem:[%s1276 + $0x10] sm:$0xf]
  %v1282 = vld [vmem:[%s1276 + $0x14] sm:$0xf]
  %v1283 = vld [vmem:[%s1276 + $0x18] sm:$0xf]
  %v1284 = vld [vmem:[%s1276 + $0x1c] sm:$0xf]
  %v1285 = vld [vmem:[%s1276 + $0x20] sm:$0xf]
  %v1286 = vld [vmem:[%s1276 + $0x24] sm:$0xf]
  %v1287 = vld [vmem:[%s1276 + $0x28] sm:$0xf]
  %v1288 = vld [vmem:[%s1276 + $0x2c] sm:$0xf]
  %v1289 = vld [vmem:[%s1276 + $0x30] sm:$0xf]
  %v1290 = vld [vmem:[%s1276 + $0x34] sm:$0xf]
  %v1291 = vld [vmem:[%s1276 + $0x38] sm:$0xf]
  %v1292 = vld [vmem:[%s1276 + $0x3c] sm:$0xf]
  %v1315 = vunpack.c.l.b16 %v1254
  %v1316 = vunpack.c.l.b16 %v1255
  %v1317 = vunpack.c.l.b16 %v1256
  %v1318 = vunpack.c.l.b16 %v1257
  %v1319 = vunpack.c.l.b16 %v1258
  %v1320 = vunpack.c.l.b16 %v1259
  %v1321 = vunpack.c.l.b16 %v1260
  %v1322 = vunpack.c.l.b16 %v1261
  %v1323 = vunpack.c.l.b16 %v1262
  %v1324 = vunpack.c.l.b16 %v1263
  %v1325 = vunpack.c.l.b16 %v1264
  %v1326 = vunpack.c.l.b16 %v1265
  %v1327 = vunpack.c.l.b16 %v1266
  %v1328 = vunpack.c.l.b16 %v1267
  %v1329 = vunpack.c.l.b16 %v1268
  %v1330 = vunpack.c.l.b16 %v1269
  %v1331 = vunpack.c.l.b16 %v1270
  %v1332 = vunpack.c.l.b16 %v1271
  %v1333 = vunpack.c.l.b16 %v1272
  %v1334 = vunpack.c.l.b16 %v1273
  %v1335 = vunpack.c.l.b16 %v1274
  %v1336 = vunpack.c.l.b16 %v1275
  %v1337 = vpack.c.b16 %v1316, %v1315
  %v1338 = vpack.c.b16 %v1318, %v1317
  %v1339 = vpack.c.b16 %v1320, %v1319
  %v1340 = vpack.c.b16 %v1322, %v1321
  %v1341 = vpack.c.b16 %v1324, %v1323
  %v1342 = vpack.c.b16 %v1326, %v1325
  %v1343 = vpack.c.b16 %v1328, %v1327
  %v1344 = vpack.c.b16 %v1330, %v1329
  %v1345 = vpack.c.b16 %v1332, %v1331
  %v1346 = vpack.c.b16 %v1334, %v1333
  %v1347 = vpack.c.b16 %v1336, %v1335
  %v1375 = vunpack.c.l.b16 %v1277
  %v1376 = vunpack.c.l.b16 %v1278
  %v1377 = vunpack.c.l.b16 %v1279
  %v1378 = vunpack.c.l.b16 %v1280
  %v1379 = vunpack.c.l.b16 %v1281
  %v1380 = vunpack.c.l.b16 %v1282
  %v1381 = vunpack.c.l.b16 %v1283
  %v1382 = vunpack.c.l.b16 %v1284
  %v1383 = vunpack.c.l.b16 %v1285
  %v1384 = vunpack.c.l.b16 %v1286
  %v1385 = vunpack.c.l.b16 %v1287
  %v1386 = vunpack.c.l.b16 %v1288
  %v1387 = vunpack.c.l.b16 %v1289
  %v1388 = vunpack.c.l.b16 %v1290
  %v1389 = vunpack.c.l.b16 %v1291
  %v1390 = vunpack.c.l.b16 %v1292
  %v1391 = vpack.c.b16 %v1376, %v1375
  %v1392 = vpack.c.b16 %v1378, %v1377
  %v1393 = vpack.c.b16 %v1380, %v1379
  %v1394 = vpack.c.b16 %v1382, %v1381
  %v1395 = vpack.c.b16 %v1384, %v1383
  %v1396 = vpack.c.b16 %v1386, %v1385
  %v1397 = vpack.c.b16 %v1388, %v1387
  %v1398 = vpack.c.b16 %v1390, %v1389
  %1407 = vmatprep.subr.bf16.mxu0 0
  %1408 = vmatpush1.bf16.msra.mxu0 %v1391
  %1409 = vmatprep.subr.bf16.mxu0 0
  %1410 = vmatpush1.bf16.msra.mxu0 %v1392
  %1411 = vmatprep.subr.bf16.mxu0 0
  %1412 = vmatpush1.bf16.msra.mxu0 %v1393
  %1413 = vmatprep.subr.bf16.mxu0 0
  %1414 = vmatpush1.bf16.msra.mxu0 %v1394
  %1415 = vmatprep.subr.bf16.mxu0 0
  %1416 = vmatpush1.bf16.msra.mxu0 %v1395
  %1417 = vmatprep.subr.bf16.mxu0 0
  %1418 = vmatpush1.bf16.msra.mxu0 %v1396
  %1419 = vmatprep.subr.bf16.mxu0 0
  %1420 = vmatpush1.bf16.msra.mxu0 %v1397
  %1421 = vmatprep.subr.bf16.mxu0 0
  %1422 = vmatpush1.bf16.msra.mxu0 %v1398
  %1423 = vmatprep.subr.bf16.mxu0 0
  %1424 = vmatpush1.bf16.msra.mxu0 0
  %1425 = vmatprep.subr.bf16.mxu0 0
  %1426 = vmatpush1.bf16.msra.mxu0 0
  %1427 = vmatprep.subr.bf16.mxu0 0
  %1428 = vmatpush1.bf16.msra.mxu0 0
  %1429 = vmatprep.subr.bf16.mxu0 0
  %1430 = vmatpush1.bf16.msra.mxu0 0
  %1431 = vmatprep.subr.bf16.mxu0 0
  %1432 = vmatpush1.bf16.msra.mxu0 0
  %1433 = vmatprep.subr.bf16.mxu0 0
  %1434 = vmatpush1.bf16.msra.mxu0 0
  %1435 = vmatprep.subr.bf16.mxu0 0
  %1436 = vmatpush1.bf16.msra.mxu0 0
  %1437 = vmatprep.subr.bf16.mxu0 0
  %1438 = vmatpush1.bf16.msra.mxu0 0
  %1439 = vmatprep.mubr.bf16.mxu0 0
  %1440 = vmatmul.mubr.bf16.gmra.mrb[0].mxu0 %v1337
  %v1441 = vpop.f32.mrb[0].mxu0
  %v1442 = vadd.f32 0.0, %v1441
  %v1443 = vpop.f32.mrb[0].mxu0
  %v1444 = vpop.f32.mrb[0].mxu0
  %v1445 = vadd.f32 0.0, %v1444
  %v1446 = vpop.f32.mrb[0].mxu0
  %1447 = vmatprep.mubr.bf16.mxu0 0
  %1448 = vmatmul.mubr.bf16.gmra.mrb[0].mxu0 %v1338
  %v1449 = vpop.f32.mrb[0].mxu0
  %v1450 = vadd.f32 0.0, %v1449
  %v1451 = vpop.f32.mrb[0].mxu0
  %v1452 = vpop.f32.mrb[0].mxu0
  %v1453 = vadd.f32 0.0, %v1452
  %v1454 = vpop.f32.mrb[0].mxu0
  %1455 = vmatprep.mubr.bf16.mxu0 0
  %1456 = vmatmul.mubr.bf16.gmra.mrb[0].mxu0 %v1339
  %v1457 = vpop.f32.mrb[0].mxu0
  %v1458 = vadd.f32 0.0, %v1457
  %v1459 = vpop.f32.mrb[0].mxu0
  %v1460 = vpop.f32.mrb[0].mxu0
  %v1461 = vadd.f32 0.0, %v1460
  %v1462 = vpop.f32.mrb[0].mxu0
  %1463 = vmatprep.mubr.bf16.mxu0 0
  %1464 = vmatmul.mubr.bf16.gmra.mrb[0].mxu0 %v1340
  %v1465 = vpop.f32.mrb[0].mxu0
  %v1466 = vadd.f32 0.0, %v1465
  %v1467 = vpop.f32.mrb[0].mxu0
  %v1468 = vpop.f32.mrb[0].mxu0
  %v1469 = vadd.f32 0.0, %v1468
  %v1470 = vpop.f32.mrb[0].mxu0
  %1471 = vmatprep.mubr.bf16.mxu0 0
  %1472 = vmatmul.mubr.bf16.gmra.mrb[0].mxu0 %v1341
  %v1473 = vpop.f32.mrb[0].mxu0
  %v1474 = vadd.f32 0.0, %v1473
  %v1475 = vpop.f32.mrb[0].mxu0
  %v1476 = vpop.f32.mrb[0].mxu0
  %v1477 = vadd.f32 0.0, %v1476
  %v1478 = vpop.f32.mrb[0].mxu0
  %1479 = vmatprep.mubr.bf16.mxu0 0
  %1480 = vmatmul.mubr.bf16.gmra.mrb[0].mxu0 %v1342
  %v1481 = vpop.f32.mrb[0].mxu0
  %v1482 = vadd.f32 0.0, %v1481
  %v1483 = vpop.f32.mrb[0].mxu0
  %v1484 = vpop.f32.mrb[0].mxu0
  %v1485 = vadd.f32 0.0, %v1484
  %v1486 = vpop.f32.mrb[0].mxu0
  %1487 = vmatprep.mubr.bf16.mxu0 0
  %1488 = vmatmul.mubr.bf16.gmra.mrb[0].mxu0 %v1343
  %v1489 = vpop.f32.mrb[0].mxu0
  %v1490 = vadd.f32 0.0, %v1489
  %v1491 = vpop.f32.mrb[0].mxu0
  %v1492 = vpop.f32.mrb[0].mxu0
  %v1493 = vadd.f32 0.0, %v1492
  %v1494 = vpop.f32.mrb[0].mxu0
  %1495 = vmatprep.mubr.bf16.mxu0 0
  %1496 = vmatmul.mubr.bf16.gmra.mrb[0].mxu0 %v1344
  %v1497 = vpop.f32.mrb[0].mxu0
  %v1498 = vadd.f32 0.0, %v1497
  %v1499 = vpop.f32.mrb[0].mxu0
  %v1500 = vpop.f32.mrb[0].mxu0
  %v1501 = vadd.f32 0.0, %v1500
  %v1502 = vpop.f32.mrb[0].mxu0
  %1503 = vmatprep.mubr.bf16.mxu0 0
  %1504 = vmatmul.mubr.bf16.gmra.mrb[0].mxu0 %v1345
  %v1505 = vpop.f32.mrb[0].mxu0
  %v1506 = vadd.f32 0.0, %v1505
  %v1507 = vpop.f32.mrb[0].mxu0
  %v1508 = vpop.f32.mrb[0].mxu0
  %v1509 = vadd.f32 0.0, %v1508
  %v1510 = vpop.f32.mrb[0].mxu0
  %1511 = vmatprep.mubr.bf16.mxu0 0
  %1512 = vmatmul.mubr.bf16.gmra.mrb[0].mxu0 %v1346
  %v1513 = vpop.f32.mrb[0].mxu0
  %v1514 = vadd.f32 0.0, %v1513
  %v1515 = vpop.f32.mrb[0].mxu0
  %v1516 = vpop.f32.mrb[0].mxu0
  %v1517 = vadd.f32 0.0, %v1516
  %v1518 = vpop.f32.mrb[0].mxu0
  %1519 = vmatprep.mubr.bf16.mxu0 0
  %1520 = vmatmul.mubr.bf16.gmra.mrb[0].mxu0 %v1347
  %v1521 = vpop.f32.mrb[0].mxu0
  %v1522 = vadd.f32 0.0, %v1521
  %v1523 = vpop.f32.mrb[0].mxu0
  %v1524 = vpop.f32.mrb[0].mxu0
  %v1525 = vadd.f32 0.0, %v1524
  %v1526 = vpop.f32.mrb[0].mxu0
  %1527 = vdwg.mxu0
  %v1528 = vadd.f32 %v1231, %v1442
  %v1529 = vadd.f32 %v1232, %v1445
  %v1530 = vadd.f32 %v1233, %v1450
  %v1531 = vadd.f32 %v1234, %v1453
  %v1532 = vadd.f32 %v1235, %v1458
  %v1533 = vadd.f32 %v1236, %v1461
  %v1534 = vadd.f32 %v1237, %v1466
  %v1535 = vadd.f32 %v1238, %v1469
  %v1536 = vadd.f32 %v1239, %v1474
  %v1537 = vadd.f32 %v1240, %v1477
  %v1538 = vadd.f32 %v1241, %v1482
  %v1539 = vadd.f32 %v1242, %v1485
  %v1540 = vadd.f32 %v1243, %v1490
  %v1541 = vadd.f32 %v1244, %v1493
  %v1542 = vadd.f32 %v1245, %v1498
  %v1543 = vadd.f32 %v1246, %v1501
  %v1544 = vadd.f32 %v1247, %v1506
  %v1545 = vadd.f32 %v1248, %v1509
  %v1546 = vadd.f32 %v1249, %v1514
  %v1547 = vadd.f32 %v1250, %v1517
  %v1548 = vadd.f32 %v1251, %v1522
  %v1549 = vadd.f32 %v1252, %v1525
  %v1550 = vld [vmem:[%s956] sm:$0xf]
  %v1551 = vld [vmem:[%s956 + $0x4] sm:$0xf]
  %v1552 = vld [vmem:[%s956 + $0x8] sm:$0xf]
  %v1553 = vld [vmem:[%s956 + $0xc] sm:$0xf]
  %v1554 = vld [vmem:[%s956 + $0x10] sm:$0xf]
  %v1555 = vld [vmem:[%s956 + $0x14] sm:$0xf]
  %v1556 = vld [vmem:[%s956 + $0x18] sm:$0xf]
  %v1557 = vld [vmem:[%s956 + $0x1c] sm:$0xf]
  %v1558 = vld [vmem:[%s956 + $0x20] sm:$0xf]
  %v1559 = vld [vmem:[%s956 + $0x24] sm:$0xf]
  %v1560 = vld [vmem:[%s956 + $0x28] sm:$0xf]
  %v1561 = vld [vmem:[%s956 + $0x2c] sm:$0xf]
  %v1562 = vld [vmem:[%s956 + $0x30] sm:$0xf]
  %v1563 = vld [vmem:[%s956 + $0x34] sm:$0xf]
  %v1564 = vld [vmem:[%s956 + $0x38] sm:$0xf]
  %v1565 = vld [vmem:[%s956 + $0x3c] sm:$0xf]
  %v1566 = vld [vmem:[%s956 + $0x40] sm:$0xf]
  %v1567 = vld [vmem:[%s956 + $0x44] sm:$0xf]
  %v1568 = vld [vmem:[%s956 + $0x48] sm:$0xf]
  %v1569 = vld [vmem:[%s956 + $0x4c] sm:$0xf]
  %v1570 = vld [vmem:[%s956 + $0x50] sm:$0xf]
  %v1571 = vld [vmem:[%s956 + $0x54] sm:$0xf]
  %v1572 = vld [vmem:[%s956 + $0x58] sm:$0x1]
  %s1573 = scalar_lea.vmem %s1, 320
  %v1574 = vld [vmem:[%s1573] sm:$0xf]
  %v1575 = vld [vmem:[%s1573 + $0x4] sm:$0xf]
  %v1576 = vld [vmem:[%s1573 + $0x8] sm:$0xf]
  %v1577 = vld [vmem:[%s1573 + $0xc] sm:$0xf]
  %v1578 = vld [vmem:[%s1573 + $0x10] sm:$0xf]
  %v1579 = vld [vmem:[%s1573 + $0x14] sm:$0xf]
  %v1580 = vld [vmem:[%s1573 + $0x18] sm:$0xf]
  %v1581 = vld [vmem:[%s1573 + $0x1c] sm:$0xf]
  %v1582 = vld [vmem:[%s1573 + $0x20] sm:$0xf]
  %v1583 = vld [vmem:[%s1573 + $0x24] sm:$0xf]
  %v1584 = vld [vmem:[%s1573 + $0x28] sm:$0xf]
  %v1585 = vld [vmem:[%s1573 + $0x2c] sm:$0xf]
  %v1586 = vld [vmem:[%s1573 + $0x30] sm:$0xf]
  %v1587 = vld [vmem:[%s1573 + $0x34] sm:$0xf]
  %v1588 = vld [vmem:[%s1573 + $0x38] sm:$0xf]
  %v1589 = vld [vmem:[%s1573 + $0x3c] sm:$0xf]
  %v1613 = vunpack.c.l.b16 %v1550
  %v1614 = vunpack.c.l.b16 %v1551
  %v1615 = vunpack.c.l.b16 %v1552
  %v1616 = vunpack.c.l.b16 %v1553
  %v1617 = vunpack.c.l.b16 %v1554
  %v1618 = vunpack.c.l.b16 %v1555
  %v1619 = vunpack.c.l.b16 %v1556
  %v1620 = vunpack.c.l.b16 %v1557
  %v1621 = vunpack.c.l.b16 %v1558
  %v1622 = vunpack.c.l.b16 %v1559
  %v1623 = vunpack.c.l.b16 %v1560
  %v1624 = vunpack.c.l.b16 %v1561
  %v1625 = vunpack.c.l.b16 %v1562
  %v1626 = vunpack.c.l.b16 %v1563
  %v1627 = vunpack.c.l.b16 %v1564
  %v1628 = vunpack.c.l.b16 %v1565
  %v1629 = vunpack.c.l.b16 %v1566
  %v1630 = vunpack.c.l.b16 %v1567
  %v1631 = vunpack.c.l.b16 %v1568
  %v1632 = vunpack.c.l.b16 %v1569
  %v1633 = vunpack.c.l.b16 %v1570
  %v1634 = vunpack.c.l.b16 %v1571
  %v1635 = vunpack.c.l.b16 %v1572
  %v1636 = vpack.c.b16 %v1614, %v1613
  %v1637 = vpack.c.b16 %v1616, %v1615
  %v1638 = vpack.c.b16 %v1618, %v1617
  %v1639 = vpack.c.b16 %v1620, %v1619
  %v1640 = vpack.c.b16 %v1622, %v1621
  %v1641 = vpack.c.b16 %v1624, %v1623
  %v1642 = vpack.c.b16 %v1626, %v1625
  %v1643 = vpack.c.b16 %v1628, %v1627
  %v1644 = vpack.c.b16 %v1630, %v1629
  %v1645 = vpack.c.b16 %v1632, %v1631
  %v1646 = vpack.c.b16 %v1634, %v1633
  %v1647 = vpack.c.b16 %v1635, %v1635
  %v1649 = vshrl.u32 %v1636, 16
  %v1651 = vshll.u32 %v1636, 16
  %v1653 = vrot.slane %v1651, 1
  %v1654 = vor.u32 %v1649, %v1653
  %v1656 = vshll.u32 %v1637, 16
  %v1658 = vrot.slane %v1656, 1
  %v1659 = vsel %vm661, %v1654, %v1658
  %v1660 = vshrl.u32 %v1637, 16
  %v1662 = vor.u32 %v1660, %v1658
  %v1664 = vshll.u32 %v1638, 16
  %v1666 = vrot.slane %v1664, 1
  %v1667 = vsel %vm661, %v1662, %v1666
  %v1668 = vshrl.u32 %v1638, 16
  %v1670 = vor.u32 %v1668, %v1666
  %v1672 = vshll.u32 %v1639, 16
  %v1674 = vrot.slane %v1672, 1
  %v1675 = vsel %vm661, %v1670, %v1674
  %v1676 = vshrl.u32 %v1639, 16
  %v1678 = vor.u32 %v1676, %v1674
  %v1680 = vshll.u32 %v1640, 16
  %v1682 = vrot.slane %v1680, 1
  %v1683 = vsel %vm661, %v1678, %v1682
  %v1684 = vshrl.u32 %v1640, 16
  %v1686 = vor.u32 %v1684, %v1682
  %v1688 = vshll.u32 %v1641, 16
  %v1690 = vrot.slane %v1688, 1
  %v1691 = vsel %vm661, %v1686, %v1690
  %v1692 = vshrl.u32 %v1641, 16
  %v1694 = vor.u32 %v1692, %v1690
  %v1696 = vshll.u32 %v1642, 16
  %v1698 = vrot.slane %v1696, 1
  %v1699 = vsel %vm661, %v1694, %v1698
  %v1700 = vshrl.u32 %v1642, 16
  %v1702 = vor.u32 %v1700, %v1698
  %v1704 = vshll.u32 %v1643, 16
  %v1706 = vrot.slane %v1704, 1
  %v1707 = vsel %vm661, %v1702, %v1706
  %v1708 = vshrl.u32 %v1643, 16
  %v1710 = vor.u32 %v1708, %v1706
  %v1712 = vshll.u32 %v1644, 16
  %v1714 = vrot.slane %v1712, 1
  %v1715 = vsel %vm661, %v1710, %v1714
  %v1716 = vshrl.u32 %v1644, 16
  %v1718 = vor.u32 %v1716, %v1714
  %v1720 = vshll.u32 %v1645, 16
  %v1722 = vrot.slane %v1720, 1
  %v1723 = vsel %vm661, %v1718, %v1722
  %v1724 = vshrl.u32 %v1645, 16
  %v1726 = vor.u32 %v1724, %v1722
  %v1728 = vshll.u32 %v1646, 16
  %v1730 = vrot.slane %v1728, 1
  %v1731 = vsel %vm661, %v1726, %v1730
  %v1732 = vshrl.u32 %v1646, 16
  %v1734 = vor.u32 %v1732, %v1730
  %v1736 = vshll.u32 %v1647, 16
  %v1738 = vrot.slane %v1736, 1
  %v1739 = vsel %vm661, %v1734, %v1738
  %v1767 = vunpack.c.l.b16 %v1574
  %v1768 = vunpack.c.l.b16 %v1575
  %v1769 = vunpack.c.l.b16 %v1576
  %v1770 = vunpack.c.l.b16 %v1577
  %v1771 = vunpack.c.l.b16 %v1578
  %v1772 = vunpack.c.l.b16 %v1579
  %v1773 = vunpack.c.l.b16 %v1580
  %v1774 = vunpack.c.l.b16 %v1581
  %v1775 = vunpack.c.l.b16 %v1582
  %v1776 = vunpack.c.l.b16 %v1583
  %v1777 = vunpack.c.l.b16 %v1584
  %v1778 = vunpack.c.l.b16 %v1585
  %v1779 = vunpack.c.l.b16 %v1586
  %v1780 = vunpack.c.l.b16 %v1587
  %v1781 = vunpack.c.l.b16 %v1588
  %v1782 = vunpack.c.l.b16 %v1589
  %v1783 = vpack.c.b16 %v1768, %v1767
  %v1784 = vpack.c.b16 %v1770, %v1769
  %v1785 = vpack.c.b16 %v1772, %v1771
  %v1786 = vpack.c.b16 %v1774, %v1773
  %v1787 = vpack.c.b16 %v1776, %v1775
  %v1788 = vpack.c.b16 %v1778, %v1777
  %v1789 = vpack.c.b16 %v1780, %v1779
  %v1790 = vpack.c.b16 %v1782, %v1781
  %1799 = vmatprep.subr.bf16.mxu0 0
  %1800 = vmatpush1.bf16.msra.mxu0 %v1783
  %1801 = vmatprep.subr.bf16.mxu0 0
  %1802 = vmatpush1.bf16.msra.mxu0 %v1784
  %1803 = vmatprep.subr.bf16.mxu0 0
  %1804 = vmatpush1.bf16.msra.mxu0 %v1785
  %1805 = vmatprep.subr.bf16.mxu0 0
  %1806 = vmatpush1.bf16.msra.mxu0 %v1786
  %1807 = vmatprep.subr.bf16.mxu0 0
  %1808 = vmatpush1.bf16.msra.mxu0 %v1787
  %1809 = vmatprep.subr.bf16.mxu0 0
  %1810 = vmatpush1.bf16.msra.mxu0 %v1788
  %1811 = vmatprep.subr.bf16.mxu0 0
  %1812 = vmatpush1.bf16.msra.mxu0 %v1789
  %1813 = vmatprep.subr.bf16.mxu0 0
  %1814 = vmatpush1.bf16.msra.mxu0 %v1790
  %1815 = vmatprep.subr.bf16.mxu0 0
  %1816 = vmatpush1.bf16.msra.mxu0 0
  %1817 = vmatprep.subr.bf16.mxu0 0
  %1818 = vmatpush1.bf16.msra.mxu0 0
  %1819 = vmatprep.subr.bf16.mxu0 0
  %1820 = vmatpush1.bf16.msra.mxu0 0
  %1821 = vmatprep.subr.bf16.mxu0 0
  %1822 = vmatpush1.bf16.msra.mxu0 0
  %1823 = vmatprep.subr.bf16.mxu0 0
  %1824 = vmatpush1.bf16.msra.mxu0 0
  %1825 = vmatprep.subr.bf16.mxu0 0
  %1826 = vmatpush1.bf16.msra.mxu0 0
  %1827 = vmatprep.subr.bf16.mxu0 0
  %1828 = vmatpush1.bf16.msra.mxu0 0
  %1829 = vmatprep.subr.bf16.mxu0 0
  %1830 = vmatpush1.bf16.msra.mxu0 0
  %1831 = vmatprep.mubr.bf16.mxu0 0
  %1832 = vmatmul.mubr.bf16.gmra.mrb[0].mxu0 %v1659
  %v1833 = vpop.f32.mrb[0].mxu0
  %v1834 = vadd.f32 0.0, %v1833
  %v1835 = vpop.f32.mrb[0].mxu0
  %v1836 = vpop.f32.mrb[0].mxu0
  %v1837 = vadd.f32 0.0, %v1836
  %v1838 = vpop.f32.mrb[0].mxu0
  %1839 = vmatprep.mubr.bf16.mxu0 0
  %1840 = vmatmul.mubr.bf16.gmra.mrb[0].mxu0 %v1667
  %v1841 = vpop.f32.mrb[0].mxu0
  %v1842 = vadd.f32 0.0, %v1841
  %v1843 = vpop.f32.mrb[0].mxu0
  %v1844 = vpop.f32.mrb[0].mxu0
  %v1845 = vadd.f32 0.0, %v1844
  %v1846 = vpop.f32.mrb[0].mxu0
  %1847 = vmatprep.mubr.bf16.mxu0 0
  %1848 = vmatmul.mubr.bf16.gmra.mrb[0].mxu0 %v1675
  %v1849 = vpop.f32.mrb[0].mxu0
  %v1850 = vadd.f32 0.0, %v1849
  %v1851 = vpop.f32.mrb[0].mxu0
  %v1852 = vpop.f32.mrb[0].mxu0
  %v1853 = vadd.f32 0.0, %v1852
  %v1854 = vpop.f32.mrb[0].mxu0
  %1855 = vmatprep.mubr.bf16.mxu0 0
  %1856 = vmatmul.mubr.bf16.gmra.mrb[0].mxu0 %v1683
  %v1857 = vpop.f32.mrb[0].mxu0
  %v1858 = vadd.f32 0.0, %v1857
  %v1859 = vpop.f32.mrb[0].mxu0
  %v1860 = vpop.f32.mrb[0].mxu0
  %v1861 = vadd.f32 0.0, %v1860
  %v1862 = vpop.f32.mrb[0].mxu0
  %1863 = vmatprep.mubr.bf16.mxu0 0
  %1864 = vmatmul.mubr.bf16.gmra.mrb[0].mxu0 %v1691
  %v1865 = vpop.f32.mrb[0].mxu0
  %v1866 = vadd.f32 0.0, %v1865
  %v1867 = vpop.f32.mrb[0].mxu0
  %v1868 = vpop.f32.mrb[0].mxu0
  %v1869 = vadd.f32 0.0, %v1868
  %v1870 = vpop.f32.mrb[0].mxu0
  %1871 = vmatprep.mubr.bf16.mxu0 0
  %1872 = vmatmul.mubr.bf16.gmra.mrb[0].mxu0 %v1699
  %v1873 = vpop.f32.mrb[0].mxu0
  %v1874 = vadd.f32 0.0, %v1873
  %v1875 = vpop.f32.mrb[0].mxu0
  %v1876 = vpop.f32.mrb[0].mxu0
  %v1877 = vadd.f32 0.0, %v1876
  %v1878 = vpop.f32.mrb[0].mxu0
  %1879 = vmatprep.mubr.bf16.mxu0 0
  %1880 = vmatmul.mubr.bf16.gmra.mrb[0].mxu0 %v1707
  %v1881 = vpop.f32.mrb[0].mxu0
  %v1882 = vadd.f32 0.0, %v1881
  %v1883 = vpop.f32.mrb[0].mxu0
  %v1884 = vpop.f32.mrb[0].mxu0
  %v1885 = vadd.f32 0.0, %v1884
  %v1886 = vpop.f32.mrb[0].mxu0
  %1887 = vmatprep.mubr.bf16.mxu0 0
  %1888 = vmatmul.mubr.bf16.gmra.mrb[0].mxu0 %v1715
  %v1889 = vpop.f32.mrb[0].mxu0
  %v1890 = vadd.f32 0.0, %v1889
  %v1891 = vpop.f32.mrb[0].mxu0
  %v1892 = vpop.f32.mrb[0].mxu0
  %v1893 = vadd.f32 0.0, %v1892
  %v1894 = vpop.f32.mrb[0].mxu0
  %1895 = vmatprep.mubr.bf16.mxu0 0
  %1896 = vmatmul.mubr.bf16.gmra.mrb[0].mxu0 %v1723
  %v1897 = vpop.f32.mrb[0].mxu0
  %v1898 = vadd.f32 0.0, %v1897
  %v1899 = vpop.f32.mrb[0].mxu0
  %v1900 = vpop.f32.mrb[0].mxu0
  %v1901 = vadd.f32 0.0, %v1900
  %v1902 = vpop.f32.mrb[0].mxu0
  %1903 = vmatprep.mubr.bf16.mxu0 0
  %1904 = vmatmul.mubr.bf16.gmra.mrb[0].mxu0 %v1731
  %v1905 = vpop.f32.mrb[0].mxu0
  %v1906 = vadd.f32 0.0, %v1905
  %v1907 = vpop.f32.mrb[0].mxu0
  %v1908 = vpop.f32.mrb[0].mxu0
  %v1909 = vadd.f32 0.0, %v1908
  %v1910 = vpop.f32.mrb[0].mxu0
  %1911 = vmatprep.mubr.bf16.mxu0 0
  %1912 = vmatmul.mubr.bf16.gmra.mrb[0].mxu0 %v1739
  %v1913 = vpop.f32.mrb[0].mxu0
  %v1914 = vadd.f32 0.0, %v1913
  %v1915 = vpop.f32.mrb[0].mxu0
  %v1916 = vpop.f32.mrb[0].mxu0
  %v1917 = vadd.f32 0.0, %v1916
  %v1918 = vpop.f32.mrb[0].mxu0
  %1919 = vdwg.mxu0
  %v1920 = vadd.f32 %v1528, %v1834
  %v1921 = vadd.f32 %v1529, %v1837
  %v1922 = vadd.f32 %v1530, %v1842
  %v1923 = vadd.f32 %v1531, %v1845
  %v1924 = vadd.f32 %v1532, %v1850
  %v1925 = vadd.f32 %v1533, %v1853
  %v1926 = vadd.f32 %v1534, %v1858
  %v1927 = vadd.f32 %v1535, %v1861
  %v1928 = vadd.f32 %v1536, %v1866
  %v1929 = vadd.f32 %v1537, %v1869
  %v1930 = vadd.f32 %v1538, %v1874
  %v1931 = vadd.f32 %v1539, %v1877
  %v1932 = vadd.f32 %v1540, %v1882
  %v1933 = vadd.f32 %v1541, %v1885
  %v1934 = vadd.f32 %v1542, %v1890
  %v1935 = vadd.f32 %v1543, %v1893
  %v1936 = vadd.f32 %v1544, %v1898
  %v1937 = vadd.f32 %v1545, %v1901
  %v1938 = vadd.f32 %v1546, %v1906
  %v1939 = vadd.f32 %v1547, %v1909
  %v1940 = vadd.f32 %v1548, %v1914
  %v1941 = vadd.f32 %v1549, %v1917
  %v1942 = vld [vmem:[%s0 + $0x4] sm:$0xf]
  %v1943 = vld [vmem:[%s0 + $0x8] sm:$0xf]
  %v1944 = vld [vmem:[%s0 + $0xc] sm:$0xf]
  %v1945 = vld [vmem:[%s0 + $0x10] sm:$0xf]
  %v1946 = vld [vmem:[%s0 + $0x14] sm:$0xf]
  %v1947 = vld [vmem:[%s0 + $0x18] sm:$0xf]
  %v1948 = vld [vmem:[%s0 + $0x1c] sm:$0xf]
  %v1949 = vld [vmem:[%s0 + $0x20] sm:$0xf]
  %v1950 = vld [vmem:[%s0 + $0x24] sm:$0xf]
  %v1951 = vld [vmem:[%s0 + $0x28] sm:$0xf]
  %v1952 = vld [vmem:[%s0 + $0x2c] sm:$0xf]
  %v1953 = vld [vmem:[%s0 + $0x30] sm:$0xf]
  %v1954 = vld [vmem:[%s0 + $0x34] sm:$0xf]
  %v1955 = vld [vmem:[%s0 + $0x38] sm:$0xf]
  %v1956 = vld [vmem:[%s0 + $0x3c] sm:$0xf]
  %v1957 = vld [vmem:[%s0 + $0x40] sm:$0xf]
  %v1958 = vld [vmem:[%s0 + $0x44] sm:$0xf]
  %v1959 = vld [vmem:[%s0 + $0x48] sm:$0xf]
  %v1960 = vld [vmem:[%s0 + $0x4c] sm:$0xf]
  %v1961 = vld [vmem:[%s0 + $0x50] sm:$0xf]
  %v1962 = vld [vmem:[%s0 + $0x54] sm:$0xf]
  %v1963 = vld [vmem:[%s0 + $0x58] sm:$0xf]
  %v1964 = vld [vmem:[%s0 + $0x5c] sm:$0x1]
  %s1965 = scalar_lea.vmem %s1, 384
  %v1966 = vld [vmem:[%s1965] sm:$0xf]
  %v1967 = vld [vmem:[%s1965 + $0x4] sm:$0xf]
  %v1968 = vld [vmem:[%s1965 + $0x8] sm:$0xf]
  %v1969 = vld [vmem:[%s1965 + $0xc] sm:$0xf]
  %v1970 = vld [vmem:[%s1965 + $0x10] sm:$0xf]
  %v1971 = vld [vmem:[%s1965 + $0x14] sm:$0xf]
  %v1972 = vld [vmem:[%s1965 + $0x18] sm:$0xf]
  %v1973 = vld [vmem:[%s1965 + $0x1c] sm:$0xf]
  %v1974 = vld [vmem:[%s1965 + $0x20] sm:$0xf]
  %v1975 = vld [vmem:[%s1965 + $0x24] sm:$0xf]
  %v1976 = vld [vmem:[%s1965 + $0x28] sm:$0xf]
  %v1977 = vld [vmem:[%s1965 + $0x2c] sm:$0xf]
  %v1978 = vld [vmem:[%s1965 + $0x30] sm:$0xf]
  %v1979 = vld [vmem:[%s1965 + $0x34] sm:$0xf]
  %v1980 = vld [vmem:[%s1965 + $0x38] sm:$0xf]
  %v1981 = vld [vmem:[%s1965 + $0x3c] sm:$0xf]
  %v2005 = vunpack.c.l.b16 %v1942
  %v2006 = vunpack.c.l.b16 %v1943
  %v2007 = vunpack.c.l.b16 %v1944
  %v2008 = vunpack.c.l.b16 %v1945
  %v2009 = vunpack.c.l.b16 %v1946
  %v2010 = vunpack.c.l.b16 %v1947
  %v2011 = vunpack.c.l.b16 %v1948
  %v2012 = vunpack.c.l.b16 %v1949
  %v2013 = vunpack.c.l.b16 %v1950
  %v2014 = vunpack.c.l.b16 %v1951
  %v2015 = vunpack.c.l.b16 %v1952
  %v2016 = vunpack.c.l.b16 %v1953
  %v2017 = vunpack.c.l.b16 %v1954
  %v2018 = vunpack.c.l.b16 %v1955
  %v2019 = vunpack.c.l.b16 %v1956
  %v2020 = vunpack.c.l.b16 %v1957
  %v2021 = vunpack.c.l.b16 %v1958
  %v2022 = vunpack.c.l.b16 %v1959
  %v2023 = vunpack.c.l.b16 %v1960
  %v2024 = vunpack.c.l.b16 %v1961
  %v2025 = vunpack.c.l.b16 %v1962
  %v2026 = vunpack.c.l.b16 %v1963
  %v2027 = vunpack.c.l.b16 %v1964
  %v2028 = vpack.c.b16 %v2006, %v2005
  %v2029 = vpack.c.b16 %v2008, %v2007
  %v2030 = vpack.c.b16 %v2010, %v2009
  %v2031 = vpack.c.b16 %v2012, %v2011
  %v2032 = vpack.c.b16 %v2014, %v2013
  %v2033 = vpack.c.b16 %v2016, %v2015
  %v2034 = vpack.c.b16 %v2018, %v2017
  %v2035 = vpack.c.b16 %v2020, %v2019
  %v2036 = vpack.c.b16 %v2022, %v2021
  %v2037 = vpack.c.b16 %v2024, %v2023
  %v2038 = vpack.c.b16 %v2026, %v2025
  %v2039 = vpack.c.b16 %v2027, %v2027
  %v2041 = vshrl.u32 %v2028, 16
  %v2043 = vshll.u32 %v2028, 16
  %v2045 = vrot.slane %v2043, 1
  %v2046 = vor.u32 %v2041, %v2045
  %v2048 = vshll.u32 %v2029, 16
  %v2050 = vrot.slane %v2048, 1
  %v2051 = vsel %vm661, %v2046, %v2050
  %v2052 = vshrl.u32 %v2029, 16
  %v2054 = vor.u32 %v2052, %v2050
  %v2056 = vshll.u32 %v2030, 16
  %v2058 = vrot.slane %v2056, 1
  %v2059 = vsel %vm661, %v2054, %v2058
  %v2060 = vshrl.u32 %v2030, 16
  %v2062 = vor.u32 %v2060, %v2058
  %v2064 = vshll.u32 %v2031, 16
  %v2066 = vrot.slane %v2064, 1
  %v2067 = vsel %vm661, %v2062, %v2066
  %v2068 = vshrl.u32 %v2031, 16
  %v2070 = vor.u32 %v2068, %v2066
  %v2072 = vshll.u32 %v2032, 16
  %v2074 = vrot.slane %v2072, 1
  %v2075 = vsel %vm661, %v2070, %v2074
  %v2076 = vshrl.u32 %v2032, 16
  %v2078 = vor.u32 %v2076, %v2074
  %v2080 = vshll.u32 %v2033, 16
  %v2082 = vrot.slane %v2080, 1
  %v2083 = vsel %vm661, %v2078, %v2082
  %v2084 = vshrl.u32 %v2033, 16
  %v2086 = vor.u32 %v2084, %v2082
  %v2088 = vshll.u32 %v2034, 16
  %v2090 = vrot.slane %v2088, 1
  %v2091 = vsel %vm661, %v2086, %v2090
  %v2092 = vshrl.u32 %v2034, 16
  %v2094 = vor.u32 %v2092, %v2090
  %v2096 = vshll.u32 %v2035, 16
  %v2098 = vrot.slane %v2096, 1
  %v2099 = vsel %vm661, %v2094, %v2098
  %v2100 = vshrl.u32 %v2035, 16
  %v2102 = vor.u32 %v2100, %v2098
  %v2104 = vshll.u32 %v2036, 16
  %v2106 = vrot.slane %v2104, 1
  %v2107 = vsel %vm661, %v2102, %v2106
  %v2108 = vshrl.u32 %v2036, 16
  %v2110 = vor.u32 %v2108, %v2106
  %v2112 = vshll.u32 %v2037, 16
  %v2114 = vrot.slane %v2112, 1
  %v2115 = vsel %vm661, %v2110, %v2114
  %v2116 = vshrl.u32 %v2037, 16
  %v2118 = vor.u32 %v2116, %v2114
  %v2120 = vshll.u32 %v2038, 16
  %v2122 = vrot.slane %v2120, 1
  %v2123 = vsel %vm661, %v2118, %v2122
  %v2124 = vshrl.u32 %v2038, 16
  %v2126 = vor.u32 %v2124, %v2122
  %v2128 = vshll.u32 %v2039, 16
  %v2130 = vrot.slane %v2128, 1
  %v2131 = vsel %vm661, %v2126, %v2130
  %v2159 = vunpack.c.l.b16 %v1966
  %v2160 = vunpack.c.l.b16 %v1967
  %v2161 = vunpack.c.l.b16 %v1968
  %v2162 = vunpack.c.l.b16 %v1969
  %v2163 = vunpack.c.l.b16 %v1970
  %v2164 = vunpack.c.l.b16 %v1971
  %v2165 = vunpack.c.l.b16 %v1972
  %v2166 = vunpack.c.l.b16 %v1973
  %v2167 = vunpack.c.l.b16 %v1974
  %v2168 = vunpack.c.l.b16 %v1975
  %v2169 = vunpack.c.l.b16 %v1976
  %v2170 = vunpack.c.l.b16 %v1977
  %v2171 = vunpack.c.l.b16 %v1978
  %v2172 = vunpack.c.l.b16 %v1979
  %v2173 = vunpack.c.l.b16 %v1980
  %v2174 = vunpack.c.l.b16 %v1981
  %v2175 = vpack.c.b16 %v2160, %v2159
  %v2176 = vpack.c.b16 %v2162, %v2161
  %v2177 = vpack.c.b16 %v2164, %v2163
  %v2178 = vpack.c.b16 %v2166, %v2165
  %v2179 = vpack.c.b16 %v2168, %v2167
  %v2180 = vpack.c.b16 %v2170, %v2169
  %v2181 = vpack.c.b16 %v2172, %v2171
  %v2182 = vpack.c.b16 %v2174, %v2173
  %2191 = vmatprep.subr.bf16.mxu0 0
  %2192 = vmatpush1.bf16.msra.mxu0 %v2175
  %2193 = vmatprep.subr.bf16.mxu0 0
  %2194 = vmatpush1.bf16.msra.mxu0 %v2176
  %2195 = vmatprep.subr.bf16.mxu0 0
  %2196 = vmatpush1.bf16.msra.mxu0 %v2177
  %2197 = vmatprep.subr.bf16.mxu0 0
  %2198 = vmatpush1.bf16.msra.mxu0 %v2178
  %2199 = vmatprep.subr.bf16.mxu0 0
  %2200 = vmatpush1.bf16.msra.mxu0 %v2179
  %2201 = vmatprep.subr.bf16.mxu0 0
  %2202 = vmatpush1.bf16.msra.mxu0 %v2180
  %2203 = vmatprep.subr.bf16.mxu0 0
  %2204 = vmatpush1.bf16.msra.mxu0 %v2181
  %2205 = vmatprep.subr.bf16.mxu0 0
  %2206 = vmatpush1.bf16.msra.mxu0 %v2182
  %2207 = vmatprep.subr.bf16.mxu0 0
  %2208 = vmatpush1.bf16.msra.mxu0 0
  %2209 = vmatprep.subr.bf16.mxu0 0
  %2210 = vmatpush1.bf16.msra.mxu0 0
  %2211 = vmatprep.subr.bf16.mxu0 0
  %2212 = vmatpush1.bf16.msra.mxu0 0
  %2213 = vmatprep.subr.bf16.mxu0 0
  %2214 = vmatpush1.bf16.msra.mxu0 0
  %2215 = vmatprep.subr.bf16.mxu0 0
  %2216 = vmatpush1.bf16.msra.mxu0 0
  %2217 = vmatprep.subr.bf16.mxu0 0
  %2218 = vmatpush1.bf16.msra.mxu0 0
  %2219 = vmatprep.subr.bf16.mxu0 0
  %2220 = vmatpush1.bf16.msra.mxu0 0
  %2221 = vmatprep.subr.bf16.mxu0 0
  %2222 = vmatpush1.bf16.msra.mxu0 0
  %2223 = vmatprep.mubr.bf16.mxu0 0
  %2224 = vmatmul.mubr.bf16.gmra.mrb[0].mxu0 %v2051
  %v2225 = vpop.f32.mrb[0].mxu0
  %v2226 = vadd.f32 0.0, %v2225
  %v2227 = vpop.f32.mrb[0].mxu0
  %v2228 = vpop.f32.mrb[0].mxu0
  %v2229 = vadd.f32 0.0, %v2228
  %v2230 = vpop.f32.mrb[0].mxu0
  %2231 = vmatprep.mubr.bf16.mxu0 0
  %2232 = vmatmul.mubr.bf16.gmra.mrb[0].mxu0 %v2059
  %v2233 = vpop.f32.mrb[0].mxu0
  %v2234 = vadd.f32 0.0, %v2233
  %v2235 = vpop.f32.mrb[0].mxu0
  %v2236 = vpop.f32.mrb[0].mxu0
  %v2237 = vadd.f32 0.0, %v2236
  %v2238 = vpop.f32.mrb[0].mxu0
  %2239 = vmatprep.mubr.bf16.mxu0 0
  %2240 = vmatmul.mubr.bf16.gmra.mrb[0].mxu0 %v2067
  %v2241 = vpop.f32.mrb[0].mxu0
  %v2242 = vadd.f32 0.0, %v2241
  %v2243 = vpop.f32.mrb[0].mxu0
  %v2244 = vpop.f32.mrb[0].mxu0
  %v2245 = vadd.f32 0.0, %v2244
  %v2246 = vpop.f32.mrb[0].mxu0
  %2247 = vmatprep.mubr.bf16.mxu0 0
  %2248 = vmatmul.mubr.bf16.gmra.mrb[0].mxu0 %v2075
  %v2249 = vpop.f32.mrb[0].mxu0
  %v2250 = vadd.f32 0.0, %v2249
  %v2251 = vpop.f32.mrb[0].mxu0
  %v2252 = vpop.f32.mrb[0].mxu0
  %v2253 = vadd.f32 0.0, %v2252
  %v2254 = vpop.f32.mrb[0].mxu0
  %2255 = vmatprep.mubr.bf16.mxu0 0
  %2256 = vmatmul.mubr.bf16.gmra.mrb[0].mxu0 %v2083
  %v2257 = vpop.f32.mrb[0].mxu0
  %v2258 = vadd.f32 0.0, %v2257
  %v2259 = vpop.f32.mrb[0].mxu0
  %v2260 = vpop.f32.mrb[0].mxu0
  %v2261 = vadd.f32 0.0, %v2260
  %v2262 = vpop.f32.mrb[0].mxu0
  %2263 = vmatprep.mubr.bf16.mxu0 0
  %2264 = vmatmul.mubr.bf16.gmra.mrb[0].mxu0 %v2091
  %v2265 = vpop.f32.mrb[0].mxu0
  %v2266 = vadd.f32 0.0, %v2265
  %v2267 = vpop.f32.mrb[0].mxu0
  %v2268 = vpop.f32.mrb[0].mxu0
  %v2269 = vadd.f32 0.0, %v2268
  %v2270 = vpop.f32.mrb[0].mxu0
  %2271 = vmatprep.mubr.bf16.mxu0 0
  %2272 = vmatmul.mubr.bf16.gmra.mrb[0].mxu0 %v2099
  %v2273 = vpop.f32.mrb[0].mxu0
  %v2274 = vadd.f32 0.0, %v2273
  %v2275 = vpop.f32.mrb[0].mxu0
  %v2276 = vpop.f32.mrb[0].mxu0
  %v2277 = vadd.f32 0.0, %v2276
  %v2278 = vpop.f32.mrb[0].mxu0
  %2279 = vmatprep.mubr.bf16.mxu0 0
  %2280 = vmatmul.mubr.bf16.gmra.mrb[0].mxu0 %v2107
  %v2281 = vpop.f32.mrb[0].mxu0
  %v2282 = vadd.f32 0.0, %v2281
  %v2283 = vpop.f32.mrb[0].mxu0
  %v2284 = vpop.f32.mrb[0].mxu0
  %v2285 = vadd.f32 0.0, %v2284
  %v2286 = vpop.f32.mrb[0].mxu0
  %2287 = vmatprep.mubr.bf16.mxu0 0
  %2288 = vmatmul.mubr.bf16.gmra.mrb[0].mxu0 %v2115
  %v2289 = vpop.f32.mrb[0].mxu0
  %v2290 = vadd.f32 0.0, %v2289
  %v2291 = vpop.f32.mrb[0].mxu0
  %v2292 = vpop.f32.mrb[0].mxu0
  %v2293 = vadd.f32 0.0, %v2292
  %v2294 = vpop.f32.mrb[0].mxu0
  %2295 = vmatprep.mubr.bf16.mxu0 0
  %2296 = vmatmul.mubr.bf16.gmra.mrb[0].mxu0 %v2123
  %v2297 = vpop.f32.mrb[0].mxu0
  %v2298 = vadd.f32 0.0, %v2297
  %v2299 = vpop.f32.mrb[0].mxu0
  %v2300 = vpop.f32.mrb[0].mxu0
  %v2301 = vadd.f32 0.0, %v2300
  %v2302 = vpop.f32.mrb[0].mxu0
  %2303 = vmatprep.mubr.bf16.mxu0 0
  %2304 = vmatmul.mubr.bf16.gmra.mrb[0].mxu0 %v2131
  %v2305 = vpop.f32.mrb[0].mxu0
  %v2306 = vadd.f32 0.0, %v2305
  %v2307 = vpop.f32.mrb[0].mxu0
  %v2308 = vpop.f32.mrb[0].mxu0
  %v2309 = vadd.f32 0.0, %v2308
  %v2310 = vpop.f32.mrb[0].mxu0
  %2311 = vdwg.mxu0
  %v2312 = vadd.f32 %v1920, %v2226
  %v2313 = vadd.f32 %v1921, %v2229
  %v2314 = vadd.f32 %v1922, %v2234
  %v2315 = vadd.f32 %v1923, %v2237
  %v2316 = vadd.f32 %v1924, %v2242
  %v2317 = vadd.f32 %v1925, %v2245
  %v2318 = vadd.f32 %v1926, %v2250
  %v2319 = vadd.f32 %v1927, %v2253
  %v2320 = vadd.f32 %v1928, %v2258
  %v2321 = vadd.f32 %v1929, %v2261
  %v2322 = vadd.f32 %v1930, %v2266
  %v2323 = vadd.f32 %v1931, %v2269
  %v2324 = vadd.f32 %v1932, %v2274
  %v2325 = vadd.f32 %v1933, %v2277
  %v2326 = vadd.f32 %v1934, %v2282
  %v2327 = vadd.f32 %v1935, %v2285
  %v2328 = vadd.f32 %v1936, %v2290
  %v2329 = vadd.f32 %v1937, %v2293
  %v2330 = vadd.f32 %v1938, %v2298
  %v2331 = vadd.f32 %v1939, %v2301
  %v2332 = vadd.f32 %v1940, %v2306
  %v2333 = vadd.f32 %v1941, %v2309
  %v2334 = vld [vmem:[%s53 + $0x4] sm:$0xf]
  %v2335 = vld [vmem:[%s53 + $0x8] sm:$0xf]
  %v2336 = vld [vmem:[%s53 + $0xc] sm:$0xf]
  %v2337 = vld [vmem:[%s53 + $0x10] sm:$0xf]
  %v2338 = vld [vmem:[%s53 + $0x14] sm:$0xf]
  %v2339 = vld [vmem:[%s53 + $0x18] sm:$0xf]
  %v2340 = vld [vmem:[%s53 + $0x1c] sm:$0xf]
  %v2341 = vld [vmem:[%s53 + $0x20] sm:$0xf]
  %v2342 = vld [vmem:[%s53 + $0x24] sm:$0xf]
  %v2343 = vld [vmem:[%s53 + $0x28] sm:$0xf]
  %v2344 = vld [vmem:[%s53 + $0x2c] sm:$0xf]
  %v2345 = vld [vmem:[%s53 + $0x30] sm:$0xf]
  %v2346 = vld [vmem:[%s53 + $0x34] sm:$0xf]
  %v2347 = vld [vmem:[%s53 + $0x38] sm:$0xf]
  %v2348 = vld [vmem:[%s53 + $0x3c] sm:$0xf]
  %v2349 = vld [vmem:[%s53 + $0x40] sm:$0xf]
  %v2350 = vld [vmem:[%s53 + $0x44] sm:$0xf]
  %v2351 = vld [vmem:[%s53 + $0x48] sm:$0xf]
  %v2352 = vld [vmem:[%s53 + $0x4c] sm:$0xf]
  %v2353 = vld [vmem:[%s53 + $0x50] sm:$0xf]
  %v2354 = vld [vmem:[%s53 + $0x54] sm:$0xf]
  %v2355 = vld [vmem:[%s53 + $0x58] sm:$0xf]
  %v2356 = vld [vmem:[%s53 + $0x5c] sm:$0x1]
  %s2357 = scalar_lea.vmem %s1, 448
  %v2358 = vld [vmem:[%s2357] sm:$0xf]
  %v2359 = vld [vmem:[%s2357 + $0x4] sm:$0xf]
  %v2360 = vld [vmem:[%s2357 + $0x8] sm:$0xf]
  %v2361 = vld [vmem:[%s2357 + $0xc] sm:$0xf]
  %v2362 = vld [vmem:[%s2357 + $0x10] sm:$0xf]
  %v2363 = vld [vmem:[%s2357 + $0x14] sm:$0xf]
  %v2364 = vld [vmem:[%s2357 + $0x18] sm:$0xf]
  %v2365 = vld [vmem:[%s2357 + $0x1c] sm:$0xf]
  %v2366 = vld [vmem:[%s2357 + $0x20] sm:$0xf]
  %v2367 = vld [vmem:[%s2357 + $0x24] sm:$0xf]
  %v2368 = vld [vmem:[%s2357 + $0x28] sm:$0xf]
  %v2369 = vld [vmem:[%s2357 + $0x2c] sm:$0xf]
  %v2370 = vld [vmem:[%s2357 + $0x30] sm:$0xf]
  %v2371 = vld [vmem:[%s2357 + $0x34] sm:$0xf]
  %v2372 = vld [vmem:[%s2357 + $0x38] sm:$0xf]
  %v2373 = vld [vmem:[%s2357 + $0x3c] sm:$0xf]
  %v2397 = vunpack.c.l.b16 %v2334
  %v2398 = vunpack.c.l.b16 %v2335
  %v2399 = vunpack.c.l.b16 %v2336
  %v2400 = vunpack.c.l.b16 %v2337
  %v2401 = vunpack.c.l.b16 %v2338
  %v2402 = vunpack.c.l.b16 %v2339
  %v2403 = vunpack.c.l.b16 %v2340
  %v2404 = vunpack.c.l.b16 %v2341
  %v2405 = vunpack.c.l.b16 %v2342
  %v2406 = vunpack.c.l.b16 %v2343
  %v2407 = vunpack.c.l.b16 %v2344
  %v2408 = vunpack.c.l.b16 %v2345
  %v2409 = vunpack.c.l.b16 %v2346
  %v2410 = vunpack.c.l.b16 %v2347
  %v2411 = vunpack.c.l.b16 %v2348
  %v2412 = vunpack.c.l.b16 %v2349
  %v2413 = vunpack.c.l.b16 %v2350
  %v2414 = vunpack.c.l.b16 %v2351
  %v2415 = vunpack.c.l.b16 %v2352
  %v2416 = vunpack.c.l.b16 %v2353
  %v2417 = vunpack.c.l.b16 %v2354
  %v2418 = vunpack.c.l.b16 %v2355
  %v2419 = vunpack.c.l.b16 %v2356
  %v2420 = vpack.c.b16 %v2398, %v2397
  %v2421 = vpack.c.b16 %v2400, %v2399
  %v2422 = vpack.c.b16 %v2402, %v2401
  %v2423 = vpack.c.b16 %v2404, %v2403
  %v2424 = vpack.c.b16 %v2406, %v2405
  %v2425 = vpack.c.b16 %v2408, %v2407
  %v2426 = vpack.c.b16 %v2410, %v2409
  %v2427 = vpack.c.b16 %v2412, %v2411
  %v2428 = vpack.c.b16 %v2414, %v2413
  %v2429 = vpack.c.b16 %v2416, %v2415
  %v2430 = vpack.c.b16 %v2418, %v2417
  %v2431 = vpack.c.b16 %v2419, %v2419
  %v2433 = vshrl.u32 %v2420, 16
  %v2435 = vshll.u32 %v2420, 16
  %v2437 = vrot.slane %v2435, 1
  %v2438 = vor.u32 %v2433, %v2437
  %v2440 = vshll.u32 %v2421, 16
  %v2442 = vrot.slane %v2440, 1
  %v2443 = vsel %vm661, %v2438, %v2442
  %v2444 = vshrl.u32 %v2421, 16
  %v2446 = vor.u32 %v2444, %v2442
  %v2448 = vshll.u32 %v2422, 16
  %v2450 = vrot.slane %v2448, 1
  %v2451 = vsel %vm661, %v2446, %v2450
  %v2452 = vshrl.u32 %v2422, 16
  %v2454 = vor.u32 %v2452, %v2450
  %v2456 = vshll.u32 %v2423, 16
  %v2458 = vrot.slane %v2456, 1
  %v2459 = vsel %vm661, %v2454, %v2458
  %v2460 = vshrl.u32 %v2423, 16
  %v2462 = vor.u32 %v2460, %v2458
  %v2464 = vshll.u32 %v2424, 16
  %v2466 = vrot.slane %v2464, 1
  %v2467 = vsel %vm661, %v2462, %v2466
  %v2468 = vshrl.u32 %v2424, 16
  %v2470 = vor.u32 %v2468, %v2466
  %v2472 = vshll.u32 %v2425, 16
  %v2474 = vrot.slane %v2472, 1
  %v2475 = vsel %vm661, %v2470, %v2474
  %v2476 = vshrl.u32 %v2425, 16
  %v2478 = vor.u32 %v2476, %v2474
  %v2480 = vshll.u32 %v2426, 16
  %v2482 = vrot.slane %v2480, 1
  %v2483 = vsel %vm661, %v2478, %v2482
  %v2484 = vshrl.u32 %v2426, 16
  %v2486 = vor.u32 %v2484, %v2482
  %v2488 = vshll.u32 %v2427, 16
  %v2490 = vrot.slane %v2488, 1
  %v2491 = vsel %vm661, %v2486, %v2490
  %v2492 = vshrl.u32 %v2427, 16
  %v2494 = vor.u32 %v2492, %v2490
  %v2496 = vshll.u32 %v2428, 16
  %v2498 = vrot.slane %v2496, 1
  %v2499 = vsel %vm661, %v2494, %v2498
  %v2500 = vshrl.u32 %v2428, 16
  %v2502 = vor.u32 %v2500, %v2498
  %v2504 = vshll.u32 %v2429, 16
  %v2506 = vrot.slane %v2504, 1
  %v2507 = vsel %vm661, %v2502, %v2506
  %v2508 = vshrl.u32 %v2429, 16
  %v2510 = vor.u32 %v2508, %v2506
  %v2512 = vshll.u32 %v2430, 16
  %v2514 = vrot.slane %v2512, 1
  %v2515 = vsel %vm661, %v2510, %v2514
  %v2516 = vshrl.u32 %v2430, 16
  %v2518 = vor.u32 %v2516, %v2514
  %v2520 = vshll.u32 %v2431, 16
  %v2522 = vrot.slane %v2520, 1
  %v2523 = vsel %vm661, %v2518, %v2522
  %v2551 = vunpack.c.l.b16 %v2358
  %v2552 = vunpack.c.l.b16 %v2359
  %v2553 = vunpack.c.l.b16 %v2360
  %v2554 = vunpack.c.l.b16 %v2361
  %v2555 = vunpack.c.l.b16 %v2362
  %v2556 = vunpack.c.l.b16 %v2363
  %v2557 = vunpack.c.l.b16 %v2364
  %v2558 = vunpack.c.l.b16 %v2365
  %v2559 = vunpack.c.l.b16 %v2366
  %v2560 = vunpack.c.l.b16 %v2367
  %v2561 = vunpack.c.l.b16 %v2368
  %v2562 = vunpack.c.l.b16 %v2369
  %v2563 = vunpack.c.l.b16 %v2370
  %v2564 = vunpack.c.l.b16 %v2371
  %v2565 = vunpack.c.l.b16 %v2372
  %v2566 = vunpack.c.l.b16 %v2373
  %v2567 = vpack.c.b16 %v2552, %v2551
  %v2568 = vpack.c.b16 %v2554, %v2553
  %v2569 = vpack.c.b16 %v2556, %v2555
  %v2570 = vpack.c.b16 %v2558, %v2557
  %v2571 = vpack.c.b16 %v2560, %v2559
  %v2572 = vpack.c.b16 %v2562, %v2561
  %v2573 = vpack.c.b16 %v2564, %v2563
  %v2574 = vpack.c.b16 %v2566, %v2565
  %2583 = vmatprep.subr.bf16.mxu0 0
  %2584 = vmatpush1.bf16.msra.mxu0 %v2567
  %2585 = vmatprep.subr.bf16.mxu0 0
  %2586 = vmatpush1.bf16.msra.mxu0 %v2568
  %2587 = vmatprep.subr.bf16.mxu0 0
  %2588 = vmatpush1.bf16.msra.mxu0 %v2569
  %2589 = vmatprep.subr.bf16.mxu0 0
  %2590 = vmatpush1.bf16.msra.mxu0 %v2570
  %2591 = vmatprep.subr.bf16.mxu0 0
  %2592 = vmatpush1.bf16.msra.mxu0 %v2571
  %2593 = vmatprep.subr.bf16.mxu0 0
  %2594 = vmatpush1.bf16.msra.mxu0 %v2572
  %2595 = vmatprep.subr.bf16.mxu0 0
  %2596 = vmatpush1.bf16.msra.mxu0 %v2573
  %2597 = vmatprep.subr.bf16.mxu0 0
  %2598 = vmatpush1.bf16.msra.mxu0 %v2574
  %2599 = vmatprep.subr.bf16.mxu0 0
  %2600 = vmatpush1.bf16.msra.mxu0 0
  %2601 = vmatprep.subr.bf16.mxu0 0
  %2602 = vmatpush1.bf16.msra.mxu0 0
  %2603 = vmatprep.subr.bf16.mxu0 0
  %2604 = vmatpush1.bf16.msra.mxu0 0
  %2605 = vmatprep.subr.bf16.mxu0 0
  %2606 = vmatpush1.bf16.msra.mxu0 0
  %2607 = vmatprep.subr.bf16.mxu0 0
  %2608 = vmatpush1.bf16.msra.mxu0 0
  %2609 = vmatprep.subr.bf16.mxu0 0
  %2610 = vmatpush1.bf16.msra.mxu0 0
  %2611 = vmatprep.subr.bf16.mxu0 0
  %2612 = vmatpush1.bf16.msra.mxu0 0
  %2613 = vmatprep.subr.bf16.mxu0 0
  %2614 = vmatpush1.bf16.msra.mxu0 0
  %2615 = vmatprep.mubr.bf16.mxu0 0
  %2616 = vmatmul.mubr.bf16.gmra.mrb[0].mxu0 %v2443
  %v2617 = vpop.f32.mrb[0].mxu0
  %v2618 = vadd.f32 0.0, %v2617
  %v2619 = vpop.f32.mrb[0].mxu0
  %v2620 = vpop.f32.mrb[0].mxu0
  %v2621 = vadd.f32 0.0, %v2620
  %v2622 = vpop.f32.mrb[0].mxu0
  %2623 = vmatprep.mubr.bf16.mxu0 0
  %2624 = vmatmul.mubr.bf16.gmra.mrb[0].mxu0 %v2451
  %v2625 = vpop.f32.mrb[0].mxu0
  %v2626 = vadd.f32 0.0, %v2625
  %v2627 = vpop.f32.mrb[0].mxu0
  %v2628 = vpop.f32.mrb[0].mxu0
  %v2629 = vadd.f32 0.0, %v2628
  %v2630 = vpop.f32.mrb[0].mxu0
  %2631 = vmatprep.mubr.bf16.mxu0 0
  %2632 = vmatmul.mubr.bf16.gmra.mrb[0].mxu0 %v2459
  %v2633 = vpop.f32.mrb[0].mxu0
  %v2634 = vadd.f32 0.0, %v2633
  %v2635 = vpop.f32.mrb[0].mxu0
  %v2636 = vpop.f32.mrb[0].mxu0
  %v2637 = vadd.f32 0.0, %v2636
  %v2638 = vpop.f32.mrb[0].mxu0
  %2639 = vmatprep.mubr.bf16.mxu0 0
  %2640 = vmatmul.mubr.bf16.gmra.mrb[0].mxu0 %v2467
  %v2641 = vpop.f32.mrb[0].mxu0
  %v2642 = vadd.f32 0.0, %v2641
  %v2643 = vpop.f32.mrb[0].mxu0
  %v2644 = vpop.f32.mrb[0].mxu0
  %v2645 = vadd.f32 0.0, %v2644
  %v2646 = vpop.f32.mrb[0].mxu0
  %2647 = vmatprep.mubr.bf16.mxu0 0
  %2648 = vmatmul.mubr.bf16.gmra.mrb[0].mxu0 %v2475
  %v2649 = vpop.f32.mrb[0].mxu0
  %v2650 = vadd.f32 0.0, %v2649
  %v2651 = vpop.f32.mrb[0].mxu0
  %v2652 = vpop.f32.mrb[0].mxu0
  %v2653 = vadd.f32 0.0, %v2652
  %v2654 = vpop.f32.mrb[0].mxu0
  %2655 = vmatprep.mubr.bf16.mxu0 0
  %2656 = vmatmul.mubr.bf16.gmra.mrb[0].mxu0 %v2483
  %v2657 = vpop.f32.mrb[0].mxu0
  %v2658 = vadd.f32 0.0, %v2657
  %v2659 = vpop.f32.mrb[0].mxu0
  %v2660 = vpop.f32.mrb[0].mxu0
  %v2661 = vadd.f32 0.0, %v2660
  %v2662 = vpop.f32.mrb[0].mxu0
  %2663 = vmatprep.mubr.bf16.mxu0 0
  %2664 = vmatmul.mubr.bf16.gmra.mrb[0].mxu0 %v2491
  %v2665 = vpop.f32.mrb[0].mxu0
  %v2666 = vadd.f32 0.0, %v2665
  %v2667 = vpop.f32.mrb[0].mxu0
  %v2668 = vpop.f32.mrb[0].mxu0
  %v2669 = vadd.f32 0.0, %v2668
  %v2670 = vpop.f32.mrb[0].mxu0
  %2671 = vmatprep.mubr.bf16.mxu0 0
  %2672 = vmatmul.mubr.bf16.gmra.mrb[0].mxu0 %v2499
  %v2673 = vpop.f32.mrb[0].mxu0
  %v2674 = vadd.f32 0.0, %v2673
  %v2675 = vpop.f32.mrb[0].mxu0
  %v2676 = vpop.f32.mrb[0].mxu0
  %v2677 = vadd.f32 0.0, %v2676
  %v2678 = vpop.f32.mrb[0].mxu0
  %2679 = vmatprep.mubr.bf16.mxu0 0
  %2680 = vmatmul.mubr.bf16.gmra.mrb[0].mxu0 %v2507
  %v2681 = vpop.f32.mrb[0].mxu0
  %v2682 = vadd.f32 0.0, %v2681
  %v2683 = vpop.f32.mrb[0].mxu0
  %v2684 = vpop.f32.mrb[0].mxu0
  %v2685 = vadd.f32 0.0, %v2684
  %v2686 = vpop.f32.mrb[0].mxu0
  %2687 = vmatprep.mubr.bf16.mxu0 0
  %2688 = vmatmul.mubr.bf16.gmra.mrb[0].mxu0 %v2515
  %v2689 = vpop.f32.mrb[0].mxu0
  %v2690 = vadd.f32 0.0, %v2689
  %v2691 = vpop.f32.mrb[0].mxu0
  %v2692 = vpop.f32.mrb[0].mxu0
  %v2693 = vadd.f32 0.0, %v2692
  %v2694 = vpop.f32.mrb[0].mxu0
  %2695 = vmatprep.mubr.bf16.mxu0 0
  %2696 = vmatmul.mubr.bf16.gmra.mrb[0].mxu0 %v2523
  %v2697 = vpop.f32.mrb[0].mxu0
  %v2698 = vadd.f32 0.0, %v2697
  %v2699 = vpop.f32.mrb[0].mxu0
  %v2700 = vpop.f32.mrb[0].mxu0
  %v2701 = vadd.f32 0.0, %v2700
  %v2702 = vpop.f32.mrb[0].mxu0
  %2703 = vdwg.mxu0
  %v2704 = vadd.f32 %v2312, %v2618
  %v2705 = vadd.f32 %v2313, %v2621
  %v2706 = vadd.f32 %v2314, %v2626
  %v2707 = vadd.f32 %v2315, %v2629
  %v2708 = vadd.f32 %v2316, %v2634
  %v2709 = vadd.f32 %v2317, %v2637
  %v2710 = vadd.f32 %v2318, %v2642
  %v2711 = vadd.f32 %v2319, %v2645
  %v2712 = vadd.f32 %v2320, %v2650
  %v2713 = vadd.f32 %v2321, %v2653
  %v2714 = vadd.f32 %v2322, %v2658
  %v2715 = vadd.f32 %v2323, %v2661
  %v2716 = vadd.f32 %v2324, %v2666
  %v2717 = vadd.f32 %v2325, %v2669
  %v2718 = vadd.f32 %v2326, %v2674
  %v2719 = vadd.f32 %v2327, %v2677
  %v2720 = vadd.f32 %v2328, %v2682
  %v2721 = vadd.f32 %v2329, %v2685
  %v2722 = vadd.f32 %v2330, %v2690
  %v2723 = vadd.f32 %v2331, %v2693
  %v2724 = vadd.f32 %v2332, %v2698
  %v2725 = vadd.f32 %v2333, %v2701
  %v2726 = vld [vmem:[%s0 + $0x4] sm:$0xe]
  %s2727 = scalar_lea.vmem %s1, 512
  %v2728 = vld [vmem:[%s2727] sm:$0xf]
  %v2729 = vld [vmem:[%s2727 + $0x4] sm:$0xf]
  %v2730 = vld [vmem:[%s2727 + $0x8] sm:$0xf]
  %v2731 = vld [vmem:[%s2727 + $0xc] sm:$0xf]
  %v2732 = vld [vmem:[%s2727 + $0x10] sm:$0xf]
  %v2733 = vld [vmem:[%s2727 + $0x14] sm:$0xf]
  %v2734 = vld [vmem:[%s2727 + $0x18] sm:$0xf]
  %v2735 = vld [vmem:[%s2727 + $0x1c] sm:$0xf]
  %v2736 = vld [vmem:[%s2727 + $0x20] sm:$0xf]
  %v2737 = vld [vmem:[%s2727 + $0x24] sm:$0xf]
  %v2738 = vld [vmem:[%s2727 + $0x28] sm:$0xf]
  %v2739 = vld [vmem:[%s2727 + $0x2c] sm:$0xf]
  %v2740 = vld [vmem:[%s2727 + $0x30] sm:$0xf]
  %v2741 = vld [vmem:[%s2727 + $0x34] sm:$0xf]
  %v2742 = vld [vmem:[%s2727 + $0x38] sm:$0xf]
  %v2743 = vld [vmem:[%s2727 + $0x3c] sm:$0xf]
  %v2745 = vunpack.c.l.b16 %v2726
  %v2746 = vpack.c.b16 %v2006, %v2745
  %vm2747 = vcmask 1046528
  %v2748 = vrot.slane %v2746, 1
  %v2749 = vrot.slane %v2029, 1
  %v2750 = vsel %vm2747, %v2748, %v2749
  %v2751 = vrot.slane %v2030, 1
  %v2752 = vsel %vm2747, %v2749, %v2751
  %v2753 = vrot.slane %v2031, 1
  %v2754 = vsel %vm2747, %v2751, %v2753
  %v2755 = vrot.slane %v2032, 1
  %v2756 = vsel %vm2747, %v2753, %v2755
  %v2757 = vrot.slane %v2033, 1
  %v2758 = vsel %vm2747, %v2755, %v2757
  %v2759 = vrot.slane %v2034, 1
  %v2760 = vsel %vm2747, %v2757, %v2759
  %v2761 = vrot.slane %v2035, 1
  %v2762 = vsel %vm2747, %v2759, %v2761
  %v2763 = vrot.slane %v2036, 1
  %v2764 = vsel %vm2747, %v2761, %v2763
  %v2765 = vrot.slane %v2037, 1
  %v2766 = vsel %vm2747, %v2763, %v2765
  %v2767 = vrot.slane %v2038, 1
  %v2768 = vsel %vm2747, %v2765, %v2767
  %v2769 = vrot.slane %v2039, 1
  %v2770 = vsel %vm2747, %v2767, %v2769
  %v2798 = vunpack.c.l.b16 %v2728
  %v2799 = vunpack.c.l.b16 %v2729
  %v2800 = vunpack.c.l.b16 %v2730
  %v2801 = vunpack.c.l.b16 %v2731
  %v2802 = vunpack.c.l.b16 %v2732
  %v2803 = vunpack.c.l.b16 %v2733
  %v2804 = vunpack.c.l.b16 %v2734
  %v2805 = vunpack.c.l.b16 %v2735
  %v2806 = vunpack.c.l.b16 %v2736
  %v2807 = vunpack.c.l.b16 %v2737
  %v2808 = vunpack.c.l.b16 %v2738
  %v2809 = vunpack.c.l.b16 %v2739
  %v2810 = vunpack.c.l.b16 %v2740
  %v2811 = vunpack.c.l.b16 %v2741
  %v2812 = vunpack.c.l.b16 %v2742
  %v2813 = vunpack.c.l.b16 %v2743
  %v2814 = vpack.c.b16 %v2799, %v2798
  %v2815 = vpack.c.b16 %v2801, %v2800
  %v2816 = vpack.c.b16 %v2803, %v2802
  %v2817 = vpack.c.b16 %v2805, %v2804
  %v2818 = vpack.c.b16 %v2807, %v2806
  %v2819 = vpack.c.b16 %v2809, %v2808
  %v2820 = vpack.c.b16 %v2811, %v2810
  %v2821 = vpack.c.b16 %v2813, %v2812
  %2830 = vmatprep.subr.bf16.mxu0 0
  %2831 = vmatpush1.bf16.msra.mxu0 %v2814
  %2832 = vmatprep.subr.bf16.mxu0 0
  %2833 = vmatpush1.bf16.msra.mxu0 %v2815
  %2834 = vmatprep.subr.bf16.mxu0 0
  %2835 = vmatpush1.bf16.msra.mxu0 %v2816
  %2836 = vmatprep.subr.bf16.mxu0 0
  %2837 = vmatpush1.bf16.msra.mxu0 %v2817
  %2838 = vmatprep.subr.bf16.mxu0 0
  %2839 = vmatpush1.bf16.msra.mxu0 %v2818
  %2840 = vmatprep.subr.bf16.mxu0 0
  %2841 = vmatpush1.bf16.msra.mxu0 %v2819
  %2842 = vmatprep.subr.bf16.mxu0 0
  %2843 = vmatpush1.bf16.msra.mxu0 %v2820
  %2844 = vmatprep.subr.bf16.mxu0 0
  %2845 = vmatpush1.bf16.msra.mxu0 %v2821
  %2846 = vmatprep.subr.bf16.mxu0 0
  %2847 = vmatpush1.bf16.msra.mxu0 0
  %2848 = vmatprep.subr.bf16.mxu0 0
  %2849 = vmatpush1.bf16.msra.mxu0 0
  %2850 = vmatprep.subr.bf16.mxu0 0
  %2851 = vmatpush1.bf16.msra.mxu0 0
  %2852 = vmatprep.subr.bf16.mxu0 0
  %2853 = vmatpush1.bf16.msra.mxu0 0
  %2854 = vmatprep.subr.bf16.mxu0 0
  %2855 = vmatpush1.bf16.msra.mxu0 0
  %2856 = vmatprep.subr.bf16.mxu0 0
  %2857 = vmatpush1.bf16.msra.mxu0 0
  %2858 = vmatprep.subr.bf16.mxu0 0
  %2859 = vmatpush1.bf16.msra.mxu0 0
  %2860 = vmatprep.subr.bf16.mxu0 0
  %2861 = vmatpush1.bf16.msra.mxu0 0
  %2862 = vmatprep.mubr.bf16.mxu0 0
  %2863 = vmatmul.mubr.bf16.gmra.mrb[0].mxu0 %v2750
  %v2864 = vpop.f32.mrb[0].mxu0
  %v2865 = vadd.f32 0.0, %v2864
  %v2866 = vpop.f32.mrb[0].mxu0
  %v2867 = vpop.f32.mrb[0].mxu0
  %v2868 = vadd.f32 0.0, %v2867
  %v2869 = vpop.f32.mrb[0].mxu0
  %2870 = vmatprep.mubr.bf16.mxu0 0
  %2871 = vmatmul.mubr.bf16.gmra.mrb[0].mxu0 %v2752
  %v2872 = vpop.f32.mrb[0].mxu0
  %v2873 = vadd.f32 0.0, %v2872
  %v2874 = vpop.f32.mrb[0].mxu0
  %v2875 = vpop.f32.mrb[0].mxu0
  %v2876 = vadd.f32 0.0, %v2875
  %v2877 = vpop.f32.mrb[0].mxu0
  %2878 = vmatprep.mubr.bf16.mxu0 0
  %2879 = vmatmul.mubr.bf16.gmra.mrb[0].mxu0 %v2754
  %v2880 = vpop.f32.mrb[0].mxu0
  %v2881 = vadd.f32 0.0, %v2880
  %v2882 = vpop.f32.mrb[0].mxu0
  %v2883 = vpop.f32.mrb[0].mxu0
  %v2884 = vadd.f32 0.0, %v2883
  %v2885 = vpop.f32.mrb[0].mxu0
  %2886 = vmatprep.mubr.bf16.mxu0 0
  %2887 = vmatmul.mubr.bf16.gmra.mrb[0].mxu0 %v2756
  %v2888 = vpop.f32.mrb[0].mxu0
  %v2889 = vadd.f32 0.0, %v2888
  %v2890 = vpop.f32.mrb[0].mxu0
  %v2891 = vpop.f32.mrb[0].mxu0
  %v2892 = vadd.f32 0.0, %v2891
  %v2893 = vpop.f32.mrb[0].mxu0
  %2894 = vmatprep.mubr.bf16.mxu0 0
  %2895 = vmatmul.mubr.bf16.gmra.mrb[0].mxu0 %v2758
  %v2896 = vpop.f32.mrb[0].mxu0
  %v2897 = vadd.f32 0.0, %v2896
  %v2898 = vpop.f32.mrb[0].mxu0
  %v2899 = vpop.f32.mrb[0].mxu0
  %v2900 = vadd.f32 0.0, %v2899
  %v2901 = vpop.f32.mrb[0].mxu0
  %2902 = vmatprep.mubr.bf16.mxu0 0
  %2903 = vmatmul.mubr.bf16.gmra.mrb[0].mxu0 %v2760
  %v2904 = vpop.f32.mrb[0].mxu0
  %v2905 = vadd.f32 0.0, %v2904
  %v2906 = vpop.f32.mrb[0].mxu0
  %v2907 = vpop.f32.mrb[0].mxu0
  %v2908 = vadd.f32 0.0, %v2907
  %v2909 = vpop.f32.mrb[0].mxu0
  %2910 = vmatprep.mubr.bf16.mxu0 0
  %2911 = vmatmul.mubr.bf16.gmra.mrb[0].mxu0 %v2762
  %v2912 = vpop.f32.mrb[0].mxu0
  %v2913 = vadd.f32 0.0, %v2912
  %v2914 = vpop.f32.mrb[0].mxu0
  %v2915 = vpop.f32.mrb[0].mxu0
  %v2916 = vadd.f32 0.0, %v2915
  %v2917 = vpop.f32.mrb[0].mxu0
  %2918 = vmatprep.mubr.bf16.mxu0 0
  %2919 = vmatmul.mubr.bf16.gmra.mrb[0].mxu0 %v2764
  %v2920 = vpop.f32.mrb[0].mxu0
  %v2921 = vadd.f32 0.0, %v2920
  %v2922 = vpop.f32.mrb[0].mxu0
  %v2923 = vpop.f32.mrb[0].mxu0
  %v2924 = vadd.f32 0.0, %v2923
  %v2925 = vpop.f32.mrb[0].mxu0
  %2926 = vmatprep.mubr.bf16.mxu0 0
  %2927 = vmatmul.mubr.bf16.gmra.mrb[0].mxu0 %v2766
  %v2928 = vpop.f32.mrb[0].mxu0
  %v2929 = vadd.f32 0.0, %v2928
  %v2930 = vpop.f32.mrb[0].mxu0
  %v2931 = vpop.f32.mrb[0].mxu0
  %v2932 = vadd.f32 0.0, %v2931
  %v2933 = vpop.f32.mrb[0].mxu0
  %2934 = vmatprep.mubr.bf16.mxu0 0
  %2935 = vmatmul.mubr.bf16.gmra.mrb[0].mxu0 %v2768
  %v2936 = vpop.f32.mrb[0].mxu0
  %v2937 = vadd.f32 0.0, %v2936
  %v2938 = vpop.f32.mrb[0].mxu0
  %v2939 = vpop.f32.mrb[0].mxu0
  %v2940 = vadd.f32 0.0, %v2939
  %v2941 = vpop.f32.mrb[0].mxu0
  %2942 = vmatprep.mubr.bf16.mxu0 0
  %2943 = vmatmul.mubr.bf16.gmra.mrb[0].mxu0 %v2770
  %v2944 = vpop.f32.mrb[0].mxu0
  %v2945 = vadd.f32 0.0, %v2944
  %v2946 = vpop.f32.mrb[0].mxu0
  %v2947 = vpop.f32.mrb[0].mxu0
  %v2948 = vadd.f32 0.0, %v2947
  %v2949 = vpop.f32.mrb[0].mxu0
  %2950 = vdwg.mxu0
  %v2951 = vadd.f32 %v2704, %v2865
  %v2952 = vadd.f32 %v2705, %v2868
  %v2953 = vadd.f32 %v2706, %v2873
  %v2954 = vadd.f32 %v2707, %v2876
  %v2955 = vadd.f32 %v2708, %v2881
  %v2956 = vadd.f32 %v2709, %v2884
  %v2957 = vadd.f32 %v2710, %v2889
  %v2958 = vadd.f32 %v2711, %v2892
  %v2959 = vadd.f32 %v2712, %v2897
  %v2960 = vadd.f32 %v2713, %v2900
  %v2961 = vadd.f32 %v2714, %v2905
  %v2962 = vadd.f32 %v2715, %v2908
  %v2963 = vadd.f32 %v2716, %v2913
  %v2964 = vadd.f32 %v2717, %v2916
  %v2965 = vadd.f32 %v2718, %v2921
  %v2966 = vadd.f32 %v2719, %v2924
  %v2967 = vadd.f32 %v2720, %v2929
  %v2968 = vadd.f32 %v2721, %v2932
  %v2969 = vadd.f32 %v2722, %v2937
  %v2970 = vadd.f32 %v2723, %v2940
  %v2971 = vadd.f32 %v2724, %v2945
  %v2972 = vadd.f32 %v2725, %v2948
  %v2973 = vld [vmem:[%s2] sm:$0x1]
  %v2975 = vlaneseq
  %v2976 = vshrl.u32 %v2975, 7
  %v2977 = vsub.s32 0, %v2976
  %v2978 = vrot.slane %v2973, %v2977
  %v2980 = vadd.f32 %v2951, %v2978
  %v2981 = vadd.f32 %v2952, %v2978
  %v2982 = vadd.f32 %v2953, %v2978
  %v2983 = vadd.f32 %v2954, %v2978
  %v2984 = vadd.f32 %v2955, %v2978
  %v2985 = vadd.f32 %v2956, %v2978
  %v2986 = vadd.f32 %v2957, %v2978
  %v2987 = vadd.f32 %v2958, %v2978
  %v2988 = vadd.f32 %v2959, %v2978
  %v2989 = vadd.f32 %v2960, %v2978
  %v2990 = vadd.f32 %v2961, %v2978
  %v2991 = vadd.f32 %v2962, %v2978
  %v2992 = vadd.f32 %v2963, %v2978
  %v2993 = vadd.f32 %v2964, %v2978
  %v2994 = vadd.f32 %v2965, %v2978
  %v2995 = vadd.f32 %v2966, %v2978
  %v2996 = vadd.f32 %v2967, %v2978
  %v2997 = vadd.f32 %v2968, %v2978
  %v2998 = vadd.f32 %v2969, %v2978
  %v2999 = vadd.f32 %v2970, %v2978
  %v3000 = vadd.f32 %v2971, %v2978
  %v3001 = vadd.f32 %v2972, %v2978
  %v3002 = vmax.f32 %v2980, 0.0
  %v3003 = vmax.f32 %v2981, 0.0
  %v3004 = vmax.f32 %v2982, 0.0
  %v3005 = vmax.f32 %v2983, 0.0
  %v3006 = vmax.f32 %v2984, 0.0
  %v3007 = vmax.f32 %v2985, 0.0
  %v3008 = vmax.f32 %v2986, 0.0
  %v3009 = vmax.f32 %v2987, 0.0
  %v3010 = vmax.f32 %v2988, 0.0
  %v3011 = vmax.f32 %v2989, 0.0
  %v3012 = vmax.f32 %v2990, 0.0
  %v3013 = vmax.f32 %v2991, 0.0
  %v3014 = vmax.f32 %v2992, 0.0
  %v3015 = vmax.f32 %v2993, 0.0
  %v3016 = vmax.f32 %v2994, 0.0
  %v3017 = vmax.f32 %v2995, 0.0
  %v3018 = vmax.f32 %v2996, 0.0
  %v3019 = vmax.f32 %v2997, 0.0
  %v3020 = vmax.f32 %v2998, 0.0
  %v3021 = vmax.f32 %v2999, 0.0
  %v3022 = vmax.f32 %v3000, 0.0
  %v3023 = vmax.f32 %v3001, 0.0
  %3024 = vst [vmem:[%s3] sm:$0xff] %v3002
  %3025 = vst [vmem:[%s3 + $0x8] sm:$0xff] %v3003
  %3026 = vst [vmem:[%s3 + $0x10] sm:$0xff] %v3004
  %3027 = vst [vmem:[%s3 + $0x18] sm:$0xff] %v3005
  %3028 = vst [vmem:[%s3 + $0x20] sm:$0xff] %v3006
  %3029 = vst [vmem:[%s3 + $0x28] sm:$0xff] %v3007
  %3030 = vst [vmem:[%s3 + $0x30] sm:$0xff] %v3008
  %3031 = vst [vmem:[%s3 + $0x38] sm:$0xff] %v3009
  %3032 = vst [vmem:[%s3 + $0x40] sm:$0xff] %v3010
  %3033 = vst [vmem:[%s3 + $0x48] sm:$0xff] %v3011
  %3034 = vst [vmem:[%s3 + $0x50] sm:$0xff] %v3012
  %3035 = vst [vmem:[%s3 + $0x58] sm:$0xff] %v3013
  %3036 = vst [vmem:[%s3 + $0x60] sm:$0xff] %v3014
  %3037 = vst [vmem:[%s3 + $0x68] sm:$0xff] %v3015
  %3038 = vst [vmem:[%s3 + $0x70] sm:$0xff] %v3016
  %3039 = vst [vmem:[%s3 + $0x78] sm:$0xff] %v3017
  %3040 = vst [vmem:[%s3 + $0x80] sm:$0xff] %v3018
  %3041 = vst [vmem:[%s3 + $0x88] sm:$0xff] %v3019
  %3042 = vst [vmem:[%s3 + $0x90] sm:$0xff] %v3020
  %3043 = vst [vmem:[%s3 + $0x98] sm:$0xff] %v3021
  %3044 = vst [vmem:[%s3 + $0xa0] sm:$0xff] %v3022
  %3045 = vst [vmem:[%s3 + $0xa8] sm:$0xff] %v3023
  // Predicated region
  $region14: #{_lambda_.6} parent=0 // pred_check
    _
  $region15: #{_lambda_.6} parent=0 // pred_check_branch
    %3047 = sbr.rel (0) target = $region17
  $region16: #{_lambda_.6} parent=0 // pred_region
    _
  $region17: #{_lambda_.6} parent=0 // pred_fallthru
    _
  // Predicated region
  $region18: #{_lambda_.6} parent=0 // pred_check
    _
  $region19: #{_lambda_.6} parent=0 // pred_check_branch
    %3049 = sbr.rel (0) target = $region21
  $region20: #{_lambda_.6} parent=0 // pred_region
    _
  $region21: #{_lambda_.6} parent=0 // pred_fallthru
    _

// kernel: _lambda_.7
$region0: #{_lambda_.7}
  #allocation0 [shape = 'u32[]', space=smem, size = 0x4, offset = 0x4, fixed_abs, tag = 'smem constant byte address 0x4 - core index']
  #allocation1 [shape = 'u32[144,128]{1,0:T(1,128)}', space=vmem, size = 0x12000, scoped, tag = 'internal scratch']
  %s0 = inlined_call_operand.vmem [shape: bf16[4,70,128], index: 0, kind: input, shape index: {}]
  %s1 = inlined_call_operand.vmem [shape: bf16[9,128,128], index: 1, kind: input, shape index: {}]
  %s2 = inlined_call_operand.vmem [shape: f32[1,128], index: 2, kind: input, shape index: {}]
  %s3 = inlined_call_operand.vmem [shape: f32[64,128], index: 3, kind: output, shape index: {}]
  %s4 = sld [smem:[#allocation0]]
  $region22: #{_lambda_.7} parent=0
    _
  %s6 = ssub.s32 1, %s4
  %s7 = scalar_select 0, %s6, %s4
  // Predicated region
  $region2: #{_lambda_.7} parent=0 // pred_check
    _
  $region3: #{_lambda_.7} parent=0 // pred_check_branch
    %9 = sbr.rel (0) target = $region5
  $region4: #{_lambda_.7} parent=0 // pred_region
    _
  $region5: #{_lambda_.7} parent=0 // pred_fallthru
    _
  // Predicated region
  $region6: #{_lambda_.7} parent=0 // pred_check
    _
  $region7: #{_lambda_.7} parent=0 // pred_check_branch
    %11 = sbr.rel (0) target = $region9
  $region8: #{_lambda_.7} parent=0 // pred_region
    _
  $region9: #{_lambda_.7} parent=0 // pred_fallthru
    _
  // Predicated region
  $region10: #{_lambda_.7} parent=0 // pred_check
    _
  $region11: #{_lambda_.7} parent=0 // pred_check_branch
    %13 = sbr.rel (0) target = $region13
  $region12: #{_lambda_.7} parent=0 // pred_region
    _
  $region13: #{_lambda_.7} parent=0 // pred_fallthru
    _
  %v15 = vld [vmem:[%s0] sm:$0xf]
  %v16 = vld [vmem:[%s0 + $0x4] sm:$0xf]
  %v17 = vld [vmem:[%s0 + $0x8] sm:$0xf]
  %v18 = vld [vmem:[%s0 + $0xc] sm:$0xf]
  %v19 = vld [vmem:[%s0 + $0x10] sm:$0xf]
  %v20 = vld [vmem:[%s0 + $0x14] sm:$0xf]
  %v21 = vld [vmem:[%s0 + $0x18] sm:$0xf]
  %v22 = vld [vmem:[%s0 + $0x1c] sm:$0xf]
  %v23 = vld [vmem:[%s1] sm:$0xf]
  %v24 = vld [vmem:[%s1 + $0x4] sm:$0xf]
  %v25 = vld [vmem:[%s1 + $0x8] sm:$0xf]
  %v26 = vld [vmem:[%s1 + $0xc] sm:$0xf]
  %v27 = vld [vmem:[%s1 + $0x10] sm:$0xf]
  %v28 = vld [vmem:[%s1 + $0x14] sm:$0xf]
  %v29 = vld [vmem:[%s1 + $0x18] sm:$0xf]
  %v30 = vld [vmem:[%s1 + $0x1c] sm:$0xf]
  %v31 = vld [vmem:[%s1 + $0x20] sm:$0xf]
  %v32 = vld [vmem:[%s1 + $0x24] sm:$0xf]
  %v33 = vld [vmem:[%s1 + $0x28] sm:$0xf]
  %v34 = vld [vmem:[%s1 + $0x2c] sm:$0xf]
  %v35 = vld [vmem:[%s1 + $0x30] sm:$0xf]
  %v36 = vld [vmem:[%s1 + $0x34] sm:$0xf]
  %v37 = vld [vmem:[%s1 + $0x38] sm:$0xf]
  %v38 = vld [vmem:[%s1 + $0x3c] sm:$0xf]
  %s39 = scalar_lea.vmem %s0, 36
  %v40 = vld [vmem:[%s39] sm:$0xf]
  %v41 = vld [vmem:[%s39 + $0x4] sm:$0xf]
  %v42 = vld [vmem:[%s39 + $0x8] sm:$0xf]
  %v43 = vld [vmem:[%s39 + $0xc] sm:$0xf]
  %v44 = vld [vmem:[%s39 + $0x10] sm:$0xf]
  %v45 = vld [vmem:[%s39 + $0x14] sm:$0xf]
  %v46 = vld [vmem:[%s39 + $0x18] sm:$0xf]
  %v47 = vld [vmem:[%s39 + $0x1c] sm:$0xf]
  %s48 = scalar_lea.vmem %s1, 64
  %v49 = vld [vmem:[%s48] sm:$0xf]
  %v50 = vld [vmem:[%s48 + $0x4] sm:$0xf]
  %v51 = vld [vmem:[%s48 + $0x8] sm:$0xf]
  %v52 = vld [vmem:[%s48 + $0xc] sm:$0xf]
  %v53 = vld [vmem:[%s48 + $0x10] sm:$0xf]
  %v54 = vld [vmem:[%s48 + $0x14] sm:$0xf]
  %v55 = vld [vmem:[%s48 + $0x18] sm:$0xf]
  %v56 = vld [vmem:[%s48 + $0x1c] sm:$0xf]
  %v57 = vld [vmem:[%s48 + $0x20] sm:$0xf]
  %v58 = vld [vmem:[%s48 + $0x24] sm:$0xf]
  %v59 = vld [vmem:[%s48 + $0x28] sm:$0xf]
  %v60 = vld [vmem:[%s48 + $0x2c] sm:$0xf]
  %v61 = vld [vmem:[%s48 + $0x30] sm:$0xf]
  %v62 = vld [vmem:[%s48 + $0x34] sm:$0xf]
  %v63 = vld [vmem:[%s48 + $0x38] sm:$0xf]
  %v64 = vld [vmem:[%s48 + $0x3c] sm:$0xf]
  %v73 = vunpack.c.l.b16 %v40
  %v74 = vunpack.c.l.b16 %v41
  %v75 = vunpack.c.l.b16 %v42
  %v76 = vunpack.c.l.b16 %v43
  %v77 = vunpack.c.l.b16 %v44
  %v78 = vunpack.c.l.b16 %v45
  %v79 = vunpack.c.l.b16 %v46
  %v80 = vunpack.c.l.b16 %v47
  %v81 = vpack.c.b16 %v74, %v73
  %v82 = vpack.c.b16 %v76, %v75
  %v83 = vpack.c.b16 %v78, %v77
  %v84 = vpack.c.b16 %v80, %v79
  %v105 = vunpack.c.l.b16 %v49
  %v106 = vunpack.c.l.b16 %v50
  %v107 = vunpack.c.l.b16 %v51
  %v108 = vunpack.c.l.b16 %v52
  %v109 = vunpack.c.l.b16 %v53
  %v110 = vunpack.c.l.b16 %v54
  %v111 = vunpack.c.l.b16 %v55
  %v112 = vunpack.c.l.b16 %v56
  %v113 = vunpack.c.l.b16 %v57
  %v114 = vunpack.c.l.b16 %v58
  %v115 = vunpack.c.l.b16 %v59
  %v116 = vunpack.c.l.b16 %v60
  %v117 = vunpack.c.l.b16 %v61
  %v118 = vunpack.c.l.b16 %v62
  %v119 = vunpack.c.l.b16 %v63
  %v120 = vunpack.c.l.b16 %v64
  %v121 = vpack.c.b16 %v106, %v105
  %v122 = vpack.c.b16 %v108, %v107
  %v123 = vpack.c.b16 %v110, %v109
  %v124 = vpack.c.b16 %v112, %v111
  %v125 = vpack.c.b16 %v114, %v113
  %v126 = vpack.c.b16 %v116, %v115
  %v127 = vpack.c.b16 %v118, %v117
  %v128 = vpack.c.b16 %v120, %v119
  %137 = vmatprep.subr.bf16.mxu0 0
  %138 = vmatpush1.bf16.msra.mxu0 %v121
  %139 = vmatprep.subr.bf16.mxu0 0
  %140 = vmatpush1.bf16.msra.mxu0 %v122
  %141 = vmatprep.subr.bf16.mxu0 0
  %142 = vmatpush1.bf16.msra.mxu0 %v123
  %143 = vmatprep.subr.bf16.mxu0 0
  %144 = vmatpush1.bf16.msra.mxu0 %v124
  %145 = vmatprep.subr.bf16.mxu0 0
  %146 = vmatpush1.bf16.msra.mxu0 %v125
  %147 = vmatprep.subr.bf16.mxu0 0
  %148 = vmatpush1.bf16.msra.mxu0 %v126
  %149 = vmatprep.subr.bf16.mxu0 0
  %150 = vmatpush1.bf16.msra.mxu0 %v127
  %151 = vmatprep.subr.bf16.mxu0 0
  %152 = vmatpush1.bf16.msra.mxu0 %v128
  %153 = vmatprep.subr.bf16.mxu0 0
  %154 = vmatpush1.bf16.msra.mxu0 0
  %155 = vmatprep.subr.bf16.mxu0 0
  %156 = vmatpush1.bf16.msra.mxu0 0
  %157 = vmatprep.subr.bf16.mxu0 0
  %158 = vmatpush1.bf16.msra.mxu0 0
  %159 = vmatprep.subr.bf16.mxu0 0
  %160 = vmatpush1.bf16.msra.mxu0 0
  %161 = vmatprep.subr.bf16.mxu0 0
  %162 = vmatpush1.bf16.msra.mxu0 0
  %163 = vmatprep.subr.bf16.mxu0 0
  %164 = vmatpush1.bf16.msra.mxu0 0
  %165 = vmatprep.subr.bf16.mxu0 0
  %166 = vmatpush1.bf16.msra.mxu0 0
  %167 = vmatprep.subr.bf16.mxu0 0
  %168 = vmatpush1.bf16.msra.mxu0 0
  %169 = vmatprep.mubr.bf16.mxu0 0
  %170 = vmatmul.mubr.bf16.gmra.mrb[0].mxu0 %v81
  %v171 = vpop.f32.mrb[0].mxu0
  %v172 = vadd.f32 0.0, %v171
  %v173 = vpop.f32.mrb[0].mxu0
  %v174 = vpop.f32.mrb[0].mxu0
  %v175 = vadd.f32 0.0, %v174
  %v176 = vpop.f32.mrb[0].mxu0
  %177 = vmatprep.mubr.bf16.mxu0 0
  %178 = vmatmul.mubr.bf16.gmra.mrb[0].mxu0 %v82
  %v179 = vpop.f32.mrb[0].mxu0
  %v180 = vadd.f32 0.0, %v179
  %v181 = vpop.f32.mrb[0].mxu0
  %v182 = vpop.f32.mrb[0].mxu0
  %v183 = vadd.f32 0.0, %v182
  %v184 = vpop.f32.mrb[0].mxu0
  %185 = vmatprep.mubr.bf16.mxu0 0
  %186 = vmatmul.mubr.bf16.gmra.mrb[0].mxu0 %v83
  %v187 = vpop.f32.mrb[0].mxu0
  %v188 = vadd.f32 0.0, %v187
  %v189 = vpop.f32.mrb[0].mxu0
  %v190 = vpop.f32.mrb[0].mxu0
  %v191 = vadd.f32 0.0, %v190
  %v192 = vpop.f32.mrb[0].mxu0
  %193 = vmatprep.mubr.bf16.mxu0 0
  %194 = vmatmul.mubr.bf16.gmra.mrb[0].mxu0 %v84
  %v195 = vpop.f32.mrb[0].mxu0
  %v196 = vadd.f32 0.0, %v195
  %v197 = vpop.f32.mrb[0].mxu0
  %v198 = vpop.f32.mrb[0].mxu0
  %v199 = vadd.f32 0.0, %v198
  %v200 = vpop.f32.mrb[0].mxu0
  %201 = vdwg.mxu0
  %v210 = vunpack.c.l.b16 %v15
  %v211 = vunpack.c.l.b16 %v16
  %v212 = vunpack.c.l.b16 %v17
  %v213 = vunpack.c.l.b16 %v18
  %v214 = vunpack.c.l.b16 %v19
  %v215 = vunpack.c.l.b16 %v20
  %v216 = vunpack.c.l.b16 %v21
  %v217 = vunpack.c.l.b16 %v22
  %v218 = vpack.c.b16 %v211, %v210
  %v219 = vpack.c.b16 %v213, %v212
  %v220 = vpack.c.b16 %v215, %v214
  %v221 = vpack.c.b16 %v217, %v216
  %v242 = vunpack.c.l.b16 %v23
  %v243 = vunpack.c.l.b16 %v24
  %v244 = vunpack.c.l.b16 %v25
  %v245 = vunpack.c.l.b16 %v26
  %v246 = vunpack.c.l.b16 %v27
  %v247 = vunpack.c.l.b16 %v28
  %v248 = vunpack.c.l.b16 %v29
  %v249 = vunpack.c.l.b16 %v30
  %v250 = vunpack.c.l.b16 %v31
  %v251 = vunpack.c.l.b16 %v32
  %v252 = vunpack.c.l.b16 %v33
  %v253 = vunpack.c.l.b16 %v34
  %v254 = vunpack.c.l.b16 %v35
  %v255 = vunpack.c.l.b16 %v36
  %v256 = vunpack.c.l.b16 %v37
  %v257 = vunpack.c.l.b16 %v38
  %v258 = vpack.c.b16 %v243, %v242
  %v259 = vpack.c.b16 %v245, %v244
  %v260 = vpack.c.b16 %v247, %v246
  %v261 = vpack.c.b16 %v249, %v248
  %v262 = vpack.c.b16 %v251, %v250
  %v263 = vpack.c.b16 %v253, %v252
  %v264 = vpack.c.b16 %v255, %v254
  %v265 = vpack.c.b16 %v257, %v256
  %274 = vmatprep.subr.bf16.mxu0 0
  %275 = vmatpush1.bf16.msra.mxu0 %v258
  %276 = vmatprep.subr.bf16.mxu0 0
  %277 = vmatpush1.bf16.msra.mxu0 %v259
  %278 = vmatprep.subr.bf16.mxu0 0
  %279 = vmatpush1.bf16.msra.mxu0 %v260
  %280 = vmatprep.subr.bf16.mxu0 0
  %281 = vmatpush1.bf16.msra.mxu0 %v261
  %282 = vmatprep.subr.bf16.mxu0 0
  %283 = vmatpush1.bf16.msra.mxu0 %v262
  %284 = vmatprep.subr.bf16.mxu0 0
  %285 = vmatpush1.bf16.msra.mxu0 %v263
  %286 = vmatprep.subr.bf16.mxu0 0
  %287 = vmatpush1.bf16.msra.mxu0 %v264
  %288 = vmatprep.subr.bf16.mxu0 0
  %289 = vmatpush1.bf16.msra.mxu0 %v265
  %290 = vmatprep.subr.bf16.mxu0 0
  %291 = vmatpush1.bf16.msra.mxu0 0
  %292 = vmatprep.subr.bf16.mxu0 0
  %293 = vmatpush1.bf16.msra.mxu0 0
  %294 = vmatprep.subr.bf16.mxu0 0
  %295 = vmatpush1.bf16.msra.mxu0 0
  %296 = vmatprep.subr.bf16.mxu0 0
  %297 = vmatpush1.bf16.msra.mxu0 0
  %298 = vmatprep.subr.bf16.mxu0 0
  %299 = vmatpush1.bf16.msra.mxu0 0
  %300 = vmatprep.subr.bf16.mxu0 0
  %301 = vmatpush1.bf16.msra.mxu0 0
  %302 = vmatprep.subr.bf16.mxu0 0
  %303 = vmatpush1.bf16.msra.mxu0 0
  %304 = vmatprep.subr.bf16.mxu0 0
  %305 = vmatpush1.bf16.msra.mxu0 0
  %306 = vmatprep.mubr.bf16.mxu0 0
  %307 = vmatmul.mubr.bf16.gmra.mrb[0].mxu0 %v218
  %v308 = vpop.f32.mrb[0].mxu0
  %v309 = vadd.f32 %v172, %v308
  %v310 = vpop.f32.mrb[0].mxu0
  %v311 = vpop.f32.mrb[0].mxu0
  %v312 = vadd.f32 %v175, %v311
  %v313 = vpop.f32.mrb[0].mxu0
  %314 = vmatprep.mubr.bf16.mxu0 0
  %315 = vmatmul.mubr.bf16.gmra.mrb[0].mxu0 %v219
  %v316 = vpop.f32.mrb[0].mxu0
  %v317 = vadd.f32 %v180, %v316
  %v318 = vpop.f32.mrb[0].mxu0
  %v319 = vpop.f32.mrb[0].mxu0
  %v320 = vadd.f32 %v183, %v319
  %v321 = vpop.f32.mrb[0].mxu0
  %322 = vmatprep.mubr.bf16.mxu0 0
  %323 = vmatmul.mubr.bf16.gmra.mrb[0].mxu0 %v220
  %v324 = vpop.f32.mrb[0].mxu0
  %v325 = vadd.f32 %v188, %v324
  %v326 = vpop.f32.mrb[0].mxu0
  %v327 = vpop.f32.mrb[0].mxu0
  %v328 = vadd.f32 %v191, %v327
  %v329 = vpop.f32.mrb[0].mxu0
  %330 = vmatprep.mubr.bf16.mxu0 0
  %331 = vmatmul.mubr.bf16.gmra.mrb[0].mxu0 %v221
  %v332 = vpop.f32.mrb[0].mxu0
  %v333 = vadd.f32 %v196, %v332
  %v334 = vpop.f32.mrb[0].mxu0
  %v335 = vpop.f32.mrb[0].mxu0
  %v336 = vadd.f32 %v199, %v335
  %v337 = vpop.f32.mrb[0].mxu0
  %338 = vdwg.mxu0
  %v339 = vld [vmem:[%s0] sm:$0xf]
  %v340 = vld [vmem:[%s0 + $0x4] sm:$0xf]
  %v341 = vld [vmem:[%s0 + $0x8] sm:$0xf]
  %v342 = vld [vmem:[%s0 + $0xc] sm:$0xf]
  %v343 = vld [vmem:[%s0 + $0x10] sm:$0xf]
  %v344 = vld [vmem:[%s0 + $0x14] sm:$0xf]
  %v345 = vld [vmem:[%s0 + $0x18] sm:$0xf]
  %v346 = vld [vmem:[%s0 + $0x1c] sm:$0xf]
  %v347 = vld [vmem:[%s0 + $0x20] sm:$0x1]
  %s348 = scalar_lea.vmem %s1, 128
  %v349 = vld [vmem:[%s348] sm:$0xf]
  %v350 = vld [vmem:[%s348 + $0x4] sm:$0xf]
  %v351 = vld [vmem:[%s348 + $0x8] sm:$0xf]
  %v352 = vld [vmem:[%s348 + $0xc] sm:$0xf]
  %v353 = vld [vmem:[%s348 + $0x10] sm:$0xf]
  %v354 = vld [vmem:[%s348 + $0x14] sm:$0xf]
  %v355 = vld [vmem:[%s348 + $0x18] sm:$0xf]
  %v356 = vld [vmem:[%s348 + $0x1c] sm:$0xf]
  %v357 = vld [vmem:[%s348 + $0x20] sm:$0xf]
  %v358 = vld [vmem:[%s348 + $0x24] sm:$0xf]
  %v359 = vld [vmem:[%s348 + $0x28] sm:$0xf]
  %v360 = vld [vmem:[%s348 + $0x2c] sm:$0xf]
  %v361 = vld [vmem:[%s348 + $0x30] sm:$0xf]
  %v362 = vld [vmem:[%s348 + $0x34] sm:$0xf]
  %v363 = vld [vmem:[%s348 + $0x38] sm:$0xf]
  %v364 = vld [vmem:[%s348 + $0x3c] sm:$0xf]
  %v374 = vunpack.c.l.b16 %v339
  %v375 = vunpack.c.l.b16 %v340
  %v376 = vunpack.c.l.b16 %v341
  %v377 = vunpack.c.l.b16 %v342
  %v378 = vunpack.c.l.b16 %v343
  %v379 = vunpack.c.l.b16 %v344
  %v380 = vunpack.c.l.b16 %v345
  %v381 = vunpack.c.l.b16 %v346
  %v382 = vunpack.c.l.b16 %v347
  %v383 = vpack.c.b16 %v375, %v374
  %v384 = vpack.c.b16 %v377, %v376
  %v385 = vpack.c.b16 %v379, %v378
  %v386 = vpack.c.b16 %v381, %v380
  %v387 = vpack.c.b16 %v382, %v382
  %vm388 = vsmask.f32 7424
  %v390 = vshrl.u32 %v383, 16
  %v392 = vshll.u32 %v383, 16
  %v394 = vrot.slane %v392, 1
  %v395 = vor.u32 %v390, %v394
  %v397 = vshll.u32 %v384, 16
  %v399 = vrot.slane %v397, 1
  %v400 = vsel %vm388, %v395, %v399
  %v401 = vshrl.u32 %v384, 16
  %v403 = vor.u32 %v401, %v399
  %v405 = vshll.u32 %v385, 16
  %v407 = vrot.slane %v405, 1
  %v408 = vsel %vm388, %v403, %v407
  %v409 = vshrl.u32 %v385, 16
  %v411 = vor.u32 %v409, %v407
  %v413 = vshll.u32 %v386, 16
  %v415 = vrot.slane %v413, 1
  %v416 = vsel %vm388, %v411, %v415
  %v417 = vshrl.u32 %v386, 16
  %v419 = vor.u32 %v417, %v415
  %v421 = vshll.u32 %v387, 16
  %v423 = vrot.slane %v421, 1
  %v424 = vsel %vm388, %v419, %v423
  %v445 = vunpack.c.l.b16 %v349
  %v446 = vunpack.c.l.b16 %v350
  %v447 = vunpack.c.l.b16 %v351
  %v448 = vunpack.c.l.b16 %v352
  %v449 = vunpack.c.l.b16 %v353
  %v450 = vunpack.c.l.b16 %v354
  %v451 = vunpack.c.l.b16 %v355
  %v452 = vunpack.c.l.b16 %v356
  %v453 = vunpack.c.l.b16 %v357
  %v454 = vunpack.c.l.b16 %v358
  %v455 = vunpack.c.l.b16 %v359
  %v456 = vunpack.c.l.b16 %v360
  %v457 = vunpack.c.l.b16 %v361
  %v458 = vunpack.c.l.b16 %v362
  %v459 = vunpack.c.l.b16 %v363
  %v460 = vunpack.c.l.b16 %v364
  %v461 = vpack.c.b16 %v446, %v445
  %v462 = vpack.c.b16 %v448, %v447
  %v463 = vpack.c.b16 %v450, %v449
  %v464 = vpack.c.b16 %v452, %v451
  %v465 = vpack.c.b16 %v454, %v453
  %v466 = vpack.c.b16 %v456, %v455
  %v467 = vpack.c.b16 %v458, %v457
  %v468 = vpack.c.b16 %v460, %v459
  %477 = vmatprep.subr.bf16.mxu0 0
  %478 = vmatpush1.bf16.msra.mxu0 %v461
  %479 = vmatprep.subr.bf16.mxu0 0
  %480 = vmatpush1.bf16.msra.mxu0 %v462
  %481 = vmatprep.subr.bf16.mxu0 0
  %482 = vmatpush1.bf16.msra.mxu0 %v463
  %483 = vmatprep.subr.bf16.mxu0 0
  %484 = vmatpush1.bf16.msra.mxu0 %v464
  %485 = vmatprep.subr.bf16.mxu0 0
  %486 = vmatpush1.bf16.msra.mxu0 %v465
  %487 = vmatprep.subr.bf16.mxu0 0
  %488 = vmatpush1.bf16.msra.mxu0 %v466
  %489 = vmatprep.subr.bf16.mxu0 0
  %490 = vmatpush1.bf16.msra.mxu0 %v467
  %491 = vmatprep.subr.bf16.mxu0 0
  %492 = vmatpush1.bf16.msra.mxu0 %v468
  %493 = vmatprep.subr.bf16.mxu0 0
  %494 = vmatpush1.bf16.msra.mxu0 0
  %495 = vmatprep.subr.bf16.mxu0 0
  %496 = vmatpush1.bf16.msra.mxu0 0
  %497 = vmatprep.subr.bf16.mxu0 0
  %498 = vmatpush1.bf16.msra.mxu0 0
  %499 = vmatprep.subr.bf16.mxu0 0
  %500 = vmatpush1.bf16.msra.mxu0 0
  %501 = vmatprep.subr.bf16.mxu0 0
  %502 = vmatpush1.bf16.msra.mxu0 0
  %503 = vmatprep.subr.bf16.mxu0 0
  %504 = vmatpush1.bf16.msra.mxu0 0
  %505 = vmatprep.subr.bf16.mxu0 0
  %506 = vmatpush1.bf16.msra.mxu0 0
  %507 = vmatprep.subr.bf16.mxu0 0
  %508 = vmatpush1.bf16.msra.mxu0 0
  %509 = vmatprep.mubr.bf16.mxu0 0
  %510 = vmatmul.mubr.bf16.gmra.mrb[0].mxu0 %v400
  %v511 = vpop.f32.mrb[0].mxu0
  %v512 = vadd.f32 0.0, %v511
  %v513 = vpop.f32.mrb[0].mxu0
  %v514 = vpop.f32.mrb[0].mxu0
  %v515 = vadd.f32 0.0, %v514
  %v516 = vpop.f32.mrb[0].mxu0
  %517 = vmatprep.mubr.bf16.mxu0 0
  %518 = vmatmul.mubr.bf16.gmra.mrb[0].mxu0 %v408
  %v519 = vpop.f32.mrb[0].mxu0
  %v520 = vadd.f32 0.0, %v519
  %v521 = vpop.f32.mrb[0].mxu0
  %v522 = vpop.f32.mrb[0].mxu0
  %v523 = vadd.f32 0.0, %v522
  %v524 = vpop.f32.mrb[0].mxu0
  %525 = vmatprep.mubr.bf16.mxu0 0
  %526 = vmatmul.mubr.bf16.gmra.mrb[0].mxu0 %v416
  %v527 = vpop.f32.mrb[0].mxu0
  %v528 = vadd.f32 0.0, %v527
  %v529 = vpop.f32.mrb[0].mxu0
  %v530 = vpop.f32.mrb[0].mxu0
  %v531 = vadd.f32 0.0, %v530
  %v532 = vpop.f32.mrb[0].mxu0
  %533 = vmatprep.mubr.bf16.mxu0 0
  %534 = vmatmul.mubr.bf16.gmra.mrb[0].mxu0 %v424
  %v535 = vpop.f32.mrb[0].mxu0
  %v536 = vadd.f32 0.0, %v535
  %v537 = vpop.f32.mrb[0].mxu0
  %v538 = vpop.f32.mrb[0].mxu0
  %v539 = vadd.f32 0.0, %v538
  %v540 = vpop.f32.mrb[0].mxu0
  %541 = vdwg.mxu0
  %v542 = vadd.f32 %v309, %v512
  %v543 = vadd.f32 %v312, %v515
  %v544 = vadd.f32 %v317, %v520
  %v545 = vadd.f32 %v320, %v523
  %v546 = vadd.f32 %v325, %v528
  %v547 = vadd.f32 %v328, %v531
  %v548 = vadd.f32 %v333, %v536
  %v549 = vadd.f32 %v336, %v539
  %s550 = scalar_lea.vmem %s0, 72
  %v551 = vld [vmem:[%s550] sm:$0xf]
  %v552 = vld [vmem:[%s550 + $0x4] sm:$0xf]
  %v553 = vld [vmem:[%s550 + $0x8] sm:$0xf]
  %v554 = vld [vmem:[%s550 + $0xc] sm:$0xf]
  %v555 = vld [vmem:[%s550 + $0x10] sm:$0xf]
  %v556 = vld [vmem:[%s550 + $0x14] sm:$0xf]
  %v557 = vld [vmem:[%s550 + $0x18] sm:$0xf]
  %v558 = vld [vmem:[%s550 + $0x1c] sm:$0xf]
  %s559 = scalar_lea.vmem %s1, 192
  %v560 = vld [vmem:[%s559] sm:$0xf]
  %v561 = vld [vmem:[%s559 + $0x4] sm:$0xf]
  %v562 = vld [vmem:[%s559 + $0x8] sm:$0xf]
  %v563 = vld [vmem:[%s559 + $0xc] sm:$0xf]
  %v564 = vld [vmem:[%s559 + $0x10] sm:$0xf]
  %v565 = vld [vmem:[%s559 + $0x14] sm:$0xf]
  %v566 = vld [vmem:[%s559 + $0x18] sm:$0xf]
  %v567 = vld [vmem:[%s559 + $0x1c] sm:$0xf]
  %v568 = vld [vmem:[%s559 + $0x20] sm:$0xf]
  %v569 = vld [vmem:[%s559 + $0x24] sm:$0xf]
  %v570 = vld [vmem:[%s559 + $0x28] sm:$0xf]
  %v571 = vld [vmem:[%s559 + $0x2c] sm:$0xf]
  %v572 = vld [vmem:[%s559 + $0x30] sm:$0xf]
  %v573 = vld [vmem:[%s559 + $0x34] sm:$0xf]
  %v574 = vld [vmem:[%s559 + $0x38] sm:$0xf]
  %v575 = vld [vmem:[%s559 + $0x3c] sm:$0xf]
  %v584 = vunpack.c.l.b16 %v551
  %v585 = vunpack.c.l.b16 %v552
  %v586 = vunpack.c.l.b16 %v553
  %v587 = vunpack.c.l.b16 %v554
  %v588 = vunpack.c.l.b16 %v555
  %v589 = vunpack.c.l.b16 %v556
  %v590 = vunpack.c.l.b16 %v557
  %v591 = vunpack.c.l.b16 %v558
  %v592 = vpack.c.b16 %v585, %v584
  %v593 = vpack.c.b16 %v587, %v586
  %v594 = vpack.c.b16 %v589, %v588
  %v595 = vpack.c.b16 %v591, %v590
  %v616 = vunpack.c.l.b16 %v560
  %v617 = vunpack.c.l.b16 %v561
  %v618 = vunpack.c.l.b16 %v562
  %v619 = vunpack.c.l.b16 %v563
  %v620 = vunpack.c.l.b16 %v564
  %v621 = vunpack.c.l.b16 %v565
  %v622 = vunpack.c.l.b16 %v566
  %v623 = vunpack.c.l.b16 %v567
  %v624 = vunpack.c.l.b16 %v568
  %v625 = vunpack.c.l.b16 %v569
  %v626 = vunpack.c.l.b16 %v570
  %v627 = vunpack.c.l.b16 %v571
  %v628 = vunpack.c.l.b16 %v572
  %v629 = vunpack.c.l.b16 %v573
  %v630 = vunpack.c.l.b16 %v574
  %v631 = vunpack.c.l.b16 %v575
  %v632 = vpack.c.b16 %v617, %v616
  %v633 = vpack.c.b16 %v619, %v618
  %v634 = vpack.c.b16 %v621, %v620
  %v635 = vpack.c.b16 %v623, %v622
  %v636 = vpack.c.b16 %v625, %v624
  %v637 = vpack.c.b16 %v627, %v626
  %v638 = vpack.c.b16 %v629, %v628
  %v639 = vpack.c.b16 %v631, %v630
  %648 = vmatprep.subr.bf16.mxu0 0
  %649 = vmatpush1.bf16.msra.mxu0 %v632
  %650 = vmatprep.subr.bf16.mxu0 0
  %651 = vmatpush1.bf16.msra.mxu0 %v633
  %652 = vmatprep.subr.bf16.mxu0 0
  %653 = vmatpush1.bf16.msra.mxu0 %v634
  %654 = vmatprep.subr.bf16.mxu0 0
  %655 = vmatpush1.bf16.msra.mxu0 %v635
  %656 = vmatprep.subr.bf16.mxu0 0
  %657 = vmatpush1.bf16.msra.mxu0 %v636
  %658 = vmatprep.subr.bf16.mxu0 0
  %659 = vmatpush1.bf16.msra.mxu0 %v637
  %660 = vmatprep.subr.bf16.mxu0 0
  %661 = vmatpush1.bf16.msra.mxu0 %v638
  %662 = vmatprep.subr.bf16.mxu0 0
  %663 = vmatpush1.bf16.msra.mxu0 %v639
  %664 = vmatprep.subr.bf16.mxu0 0
  %665 = vmatpush1.bf16.msra.mxu0 0
  %666 = vmatprep.subr.bf16.mxu0 0
  %667 = vmatpush1.bf16.msra.mxu0 0
  %668 = vmatprep.subr.bf16.mxu0 0
  %669 = vmatpush1.bf16.msra.mxu0 0
  %670 = vmatprep.subr.bf16.mxu0 0
  %671 = vmatpush1.bf16.msra.mxu0 0
  %672 = vmatprep.subr.bf16.mxu0 0
  %673 = vmatpush1.bf16.msra.mxu0 0
  %674 = vmatprep.subr.bf16.mxu0 0
  %675 = vmatpush1.bf16.msra.mxu0 0
  %676 = vmatprep.subr.bf16.mxu0 0
  %677 = vmatpush1.bf16.msra.mxu0 0
  %678 = vmatprep.subr.bf16.mxu0 0
  %679 = vmatpush1.bf16.msra.mxu0 0
  %680 = vmatprep.mubr.bf16.mxu0 0
  %681 = vmatmul.mubr.bf16.gmra.mrb[0].mxu0 %v592
  %v682 = vpop.f32.mrb[0].mxu0
  %v683 = vadd.f32 0.0, %v682
  %v684 = vpop.f32.mrb[0].mxu0
  %v685 = vpop.f32.mrb[0].mxu0
  %v686 = vadd.f32 0.0, %v685
  %v687 = vpop.f32.mrb[0].mxu0
  %688 = vmatprep.mubr.bf16.mxu0 0
  %689 = vmatmul.mubr.bf16.gmra.mrb[0].mxu0 %v593
  %v690 = vpop.f32.mrb[0].mxu0
  %v691 = vadd.f32 0.0, %v690
  %v692 = vpop.f32.mrb[0].mxu0
  %v693 = vpop.f32.mrb[0].mxu0
  %v694 = vadd.f32 0.0, %v693
  %v695 = vpop.f32.mrb[0].mxu0
  %696 = vmatprep.mubr.bf16.mxu0 0
  %697 = vmatmul.mubr.bf16.gmra.mrb[0].mxu0 %v594
  %v698 = vpop.f32.mrb[0].mxu0
  %v699 = vadd.f32 0.0, %v698
  %v700 = vpop.f32.mrb[0].mxu0
  %v701 = vpop.f32.mrb[0].mxu0
  %v702 = vadd.f32 0.0, %v701
  %v703 = vpop.f32.mrb[0].mxu0
  %704 = vmatprep.mubr.bf16.mxu0 0
  %705 = vmatmul.mubr.bf16.gmra.mrb[0].mxu0 %v595
  %v706 = vpop.f32.mrb[0].mxu0
  %v707 = vadd.f32 0.0, %v706
  %v708 = vpop.f32.mrb[0].mxu0
  %v709 = vpop.f32.mrb[0].mxu0
  %v710 = vadd.f32 0.0, %v709
  %v711 = vpop.f32.mrb[0].mxu0
  %712 = vdwg.mxu0
  %v713 = vadd.f32 %v542, %v683
  %v714 = vadd.f32 %v543, %v686
  %v715 = vadd.f32 %v544, %v691
  %v716 = vadd.f32 %v545, %v694
  %v717 = vadd.f32 %v546, %v699
  %v718 = vadd.f32 %v547, %v702
  %v719 = vadd.f32 %v548, %v707
  %v720 = vadd.f32 %v549, %v710
  %s721 = scalar_lea.vmem %s0, 108
  %v722 = vld [vmem:[%s721] sm:$0xf]
  %v723 = vld [vmem:[%s721 + $0x4] sm:$0xf]
  %v724 = vld [vmem:[%s721 + $0x8] sm:$0xf]
  %v725 = vld [vmem:[%s721 + $0xc] sm:$0xf]
  %v726 = vld [vmem:[%s721 + $0x10] sm:$0xf]
  %v727 = vld [vmem:[%s721 + $0x14] sm:$0xf]
  %v728 = vld [vmem:[%s721 + $0x18] sm:$0xf]
  %v729 = vld [vmem:[%s721 + $0x1c] sm:$0xf]
  %s730 = scalar_lea.vmem %s1, 256
  %v731 = vld [vmem:[%s730] sm:$0xf]
  %v732 = vld [vmem:[%s730 + $0x4] sm:$0xf]
  %v733 = vld [vmem:[%s730 + $0x8] sm:$0xf]
  %v734 = vld [vmem:[%s730 + $0xc] sm:$0xf]
  %v735 = vld [vmem:[%s730 + $0x10] sm:$0xf]
  %v736 = vld [vmem:[%s730 + $0x14] sm:$0xf]
  %v737 = vld [vmem:[%s730 + $0x18] sm:$0xf]
  %v738 = vld [vmem:[%s730 + $0x1c] sm:$0xf]
  %v739 = vld [vmem:[%s730 + $0x20] sm:$0xf]
  %v740 = vld [vmem:[%s730 + $0x24] sm:$0xf]
  %v741 = vld [vmem:[%s730 + $0x28] sm:$0xf]
  %v742 = vld [vmem:[%s730 + $0x2c] sm:$0xf]
  %v743 = vld [vmem:[%s730 + $0x30] sm:$0xf]
  %v744 = vld [vmem:[%s730 + $0x34] sm:$0xf]
  %v745 = vld [vmem:[%s730 + $0x38] sm:$0xf]
  %v746 = vld [vmem:[%s730 + $0x3c] sm:$0xf]
  %v755 = vunpack.c.l.b16 %v722
  %v756 = vunpack.c.l.b16 %v723
  %v757 = vunpack.c.l.b16 %v724
  %v758 = vunpack.c.l.b16 %v725
  %v759 = vunpack.c.l.b16 %v726
  %v760 = vunpack.c.l.b16 %v727
  %v761 = vunpack.c.l.b16 %v728
  %v762 = vunpack.c.l.b16 %v729
  %v763 = vpack.c.b16 %v756, %v755
  %v764 = vpack.c.b16 %v758, %v757
  %v765 = vpack.c.b16 %v760, %v759
  %v766 = vpack.c.b16 %v762, %v761
  %v787 = vunpack.c.l.b16 %v731
  %v788 = vunpack.c.l.b16 %v732
  %v789 = vunpack.c.l.b16 %v733
  %v790 = vunpack.c.l.b16 %v734
  %v791 = vunpack.c.l.b16 %v735
  %v792 = vunpack.c.l.b16 %v736
  %v793 = vunpack.c.l.b16 %v737
  %v794 = vunpack.c.l.b16 %v738
  %v795 = vunpack.c.l.b16 %v739
  %v796 = vunpack.c.l.b16 %v740
  %v797 = vunpack.c.l.b16 %v741
  %v798 = vunpack.c.l.b16 %v742
  %v799 = vunpack.c.l.b16 %v743
  %v800 = vunpack.c.l.b16 %v744
  %v801 = vunpack.c.l.b16 %v745
  %v802 = vunpack.c.l.b16 %v746
  %v803 = vpack.c.b16 %v788, %v787
  %v804 = vpack.c.b16 %v790, %v789
  %v805 = vpack.c.b16 %v792, %v791
  %v806 = vpack.c.b16 %v794, %v793
  %v807 = vpack.c.b16 %v796, %v795
  %v808 = vpack.c.b16 %v798, %v797
  %v809 = vpack.c.b16 %v800, %v799
  %v810 = vpack.c.b16 %v802, %v801
  %819 = vmatprep.subr.bf16.mxu0 0
  %820 = vmatpush1.bf16.msra.mxu0 %v803
  %821 = vmatprep.subr.bf16.mxu0 0
  %822 = vmatpush1.bf16.msra.mxu0 %v804
  %823 = vmatprep.subr.bf16.mxu0 0
  %824 = vmatpush1.bf16.msra.mxu0 %v805
  %825 = vmatprep.subr.bf16.mxu0 0
  %826 = vmatpush1.bf16.msra.mxu0 %v806
  %827 = vmatprep.subr.bf16.mxu0 0
  %828 = vmatpush1.bf16.msra.mxu0 %v807
  %829 = vmatprep.subr.bf16.mxu0 0
  %830 = vmatpush1.bf16.msra.mxu0 %v808
  %831 = vmatprep.subr.bf16.mxu0 0
  %832 = vmatpush1.bf16.msra.mxu0 %v809
  %833 = vmatprep.subr.bf16.mxu0 0
  %834 = vmatpush1.bf16.msra.mxu0 %v810
  %835 = vmatprep.subr.bf16.mxu0 0
  %836 = vmatpush1.bf16.msra.mxu0 0
  %837 = vmatprep.subr.bf16.mxu0 0
  %838 = vmatpush1.bf16.msra.mxu0 0
  %839 = vmatprep.subr.bf16.mxu0 0
  %840 = vmatpush1.bf16.msra.mxu0 0
  %841 = vmatprep.subr.bf16.mxu0 0
  %842 = vmatpush1.bf16.msra.mxu0 0
  %843 = vmatprep.subr.bf16.mxu0 0
  %844 = vmatpush1.bf16.msra.mxu0 0
  %845 = vmatprep.subr.bf16.mxu0 0
  %846 = vmatpush1.bf16.msra.mxu0 0
  %847 = vmatprep.subr.bf16.mxu0 0
  %848 = vmatpush1.bf16.msra.mxu0 0
  %849 = vmatprep.subr.bf16.mxu0 0
  %850 = vmatpush1.bf16.msra.mxu0 0
  %851 = vmatprep.mubr.bf16.mxu0 0
  %852 = vmatmul.mubr.bf16.gmra.mrb[0].mxu0 %v763
  %v853 = vpop.f32.mrb[0].mxu0
  %v854 = vadd.f32 0.0, %v853
  %v855 = vpop.f32.mrb[0].mxu0
  %v856 = vpop.f32.mrb[0].mxu0
  %v857 = vadd.f32 0.0, %v856
  %v858 = vpop.f32.mrb[0].mxu0
  %859 = vmatprep.mubr.bf16.mxu0 0
  %860 = vmatmul.mubr.bf16.gmra.mrb[0].mxu0 %v764
  %v861 = vpop.f32.mrb[0].mxu0
  %v862 = vadd.f32 0.0, %v861
  %v863 = vpop.f32.mrb[0].mxu0
  %v864 = vpop.f32.mrb[0].mxu0
  %v865 = vadd.f32 0.0, %v864
  %v866 = vpop.f32.mrb[0].mxu0
  %867 = vmatprep.mubr.bf16.mxu0 0
  %868 = vmatmul.mubr.bf16.gmra.mrb[0].mxu0 %v765
  %v869 = vpop.f32.mrb[0].mxu0
  %v870 = vadd.f32 0.0, %v869
  %v871 = vpop.f32.mrb[0].mxu0
  %v872 = vpop.f32.mrb[0].mxu0
  %v873 = vadd.f32 0.0, %v872
  %v874 = vpop.f32.mrb[0].mxu0
  %875 = vmatprep.mubr.bf16.mxu0 0
  %876 = vmatmul.mubr.bf16.gmra.mrb[0].mxu0 %v766
  %v877 = vpop.f32.mrb[0].mxu0
  %v878 = vadd.f32 0.0, %v877
  %v879 = vpop.f32.mrb[0].mxu0
  %v880 = vpop.f32.mrb[0].mxu0
  %v881 = vadd.f32 0.0, %v880
  %v882 = vpop.f32.mrb[0].mxu0
  %883 = vdwg.mxu0
  %v884 = vadd.f32 %v713, %v854
  %v885 = vadd.f32 %v714, %v857
  %v886 = vadd.f32 %v715, %v862
  %v887 = vadd.f32 %v716, %v865
  %v888 = vadd.f32 %v717, %v870
  %v889 = vadd.f32 %v718, %v873
  %v890 = vadd.f32 %v719, %v878
  %v891 = vadd.f32 %v720, %v881
  %v892 = vld [vmem:[%s550] sm:$0xf]
  %v893 = vld [vmem:[%s550 + $0x4] sm:$0xf]
  %v894 = vld [vmem:[%s550 + $0x8] sm:$0xf]
  %v895 = vld [vmem:[%s550 + $0xc] sm:$0xf]
  %v896 = vld [vmem:[%s550 + $0x10] sm:$0xf]
  %v897 = vld [vmem:[%s550 + $0x14] sm:$0xf]
  %v898 = vld [vmem:[%s550 + $0x18] sm:$0xf]
  %v899 = vld [vmem:[%s550 + $0x1c] sm:$0xf]
  %v900 = vld [vmem:[%s550 + $0x20] sm:$0x1]
  %s901 = scalar_lea.vmem %s1, 320
  %v902 = vld [vmem:[%s901] sm:$0xf]
  %v903 = vld [vmem:[%s901 + $0x4] sm:$0xf]
  %v904 = vld [vmem:[%s901 + $0x8] sm:$0xf]
  %v905 = vld [vmem:[%s901 + $0xc] sm:$0xf]
  %v906 = vld [vmem:[%s901 + $0x10] sm:$0xf]
  %v907 = vld [vmem:[%s901 + $0x14] sm:$0xf]
  %v908 = vld [vmem:[%s901 + $0x18] sm:$0xf]
  %v909 = vld [vmem:[%s901 + $0x1c] sm:$0xf]
  %v910 = vld [vmem:[%s901 + $0x20] sm:$0xf]
  %v911 = vld [vmem:[%s901 + $0x24] sm:$0xf]
  %v912 = vld [vmem:[%s901 + $0x28] sm:$0xf]
  %v913 = vld [vmem:[%s901 + $0x2c] sm:$0xf]
  %v914 = vld [vmem:[%s901 + $0x30] sm:$0xf]
  %v915 = vld [vmem:[%s901 + $0x34] sm:$0xf]
  %v916 = vld [vmem:[%s901 + $0x38] sm:$0xf]
  %v917 = vld [vmem:[%s901 + $0x3c] sm:$0xf]
  %v927 = vunpack.c.l.b16 %v892
  %v928 = vunpack.c.l.b16 %v893
  %v929 = vunpack.c.l.b16 %v894
  %v930 = vunpack.c.l.b16 %v895
  %v931 = vunpack.c.l.b16 %v896
  %v932 = vunpack.c.l.b16 %v897
  %v933 = vunpack.c.l.b16 %v898
  %v934 = vunpack.c.l.b16 %v899
  %v935 = vunpack.c.l.b16 %v900
  %v936 = vpack.c.b16 %v928, %v927
  %v937 = vpack.c.b16 %v930, %v929
  %v938 = vpack.c.b16 %v932, %v931
  %v939 = vpack.c.b16 %v934, %v933
  %v940 = vpack.c.b16 %v935, %v935
  %v942 = vshrl.u32 %v936, 16
  %v944 = vshll.u32 %v936, 16
  %v946 = vrot.slane %v944, 1
  %v947 = vor.u32 %v942, %v946
  %v949 = vshll.u32 %v937, 16
  %v951 = vrot.slane %v949, 1
  %v952 = vsel %vm388, %v947, %v951
  %v953 = vshrl.u32 %v937, 16
  %v955 = vor.u32 %v953, %v951
  %v957 = vshll.u32 %v938, 16
  %v959 = vrot.slane %v957, 1
  %v960 = vsel %vm388, %v955, %v959
  %v961 = vshrl.u32 %v938, 16
  %v963 = vor.u32 %v961, %v959
  %v965 = vshll.u32 %v939, 16
  %v967 = vrot.slane %v965, 1
  %v968 = vsel %vm388, %v963, %v967
  %v969 = vshrl.u32 %v939, 16
  %v971 = vor.u32 %v969, %v967
  %v973 = vshll.u32 %v940, 16
  %v975 = vrot.slane %v973, 1
  %v976 = vsel %vm388, %v971, %v975
  %v997 = vunpack.c.l.b16 %v902
  %v998 = vunpack.c.l.b16 %v903
  %v999 = vunpack.c.l.b16 %v904
  %v1000 = vunpack.c.l.b16 %v905
  %v1001 = vunpack.c.l.b16 %v906
  %v1002 = vunpack.c.l.b16 %v907
  %v1003 = vunpack.c.l.b16 %v908
  %v1004 = vunpack.c.l.b16 %v909
  %v1005 = vunpack.c.l.b16 %v910
  %v1006 = vunpack.c.l.b16 %v911
  %v1007 = vunpack.c.l.b16 %v912
  %v1008 = vunpack.c.l.b16 %v913
  %v1009 = vunpack.c.l.b16 %v914
  %v1010 = vunpack.c.l.b16 %v915
  %v1011 = vunpack.c.l.b16 %v916
  %v1012 = vunpack.c.l.b16 %v917
  %v1013 = vpack.c.b16 %v998, %v997
  %v1014 = vpack.c.b16 %v1000, %v999
  %v1015 = vpack.c.b16 %v1002, %v1001
  %v1016 = vpack.c.b16 %v1004, %v1003
  %v1017 = vpack.c.b16 %v1006, %v1005
  %v1018 = vpack.c.b16 %v1008, %v1007
  %v1019 = vpack.c.b16 %v1010, %v1009
  %v1020 = vpack.c.b16 %v1012, %v1011
  %1029 = vmatprep.subr.bf16.mxu0 0
  %1030 = vmatpush1.bf16.msra.mxu0 %v1013
  %1031 = vmatprep.subr.bf16.mxu0 0
  %1032 = vmatpush1.bf16.msra.mxu0 %v1014
  %1033 = vmatprep.subr.bf16.mxu0 0
  %1034 = vmatpush1.bf16.msra.mxu0 %v1015
  %1035 = vmatprep.subr.bf16.mxu0 0
  %1036 = vmatpush1.bf16.msra.mxu0 %v1016
  %1037 = vmatprep.subr.bf16.mxu0 0
  %1038 = vmatpush1.bf16.msra.mxu0 %v1017
  %1039 = vmatprep.subr.bf16.mxu0 0
  %1040 = vmatpush1.bf16.msra.mxu0 %v1018
  %1041 = vmatprep.subr.bf16.mxu0 0
  %1042 = vmatpush1.bf16.msra.mxu0 %v1019
  %1043 = vmatprep.subr.bf16.mxu0 0
  %1044 = vmatpush1.bf16.msra.mxu0 %v1020
  %1045 = vmatprep.subr.bf16.mxu0 0
  %1046 = vmatpush1.bf16.msra.mxu0 0
  %1047 = vmatprep.subr.bf16.mxu0 0
  %1048 = vmatpush1.bf16.msra.mxu0 0
  %1049 = vmatprep.subr.bf16.mxu0 0
  %1050 = vmatpush1.bf16.msra.mxu0 0
  %1051 = vmatprep.subr.bf16.mxu0 0
  %1052 = vmatpush1.bf16.msra.mxu0 0
  %1053 = vmatprep.subr.bf16.mxu0 0
  %1054 = vmatpush1.bf16.msra.mxu0 0
  %1055 = vmatprep.subr.bf16.mxu0 0
  %1056 = vmatpush1.bf16.msra.mxu0 0
  %1057 = vmatprep.subr.bf16.mxu0 0
  %1058 = vmatpush1.bf16.msra.mxu0 0
  %1059 = vmatprep.subr.bf16.mxu0 0
  %1060 = vmatpush1.bf16.msra.mxu0 0
  %1061 = vmatprep.mubr.bf16.mxu0 0
  %1062 = vmatmul.mubr.bf16.gmra.mrb[0].mxu0 %v952
  %v1063 = vpop.f32.mrb[0].mxu0
  %v1064 = vadd.f32 0.0, %v1063
  %v1065 = vpop.f32.mrb[0].mxu0
  %v1066 = vpop.f32.mrb[0].mxu0
  %v1067 = vadd.f32 0.0, %v1066
  %v1068 = vpop.f32.mrb[0].mxu0
  %1069 = vmatprep.mubr.bf16.mxu0 0
  %1070 = vmatmul.mubr.bf16.gmra.mrb[0].mxu0 %v960
  %v1071 = vpop.f32.mrb[0].mxu0
  %v1072 = vadd.f32 0.0, %v1071
  %v1073 = vpop.f32.mrb[0].mxu0
  %v1074 = vpop.f32.mrb[0].mxu0
  %v1075 = vadd.f32 0.0, %v1074
  %v1076 = vpop.f32.mrb[0].mxu0
  %1077 = vmatprep.mubr.bf16.mxu0 0
  %1078 = vmatmul.mubr.bf16.gmra.mrb[0].mxu0 %v968
  %v1079 = vpop.f32.mrb[0].mxu0
  %v1080 = vadd.f32 0.0, %v1079
  %v1081 = vpop.f32.mrb[0].mxu0
  %v1082 = vpop.f32.mrb[0].mxu0
  %v1083 = vadd.f32 0.0, %v1082
  %v1084 = vpop.f32.mrb[0].mxu0
  %1085 = vmatprep.mubr.bf16.mxu0 0
  %1086 = vmatmul.mubr.bf16.gmra.mrb[0].mxu0 %v976
  %v1087 = vpop.f32.mrb[0].mxu0
  %v1088 = vadd.f32 0.0, %v1087
  %v1089 = vpop.f32.mrb[0].mxu0
  %v1090 = vpop.f32.mrb[0].mxu0
  %v1091 = vadd.f32 0.0, %v1090
  %v1092 = vpop.f32.mrb[0].mxu0
  %1093 = vdwg.mxu0
  %v1094 = vadd.f32 %v884, %v1064
  %v1095 = vadd.f32 %v885, %v1067
  %v1096 = vadd.f32 %v886, %v1072
  %v1097 = vadd.f32 %v887, %v1075
  %v1098 = vadd.f32 %v888, %v1080
  %v1099 = vadd.f32 %v889, %v1083
  %v1100 = vadd.f32 %v890, %v1088
  %v1101 = vadd.f32 %v891, %v1091
  %v1102 = vld [vmem:[%s0] sm:$0xc]
  %v1103 = vld [vmem:[%s0 + $0x20] sm:$0x7]
  %s1104 = scalar_lea.vmem %s1, 384
  %v1105 = vld [vmem:[%s1104] sm:$0xf]
  %v1106 = vld [vmem:[%s1104 + $0x4] sm:$0xf]
  %v1107 = vld [vmem:[%s1104 + $0x8] sm:$0xf]
  %v1108 = vld [vmem:[%s1104 + $0xc] sm:$0xf]
  %v1109 = vld [vmem:[%s1104 + $0x10] sm:$0xf]
  %v1110 = vld [vmem:[%s1104 + $0x14] sm:$0xf]
  %v1111 = vld [vmem:[%s1104 + $0x18] sm:$0xf]
  %v1112 = vld [vmem:[%s1104 + $0x1c] sm:$0xf]
  %v1113 = vld [vmem:[%s1104 + $0x20] sm:$0xf]
  %v1114 = vld [vmem:[%s1104 + $0x24] sm:$0xf]
  %v1115 = vld [vmem:[%s1104 + $0x28] sm:$0xf]
  %v1116 = vld [vmem:[%s1104 + $0x2c] sm:$0xf]
  %v1117 = vld [vmem:[%s1104 + $0x30] sm:$0xf]
  %v1118 = vld [vmem:[%s1104 + $0x34] sm:$0xf]
  %v1119 = vld [vmem:[%s1104 + $0x38] sm:$0xf]
  %v1120 = vld [vmem:[%s1104 + $0x3c] sm:$0xf]
  %v1123 = vunpack.c.l.b16 %v1102
  %v1124 = vunpack.c.l.b16 %v1103
  %v1125 = vpack.c.b16 %v375, %v1123
  %v1126 = vpack.c.b16 %v1124, %v1124
  %vm1127 = vsmask.f32 5376
  %v1129 = vshrl.u32 %v1125, 16
  %v1131 = vrot.slane %v1129, 2
  %v1132 = vshll.u32 %v1125, 16
  %v1134 = vrot.slane %v1132, 3
  %v1135 = vor.u32 %v1131, %v1134
  %v1136 = vrot.slane %v401, 2
  %v1137 = vrot.slane %v397, 3
  %v1138 = vor.u32 %v1136, %v1137
  %v1139 = vsel %vm1127, %v1135, %v1138
  %v1140 = vrot.slane %v409, 2
  %v1141 = vrot.slane %v405, 3
  %v1142 = vor.u32 %v1140, %v1141
  %v1143 = vsel %vm1127, %v1138, %v1142
  %v1144 = vrot.slane %v417, 2
  %v1145 = vrot.slane %v413, 3
  %v1146 = vor.u32 %v1144, %v1145
  %v1147 = vsel %vm1127, %v1142, %v1146
  %v1149 = vshrl.u32 %v1126, 16
  %v1151 = vrot.slane %v1149, 2
  %v1152 = vshll.u32 %v1126, 16
  %v1154 = vrot.slane %v1152, 3
  %v1155 = vor.u32 %v1151, %v1154
  %v1156 = vsel %vm1127, %v1146, %v1155
  %v1177 = vunpack.c.l.b16 %v1105
  %v1178 = vunpack.c.l.b16 %v1106
  %v1179 = vunpack.c.l.b16 %v1107
  %v1180 = vunpack.c.l.b16 %v1108
  %v1181 = vunpack.c.l.b16 %v1109
  %v1182 = vunpack.c.l.b16 %v1110
  %v1183 = vunpack.c.l.b16 %v1111
  %v1184 = vunpack.c.l.b16 %v1112
  %v1185 = vunpack.c.l.b16 %v1113
  %v1186 = vunpack.c.l.b16 %v1114
  %v1187 = vunpack.c.l.b16 %v1115
  %v1188 = vunpack.c.l.b16 %v1116
  %v1189 = vunpack.c.l.b16 %v1117
  %v1190 = vunpack.c.l.b16 %v1118
  %v1191 = vunpack.c.l.b16 %v1119
  %v1192 = vunpack.c.l.b16 %v1120
  %v1193 = vpack.c.b16 %v1178, %v1177
  %v1194 = vpack.c.b16 %v1180, %v1179
  %v1195 = vpack.c.b16 %v1182, %v1181
  %v1196 = vpack.c.b16 %v1184, %v1183
  %v1197 = vpack.c.b16 %v1186, %v1185
  %v1198 = vpack.c.b16 %v1188, %v1187
  %v1199 = vpack.c.b16 %v1190, %v1189
  %v1200 = vpack.c.b16 %v1192, %v1191
  %1209 = vmatprep.subr.bf16.mxu0 0
  %1210 = vmatpush1.bf16.msra.mxu0 %v1193
  %1211 = vmatprep.subr.bf16.mxu0 0
  %1212 = vmatpush1.bf16.msra.mxu0 %v1194
  %1213 = vmatprep.subr.bf16.mxu0 0
  %1214 = vmatpush1.bf16.msra.mxu0 %v1195
  %1215 = vmatprep.subr.bf16.mxu0 0
  %1216 = vmatpush1.bf16.msra.mxu0 %v1196
  %1217 = vmatprep.subr.bf16.mxu0 0
  %1218 = vmatpush1.bf16.msra.mxu0 %v1197
  %1219 = vmatprep.subr.bf16.mxu0 0
  %1220 = vmatpush1.bf16.msra.mxu0 %v1198
  %1221 = vmatprep.subr.bf16.mxu0 0
  %1222 = vmatpush1.bf16.msra.mxu0 %v1199
  %1223 = vmatprep.subr.bf16.mxu0 0
  %1224 = vmatpush1.bf16.msra.mxu0 %v1200
  %1225 = vmatprep.subr.bf16.mxu0 0
  %1226 = vmatpush1.bf16.msra.mxu0 0
  %1227 = vmatprep.subr.bf16.mxu0 0
  %1228 = vmatpush1.bf16.msra.mxu0 0
  %1229 = vmatprep.subr.bf16.mxu0 0
  %1230 = vmatpush1.bf16.msra.mxu0 0
  %1231 = vmatprep.subr.bf16.mxu0 0
  %1232 = vmatpush1.bf16.msra.mxu0 0
  %1233 = vmatprep.subr.bf16.mxu0 0
  %1234 = vmatpush1.bf16.msra.mxu0 0
  %1235 = vmatprep.subr.bf16.mxu0 0
  %1236 = vmatpush1.bf16.msra.mxu0 0
  %1237 = vmatprep.subr.bf16.mxu0 0
  %1238 = vmatpush1.bf16.msra.mxu0 0
  %1239 = vmatprep.subr.bf16.mxu0 0
  %1240 = vmatpush1.bf16.msra.mxu0 0
  %1241 = vmatprep.mubr.bf16.mxu0 0
  %1242 = vmatmul.mubr.bf16.gmra.mrb[0].mxu0 %v1139
  %v1243 = vpop.f32.mrb[0].mxu0
  %v1244 = vadd.f32 0.0, %v1243
  %v1245 = vpop.f32.mrb[0].mxu0
  %v1246 = vpop.f32.mrb[0].mxu0
  %v1247 = vadd.f32 0.0, %v1246
  %v1248 = vpop.f32.mrb[0].mxu0
  %1249 = vmatprep.mubr.bf16.mxu0 0
  %1250 = vmatmul.mubr.bf16.gmra.mrb[0].mxu0 %v1143
  %v1251 = vpop.f32.mrb[0].mxu0
  %v1252 = vadd.f32 0.0, %v1251
  %v1253 = vpop.f32.mrb[0].mxu0
  %v1254 = vpop.f32.mrb[0].mxu0
  %v1255 = vadd.f32 0.0, %v1254
  %v1256 = vpop.f32.mrb[0].mxu0
  %1257 = vmatprep.mubr.bf16.mxu0 0
  %1258 = vmatmul.mubr.bf16.gmra.mrb[0].mxu0 %v1147
  %v1259 = vpop.f32.mrb[0].mxu0
  %v1260 = vadd.f32 0.0, %v1259
  %v1261 = vpop.f32.mrb[0].mxu0
  %v1262 = vpop.f32.mrb[0].mxu0
  %v1263 = vadd.f32 0.0, %v1262
  %v1264 = vpop.f32.mrb[0].mxu0
  %1265 = vmatprep.mubr.bf16.mxu0 0
  %1266 = vmatmul.mubr.bf16.gmra.mrb[0].mxu0 %v1156
  %v1267 = vpop.f32.mrb[0].mxu0
  %v1268 = vadd.f32 0.0, %v1267
  %v1269 = vpop.f32.mrb[0].mxu0
  %v1270 = vpop.f32.mrb[0].mxu0
  %v1271 = vadd.f32 0.0, %v1270
  %v1272 = vpop.f32.mrb[0].mxu0
  %1273 = vdwg.mxu0
  %v1274 = vadd.f32 %v1094, %v1244
  %v1275 = vadd.f32 %v1095, %v1247
  %v1276 = vadd.f32 %v1096, %v1252
  %v1277 = vadd.f32 %v1097, %v1255
  %v1278 = vadd.f32 %v1098, %v1260
  %v1279 = vadd.f32 %v1099, %v1263
  %v1280 = vadd.f32 %v1100, %v1268
  %v1281 = vadd.f32 %v1101, %v1271
  %v1282 = vld [vmem:[%s39] sm:$0xc]
  %v1283 = vld [vmem:[%s39 + $0x4] sm:$0xf]
  %v1284 = vld [vmem:[%s39 + $0x8] sm:$0xf]
  %v1285 = vld [vmem:[%s39 + $0xc] sm:$0xf]
  %v1286 = vld [vmem:[%s39 + $0x10] sm:$0xf]
  %v1287 = vld [vmem:[%s39 + $0x14] sm:$0xf]
  %v1288 = vld [vmem:[%s39 + $0x18] sm:$0xf]
  %v1289 = vld [vmem:[%s39 + $0x1c] sm:$0xf]
  %v1290 = vld [vmem:[%s39 + $0x20] sm:$0x7]
  %s1291 = scalar_lea.vmem %s1, 448
  %v1292 = vld [vmem:[%s1291] sm:$0xf]
  %v1293 = vld [vmem:[%s1291 + $0x4] sm:$0xf]
  %v1294 = vld [vmem:[%s1291 + $0x8] sm:$0xf]
  %v1295 = vld [vmem:[%s1291 + $0xc] sm:$0xf]
  %v1296 = vld [vmem:[%s1291 + $0x10] sm:$0xf]
  %v1297 = vld [vmem:[%s1291 + $0x14] sm:$0xf]
  %v1298 = vld [vmem:[%s1291 + $0x18] sm:$0xf]
  %v1299 = vld [vmem:[%s1291 + $0x1c] sm:$0xf]
  %v1300 = vld [vmem:[%s1291 + $0x20] sm:$0xf]
  %v1301 = vld [vmem:[%s1291 + $0x24] sm:$0xf]
  %v1302 = vld [vmem:[%s1291 + $0x28] sm:$0xf]
  %v1303 = vld [vmem:[%s1291 + $0x2c] sm:$0xf]
  %v1304 = vld [vmem:[%s1291 + $0x30] sm:$0xf]
  %v1305 = vld [vmem:[%s1291 + $0x34] sm:$0xf]
  %v1306 = vld [vmem:[%s1291 + $0x38] sm:$0xf]
  %v1307 = vld [vmem:[%s1291 + $0x3c] sm:$0xf]
  %v1317 = vunpack.c.l.b16 %v1282
  %v1318 = vunpack.c.l.b16 %v1283
  %v1319 = vunpack.c.l.b16 %v1284
  %v1320 = vunpack.c.l.b16 %v1285
  %v1321 = vunpack.c.l.b16 %v1286
  %v1322 = vunpack.c.l.b16 %v1287
  %v1323 = vunpack.c.l.b16 %v1288
  %v1324 = vunpack.c.l.b16 %v1289
  %v1325 = vunpack.c.l.b16 %v1290
  %v1326 = vpack.c.b16 %v1318, %v1317
  %v1327 = vpack.c.b16 %v1320, %v1319
  %v1328 = vpack.c.b16 %v1322, %v1321
  %v1329 = vpack.c.b16 %v1324, %v1323
  %v1330 = vpack.c.b16 %v1325, %v1325
  %v1332 = vshrl.u32 %v1326, 16
  %v1334 = vrot.slane %v1332, 2
  %v1335 = vshll.u32 %v1326, 16
  %v1337 = vrot.slane %v1335, 3
  %v1338 = vor.u32 %v1334, %v1337
  %v1340 = vshrl.u32 %v1327, 16
  %v1342 = vrot.slane %v1340, 2
  %v1343 = vshll.u32 %v1327, 16
  %v1345 = vrot.slane %v1343, 3
  %v1346 = vor.u32 %v1342, %v1345
  %v1347 = vsel %vm1127, %v1338, %v1346
  %v1349 = vshrl.u32 %v1328, 16
  %v1351 = vrot.slane %v1349, 2
  %v1352 = vshll.u32 %v1328, 16
  %v1354 = vrot.slane %v1352, 3
  %v1355 = vor.u32 %v1351, %v1354
  %v1356 = vsel %vm1127, %v1346, %v1355
  %v1358 = vshrl.u32 %v1329, 16
  %v1360 = vrot.slane %v1358, 2
  %v1361 = vshll.u32 %v1329, 16
  %v1363 = vrot.slane %v1361, 3
  %v1364 = vor.u32 %v1360, %v1363
  %v1365 = vsel %vm1127, %v1355, %v1364
  %v1367 = vshrl.u32 %v1330, 16
  %v1369 = vrot.slane %v1367, 2
  %v1370 = vshll.u32 %v1330, 16
  %v1372 = vrot.slane %v1370, 3
  %v1373 = vor.u32 %v1369, %v1372
  %v1374 = vsel %vm1127, %v1364, %v1373
  %v1395 = vunpack.c.l.b16 %v1292
  %v1396 = vunpack.c.l.b16 %v1293
  %v1397 = vunpack.c.l.b16 %v1294
  %v1398 = vunpack.c.l.b16 %v1295
  %v1399 = vunpack.c.l.b16 %v1296
  %v1400 = vunpack.c.l.b16 %v1297
  %v1401 = vunpack.c.l.b16 %v1298
  %v1402 = vunpack.c.l.b16 %v1299
  %v1403 = vunpack.c.l.b16 %v1300
  %v1404 = vunpack.c.l.b16 %v1301
  %v1405 = vunpack.c.l.b16 %v1302
  %v1406 = vunpack.c.l.b16 %v1303
  %v1407 = vunpack.c.l.b16 %v1304
  %v1408 = vunpack.c.l.b16 %v1305
  %v1409 = vunpack.c.l.b16 %v1306
  %v1410 = vunpack.c.l.b16 %v1307
  %v1411 = vpack.c.b16 %v1396, %v1395
  %v1412 = vpack.c.b16 %v1398, %v1397
  %v1413 = vpack.c.b16 %v1400, %v1399
  %v1414 = vpack.c.b16 %v1402, %v1401
  %v1415 = vpack.c.b16 %v1404, %v1403
  %v1416 = vpack.c.b16 %v1406, %v1405
  %v1417 = vpack.c.b16 %v1408, %v1407
  %v1418 = vpack.c.b16 %v1410, %v1409
  %1427 = vmatprep.subr.bf16.mxu0 0
  %1428 = vmatpush1.bf16.msra.mxu0 %v1411
  %1429 = vmatprep.subr.bf16.mxu0 0
  %1430 = vmatpush1.bf16.msra.mxu0 %v1412
  %1431 = vmatprep.subr.bf16.mxu0 0
  %1432 = vmatpush1.bf16.msra.mxu0 %v1413
  %1433 = vmatprep.subr.bf16.mxu0 0
  %1434 = vmatpush1.bf16.msra.mxu0 %v1414
  %1435 = vmatprep.subr.bf16.mxu0 0
  %1436 = vmatpush1.bf16.msra.mxu0 %v1415
  %1437 = vmatprep.subr.bf16.mxu0 0
  %1438 = vmatpush1.bf16.msra.mxu0 %v1416
  %1439 = vmatprep.subr.bf16.mxu0 0
  %1440 = vmatpush1.bf16.msra.mxu0 %v1417
  %1441 = vmatprep.subr.bf16.mxu0 0
  %1442 = vmatpush1.bf16.msra.mxu0 %v1418
  %1443 = vmatprep.subr.bf16.mxu0 0
  %1444 = vmatpush1.bf16.msra.mxu0 0
  %1445 = vmatprep.subr.bf16.mxu0 0
  %1446 = vmatpush1.bf16.msra.mxu0 0
  %1447 = vmatprep.subr.bf16.mxu0 0
  %1448 = vmatpush1.bf16.msra.mxu0 0
  %1449 = vmatprep.subr.bf16.mxu0 0
  %1450 = vmatpush1.bf16.msra.mxu0 0
  %1451 = vmatprep.subr.bf16.mxu0 0
  %1452 = vmatpush1.bf16.msra.mxu0 0
  %1453 = vmatprep.subr.bf16.mxu0 0
  %1454 = vmatpush1.bf16.msra.mxu0 0
  %1455 = vmatprep.subr.bf16.mxu0 0
  %1456 = vmatpush1.bf16.msra.mxu0 0
  %1457 = vmatprep.subr.bf16.mxu0 0
  %1458 = vmatpush1.bf16.msra.mxu0 0
  %1459 = vmatprep.mubr.bf16.mxu0 0
  %1460 = vmatmul.mubr.bf16.gmra.mrb[0].mxu0 %v1347
  %v1461 = vpop.f32.mrb[0].mxu0
  %v1462 = vadd.f32 0.0, %v1461
  %v1463 = vpop.f32.mrb[0].mxu0
  %v1464 = vpop.f32.mrb[0].mxu0
  %v1465 = vadd.f32 0.0, %v1464
  %v1466 = vpop.f32.mrb[0].mxu0
  %1467 = vmatprep.mubr.bf16.mxu0 0
  %1468 = vmatmul.mubr.bf16.gmra.mrb[0].mxu0 %v1356
  %v1469 = vpop.f32.mrb[0].mxu0
  %v1470 = vadd.f32 0.0, %v1469
  %v1471 = vpop.f32.mrb[0].mxu0
  %v1472 = vpop.f32.mrb[0].mxu0
  %v1473 = vadd.f32 0.0, %v1472
  %v1474 = vpop.f32.mrb[0].mxu0
  %1475 = vmatprep.mubr.bf16.mxu0 0
  %1476 = vmatmul.mubr.bf16.gmra.mrb[0].mxu0 %v1365
  %v1477 = vpop.f32.mrb[0].mxu0
  %v1478 = vadd.f32 0.0, %v1477
  %v1479 = vpop.f32.mrb[0].mxu0
  %v1480 = vpop.f32.mrb[0].mxu0
  %v1481 = vadd.f32 0.0, %v1480
  %v1482 = vpop.f32.mrb[0].mxu0
  %1483 = vmatprep.mubr.bf16.mxu0 0
  %1484 = vmatmul.mubr.bf16.gmra.mrb[0].mxu0 %v1374
  %v1485 = vpop.f32.mrb[0].mxu0
  %v1486 = vadd.f32 0.0, %v1485
  %v1487 = vpop.f32.mrb[0].mxu0
  %v1488 = vpop.f32.mrb[0].mxu0
  %v1489 = vadd.f32 0.0, %v1488
  %v1490 = vpop.f32.mrb[0].mxu0
  %1491 = vdwg.mxu0
  %v1492 = vadd.f32 %v1274, %v1462
  %v1493 = vadd.f32 %v1275, %v1465
  %v1494 = vadd.f32 %v1276, %v1470
  %v1495 = vadd.f32 %v1277, %v1473
  %v1496 = vadd.f32 %v1278, %v1478
  %v1497 = vadd.f32 %v1279, %v1481
  %v1498 = vadd.f32 %v1280, %v1486
  %v1499 = vadd.f32 %v1281, %v1489
  %v1500 = vld [vmem:[%s0] sm:$0x8]
  %s1501 = scalar_lea.vmem %s1, 512
  %v1502 = vld [vmem:[%s1501] sm:$0xf]
  %v1503 = vld [vmem:[%s1501 + $0x4] sm:$0xf]
  %v1504 = vld [vmem:[%s1501 + $0x8] sm:$0xf]
  %v1505 = vld [vmem:[%s1501 + $0xc] sm:$0xf]
  %v1506 = vld [vmem:[%s1501 + $0x10] sm:$0xf]
  %v1507 = vld [vmem:[%s1501 + $0x14] sm:$0xf]
  %v1508 = vld [vmem:[%s1501 + $0x18] sm:$0xf]
  %v1509 = vld [vmem:[%s1501 + $0x1c] sm:$0xf]
  %v1510 = vld [vmem:[%s1501 + $0x20] sm:$0xf]
  %v1511 = vld [vmem:[%s1501 + $0x24] sm:$0xf]
  %v1512 = vld [vmem:[%s1501 + $0x28] sm:$0xf]
  %v1513 = vld [vmem:[%s1501 + $0x2c] sm:$0xf]
  %v1514 = vld [vmem:[%s1501 + $0x30] sm:$0xf]
  %v1515 = vld [vmem:[%s1501 + $0x34] sm:$0xf]
  %v1516 = vld [vmem:[%s1501 + $0x38] sm:$0xf]
  %v1517 = vld [vmem:[%s1501 + $0x3c] sm:$0xf]
  %v1519 = vunpack.c.l.b16 %v1500
  %v1520 = vpack.c.b16 %v375, %v1519
  %vm1521 = vcmask 1044480
  %v1522 = vrot.slane %v1520, 3
  %v1523 = vrot.slane %v384, 3
  %v1524 = vsel %vm1521, %v1522, %v1523
  %v1525 = vrot.slane %v385, 3
  %v1526 = vsel %vm1521, %v1523, %v1525
  %v1527 = vrot.slane %v386, 3
  %v1528 = vsel %vm1521, %v1525, %v1527
  %v1529 = vrot.slane %v1126, 3
  %v1530 = vsel %vm1521, %v1527, %v1529
  %v1551 = vunpack.c.l.b16 %v1502
  %v1552 = vunpack.c.l.b16 %v1503
  %v1553 = vunpack.c.l.b16 %v1504
  %v1554 = vunpack.c.l.b16 %v1505
  %v1555 = vunpack.c.l.b16 %v1506
  %v1556 = vunpack.c.l.b16 %v1507
  %v1557 = vunpack.c.l.b16 %v1508
  %v1558 = vunpack.c.l.b16 %v1509
  %v1559 = vunpack.c.l.b16 %v1510
  %v1560 = vunpack.c.l.b16 %v1511
  %v1561 = vunpack.c.l.b16 %v1512
  %v1562 = vunpack.c.l.b16 %v1513
  %v1563 = vunpack.c.l.b16 %v1514
  %v1564 = vunpack.c.l.b16 %v1515
  %v1565 = vunpack.c.l.b16 %v1516
  %v1566 = vunpack.c.l.b16 %v1517
  %v1567 = vpack.c.b16 %v1552, %v1551
  %v1568 = vpack.c.b16 %v1554, %v1553
  %v1569 = vpack.c.b16 %v1556, %v1555
  %v1570 = vpack.c.b16 %v1558, %v1557
  %v1571 = vpack.c.b16 %v1560, %v1559
  %v1572 = vpack.c.b16 %v1562, %v1561
  %v1573 = vpack.c.b16 %v1564, %v1563
  %v1574 = vpack.c.b16 %v1566, %v1565
  %1583 = vmatprep.subr.bf16.mxu0 0
  %1584 = vmatpush1.bf16.msra.mxu0 %v1567
  %1585 = vmatprep.subr.bf16.mxu0 0
  %1586 = vmatpush1.bf16.msra.mxu0 %v1568
  %1587 = vmatprep.subr.bf16.mxu0 0
  %1588 = vmatpush1.bf16.msra.mxu0 %v1569
  %1589 = vmatprep.subr.bf16.mxu0 0
  %1590 = vmatpush1.bf16.msra.mxu0 %v1570
  %1591 = vmatprep.subr.bf16.mxu0 0
  %1592 = vmatpush1.bf16.msra.mxu0 %v1571
  %1593 = vmatprep.subr.bf16.mxu0 0
  %1594 = vmatpush1.bf16.msra.mxu0 %v1572
  %1595 = vmatprep.subr.bf16.mxu0 0
  %1596 = vmatpush1.bf16.msra.mxu0 %v1573
  %1597 = vmatprep.subr.bf16.mxu0 0
  %1598 = vmatpush1.bf16.msra.mxu0 %v1574
  %1599 = vmatprep.subr.bf16.mxu0 0
  %1600 = vmatpush1.bf16.msra.mxu0 0
  %1601 = vmatprep.subr.bf16.mxu0 0
  %1602 = vmatpush1.bf16.msra.mxu0 0
  %1603 = vmatprep.subr.bf16.mxu0 0
  %1604 = vmatpush1.bf16.msra.mxu0 0
  %1605 = vmatprep.subr.bf16.mxu0 0
  %1606 = vmatpush1.bf16.msra.mxu0 0
  %1607 = vmatprep.subr.bf16.mxu0 0
  %1608 = vmatpush1.bf16.msra.mxu0 0
  %1609 = vmatprep.subr.bf16.mxu0 0
  %1610 = vmatpush1.bf16.msra.mxu0 0
  %1611 = vmatprep.subr.bf16.mxu0 0
  %1612 = vmatpush1.bf16.msra.mxu0 0
  %1613 = vmatprep.subr.bf16.mxu0 0
  %1614 = vmatpush1.bf16.msra.mxu0 0
  %1615 = vmatprep.mubr.bf16.mxu0 0
  %1616 = vmatmul.mubr.bf16.gmra.mrb[0].mxu0 %v1524
  %v1617 = vpop.f32.mrb[0].mxu0
  %v1618 = vadd.f32 0.0, %v1617
  %v1619 = vpop.f32.mrb[0].mxu0
  %v1620 = vpop.f32.mrb[0].mxu0
  %v1621 = vadd.f32 0.0, %v1620
  %v1622 = vpop.f32.mrb[0].mxu0
  %1623 = vmatprep.mubr.bf16.mxu0 0
  %1624 = vmatmul.mubr.bf16.gmra.mrb[0].mxu0 %v1526
  %v1625 = vpop.f32.mrb[0].mxu0
  %v1626 = vadd.f32 0.0, %v1625
  %v1627 = vpop.f32.mrb[0].mxu0
  %v1628 = vpop.f32.mrb[0].mxu0
  %v1629 = vadd.f32 0.0, %v1628
  %v1630 = vpop.f32.mrb[0].mxu0
  %1631 = vmatprep.mubr.bf16.mxu0 0
  %1632 = vmatmul.mubr.bf16.gmra.mrb[0].mxu0 %v1528
  %v1633 = vpop.f32.mrb[0].mxu0
  %v1634 = vadd.f32 0.0, %v1633
  %v1635 = vpop.f32.mrb[0].mxu0
  %v1636 = vpop.f32.mrb[0].mxu0
  %v1637 = vadd.f32 0.0, %v1636
  %v1638 = vpop.f32.mrb[0].mxu0
  %1639 = vmatprep.mubr.bf16.mxu0 0
  %1640 = vmatmul.mubr.bf16.gmra.mrb[0].mxu0 %v1530
  %v1641 = vpop.f32.mrb[0].mxu0
  %v1642 = vadd.f32 0.0, %v1641
  %v1643 = vpop.f32.mrb[0].mxu0
  %v1644 = vpop.f32.mrb[0].mxu0
  %v1645 = vadd.f32 0.0, %v1644
  %v1646 = vpop.f32.mrb[0].mxu0
  %1647 = vdwg.mxu0
  %v1648 = vadd.f32 %v1492, %v1618
  %v1649 = vadd.f32 %v1493, %v1621
  %v1650 = vadd.f32 %v1494, %v1626
  %v1651 = vadd.f32 %v1495, %v1629
  %v1652 = vadd.f32 %v1496, %v1634
  %v1653 = vadd.f32 %v1497, %v1637
  %v1654 = vadd.f32 %v1498, %v1642
  %v1655 = vadd.f32 %v1499, %v1645
  %v1656 = vld [vmem:[%s2] sm:$0x1]
  %v1658 = vlaneseq
  %v1659 = vshrl.u32 %v1658, 7
  %v1660 = vsub.s32 0, %v1659
  %v1661 = vrot.slane %v1656, %v1660
  %v1663 = vadd.f32 %v1648, %v1661
  %v1664 = vadd.f32 %v1649, %v1661
  %v1665 = vadd.f32 %v1650, %v1661
  %v1666 = vadd.f32 %v1651, %v1661
  %v1667 = vadd.f32 %v1652, %v1661
  %v1668 = vadd.f32 %v1653, %v1661
  %v1669 = vadd.f32 %v1654, %v1661
  %v1670 = vadd.f32 %v1655, %v1661
  %v1671 = vmax.f32 %v1663, 0.0
  %v1672 = vmax.f32 %v1664, 0.0
  %v1673 = vmax.f32 %v1665, 0.0
  %v1674 = vmax.f32 %v1666, 0.0
  %v1675 = vmax.f32 %v1667, 0.0
  %v1676 = vmax.f32 %v1668, 0.0
  %v1677 = vmax.f32 %v1669, 0.0
  %v1678 = vmax.f32 %v1670, 0.0
  %1679 = vst [vmem:[%s3] sm:$0xff] %v1671
  %1680 = vst [vmem:[%s3 + $0x8] sm:$0xff] %v1672
  %1681 = vst [vmem:[%s3 + $0x10] sm:$0xff] %v1673
  %1682 = vst [vmem:[%s3 + $0x18] sm:$0xff] %v1674
  %1683 = vst [vmem:[%s3 + $0x20] sm:$0xff] %v1675
  %1684 = vst [vmem:[%s3 + $0x28] sm:$0xff] %v1676
  %1685 = vst [vmem:[%s3 + $0x30] sm:$0xff] %v1677
  %1686 = vst [vmem:[%s3 + $0x38] sm:$0xff] %v1678
  // Predicated region
  $region14: #{_lambda_.7} parent=0 // pred_check
    _
  $region15: #{_lambda_.7} parent=0 // pred_check_branch
    %1688 = sbr.rel (0) target = $region17
  $region16: #{_lambda_.7} parent=0 // pred_region
    _
  $region17: #{_lambda_.7} parent=0 // pred_fallthru
    _
  // Predicated region
  $region18: #{_lambda_.7} parent=0 // pred_check
    _
  $region19: #{_lambda_.7} parent=0 // pred_check_branch
    %1690 = sbr.rel (0) target = $region21
  $region20: #{_lambda_.7} parent=0 // pred_region
    _
  $region21: #{_lambda_.7} parent=0 // pred_fallthru
    _

// kernel: _lambda_.5
$region0: #{_lambda_.5}
  #allocation0 [shape = 'u32[]', space=smem, size = 0x4, offset = 0x4, fixed_abs, tag = 'smem constant byte address 0x4 - core index']
  #allocation1 [shape = 'u32[144,128]{1,0:T(1,128)}', space=vmem, size = 0x12000, scoped, tag = 'internal scratch']
  %s0 = inlined_call_operand.vmem [shape: bf16[1,694,128], index: 0, kind: input, shape index: {}]
  %s1 = inlined_call_operand.vmem [shape: bf16[9,128,128], index: 1, kind: input, shape index: {}]
  %s2 = inlined_call_operand.vmem [shape: f32[1,128], index: 2, kind: input, shape index: {}]
  %s3 = inlined_call_operand.vmem [shape: f32[656,128], index: 3, kind: output, shape index: {}]
  %s4 = sld [smem:[#allocation0]]
  $region22: #{_lambda_.5} parent=0
    _
  %s6 = ssub.s32 1, %s4
  %s7 = scalar_select 0, %s6, %s4
  // Predicated region
  $region2: #{_lambda_.5} parent=0 // pred_check
    _
  $region3: #{_lambda_.5} parent=0 // pred_check_branch
    %9 = sbr.rel (0) target = $region5
  $region4: #{_lambda_.5} parent=0 // pred_region
    _
  $region5: #{_lambda_.5} parent=0 // pred_fallthru
    _
  // Predicated region
  $region6: #{_lambda_.5} parent=0 // pred_check
    _
  $region7: #{_lambda_.5} parent=0 // pred_check_branch
    %11 = sbr.rel (0) target = $region9
  $region8: #{_lambda_.5} parent=0 // pred_region
    _
  $region9: #{_lambda_.5} parent=0 // pred_fallthru
    _
  // Predicated region
  $region10: #{_lambda_.5} parent=0 // pred_check
    _
  $region11: #{_lambda_.5} parent=0 // pred_check_branch
    %13 = sbr.rel (0) target = $region13
  $region12: #{_lambda_.5} parent=0 // pred_region
    _
  $region13: #{_lambda_.5} parent=0 // pred_fallthru
    _
  %v15 = vld [vmem:[%s0] sm:$0xf]
  %v16 = vld [vmem:[%s0 + $0x4] sm:$0xf]
  %v17 = vld [vmem:[%s0 + $0x8] sm:$0xf]
  %v18 = vld [vmem:[%s0 + $0xc] sm:$0xf]
  %v19 = vld [vmem:[%s0 + $0x10] sm:$0xf]
  %v20 = vld [vmem:[%s0 + $0x14] sm:$0xf]
  %v21 = vld [vmem:[%s0 + $0x18] sm:$0xf]
  %v22 = vld [vmem:[%s0 + $0x1c] sm:$0xf]
  %v23 = vld [vmem:[%s0 + $0x20] sm:$0xf]
  %v24 = vld [vmem:[%s0 + $0x24] sm:$0xf]
  %v25 = vld [vmem:[%s0 + $0x28] sm:$0xf]
  %v26 = vld [vmem:[%s0 + $0x2c] sm:$0xf]
  %v27 = vld [vmem:[%s0 + $0x30] sm:$0xf]
  %v28 = vld [vmem:[%s0 + $0x34] sm:$0xf]
  %v29 = vld [vmem:[%s0 + $0x38] sm:$0xf]
  %v30 = vld [vmem:[%s0 + $0x3c] sm:$0xf]
  %v31 = vld [vmem:[%s0 + $0x40] sm:$0xf]
  %v32 = vld [vmem:[%s0 + $0x44] sm:$0xf]
  %v33 = vld [vmem:[%s0 + $0x48] sm:$0xf]
  %v34 = vld [vmem:[%s0 + $0x4c] sm:$0xf]
  %v35 = vld [vmem:[%s0 + $0x50] sm:$0xf]
  %v36 = vld [vmem:[%s0 + $0x54] sm:$0xf]
  %v37 = vld [vmem:[%s0 + $0x58] sm:$0xf]
  %v38 = vld [vmem:[%s0 + $0x5c] sm:$0xf]
  %v39 = vld [vmem:[%s0 + $0x60] sm:$0xf]
  %v40 = vld [vmem:[%s0 + $0x64] sm:$0xf]
  %v41 = vld [vmem:[%s0 + $0x68] sm:$0xf]
  %v42 = vld [vmem:[%s0 + $0x6c] sm:$0xf]
  %v43 = vld [vmem:[%s0 + $0x70] sm:$0xf]
  %v44 = vld [vmem:[%s0 + $0x74] sm:$0xf]
  %v45 = vld [vmem:[%s0 + $0x78] sm:$0xf]
  %v46 = vld [vmem:[%s0 + $0x7c] sm:$0xf]
  %v47 = vld [vmem:[%s0 + $0x80] sm:$0xf]
  %v48 = vld [vmem:[%s0 + $0x84] sm:$0xf]
  %v49 = vld [vmem:[%s0 + $0x88] sm:$0xf]
  %v50 = vld [vmem:[%s0 + $0x8c] sm:$0xf]
  %v51 = vld [vmem:[%s0 + $0x90] sm:$0xf]
  %v52 = vld [vmem:[%s0 + $0x94] sm:$0xf]
  %v53 = vld [vmem:[%s0 + $0x98] sm:$0xf]
  %v54 = vld [vmem:[%s0 + $0x9c] sm:$0xf]
  %v55 = vld [vmem:[%s0 + $0xa0] sm:$0xf]
  %v56 = vld [vmem:[%s0 + $0xa4] sm:$0xf]
  %v57 = vld [vmem:[%s0 + $0xa8] sm:$0xf]
  %v58 = vld [vmem:[%s0 + $0xac] sm:$0xf]
  %v59 = vld [vmem:[%s0 + $0xb0] sm:$0xf]
  %v60 = vld [vmem:[%s0 + $0xb4] sm:$0xf]
  %v61 = vld [vmem:[%s0 + $0xb8] sm:$0xf]
  %v62 = vld [vmem:[%s0 + $0xbc] sm:$0xf]
  %v63 = vld [vmem:[%s0 + $0xc0] sm:$0xf]
  %v64 = vld [vmem:[%s0 + $0xc4] sm:$0xf]
  %v65 = vld [vmem:[%s0 + $0xc8] sm:$0xf]
  %v66 = vld [vmem:[%s0 + $0xcc] sm:$0xf]
  %v67 = vld [vmem:[%s0 + $0xd0] sm:$0xf]
  %v68 = vld [vmem:[%s0 + $0xd4] sm:$0xf]
  %v69 = vld [vmem:[%s0 + $0xd8] sm:$0xf]
  %v70 = vld [vmem:[%s0 + $0xdc] sm:$0xf]
  %v71 = vld [vmem:[%s0 + $0xe0] sm:$0xf]
  %v72 = vld [vmem:[%s0 + $0xe4] sm:$0xf]
  %v73 = vld [vmem:[%s0 + $0xe8] sm:$0xf]
  %v74 = vld [vmem:[%s0 + $0xec] sm:$0xf]
  %v75 = vld [vmem:[%s0 + $0xf0] sm:$0xf]
  %v76 = vld [vmem:[%s0 + $0xf4] sm:$0xf]
  %v77 = vld [vmem:[%s0 + $0xf8] sm:$0xf]
  %v78 = vld [vmem:[%s0 + $0xfc] sm:$0xf]
  %v79 = vld [vmem:[%s0 + $0x100] sm:$0xf]
  %v80 = vld [vmem:[%s0 + $0x104] sm:$0xf]
  %v81 = vld [vmem:[%s0 + $0x108] sm:$0xf]
  %v82 = vld [vmem:[%s0 + $0x10c] sm:$0xf]
  %v83 = vld [vmem:[%s0 + $0x110] sm:$0xf]
  %v84 = vld [vmem:[%s0 + $0x114] sm:$0xf]
  %v85 = vld [vmem:[%s0 + $0x118] sm:$0xf]
  %v86 = vld [vmem:[%s0 + $0x11c] sm:$0xf]
  %v87 = vld [vmem:[%s0 + $0x120] sm:$0xf]
  %v88 = vld [vmem:[%s0 + $0x124] sm:$0xf]
  %v89 = vld [vmem:[%s0 + $0x128] sm:$0xf]
  %v90 = vld [vmem:[%s0 + $0x12c] sm:$0xf]
  %v91 = vld [vmem:[%s0 + $0x130] sm:$0xf]
  %v92 = vld [vmem:[%s0 + $0x134] sm:$0xf]
  %v93 = vld [vmem:[%s0 + $0x138] sm:$0xf]
  %v94 = vld [vmem:[%s0 + $0x13c] sm:$0xf]
  %v95 = vld [vmem:[%s0 + $0x140] sm:$0xf]
  %v96 = vld [vmem:[%s0 + $0x144] sm:$0xf]
  %v97 = vld [vmem:[%s1] sm:$0xf]
  %v98 = vld [vmem:[%s1 + $0x4] sm:$0xf]
  %v99 = vld [vmem:[%s1 + $0x8] sm:$0xf]
  %v100 = vld [vmem:[%s1 + $0xc] sm:$0xf]
  %v101 = vld [vmem:[%s1 + $0x10] sm:$0xf]
  %v102 = vld [vmem:[%s1 + $0x14] sm:$0xf]
  %v103 = vld [vmem:[%s1 + $0x18] sm:$0xf]
  %v104 = vld [vmem:[%s1 + $0x1c] sm:$0xf]
  %v105 = vld [vmem:[%s1 + $0x20] sm:$0xf]
  %v106 = vld [vmem:[%s1 + $0x24] sm:$0xf]
  %v107 = vld [vmem:[%s1 + $0x28] sm:$0xf]
  %v108 = vld [vmem:[%s1 + $0x2c] sm:$0xf]
  %v109 = vld [vmem:[%s1 + $0x30] sm:$0xf]
  %v110 = vld [vmem:[%s1 + $0x34] sm:$0xf]
  %v111 = vld [vmem:[%s1 + $0x38] sm:$0xf]
  %v112 = vld [vmem:[%s1 + $0x3c] sm:$0xf]
  %v113 = vld [vmem:[%s0 + $0x148] sm:$0x1]
  %s114 = scalar_lea.vmem %s1, 64
  %v115 = vld [vmem:[%s114] sm:$0xf]
  %v116 = vld [vmem:[%s114 + $0x4] sm:$0xf]
  %v117 = vld [vmem:[%s114 + $0x8] sm:$0xf]
  %v118 = vld [vmem:[%s114 + $0xc] sm:$0xf]
  %v119 = vld [vmem:[%s114 + $0x10] sm:$0xf]
  %v120 = vld [vmem:[%s114 + $0x14] sm:$0xf]
  %v121 = vld [vmem:[%s114 + $0x18] sm:$0xf]
  %v122 = vld [vmem:[%s114 + $0x1c] sm:$0xf]
  %v123 = vld [vmem:[%s114 + $0x20] sm:$0xf]
  %v124 = vld [vmem:[%s114 + $0x24] sm:$0xf]
  %v125 = vld [vmem:[%s114 + $0x28] sm:$0xf]
  %v126 = vld [vmem:[%s114 + $0x2c] sm:$0xf]
  %v127 = vld [vmem:[%s114 + $0x30] sm:$0xf]
  %v128 = vld [vmem:[%s114 + $0x34] sm:$0xf]
  %v129 = vld [vmem:[%s114 + $0x38] sm:$0xf]
  %v130 = vld [vmem:[%s114 + $0x3c] sm:$0xf]
  %v214 = vunpack.c.l.b16 %v15
  %v215 = vunpack.c.l.b16 %v16
  %v216 = vunpack.c.l.b16 %v17
  %v217 = vunpack.c.l.b16 %v18
  %v218 = vunpack.c.l.b16 %v19
  %v219 = vunpack.c.l.b16 %v20
  %v220 = vunpack.c.l.b16 %v21
  %v221 = vunpack.c.l.b16 %v22
  %v222 = vunpack.c.l.b16 %v23
  %v223 = vunpack.c.l.b16 %v24
  %v224 = vunpack.c.l.b16 %v25
  %v225 = vunpack.c.l.b16 %v26
  %v226 = vunpack.c.l.b16 %v27
  %v227 = vunpack.c.l.b16 %v28
  %v228 = vunpack.c.l.b16 %v29
  %v229 = vunpack.c.l.b16 %v30
  %v230 = vunpack.c.l.b16 %v31
  %v231 = vunpack.c.l.b16 %v32
  %v232 = vunpack.c.l.b16 %v33
  %v233 = vunpack.c.l.b16 %v34
  %v234 = vunpack.c.l.b16 %v35
  %v235 = vunpack.c.l.b16 %v36
  %v236 = vunpack.c.l.b16 %v37
  %v237 = vunpack.c.l.b16 %v38
  %v238 = vunpack.c.l.b16 %v39
  %v239 = vunpack.c.l.b16 %v40
  %v240 = vunpack.c.l.b16 %v41
  %v241 = vunpack.c.l.b16 %v42
  %v242 = vunpack.c.l.b16 %v43
  %v243 = vunpack.c.l.b16 %v44
  %v244 = vunpack.c.l.b16 %v45
  %v245 = vunpack.c.l.b16 %v46
  %v246 = vunpack.c.l.b16 %v47
  %v247 = vunpack.c.l.b16 %v48
  %v248 = vunpack.c.l.b16 %v49
  %v249 = vunpack.c.l.b16 %v50
  %v250 = vunpack.c.l.b16 %v51
  %v251 = vunpack.c.l.b16 %v52
  %v252 = vunpack.c.l.b16 %v53
  %v253 = vunpack.c.l.b16 %v54
  %v254 = vunpack.c.l.b16 %v55
  %v255 = vunpack.c.l.b16 %v56
  %v256 = vunpack.c.l.b16 %v57
  %v257 = vunpack.c.l.b16 %v58
  %v258 = vunpack.c.l.b16 %v59
  %v259 = vunpack.c.l.b16 %v60
  %v260 = vunpack.c.l.b16 %v61
  %v261 = vunpack.c.l.b16 %v62
  %v262 = vunpack.c.l.b16 %v63
  %v263 = vunpack.c.l.b16 %v64
  %v264 = vunpack.c.l.b16 %v65
  %v265 = vunpack.c.l.b16 %v66
  %v266 = vunpack.c.l.b16 %v67
  %v267 = vunpack.c.l.b16 %v68
  %v268 = vunpack.c.l.b16 %v69
  %v269 = vunpack.c.l.b16 %v70
  %v270 = vunpack.c.l.b16 %v71
  %v271 = vunpack.c.l.b16 %v72
  %v272 = vunpack.c.l.b16 %v73
  %v273 = vunpack.c.l.b16 %v74
  %v274 = vunpack.c.l.b16 %v75
  %v275 = vunpack.c.l.b16 %v76
  %v276 = vunpack.c.l.b16 %v77
  %v277 = vunpack.c.l.b16 %v78
  %v278 = vunpack.c.l.b16 %v79
  %v279 = vunpack.c.l.b16 %v80
  %v280 = vunpack.c.l.b16 %v81
  %v281 = vunpack.c.l.b16 %v82
  %v282 = vunpack.c.l.b16 %v83
  %v283 = vunpack.c.l.b16 %v84
  %v284 = vunpack.c.l.b16 %v85
  %v285 = vunpack.c.l.b16 %v86
  %v286 = vunpack.c.l.b16 %v87
  %v287 = vunpack.c.l.b16 %v88
  %v288 = vunpack.c.l.b16 %v89
  %v289 = vunpack.c.l.b16 %v90
  %v290 = vunpack.c.l.b16 %v91
  %v291 = vunpack.c.l.b16 %v92
  %v292 = vunpack.c.l.b16 %v93
  %v293 = vunpack.c.l.b16 %v94
  %v294 = vunpack.c.l.b16 %v95
  %v295 = vunpack.c.l.b16 %v96
  %v296 = vunpack.c.l.b16 %v113
  %v297 = vpack.c.b16 %v215, %v214
  %v298 = vpack.c.b16 %v217, %v216
  %v299 = vpack.c.b16 %v219, %v218
  %v300 = vpack.c.b16 %v221, %v220
  %v301 = vpack.c.b16 %v223, %v222
  %v302 = vpack.c.b16 %v225, %v224
  %v303 = vpack.c.b16 %v227, %v226
  %v304 = vpack.c.b16 %v229, %v228
  %v305 = vpack.c.b16 %v231, %v230
  %v306 = vpack.c.b16 %v233, %v232
  %v307 = vpack.c.b16 %v235, %v234
  %v308 = vpack.c.b16 %v237, %v236
  %v309 = vpack.c.b16 %v239, %v238
  %v310 = vpack.c.b16 %v241, %v240
  %v311 = vpack.c.b16 %v243, %v242
  %v312 = vpack.c.b16 %v245, %v244
  %v313 = vpack.c.b16 %v247, %v246
  %v314 = vpack.c.b16 %v249, %v248
  %v315 = vpack.c.b16 %v251, %v250
  %v316 = vpack.c.b16 %v253, %v252
  %v317 = vpack.c.b16 %v255, %v254
  %v318 = vpack.c.b16 %v257, %v256
  %v319 = vpack.c.b16 %v259, %v258
  %v320 = vpack.c.b16 %v261, %v260
  %v321 = vpack.c.b16 %v263, %v262
  %v322 = vpack.c.b16 %v265, %v264
  %v323 = vpack.c.b16 %v267, %v266
  %v324 = vpack.c.b16 %v269, %v268
  %v325 = vpack.c.b16 %v271, %v270
  %v326 = vpack.c.b16 %v273, %v272
  %v327 = vpack.c.b16 %v275, %v274
  %v328 = vpack.c.b16 %v277, %v276
  %v329 = vpack.c.b16 %v279, %v278
  %v330 = vpack.c.b16 %v281, %v280
  %v331 = vpack.c.b16 %v283, %v282
  %v332 = vpack.c.b16 %v285, %v284
  %v333 = vpack.c.b16 %v287, %v286
  %v334 = vpack.c.b16 %v289, %v288
  %v335 = vpack.c.b16 %v291, %v290
  %v336 = vpack.c.b16 %v293, %v292
  %v337 = vpack.c.b16 %v295, %v294
  %v338 = vpack.c.b16 %v296, %v296
  %vm339 = vsmask.f32 7424
  %v341 = vshrl.u32 %v297, 16
  %v343 = vshll.u32 %v297, 16
  %v345 = vrot.slane %v343, 1
  %v346 = vor.u32 %v341, %v345
  %v348 = vshll.u32 %v298, 16
  %v350 = vrot.slane %v348, 1
  %v351 = vsel %vm339, %v346, %v350
  %v352 = vshrl.u32 %v298, 16
  %v354 = vor.u32 %v352, %v350
  %v356 = vshll.u32 %v299, 16
  %v358 = vrot.slane %v356, 1
  %v359 = vsel %vm339, %v354, %v358
  %v360 = vshrl.u32 %v299, 16
  %v362 = vor.u32 %v360, %v358
  %v364 = vshll.u32 %v300, 16
  %v366 = vrot.slane %v364, 1
  %v367 = vsel %vm339, %v362, %v366
  %v368 = vshrl.u32 %v300, 16
  %v370 = vor.u32 %v368, %v366
  %v372 = vshll.u32 %v301, 16
  %v374 = vrot.slane %v372, 1
  %v375 = vsel %vm339, %v370, %v374
  %v376 = vshrl.u32 %v301, 16
  %v378 = vor.u32 %v376, %v374
  %v380 = vshll.u32 %v302, 16
  %v382 = vrot.slane %v380, 1
  %v383 = vsel %vm339, %v378, %v382
  %v384 = vshrl.u32 %v302, 16
  %v386 = vor.u32 %v384, %v382
  %v388 = vshll.u32 %v303, 16
  %v390 = vrot.slane %v388, 1
  %v391 = vsel %vm339, %v386, %v390
  %v392 = vshrl.u32 %v303, 16
  %v394 = vor.u32 %v392, %v390
  %v396 = vshll.u32 %v304, 16
  %v398 = vrot.slane %v396, 1
  %v399 = vsel %vm339, %v394, %v398
  %v400 = vshrl.u32 %v304, 16
  %v402 = vor.u32 %v400, %v398
  %v404 = vshll.u32 %v305, 16
  %v406 = vrot.slane %v404, 1
  %v407 = vsel %vm339, %v402, %v406
  %v408 = vshrl.u32 %v305, 16
  %v410 = vor.u32 %v408, %v406
  %v412 = vshll.u32 %v306, 16
  %v414 = vrot.slane %v412, 1
  %v415 = vsel %vm339, %v410, %v414
  %v416 = vshrl.u32 %v306, 16
  %v418 = vor.u32 %v416, %v414
  %v420 = vshll.u32 %v307, 16
  %v422 = vrot.slane %v420, 1
  %v423 = vsel %vm339, %v418, %v422
  %v424 = vshrl.u32 %v307, 16
  %v426 = vor.u32 %v424, %v422
  %v428 = vshll.u32 %v308, 16
  %v430 = vrot.slane %v428, 1
  %v431 = vsel %vm339, %v426, %v430
  %v432 = vshrl.u32 %v308, 16
  %v434 = vor.u32 %v432, %v430
  %v436 = vshll.u32 %v309, 16
  %v438 = vrot.slane %v436, 1
  %v439 = vsel %vm339, %v434, %v438
  %v440 = vshrl.u32 %v309, 16
  %v442 = vor.u32 %v440, %v438
  %v444 = vshll.u32 %v310, 16
  %v446 = vrot.slane %v444, 1
  %v447 = vsel %vm339, %v442, %v446
  %v448 = vshrl.u32 %v310, 16
  %v450 = vor.u32 %v448, %v446
  %v452 = vshll.u32 %v311, 16
  %v454 = vrot.slane %v452, 1
  %v455 = vsel %vm339, %v450, %v454
  %v456 = vshrl.u32 %v311, 16
  %v458 = vor.u32 %v456, %v454
  %v460 = vshll.u32 %v312, 16
  %v462 = vrot.slane %v460, 1
  %v463 = vsel %vm339, %v458, %v462
  %v464 = vshrl.u32 %v312, 16
  %v466 = vor.u32 %v464, %v462
  %v468 = vshll.u32 %v313, 16
  %v470 = vrot.slane %v468, 1
  %v471 = vsel %vm339, %v466, %v470
  %v472 = vshrl.u32 %v313, 16
  %v474 = vor.u32 %v472, %v470
  %v476 = vshll.u32 %v314, 16
  %v478 = vrot.slane %v476, 1
  %v479 = vsel %vm339, %v474, %v478
  %v480 = vshrl.u32 %v314, 16
  %v482 = vor.u32 %v480, %v478
  %v484 = vshll.u32 %v315, 16
  %v486 = vrot.slane %v484, 1
  %v487 = vsel %vm339, %v482, %v486
  %v488 = vshrl.u32 %v315, 16
  %v490 = vor.u32 %v488, %v486
  %v492 = vshll.u32 %v316, 16
  %v494 = vrot.slane %v492, 1
  %v495 = vsel %vm339, %v490, %v494
  %v496 = vshrl.u32 %v316, 16
  %v498 = vor.u32 %v496, %v494
  %v500 = vshll.u32 %v317, 16
  %v502 = vrot.slane %v500, 1
  %v503 = vsel %vm339, %v498, %v502
  %v504 = vshrl.u32 %v317, 16
  %v506 = vor.u32 %v504, %v502
  %v508 = vshll.u32 %v318, 16
  %v510 = vrot.slane %v508, 1
  %v511 = vsel %vm339, %v506, %v510
  %v512 = vshrl.u32 %v318, 16
  %v514 = vor.u32 %v512, %v510
  %v516 = vshll.u32 %v319, 16
  %v518 = vrot.slane %v516, 1
  %v519 = vsel %vm339, %v514, %v518
  %v520 = vshrl.u32 %v319, 16
  %v522 = vor.u32 %v520, %v518
  %v524 = vshll.u32 %v320, 16
  %v526 = vrot.slane %v524, 1
  %v527 = vsel %vm339, %v522, %v526
  %v528 = vshrl.u32 %v320, 16
  %v530 = vor.u32 %v528, %v526
  %v532 = vshll.u32 %v321, 16
  %v534 = vrot.slane %v532, 1
  %v535 = vsel %vm339, %v530, %v534
  %v536 = vshrl.u32 %v321, 16
  %v538 = vor.u32 %v536, %v534
  %v540 = vshll.u32 %v322, 16
  %v542 = vrot.slane %v540, 1
  %v543 = vsel %vm339, %v538, %v542
  %v544 = vshrl.u32 %v322, 16
  %v546 = vor.u32 %v544, %v542
  %v548 = vshll.u32 %v323, 16
  %v550 = vrot.slane %v548, 1
  %v551 = vsel %vm339, %v546, %v550
  %v552 = vshrl.u32 %v323, 16
  %v554 = vor.u32 %v552, %v550
  %v556 = vshll.u32 %v324, 16
  %v558 = vrot.slane %v556, 1
  %v559 = vsel %vm339, %v554, %v558
  %v560 = vshrl.u32 %v324, 16
  %v562 = vor.u32 %v560, %v558
  %v564 = vshll.u32 %v325, 16
  %v566 = vrot.slane %v564, 1
  %v567 = vsel %vm339, %v562, %v566
  %v568 = vshrl.u32 %v325, 16
  %v570 = vor.u32 %v568, %v566
  %v572 = vshll.u32 %v326, 16
  %v574 = vrot.slane %v572, 1
  %v575 = vsel %vm339, %v570, %v574
  %v576 = vshrl.u32 %v326, 16
  %v578 = vor.u32 %v576, %v574
  %v580 = vshll.u32 %v327, 16
  %v582 = vrot.slane %v580, 1
  %v583 = vsel %vm339, %v578, %v582
  %v584 = vshrl.u32 %v327, 16
  %v586 = vor.u32 %v584, %v582
  %v588 = vshll.u32 %v328, 16
  %v590 = vrot.slane %v588, 1
  %v591 = vsel %vm339, %v586, %v590
  %v592 = vshrl.u32 %v328, 16
  %v594 = vor.u32 %v592, %v590
  %v596 = vshll.u32 %v329, 16
  %v598 = vrot.slane %v596, 1
  %v599 = vsel %vm339, %v594, %v598
  %v600 = vshrl.u32 %v329, 16
  %v602 = vor.u32 %v600, %v598
  %v604 = vshll.u32 %v330, 16
  %v606 = vrot.slane %v604, 1
  %v607 = vsel %vm339, %v602, %v606
  %v608 = vshrl.u32 %v330, 16
  %v610 = vor.u32 %v608, %v606
  %v612 = vshll.u32 %v331, 16
  %v614 = vrot.slane %v612, 1
  %v615 = vsel %vm339, %v610, %v614
  %v616 = vshrl.u32 %v331, 16
  %v618 = vor.u32 %v616, %v614
  %v620 = vshll.u32 %v332, 16
  %v622 = vrot.slane %v620, 1
  %v623 = vsel %vm339, %v618, %v622
  %v624 = vshrl.u32 %v332, 16
  %v626 = vor.u32 %v624, %v622
  %v628 = vshll.u32 %v333, 16
  %v630 = vrot.slane %v628, 1
  %v631 = vsel %vm339, %v626, %v630
  %v632 = vshrl.u32 %v333, 16
  %v634 = vor.u32 %v632, %v630
  %v636 = vshll.u32 %v334, 16
  %v638 = vrot.slane %v636, 1
  %v639 = vsel %vm339, %v634, %v638
  %v640 = vshrl.u32 %v334, 16
  %v642 = vor.u32 %v640, %v638
  %v644 = vshll.u32 %v335, 16
  %v646 = vrot.slane %v644, 1
  %v647 = vsel %vm339, %v642, %v646
  %v648 = vshrl.u32 %v335, 16
  %v650 = vor.u32 %v648, %v646
  %v652 = vshll.u32 %v336, 16
  %v654 = vrot.slane %v652, 1
  %v655 = vsel %vm339, %v650, %v654
  %v656 = vshrl.u32 %v336, 16
  %v658 = vor.u32 %v656, %v654
  %v660 = vshll.u32 %v337, 16
  %v662 = vrot.slane %v660, 1
  %v663 = vsel %vm339, %v658, %v662
  %v664 = vshrl.u32 %v337, 16
  %v666 = vor.u32 %v664, %v662
  %v668 = vshll.u32 %v338, 16
  %v670 = vrot.slane %v668, 1
  %v671 = vsel %vm339, %v666, %v670
  %v729 = vunpack.c.l.b16 %v115
  %v730 = vunpack.c.l.b16 %v116
  %v731 = vunpack.c.l.b16 %v117
  %v732 = vunpack.c.l.b16 %v118
  %v733 = vunpack.c.l.b16 %v119
  %v734 = vunpack.c.l.b16 %v120
  %v735 = vunpack.c.l.b16 %v121
  %v736 = vunpack.c.l.b16 %v122
  %v737 = vunpack.c.l.b16 %v123
  %v738 = vunpack.c.l.b16 %v124
  %v739 = vunpack.c.l.b16 %v125
  %v740 = vunpack.c.l.b16 %v126
  %v741 = vunpack.c.l.b16 %v127
  %v742 = vunpack.c.l.b16 %v128
  %v743 = vunpack.c.l.b16 %v129
  %v744 = vunpack.c.l.b16 %v130
  %v745 = vpack.c.b16 %v730, %v729
  %v746 = vpack.c.b16 %v732, %v731
  %v747 = vpack.c.b16 %v734, %v733
  %v748 = vpack.c.b16 %v736, %v735
  %v749 = vpack.c.b16 %v738, %v737
  %v750 = vpack.c.b16 %v740, %v739
  %v751 = vpack.c.b16 %v742, %v741
  %v752 = vpack.c.b16 %v744, %v743
  %761 = vmatprep.subr.bf16.mxu0 0
  %762 = vmatpush1.bf16.msra.mxu0 %v745
  %763 = vmatprep.subr.bf16.mxu0 0
  %764 = vmatpush1.bf16.msra.mxu0 %v746
  %765 = vmatprep.subr.bf16.mxu0 0
  %766 = vmatpush1.bf16.msra.mxu0 %v747
  %767 = vmatprep.subr.bf16.mxu0 0
  %768 = vmatpush1.bf16.msra.mxu0 %v748
  %769 = vmatprep.subr.bf16.mxu0 0
  %770 = vmatpush1.bf16.msra.mxu0 %v749
  %771 = vmatprep.subr.bf16.mxu0 0
  %772 = vmatpush1.bf16.msra.mxu0 %v750
  %773 = vmatprep.subr.bf16.mxu0 0
  %774 = vmatpush1.bf16.msra.mxu0 %v751
  %775 = vmatprep.subr.bf16.mxu0 0
  %776 = vmatpush1.bf16.msra.mxu0 %v752
  %777 = vmatprep.subr.bf16.mxu0 0
  %778 = vmatpush1.bf16.msra.mxu0 0
  %779 = vmatprep.subr.bf16.mxu0 0
  %780 = vmatpush1.bf16.msra.mxu0 0
  %781 = vmatprep.subr.bf16.mxu0 0
  %782 = vmatpush1.bf16.msra.mxu0 0
  %783 = vmatprep.subr.bf16.mxu0 0
  %784 = vmatpush1.bf16.msra.mxu0 0
  %785 = vmatprep.subr.bf16.mxu0 0
  %786 = vmatpush1.bf16.msra.mxu0 0
  %787 = vmatprep.subr.bf16.mxu0 0
  %788 = vmatpush1.bf16.msra.mxu0 0
  %789 = vmatprep.subr.bf16.mxu0 0
  %790 = vmatpush1.bf16.msra.mxu0 0
  %791 = vmatprep.subr.bf16.mxu0 0
  %792 = vmatpush1.bf16.msra.mxu0 0
  %793 = vmatprep.mubr.bf16.mxu0 0
  %794 = vmatmul.mubr.bf16.gmra.mrb[0].mxu0 %v351
  %v795 = vpop.f32.mrb[0].mxu0
  %v796 = vadd.f32 0.0, %v795
  %v797 = vpop.f32.mrb[0].mxu0
  %v798 = vpop.f32.mrb[0].mxu0
  %v799 = vadd.f32 0.0, %v798
  %v800 = vpop.f32.mrb[0].mxu0
  %801 = vmatprep.mubr.bf16.mxu0 0
  %802 = vmatmul.mubr.bf16.gmra.mrb[0].mxu0 %v359
  %v803 = vpop.f32.mrb[0].mxu0
  %v804 = vadd.f32 0.0, %v803
  %v805 = vpop.f32.mrb[0].mxu0
  %v806 = vpop.f32.mrb[0].mxu0
  %v807 = vadd.f32 0.0, %v806
  %v808 = vpop.f32.mrb[0].mxu0
  %809 = vmatprep.mubr.bf16.mxu0 0
  %810 = vmatmul.mubr.bf16.gmra.mrb[0].mxu0 %v367
  %v811 = vpop.f32.mrb[0].mxu0
  %v812 = vadd.f32 0.0, %v811
  %v813 = vpop.f32.mrb[0].mxu0
  %v814 = vpop.f32.mrb[0].mxu0
  %v815 = vadd.f32 0.0, %v814
  %v816 = vpop.f32.mrb[0].mxu0
  %817 = vmatprep.mubr.bf16.mxu0 0
  %818 = vmatmul.mubr.bf16.gmra.mrb[0].mxu0 %v375
  %v819 = vpop.f32.mrb[0].mxu0
  %v820 = vadd.f32 0.0, %v819
  %v821 = vpop.f32.mrb[0].mxu0
  %v822 = vpop.f32.mrb[0].mxu0
  %v823 = vadd.f32 0.0, %v822
  %v824 = vpop.f32.mrb[0].mxu0
  %825 = vmatprep.mubr.bf16.mxu0 0
  %826 = vmatmul.mubr.bf16.gmra.mrb[0].mxu0 %v383
  %v827 = vpop.f32.mrb[0].mxu0
  %v828 = vadd.f32 0.0, %v827
  %v829 = vpop.f32.mrb[0].mxu0
  %v830 = vpop.f32.mrb[0].mxu0
  %v831 = vadd.f32 0.0, %v830
  %v832 = vpop.f32.mrb[0].mxu0
  %833 = vmatprep.mubr.bf16.mxu0 0
  %834 = vmatmul.mubr.bf16.gmra.mrb[0].mxu0 %v391
  %v835 = vpop.f32.mrb[0].mxu0
  %v836 = vadd.f32 0.0, %v835
  %v837 = vpop.f32.mrb[0].mxu0
  %v838 = vpop.f32.mrb[0].mxu0
  %v839 = vadd.f32 0.0, %v838
  %v840 = vpop.f32.mrb[0].mxu0
  %841 = vmatprep.mubr.bf16.mxu0 0
  %842 = vmatmul.mubr.bf16.gmra.mrb[0].mxu0 %v399
  %v843 = vpop.f32.mrb[0].mxu0
  %v844 = vadd.f32 0.0, %v843
  %v845 = vpop.f32.mrb[0].mxu0
  %v846 = vpop.f32.mrb[0].mxu0
  %v847 = vadd.f32 0.0, %v846
  %v848 = vpop.f32.mrb[0].mxu0
  %849 = vmatprep.mubr.bf16.mxu0 0
  %850 = vmatmul.mubr.bf16.gmra.mrb[0].mxu0 %v407
  %v851 = vpop.f32.mrb[0].mxu0
  %v852 = vadd.f32 0.0, %v851
  %v853 = vpop.f32.mrb[0].mxu0
  %v854 = vpop.f32.mrb[0].mxu0
  %v855 = vadd.f32 0.0, %v854
  %v856 = vpop.f32.mrb[0].mxu0
  %857 = vmatprep.mubr.bf16.mxu0 0
  %858 = vmatmul.mubr.bf16.gmra.mrb[0].mxu0 %v415
  %v859 = vpop.f32.mrb[0].mxu0
  %v860 = vadd.f32 0.0, %v859
  %v861 = vpop.f32.mrb[0].mxu0
  %v862 = vpop.f32.mrb[0].mxu0
  %v863 = vadd.f32 0.0, %v862
  %v864 = vpop.f32.mrb[0].mxu0
  %865 = vmatprep.mubr.bf16.mxu0 0
  %866 = vmatmul.mubr.bf16.gmra.mrb[0].mxu0 %v423
  %v867 = vpop.f32.mrb[0].mxu0
  %v868 = vadd.f32 0.0, %v867
  %v869 = vpop.f32.mrb[0].mxu0
  %v870 = vpop.f32.mrb[0].mxu0
  %v871 = vadd.f32 0.0, %v870
  %v872 = vpop.f32.mrb[0].mxu0
  %873 = vmatprep.mubr.bf16.mxu0 0
  %874 = vmatmul.mubr.bf16.gmra.mrb[0].mxu0 %v431
  %v875 = vpop.f32.mrb[0].mxu0
  %v876 = vadd.f32 0.0, %v875
  %v877 = vpop.f32.mrb[0].mxu0
  %v878 = vpop.f32.mrb[0].mxu0
  %v879 = vadd.f32 0.0, %v878
  %v880 = vpop.f32.mrb[0].mxu0
  %881 = vmatprep.mubr.bf16.mxu0 0
  %882 = vmatmul.mubr.bf16.gmra.mrb[0].mxu0 %v439
  %v883 = vpop.f32.mrb[0].mxu0
  %v884 = vadd.f32 0.0, %v883
  %v885 = vpop.f32.mrb[0].mxu0
  %v886 = vpop.f32.mrb[0].mxu0
  %v887 = vadd.f32 0.0, %v886
  %v888 = vpop.f32.mrb[0].mxu0
  %889 = vmatprep.mubr.bf16.mxu0 0
  %890 = vmatmul.mubr.bf16.gmra.mrb[0].mxu0 %v447
  %v891 = vpop.f32.mrb[0].mxu0
  %v892 = vadd.f32 0.0, %v891
  %v893 = vpop.f32.mrb[0].mxu0
  %v894 = vpop.f32.mrb[0].mxu0
  %v895 = vadd.f32 0.0, %v894
  %v896 = vpop.f32.mrb[0].mxu0
  %897 = vmatprep.mubr.bf16.mxu0 0
  %898 = vmatmul.mubr.bf16.gmra.mrb[0].mxu0 %v455
  %v899 = vpop.f32.mrb[0].mxu0
  %v900 = vadd.f32 0.0, %v899
  %v901 = vpop.f32.mrb[0].mxu0
  %v902 = vpop.f32.mrb[0].mxu0
  %v903 = vadd.f32 0.0, %v902
  %v904 = vpop.f32.mrb[0].mxu0
  %905 = vmatprep.mubr.bf16.mxu0 0
  %906 = vmatmul.mubr.bf16.gmra.mrb[0].mxu0 %v463
  %v907 = vpop.f32.mrb[0].mxu0
  %v908 = vadd.f32 0.0, %v907
  %v909 = vpop.f32.mrb[0].mxu0
  %v910 = vpop.f32.mrb[0].mxu0
  %v911 = vadd.f32 0.0, %v910
  %v912 = vpop.f32.mrb[0].mxu0
  %913 = vmatprep.mubr.bf16.mxu0 0
  %914 = vmatmul.mubr.bf16.gmra.mrb[0].mxu0 %v471
  %v915 = vpop.f32.mrb[0].mxu0
  %v916 = vadd.f32 0.0, %v915
  %v917 = vpop.f32.mrb[0].mxu0
  %v918 = vpop.f32.mrb[0].mxu0
  %v919 = vadd.f32 0.0, %v918
  %v920 = vpop.f32.mrb[0].mxu0
  %921 = vmatprep.mubr.bf16.mxu0 0
  %922 = vmatmul.mubr.bf16.gmra.mrb[0].mxu0 %v479
  %v923 = vpop.f32.mrb[0].mxu0
  %v924 = vadd.f32 0.0, %v923
  %v925 = vpop.f32.mrb[0].mxu0
  %v926 = vpop.f32.mrb[0].mxu0
  %v927 = vadd.f32 0.0, %v926
  %v928 = vpop.f32.mrb[0].mxu0
  %929 = vmatprep.mubr.bf16.mxu0 0
  %930 = vmatmul.mubr.bf16.gmra.mrb[0].mxu0 %v487
  %v931 = vpop.f32.mrb[0].mxu0
  %v932 = vadd.f32 0.0, %v931
  %v933 = vpop.f32.mrb[0].mxu0
  %v934 = vpop.f32.mrb[0].mxu0
  %v935 = vadd.f32 0.0, %v934
  %v936 = vpop.f32.mrb[0].mxu0
  %937 = vmatprep.mubr.bf16.mxu0 0
  %938 = vmatmul.mubr.bf16.gmra.mrb[0].mxu0 %v495
  %v939 = vpop.f32.mrb[0].mxu0
  %v940 = vadd.f32 0.0, %v939
  %v941 = vpop.f32.mrb[0].mxu0
  %v942 = vpop.f32.mrb[0].mxu0
  %v943 = vadd.f32 0.0, %v942
  %v944 = vpop.f32.mrb[0].mxu0
  %945 = vmatprep.mubr.bf16.mxu0 0
  %946 = vmatmul.mubr.bf16.gmra.mrb[0].mxu0 %v503
  %v947 = vpop.f32.mrb[0].mxu0
  %v948 = vadd.f32 0.0, %v947
  %v949 = vpop.f32.mrb[0].mxu0
  %v950 = vpop.f32.mrb[0].mxu0
  %v951 = vadd.f32 0.0, %v950
  %v952 = vpop.f32.mrb[0].mxu0
  %953 = vmatprep.mubr.bf16.mxu0 0
  %954 = vmatmul.mubr.bf16.gmra.mrb[0].mxu0 %v511
  %v955 = vpop.f32.mrb[0].mxu0
  %v956 = vadd.f32 0.0, %v955
  %v957 = vpop.f32.mrb[0].mxu0
  %v958 = vpop.f32.mrb[0].mxu0
  %v959 = vadd.f32 0.0, %v958
  %v960 = vpop.f32.mrb[0].mxu0
  %961 = vmatprep.mubr.bf16.mxu0 0
  %962 = vmatmul.mubr.bf16.gmra.mrb[0].mxu0 %v519
  %v963 = vpop.f32.mrb[0].mxu0
  %v964 = vadd.f32 0.0, %v963
  %v965 = vpop.f32.mrb[0].mxu0
  %v966 = vpop.f32.mrb[0].mxu0
  %v967 = vadd.f32 0.0, %v966
  %v968 = vpop.f32.mrb[0].mxu0
  %969 = vmatprep.mubr.bf16.mxu0 0
  %970 = vmatmul.mubr.bf16.gmra.mrb[0].mxu0 %v527
  %v971 = vpop.f32.mrb[0].mxu0
  %v972 = vadd.f32 0.0, %v971
  %v973 = vpop.f32.mrb[0].mxu0
  %v974 = vpop.f32.mrb[0].mxu0
  %v975 = vadd.f32 0.0, %v974
  %v976 = vpop.f32.mrb[0].mxu0
  %977 = vmatprep.mubr.bf16.mxu0 0
  %978 = vmatmul.mubr.bf16.gmra.mrb[0].mxu0 %v535
  %v979 = vpop.f32.mrb[0].mxu0
  %v980 = vadd.f32 0.0, %v979
  %v981 = vpop.f32.mrb[0].mxu0
  %v982 = vpop.f32.mrb[0].mxu0
  %v983 = vadd.f32 0.0, %v982
  %v984 = vpop.f32.mrb[0].mxu0
  %985 = vmatprep.mubr.bf16.mxu0 0
  %986 = vmatmul.mubr.bf16.gmra.mrb[0].mxu0 %v543
  %v987 = vpop.f32.mrb[0].mxu0
  %v988 = vadd.f32 0.0, %v987
  %v989 = vpop.f32.mrb[0].mxu0
  %v990 = vpop.f32.mrb[0].mxu0
  %v991 = vadd.f32 0.0, %v990
  %v992 = vpop.f32.mrb[0].mxu0
  %993 = vmatprep.mubr.bf16.mxu0 0
  %994 = vmatmul.mubr.bf16.gmra.mrb[0].mxu0 %v551
  %v995 = vpop.f32.mrb[0].mxu0
  %v996 = vadd.f32 0.0, %v995
  %v997 = vpop.f32.mrb[0].mxu0
  %v998 = vpop.f32.mrb[0].mxu0
  %v999 = vadd.f32 0.0, %v998
  %v1000 = vpop.f32.mrb[0].mxu0
  %1001 = vmatprep.mubr.bf16.mxu0 0
  %1002 = vmatmul.mubr.bf16.gmra.mrb[0].mxu0 %v559
  %v1003 = vpop.f32.mrb[0].mxu0
  %v1004 = vadd.f32 0.0, %v1003
  %v1005 = vpop.f32.mrb[0].mxu0
  %v1006 = vpop.f32.mrb[0].mxu0
  %v1007 = vadd.f32 0.0, %v1006
  %v1008 = vpop.f32.mrb[0].mxu0
  %1009 = vmatprep.mubr.bf16.mxu0 0
  %1010 = vmatmul.mubr.bf16.gmra.mrb[0].mxu0 %v567
  %v1011 = vpop.f32.mrb[0].mxu0
  %v1012 = vadd.f32 0.0, %v1011
  %v1013 = vpop.f32.mrb[0].mxu0
  %v1014 = vpop.f32.mrb[0].mxu0
  %v1015 = vadd.f32 0.0, %v1014
  %v1016 = vpop.f32.mrb[0].mxu0
  %1017 = vmatprep.mubr.bf16.mxu0 0
  %1018 = vmatmul.mubr.bf16.gmra.mrb[0].mxu0 %v575
  %v1019 = vpop.f32.mrb[0].mxu0
  %v1020 = vadd.f32 0.0, %v1019
  %v1021 = vpop.f32.mrb[0].mxu0
  %v1022 = vpop.f32.mrb[0].mxu0
  %v1023 = vadd.f32 0.0, %v1022
  %v1024 = vpop.f32.mrb[0].mxu0
  %1025 = vmatprep.mubr.bf16.mxu0 0
  %1026 = vmatmul.mubr.bf16.gmra.mrb[0].mxu0 %v583
  %v1027 = vpop.f32.mrb[0].mxu0
  %v1028 = vadd.f32 0.0, %v1027
  %v1029 = vpop.f32.mrb[0].mxu0
  %v1030 = vpop.f32.mrb[0].mxu0
  %v1031 = vadd.f32 0.0, %v1030
  %v1032 = vpop.f32.mrb[0].mxu0
  %1033 = vmatprep.mubr.bf16.mxu0 0
  %1034 = vmatmul.mubr.bf16.gmra.mrb[0].mxu0 %v591
  %v1035 = vpop.f32.mrb[0].mxu0
  %v1036 = vadd.f32 0.0, %v1035
  %v1037 = vpop.f32.mrb[0].mxu0
  %v1038 = vpop.f32.mrb[0].mxu0
  %v1039 = vadd.f32 0.0, %v1038
  %v1040 = vpop.f32.mrb[0].mxu0
  %1041 = vmatprep.mubr.bf16.mxu0 0
  %1042 = vmatmul.mubr.bf16.gmra.mrb[0].mxu0 %v599
  %v1043 = vpop.f32.mrb[0].mxu0
  %v1044 = vadd.f32 0.0, %v1043
  %v1045 = vpop.f32.mrb[0].mxu0
  %v1046 = vpop.f32.mrb[0].mxu0
  %v1047 = vadd.f32 0.0, %v1046
  %v1048 = vpop.f32.mrb[0].mxu0
  %1049 = vmatprep.mubr.bf16.mxu0 0
  %1050 = vmatmul.mubr.bf16.gmra.mrb[0].mxu0 %v607
  %v1051 = vpop.f32.mrb[0].mxu0
  %v1052 = vadd.f32 0.0, %v1051
  %v1053 = vpop.f32.mrb[0].mxu0
  %v1054 = vpop.f32.mrb[0].mxu0
  %v1055 = vadd.f32 0.0, %v1054
  %v1056 = vpop.f32.mrb[0].mxu0
  %1057 = vmatprep.mubr.bf16.mxu0 0
  %1058 = vmatmul.mubr.bf16.gmra.mrb[0].mxu0 %v615
  %v1059 = vpop.f32.mrb[0].mxu0
  %v1060 = vadd.f32 0.0, %v1059
  %v1061 = vpop.f32.mrb[0].mxu0
  %v1062 = vpop.f32.mrb[0].mxu0
  %v1063 = vadd.f32 0.0, %v1062
  %v1064 = vpop.f32.mrb[0].mxu0
  %1065 = vmatprep.mubr.bf16.mxu0 0
  %1066 = vmatmul.mubr.bf16.gmra.mrb[0].mxu0 %v623
  %v1067 = vpop.f32.mrb[0].mxu0
  %v1068 = vadd.f32 0.0, %v1067
  %v1069 = vpop.f32.mrb[0].mxu0
  %v1070 = vpop.f32.mrb[0].mxu0
  %v1071 = vadd.f32 0.0, %v1070
  %v1072 = vpop.f32.mrb[0].mxu0
  %1073 = vmatprep.mubr.bf16.mxu0 0
  %1074 = vmatmul.mubr.bf16.gmra.mrb[0].mxu0 %v631
  %v1075 = vpop.f32.mrb[0].mxu0
  %v1076 = vadd.f32 0.0, %v1075
  %v1077 = vpop.f32.mrb[0].mxu0
  %v1078 = vpop.f32.mrb[0].mxu0
  %v1079 = vadd.f32 0.0, %v1078
  %v1080 = vpop.f32.mrb[0].mxu0
  %1081 = vmatprep.mubr.bf16.mxu0 0
  %1082 = vmatmul.mubr.bf16.gmra.mrb[0].mxu0 %v639
  %v1083 = vpop.f32.mrb[0].mxu0
  %v1084 = vadd.f32 0.0, %v1083
  %v1085 = vpop.f32.mrb[0].mxu0
  %v1086 = vpop.f32.mrb[0].mxu0
  %v1087 = vadd.f32 0.0, %v1086
  %v1088 = vpop.f32.mrb[0].mxu0
  %1089 = vmatprep.mubr.bf16.mxu0 0
  %1090 = vmatmul.mubr.bf16.gmra.mrb[0].mxu0 %v647
  %v1091 = vpop.f32.mrb[0].mxu0
  %v1092 = vadd.f32 0.0, %v1091
  %v1093 = vpop.f32.mrb[0].mxu0
  %v1094 = vpop.f32.mrb[0].mxu0
  %v1095 = vadd.f32 0.0, %v1094
  %v1096 = vpop.f32.mrb[0].mxu0
  %1097 = vmatprep.mubr.bf16.mxu0 0
  %1098 = vmatmul.mubr.bf16.gmra.mrb[0].mxu0 %v655
  %v1099 = vpop.f32.mrb[0].mxu0
  %v1100 = vadd.f32 0.0, %v1099
  %v1101 = vpop.f32.mrb[0].mxu0
  %v1102 = vpop.f32.mrb[0].mxu0
  %v1103 = vadd.f32 0.0, %v1102
  %v1104 = vpop.f32.mrb[0].mxu0
  %1105 = vmatprep.mubr.bf16.mxu0 0
  %1106 = vmatmul.mubr.bf16.gmra.mrb[0].mxu0 %v663
  %v1107 = vpop.f32.mrb[0].mxu0
  %v1108 = vadd.f32 0.0, %v1107
  %v1109 = vpop.f32.mrb[0].mxu0
  %v1110 = vpop.f32.mrb[0].mxu0
  %v1111 = vadd.f32 0.0, %v1110
  %v1112 = vpop.f32.mrb[0].mxu0
  %1113 = vmatprep.mubr.bf16.mxu0 0
  %1114 = vmatmul.mubr.bf16.gmra.mrb[0].mxu0 %v671
  %v1115 = vpop.f32.mrb[0].mxu0
  %v1116 = vadd.f32 0.0, %v1115
  %v1117 = vpop.f32.mrb[0].mxu0
  %v1118 = vpop.f32.mrb[0].mxu0
  %v1119 = vadd.f32 0.0, %v1118
  %v1120 = vpop.f32.mrb[0].mxu0
  %1121 = vdwg.mxu0
  %v1179 = vunpack.c.l.b16 %v97
  %v1180 = vunpack.c.l.b16 %v98
  %v1181 = vunpack.c.l.b16 %v99
  %v1182 = vunpack.c.l.b16 %v100
  %v1183 = vunpack.c.l.b16 %v101
  %v1184 = vunpack.c.l.b16 %v102
  %v1185 = vunpack.c.l.b16 %v103
  %v1186 = vunpack.c.l.b16 %v104
  %v1187 = vunpack.c.l.b16 %v105
  %v1188 = vunpack.c.l.b16 %v106
  %v1189 = vunpack.c.l.b16 %v107
  %v1190 = vunpack.c.l.b16 %v108
  %v1191 = vunpack.c.l.b16 %v109
  %v1192 = vunpack.c.l.b16 %v110
  %v1193 = vunpack.c.l.b16 %v111
  %v1194 = vunpack.c.l.b16 %v112
  %v1195 = vpack.c.b16 %v1180, %v1179
  %v1196 = vpack.c.b16 %v1182, %v1181
  %v1197 = vpack.c.b16 %v1184, %v1183
  %v1198 = vpack.c.b16 %v1186, %v1185
  %v1199 = vpack.c.b16 %v1188, %v1187
  %v1200 = vpack.c.b16 %v1190, %v1189
  %v1201 = vpack.c.b16 %v1192, %v1191
  %v1202 = vpack.c.b16 %v1194, %v1193
  %1211 = vmatprep.subr.bf16.mxu0 0
  %1212 = vmatpush1.bf16.msra.mxu0 %v1195
  %1213 = vmatprep.subr.bf16.mxu0 0
  %1214 = vmatpush1.bf16.msra.mxu0 %v1196
  %1215 = vmatprep.subr.bf16.mxu0 0
  %1216 = vmatpush1.bf16.msra.mxu0 %v1197
  %1217 = vmatprep.subr.bf16.mxu0 0
  %1218 = vmatpush1.bf16.msra.mxu0 %v1198
  %1219 = vmatprep.subr.bf16.mxu0 0
  %1220 = vmatpush1.bf16.msra.mxu0 %v1199
  %1221 = vmatprep.subr.bf16.mxu0 0
  %1222 = vmatpush1.bf16.msra.mxu0 %v1200
  %1223 = vmatprep.subr.bf16.mxu0 0
  %1224 = vmatpush1.bf16.msra.mxu0 %v1201
  %1225 = vmatprep.subr.bf16.mxu0 0
  %1226 = vmatpush1.bf16.msra.mxu0 %v1202
  %1227 = vmatprep.subr.bf16.mxu0 0
  %1228 = vmatpush1.bf16.msra.mxu0 0
  %1229 = vmatprep.subr.bf16.mxu0 0
  %1230 = vmatpush1.bf16.msra.mxu0 0
  %1231 = vmatprep.subr.bf16.mxu0 0
  %1232 = vmatpush1.bf16.msra.mxu0 0
  %1233 = vmatprep.subr.bf16.mxu0 0
  %1234 = vmatpush1.bf16.msra.mxu0 0
  %1235 = vmatprep.subr.bf16.mxu0 0
  %1236 = vmatpush1.bf16.msra.mxu0 0
  %1237 = vmatprep.subr.bf16.mxu0 0
  %1238 = vmatpush1.bf16.msra.mxu0 0
  %1239 = vmatprep.subr.bf16.mxu0 0
  %1240 = vmatpush1.bf16.msra.mxu0 0
  %1241 = vmatprep.subr.bf16.mxu0 0
  %1242 = vmatpush1.bf16.msra.mxu0 0
  %1243 = vmatprep.mubr.bf16.mxu0 0
  %1244 = vmatmul.mubr.bf16.gmra.mrb[0].mxu0 %v297
  %v1245 = vpop.f32.mrb[0].mxu0
  %v1246 = vadd.f32 %v796, %v1245
  %v1247 = vpop.f32.mrb[0].mxu0
  %v1248 = vpop.f32.mrb[0].mxu0
  %v1249 = vadd.f32 %v799, %v1248
  %v1250 = vpop.f32.mrb[0].mxu0
  %1251 = vmatprep.mubr.bf16.mxu0 0
  %1252 = vmatmul.mubr.bf16.gmra.mrb[0].mxu0 %v298
  %v1253 = vpop.f32.mrb[0].mxu0
  %v1254 = vadd.f32 %v804, %v1253
  %v1255 = vpop.f32.mrb[0].mxu0
  %v1256 = vpop.f32.mrb[0].mxu0
  %v1257 = vadd.f32 %v807, %v1256
  %v1258 = vpop.f32.mrb[0].mxu0
  %1259 = vmatprep.mubr.bf16.mxu0 0
  %1260 = vmatmul.mubr.bf16.gmra.mrb[0].mxu0 %v299
  %v1261 = vpop.f32.mrb[0].mxu0
  %v1262 = vadd.f32 %v812, %v1261
  %v1263 = vpop.f32.mrb[0].mxu0
  %v1264 = vpop.f32.mrb[0].mxu0
  %v1265 = vadd.f32 %v815, %v1264
  %v1266 = vpop.f32.mrb[0].mxu0
  %1267 = vmatprep.mubr.bf16.mxu0 0
  %1268 = vmatmul.mubr.bf16.gmra.mrb[0].mxu0 %v300
  %v1269 = vpop.f32.mrb[0].mxu0
  %v1270 = vadd.f32 %v820, %v1269
  %v1271 = vpop.f32.mrb[0].mxu0
  %v1272 = vpop.f32.mrb[0].mxu0
  %v1273 = vadd.f32 %v823, %v1272
  %v1274 = vpop.f32.mrb[0].mxu0
  %1275 = vmatprep.mubr.bf16.mxu0 0
  %1276 = vmatmul.mubr.bf16.gmra.mrb[0].mxu0 %v301
  %v1277 = vpop.f32.mrb[0].mxu0
  %v1278 = vadd.f32 %v828, %v1277
  %v1279 = vpop.f32.mrb[0].mxu0
  %v1280 = vpop.f32.mrb[0].mxu0
  %v1281 = vadd.f32 %v831, %v1280
  %v1282 = vpop.f32.mrb[0].mxu0
  %1283 = vmatprep.mubr.bf16.mxu0 0
  %1284 = vmatmul.mubr.bf16.gmra.mrb[0].mxu0 %v302
  %v1285 = vpop.f32.mrb[0].mxu0
  %v1286 = vadd.f32 %v836, %v1285
  %v1287 = vpop.f32.mrb[0].mxu0
  %v1288 = vpop.f32.mrb[0].mxu0
  %v1289 = vadd.f32 %v839, %v1288
  %v1290 = vpop.f32.mrb[0].mxu0
  %1291 = vmatprep.mubr.bf16.mxu0 0
  %1292 = vmatmul.mubr.bf16.gmra.mrb[0].mxu0 %v303
  %v1293 = vpop.f32.mrb[0].mxu0
  %v1294 = vadd.f32 %v844, %v1293
  %v1295 = vpop.f32.mrb[0].mxu0
  %v1296 = vpop.f32.mrb[0].mxu0
  %v1297 = vadd.f32 %v847, %v1296
  %v1298 = vpop.f32.mrb[0].mxu0
  %1299 = vmatprep.mubr.bf16.mxu0 0
  %1300 = vmatmul.mubr.bf16.gmra.mrb[0].mxu0 %v304
  %v1301 = vpop.f32.mrb[0].mxu0
  %v1302 = vadd.f32 %v852, %v1301
  %v1303 = vpop.f32.mrb[0].mxu0
  %v1304 = vpop.f32.mrb[0].mxu0
  %v1305 = vadd.f32 %v855, %v1304
  %v1306 = vpop.f32.mrb[0].mxu0
  %1307 = vmatprep.mubr.bf16.mxu0 0
  %1308 = vmatmul.mubr.bf16.gmra.mrb[0].mxu0 %v305
  %v1309 = vpop.f32.mrb[0].mxu0
  %v1310 = vadd.f32 %v860, %v1309
  %v1311 = vpop.f32.mrb[0].mxu0
  %v1312 = vpop.f32.mrb[0].mxu0
  %v1313 = vadd.f32 %v863, %v1312
  %v1314 = vpop.f32.mrb[0].mxu0
  %1315 = vmatprep.mubr.bf16.mxu0 0
  %1316 = vmatmul.mubr.bf16.gmra.mrb[0].mxu0 %v306
  %v1317 = vpop.f32.mrb[0].mxu0
  %v1318 = vadd.f32 %v868, %v1317
  %v1319 = vpop.f32.mrb[0].mxu0
  %v1320 = vpop.f32.mrb[0].mxu0
  %v1321 = vadd.f32 %v871, %v1320
  %v1322 = vpop.f32.mrb[0].mxu0
  %1323 = vmatprep.mubr.bf16.mxu0 0
  %1324 = vmatmul.mubr.bf16.gmra.mrb[0].mxu0 %v307
  %v1325 = vpop.f32.mrb[0].mxu0
  %v1326 = vadd.f32 %v876, %v1325
  %v1327 = vpop.f32.mrb[0].mxu0
  %v1328 = vpop.f32.mrb[0].mxu0
  %v1329 = vadd.f32 %v879, %v1328
  %v1330 = vpop.f32.mrb[0].mxu0
  %1331 = vmatprep.mubr.bf16.mxu0 0
  %1332 = vmatmul.mubr.bf16.gmra.mrb[0].mxu0 %v308
  %v1333 = vpop.f32.mrb[0].mxu0
  %v1334 = vadd.f32 %v884, %v1333
  %v1335 = vpop.f32.mrb[0].mxu0
  %v1336 = vpop.f32.mrb[0].mxu0
  %v1337 = vadd.f32 %v887, %v1336
  %v1338 = vpop.f32.mrb[0].mxu0
  %1339 = vmatprep.mubr.bf16.mxu0 0
  %1340 = vmatmul.mubr.bf16.gmra.mrb[0].mxu0 %v309
  %v1341 = vpop.f32.mrb[0].mxu0
  %v1342 = vadd.f32 %v892, %v1341
  %v1343 = vpop.f32.mrb[0].mxu0
  %v1344 = vpop.f32.mrb[0].mxu0
  %v1345 = vadd.f32 %v895, %v1344
  %v1346 = vpop.f32.mrb[0].mxu0
  %1347 = vmatprep.mubr.bf16.mxu0 0
  %1348 = vmatmul.mubr.bf16.gmra.mrb[0].mxu0 %v310
  %v1349 = vpop.f32.mrb[0].mxu0
  %v1350 = vadd.f32 %v900, %v1349
  %v1351 = vpop.f32.mrb[0].mxu0
  %v1352 = vpop.f32.mrb[0].mxu0
  %v1353 = vadd.f32 %v903, %v1352
  %v1354 = vpop.f32.mrb[0].mxu0
  %1355 = vmatprep.mubr.bf16.mxu0 0
  %1356 = vmatmul.mubr.bf16.gmra.mrb[0].mxu0 %v311
  %v1357 = vpop.f32.mrb[0].mxu0
  %v1358 = vadd.f32 %v908, %v1357
  %v1359 = vpop.f32.mrb[0].mxu0
  %v1360 = vpop.f32.mrb[0].mxu0
  %v1361 = vadd.f32 %v911, %v1360
  %v1362 = vpop.f32.mrb[0].mxu0
  %1363 = vmatprep.mubr.bf16.mxu0 0
  %1364 = vmatmul.mubr.bf16.gmra.mrb[0].mxu0 %v312
  %v1365 = vpop.f32.mrb[0].mxu0
  %v1366 = vadd.f32 %v916, %v1365
  %v1367 = vpop.f32.mrb[0].mxu0
  %v1368 = vpop.f32.mrb[0].mxu0
  %v1369 = vadd.f32 %v919, %v1368
  %v1370 = vpop.f32.mrb[0].mxu0
  %1371 = vmatprep.mubr.bf16.mxu0 0
  %1372 = vmatmul.mubr.bf16.gmra.mrb[0].mxu0 %v313
  %v1373 = vpop.f32.mrb[0].mxu0
  %v1374 = vadd.f32 %v924, %v1373
  %v1375 = vpop.f32.mrb[0].mxu0
  %v1376 = vpop.f32.mrb[0].mxu0
  %v1377 = vadd.f32 %v927, %v1376
  %v1378 = vpop.f32.mrb[0].mxu0
  %1379 = vmatprep.mubr.bf16.mxu0 0
  %1380 = vmatmul.mubr.bf16.gmra.mrb[0].mxu0 %v314
  %v1381 = vpop.f32.mrb[0].mxu0
  %v1382 = vadd.f32 %v932, %v1381
  %v1383 = vpop.f32.mrb[0].mxu0
  %v1384 = vpop.f32.mrb[0].mxu0
  %v1385 = vadd.f32 %v935, %v1384
  %v1386 = vpop.f32.mrb[0].mxu0
  %1387 = vmatprep.mubr.bf16.mxu0 0
  %1388 = vmatmul.mubr.bf16.gmra.mrb[0].mxu0 %v315
  %v1389 = vpop.f32.mrb[0].mxu0
  %v1390 = vadd.f32 %v940, %v1389
  %v1391 = vpop.f32.mrb[0].mxu0
  %v1392 = vpop.f32.mrb[0].mxu0
  %v1393 = vadd.f32 %v943, %v1392
  %v1394 = vpop.f32.mrb[0].mxu0
  %1395 = vmatprep.mubr.bf16.mxu0 0
  %1396 = vmatmul.mubr.bf16.gmra.mrb[0].mxu0 %v316
  %v1397 = vpop.f32.mrb[0].mxu0
  %v1398 = vadd.f32 %v948, %v1397
  %v1399 = vpop.f32.mrb[0].mxu0
  %v1400 = vpop.f32.mrb[0].mxu0
  %v1401 = vadd.f32 %v951, %v1400
  %v1402 = vpop.f32.mrb[0].mxu0
  %1403 = vmatprep.mubr.bf16.mxu0 0
  %1404 = vmatmul.mubr.bf16.gmra.mrb[0].mxu0 %v317
  %v1405 = vpop.f32.mrb[0].mxu0
  %v1406 = vadd.f32 %v956, %v1405
  %v1407 = vpop.f32.mrb[0].mxu0
  %v1408 = vpop.f32.mrb[0].mxu0
  %v1409 = vadd.f32 %v959, %v1408
  %v1410 = vpop.f32.mrb[0].mxu0
  %1411 = vmatprep.mubr.bf16.mxu0 0
  %1412 = vmatmul.mubr.bf16.gmra.mrb[0].mxu0 %v318
  %v1413 = vpop.f32.mrb[0].mxu0
  %v1414 = vadd.f32 %v964, %v1413
  %v1415 = vpop.f32.mrb[0].mxu0
  %v1416 = vpop.f32.mrb[0].mxu0
  %v1417 = vadd.f32 %v967, %v1416
  %v1418 = vpop.f32.mrb[0].mxu0
  %1419 = vmatprep.mubr.bf16.mxu0 0
  %1420 = vmatmul.mubr.bf16.gmra.mrb[0].mxu0 %v319
  %v1421 = vpop.f32.mrb[0].mxu0
  %v1422 = vadd.f32 %v972, %v1421
  %v1423 = vpop.f32.mrb[0].mxu0
  %v1424 = vpop.f32.mrb[0].mxu0
  %v1425 = vadd.f32 %v975, %v1424
  %v1426 = vpop.f32.mrb[0].mxu0
  %1427 = vmatprep.mubr.bf16.mxu0 0
  %1428 = vmatmul.mubr.bf16.gmra.mrb[0].mxu0 %v320
  %v1429 = vpop.f32.mrb[0].mxu0
  %v1430 = vadd.f32 %v980, %v1429
  %v1431 = vpop.f32.mrb[0].mxu0
  %v1432 = vpop.f32.mrb[0].mxu0
  %v1433 = vadd.f32 %v983, %v1432
  %v1434 = vpop.f32.mrb[0].mxu0
  %1435 = vmatprep.mubr.bf16.mxu0 0
  %1436 = vmatmul.mubr.bf16.gmra.mrb[0].mxu0 %v321
  %v1437 = vpop.f32.mrb[0].mxu0
  %v1438 = vadd.f32 %v988, %v1437
  %v1439 = vpop.f32.mrb[0].mxu0
  %v1440 = vpop.f32.mrb[0].mxu0
  %v1441 = vadd.f32 %v991, %v1440
  %v1442 = vpop.f32.mrb[0].mxu0
  %1443 = vmatprep.mubr.bf16.mxu0 0
  %1444 = vmatmul.mubr.bf16.gmra.mrb[0].mxu0 %v322
  %v1445 = vpop.f32.mrb[0].mxu0
  %v1446 = vadd.f32 %v996, %v1445
  %v1447 = vpop.f32.mrb[0].mxu0
  %v1448 = vpop.f32.mrb[0].mxu0
  %v1449 = vadd.f32 %v999, %v1448
  %v1450 = vpop.f32.mrb[0].mxu0
  %1451 = vmatprep.mubr.bf16.mxu0 0
  %1452 = vmatmul.mubr.bf16.gmra.mrb[0].mxu0 %v323
  %v1453 = vpop.f32.mrb[0].mxu0
  %v1454 = vadd.f32 %v1004, %v1453
  %v1455 = vpop.f32.mrb[0].mxu0
  %v1456 = vpop.f32.mrb[0].mxu0
  %v1457 = vadd.f32 %v1007, %v1456
  %v1458 = vpop.f32.mrb[0].mxu0
  %1459 = vmatprep.mubr.bf16.mxu0 0
  %1460 = vmatmul.mubr.bf16.gmra.mrb[0].mxu0 %v324
  %v1461 = vpop.f32.mrb[0].mxu0
  %v1462 = vadd.f32 %v1012, %v1461
  %v1463 = vpop.f32.mrb[0].mxu0
  %v1464 = vpop.f32.mrb[0].mxu0
  %v1465 = vadd.f32 %v1015, %v1464
  %v1466 = vpop.f32.mrb[0].mxu0
  %1467 = vmatprep.mubr.bf16.mxu0 0
  %1468 = vmatmul.mubr.bf16.gmra.mrb[0].mxu0 %v325
  %v1469 = vpop.f32.mrb[0].mxu0
  %v1470 = vadd.f32 %v1020, %v1469
  %v1471 = vpop.f32.mrb[0].mxu0
  %v1472 = vpop.f32.mrb[0].mxu0
  %v1473 = vadd.f32 %v1023, %v1472
  %v1474 = vpop.f32.mrb[0].mxu0
  %1475 = vmatprep.mubr.bf16.mxu0 0
  %1476 = vmatmul.mubr.bf16.gmra.mrb[0].mxu0 %v326
  %v1477 = vpop.f32.mrb[0].mxu0
  %v1478 = vadd.f32 %v1028, %v1477
  %v1479 = vpop.f32.mrb[0].mxu0
  %v1480 = vpop.f32.mrb[0].mxu0
  %v1481 = vadd.f32 %v1031, %v1480
  %v1482 = vpop.f32.mrb[0].mxu0
  %1483 = vmatprep.mubr.bf16.mxu0 0
  %1484 = vmatmul.mubr.bf16.gmra.mrb[0].mxu0 %v327
  %v1485 = vpop.f32.mrb[0].mxu0
  %v1486 = vadd.f32 %v1036, %v1485
  %v1487 = vpop.f32.mrb[0].mxu0
  %v1488 = vpop.f32.mrb[0].mxu0
  %v1489 = vadd.f32 %v1039, %v1488
  %v1490 = vpop.f32.mrb[0].mxu0
  %1491 = vmatprep.mubr.bf16.mxu0 0
  %1492 = vmatmul.mubr.bf16.gmra.mrb[0].mxu0 %v328
  %v1493 = vpop.f32.mrb[0].mxu0
  %v1494 = vadd.f32 %v1044, %v1493
  %v1495 = vpop.f32.mrb[0].mxu0
  %v1496 = vpop.f32.mrb[0].mxu0
  %v1497 = vadd.f32 %v1047, %v1496
  %v1498 = vpop.f32.mrb[0].mxu0
  %1499 = vmatprep.mubr.bf16.mxu0 0
  %1500 = vmatmul.mubr.bf16.gmra.mrb[0].mxu0 %v329
  %v1501 = vpop.f32.mrb[0].mxu0
  %v1502 = vadd.f32 %v1052, %v1501
  %v1503 = vpop.f32.mrb[0].mxu0
  %v1504 = vpop.f32.mrb[0].mxu0
  %v1505 = vadd.f32 %v1055, %v1504
  %v1506 = vpop.f32.mrb[0].mxu0
  %1507 = vmatprep.mubr.bf16.mxu0 0
  %1508 = vmatmul.mubr.bf16.gmra.mrb[0].mxu0 %v330
  %v1509 = vpop.f32.mrb[0].mxu0
  %v1510 = vadd.f32 %v1060, %v1509
  %v1511 = vpop.f32.mrb[0].mxu0
  %v1512 = vpop.f32.mrb[0].mxu0
  %v1513 = vadd.f32 %v1063, %v1512
  %v1514 = vpop.f32.mrb[0].mxu0
  %1515 = vmatprep.mubr.bf16.mxu0 0
  %1516 = vmatmul.mubr.bf16.gmra.mrb[0].mxu0 %v331
  %v1517 = vpop.f32.mrb[0].mxu0
  %v1518 = vadd.f32 %v1068, %v1517
  %v1519 = vpop.f32.mrb[0].mxu0
  %v1520 = vpop.f32.mrb[0].mxu0
  %v1521 = vadd.f32 %v1071, %v1520
  %v1522 = vpop.f32.mrb[0].mxu0
  %1523 = vmatprep.mubr.bf16.mxu0 0
  %1524 = vmatmul.mubr.bf16.gmra.mrb[0].mxu0 %v332
  %v1525 = vpop.f32.mrb[0].mxu0
  %v1526 = vadd.f32 %v1076, %v1525
  %v1527 = vpop.f32.mrb[0].mxu0
  %v1528 = vpop.f32.mrb[0].mxu0
  %v1529 = vadd.f32 %v1079, %v1528
  %v1530 = vpop.f32.mrb[0].mxu0
  %1531 = vmatprep.mubr.bf16.mxu0 0
  %1532 = vmatmul.mubr.bf16.gmra.mrb[0].mxu0 %v333
  %v1533 = vpop.f32.mrb[0].mxu0
  %v1534 = vadd.f32 %v1084, %v1533
  %v1535 = vpop.f32.mrb[0].mxu0
  %v1536 = vpop.f32.mrb[0].mxu0
  %v1537 = vadd.f32 %v1087, %v1536
  %v1538 = vpop.f32.mrb[0].mxu0
  %1539 = vmatprep.mubr.bf16.mxu0 0
  %1540 = vmatmul.mubr.bf16.gmra.mrb[0].mxu0 %v334
  %v1541 = vpop.f32.mrb[0].mxu0
  %v1542 = vadd.f32 %v1092, %v1541
  %v1543 = vpop.f32.mrb[0].mxu0
  %v1544 = vpop.f32.mrb[0].mxu0
  %v1545 = vadd.f32 %v1095, %v1544
  %v1546 = vpop.f32.mrb[0].mxu0
  %1547 = vmatprep.mubr.bf16.mxu0 0
  %1548 = vmatmul.mubr.bf16.gmra.mrb[0].mxu0 %v335
  %v1549 = vpop.f32.mrb[0].mxu0
  %v1550 = vadd.f32 %v1100, %v1549
  %v1551 = vpop.f32.mrb[0].mxu0
  %v1552 = vpop.f32.mrb[0].mxu0
  %v1553 = vadd.f32 %v1103, %v1552
  %v1554 = vpop.f32.mrb[0].mxu0
  %1555 = vmatprep.mubr.bf16.mxu0 0
  %1556 = vmatmul.mubr.bf16.gmra.mrb[0].mxu0 %v336
  %v1557 = vpop.f32.mrb[0].mxu0
  %v1558 = vadd.f32 %v1108, %v1557
  %v1559 = vpop.f32.mrb[0].mxu0
  %v1560 = vpop.f32.mrb[0].mxu0
  %v1561 = vadd.f32 %v1111, %v1560
  %v1562 = vpop.f32.mrb[0].mxu0
  %1563 = vmatprep.mubr.bf16.mxu0 0
  %1564 = vmatmul.mubr.bf16.gmra.mrb[0].mxu0 %v337
  %v1565 = vpop.f32.mrb[0].mxu0
  %v1566 = vadd.f32 %v1116, %v1565
  %v1567 = vpop.f32.mrb[0].mxu0
  %v1568 = vpop.f32.mrb[0].mxu0
  %v1569 = vadd.f32 %v1119, %v1568
  %v1570 = vpop.f32.mrb[0].mxu0
  %1571 = vdwg.mxu0
  %v1572 = vld [vmem:[%s0] sm:$0xe]
  %s1573 = scalar_lea.vmem %s1, 128
  %v1574 = vld [vmem:[%s1573] sm:$0xf]
  %v1575 = vld [vmem:[%s1573 + $0x4] sm:$0xf]
  %v1576 = vld [vmem:[%s1573 + $0x8] sm:$0xf]
  %v1577 = vld [vmem:[%s1573 + $0xc] sm:$0xf]
  %v1578 = vld [vmem:[%s1573 + $0x10] sm:$0xf]
  %v1579 = vld [vmem:[%s1573 + $0x14] sm:$0xf]
  %v1580 = vld [vmem:[%s1573 + $0x18] sm:$0xf]
  %v1581 = vld [vmem:[%s1573 + $0x1c] sm:$0xf]
  %v1582 = vld [vmem:[%s1573 + $0x20] sm:$0xf]
  %v1583 = vld [vmem:[%s1573 + $0x24] sm:$0xf]
  %v1584 = vld [vmem:[%s1573 + $0x28] sm:$0xf]
  %v1585 = vld [vmem:[%s1573 + $0x2c] sm:$0xf]
  %v1586 = vld [vmem:[%s1573 + $0x30] sm:$0xf]
  %v1587 = vld [vmem:[%s1573 + $0x34] sm:$0xf]
  %v1588 = vld [vmem:[%s1573 + $0x38] sm:$0xf]
  %v1589 = vld [vmem:[%s1573 + $0x3c] sm:$0xf]
  %v1591 = vunpack.c.l.b16 %v1572
  %v1592 = vpack.c.b16 %v215, %v1591
  %vm1593 = vcmask 1046528
  %v1594 = vrot.slane %v1592, 1
  %v1595 = vrot.slane %v298, 1
  %v1596 = vsel %vm1593, %v1594, %v1595
  %v1597 = vrot.slane %v299, 1
  %v1598 = vsel %vm1593, %v1595, %v1597
  %v1599 = vrot.slane %v300, 1
  %v1600 = vsel %vm1593, %v1597, %v1599
  %v1601 = vrot.slane %v301, 1
  %v1602 = vsel %vm1593, %v1599, %v1601
  %v1603 = vrot.slane %v302, 1
  %v1604 = vsel %vm1593, %v1601, %v1603
  %v1605 = vrot.slane %v303, 1
  %v1606 = vsel %vm1593, %v1603, %v1605
  %v1607 = vrot.slane %v304, 1
  %v1608 = vsel %vm1593, %v1605, %v1607
  %v1609 = vrot.slane %v305, 1
  %v1610 = vsel %vm1593, %v1607, %v1609
  %v1611 = vrot.slane %v306, 1
  %v1612 = vsel %vm1593, %v1609, %v1611
  %v1613 = vrot.slane %v307, 1
  %v1614 = vsel %vm1593, %v1611, %v1613
  %v1615 = vrot.slane %v308, 1
  %v1616 = vsel %vm1593, %v1613, %v1615
  %v1617 = vrot.slane %v309, 1
  %v1618 = vsel %vm1593, %v1615, %v1617
  %v1619 = vrot.slane %v310, 1
  %v1620 = vsel %vm1593, %v1617, %v1619
  %v1621 = vrot.slane %v311, 1
  %v1622 = vsel %vm1593, %v1619, %v1621
  %v1623 = vrot.slane %v312, 1
  %v1624 = vsel %vm1593, %v1621, %v1623
  %v1625 = vrot.slane %v313, 1
  %v1626 = vsel %vm1593, %v1623, %v1625
  %v1627 = vrot.slane %v314, 1
  %v1628 = vsel %vm1593, %v1625, %v1627
  %v1629 = vrot.slane %v315, 1
  %v1630 = vsel %vm1593, %v1627, %v1629
  %v1631 = vrot.slane %v316, 1
  %v1632 = vsel %vm1593, %v1629, %v1631
  %v1633 = vrot.slane %v317, 1
  %v1634 = vsel %vm1593, %v1631, %v1633
  %v1635 = vrot.slane %v318, 1
  %v1636 = vsel %vm1593, %v1633, %v1635
  %v1637 = vrot.slane %v319, 1
  %v1638 = vsel %vm1593, %v1635, %v1637
  %v1639 = vrot.slane %v320, 1
  %v1640 = vsel %vm1593, %v1637, %v1639
  %v1641 = vrot.slane %v321, 1
  %v1642 = vsel %vm1593, %v1639, %v1641
  %v1643 = vrot.slane %v322, 1
  %v1644 = vsel %vm1593, %v1641, %v1643
  %v1645 = vrot.slane %v323, 1
  %v1646 = vsel %vm1593, %v1643, %v1645
  %v1647 = vrot.slane %v324, 1
  %v1648 = vsel %vm1593, %v1645, %v1647
  %v1649 = vrot.slane %v325, 1
  %v1650 = vsel %vm1593, %v1647, %v1649
  %v1651 = vrot.slane %v326, 1
  %v1652 = vsel %vm1593, %v1649, %v1651
  %v1653 = vrot.slane %v327, 1
  %v1654 = vsel %vm1593, %v1651, %v1653
  %v1655 = vrot.slane %v328, 1
  %v1656 = vsel %vm1593, %v1653, %v1655
  %v1657 = vrot.slane %v329, 1
  %v1658 = vsel %vm1593, %v1655, %v1657
  %v1659 = vrot.slane %v330, 1
  %v1660 = vsel %vm1593, %v1657, %v1659
  %v1661 = vrot.slane %v331, 1
  %v1662 = vsel %vm1593, %v1659, %v1661
  %v1663 = vrot.slane %v332, 1
  %v1664 = vsel %vm1593, %v1661, %v1663
  %v1665 = vrot.slane %v333, 1
  %v1666 = vsel %vm1593, %v1663, %v1665
  %v1667 = vrot.slane %v334, 1
  %v1668 = vsel %vm1593, %v1665, %v1667
  %v1669 = vrot.slane %v335, 1
  %v1670 = vsel %vm1593, %v1667, %v1669
  %v1671 = vrot.slane %v336, 1
  %v1672 = vsel %vm1593, %v1669, %v1671
  %v1673 = vrot.slane %v337, 1
  %v1674 = vsel %vm1593, %v1671, %v1673
  %v1675 = vrot.slane %v338, 1
  %v1676 = vsel %vm1593, %v1673, %v1675
  %v1734 = vunpack.c.l.b16 %v1574
  %v1735 = vunpack.c.l.b16 %v1575
  %v1736 = vunpack.c.l.b16 %v1576
  %v1737 = vunpack.c.l.b16 %v1577
  %v1738 = vunpack.c.l.b16 %v1578
  %v1739 = vunpack.c.l.b16 %v1579
  %v1740 = vunpack.c.l.b16 %v1580
  %v1741 = vunpack.c.l.b16 %v1581
  %v1742 = vunpack.c.l.b16 %v1582
  %v1743 = vunpack.c.l.b16 %v1583
  %v1744 = vunpack.c.l.b16 %v1584
  %v1745 = vunpack.c.l.b16 %v1585
  %v1746 = vunpack.c.l.b16 %v1586
  %v1747 = vunpack.c.l.b16 %v1587
  %v1748 = vunpack.c.l.b16 %v1588
  %v1749 = vunpack.c.l.b16 %v1589
  %v1750 = vpack.c.b16 %v1735, %v1734
  %v1751 = vpack.c.b16 %v1737, %v1736
  %v1752 = vpack.c.b16 %v1739, %v1738
  %v1753 = vpack.c.b16 %v1741, %v1740
  %v1754 = vpack.c.b16 %v1743, %v1742
  %v1755 = vpack.c.b16 %v1745, %v1744
  %v1756 = vpack.c.b16 %v1747, %v1746
  %v1757 = vpack.c.b16 %v1749, %v1748
  %1766 = vmatprep.subr.bf16.mxu0 0
  %1767 = vmatpush1.bf16.msra.mxu0 %v1750
  %1768 = vmatprep.subr.bf16.mxu0 0
  %1769 = vmatpush1.bf16.msra.mxu0 %v1751
  %1770 = vmatprep.subr.bf16.mxu0 0
  %1771 = vmatpush1.bf16.msra.mxu0 %v1752
  %1772 = vmatprep.subr.bf16.mxu0 0
  %1773 = vmatpush1.bf16.msra.mxu0 %v1753
  %1774 = vmatprep.subr.bf16.mxu0 0
  %1775 = vmatpush1.bf16.msra.mxu0 %v1754
  %1776 = vmatprep.subr.bf16.mxu0 0
  %1777 = vmatpush1.bf16.msra.mxu0 %v1755
  %1778 = vmatprep.subr.bf16.mxu0 0
  %1779 = vmatpush1.bf16.msra.mxu0 %v1756
  %1780 = vmatprep.subr.bf16.mxu0 0
  %1781 = vmatpush1.bf16.msra.mxu0 %v1757
  %1782 = vmatprep.subr.bf16.mxu0 0
  %1783 = vmatpush1.bf16.msra.mxu0 0
  %1784 = vmatprep.subr.bf16.mxu0 0
  %1785 = vmatpush1.bf16.msra.mxu0 0
  %1786 = vmatprep.subr.bf16.mxu0 0
  %1787 = vmatpush1.bf16.msra.mxu0 0
  %1788 = vmatprep.subr.bf16.mxu0 0
  %1789 = vmatpush1.bf16.msra.mxu0 0
  %1790 = vmatprep.subr.bf16.mxu0 0
  %1791 = vmatpush1.bf16.msra.mxu0 0
  %1792 = vmatprep.subr.bf16.mxu0 0
  %1793 = vmatpush1.bf16.msra.mxu0 0
  %1794 = vmatprep.subr.bf16.mxu0 0
  %1795 = vmatpush1.bf16.msra.mxu0 0
  %1796 = vmatprep.subr.bf16.mxu0 0
  %1797 = vmatpush1.bf16.msra.mxu0 0
  %1798 = vmatprep.mubr.bf16.mxu0 0
  %1799 = vmatmul.mubr.bf16.gmra.mrb[0].mxu0 %v1596
  %v1800 = vpop.f32.mrb[0].mxu0
  %v1801 = vadd.f32 0.0, %v1800
  %v1802 = vpop.f32.mrb[0].mxu0
  %v1803 = vpop.f32.mrb[0].mxu0
  %v1804 = vadd.f32 0.0, %v1803
  %v1805 = vpop.f32.mrb[0].mxu0
  %1806 = vmatprep.mubr.bf16.mxu0 0
  %1807 = vmatmul.mubr.bf16.gmra.mrb[0].mxu0 %v1598
  %v1808 = vpop.f32.mrb[0].mxu0
  %v1809 = vadd.f32 0.0, %v1808
  %v1810 = vpop.f32.mrb[0].mxu0
  %v1811 = vpop.f32.mrb[0].mxu0
  %v1812 = vadd.f32 0.0, %v1811
  %v1813 = vpop.f32.mrb[0].mxu0
  %1814 = vmatprep.mubr.bf16.mxu0 0
  %1815 = vmatmul.mubr.bf16.gmra.mrb[0].mxu0 %v1600
  %v1816 = vpop.f32.mrb[0].mxu0
  %v1817 = vadd.f32 0.0, %v1816
  %v1818 = vpop.f32.mrb[0].mxu0
  %v1819 = vpop.f32.mrb[0].mxu0
  %v1820 = vadd.f32 0.0, %v1819
  %v1821 = vpop.f32.mrb[0].mxu0
  %1822 = vmatprep.mubr.bf16.mxu0 0
  %1823 = vmatmul.mubr.bf16.gmra.mrb[0].mxu0 %v1602
  %v1824 = vpop.f32.mrb[0].mxu0
  %v1825 = vadd.f32 0.0, %v1824
  %v1826 = vpop.f32.mrb[0].mxu0
  %v1827 = vpop.f32.mrb[0].mxu0
  %v1828 = vadd.f32 0.0, %v1827
  %v1829 = vpop.f32.mrb[0].mxu0
  %1830 = vmatprep.mubr.bf16.mxu0 0
  %1831 = vmatmul.mubr.bf16.gmra.mrb[0].mxu0 %v1604
  %v1832 = vpop.f32.mrb[0].mxu0
  %v1833 = vadd.f32 0.0, %v1832
  %v1834 = vpop.f32.mrb[0].mxu0
  %v1835 = vpop.f32.mrb[0].mxu0
  %v1836 = vadd.f32 0.0, %v1835
  %v1837 = vpop.f32.mrb[0].mxu0
  %1838 = vmatprep.mubr.bf16.mxu0 0
  %1839 = vmatmul.mubr.bf16.gmra.mrb[0].mxu0 %v1606
  %v1840 = vpop.f32.mrb[0].mxu0
  %v1841 = vadd.f32 0.0, %v1840
  %v1842 = vpop.f32.mrb[0].mxu0
  %v1843 = vpop.f32.mrb[0].mxu0
  %v1844 = vadd.f32 0.0, %v1843
  %v1845 = vpop.f32.mrb[0].mxu0
  %1846 = vmatprep.mubr.bf16.mxu0 0
  %1847 = vmatmul.mubr.bf16.gmra.mrb[0].mxu0 %v1608
  %v1848 = vpop.f32.mrb[0].mxu0
  %v1849 = vadd.f32 0.0, %v1848
  %v1850 = vpop.f32.mrb[0].mxu0
  %v1851 = vpop.f32.mrb[0].mxu0
  %v1852 = vadd.f32 0.0, %v1851
  %v1853 = vpop.f32.mrb[0].mxu0
  %1854 = vmatprep.mubr.bf16.mxu0 0
  %1855 = vmatmul.mubr.bf16.gmra.mrb[0].mxu0 %v1610
  %v1856 = vpop.f32.mrb[0].mxu0
  %v1857 = vadd.f32 0.0, %v1856
  %v1858 = vpop.f32.mrb[0].mxu0
  %v1859 = vpop.f32.mrb[0].mxu0
  %v1860 = vadd.f32 0.0, %v1859
  %v1861 = vpop.f32.mrb[0].mxu0
  %1862 = vmatprep.mubr.bf16.mxu0 0
  %1863 = vmatmul.mubr.bf16.gmra.mrb[0].mxu0 %v1612
  %v1864 = vpop.f32.mrb[0].mxu0
  %v1865 = vadd.f32 0.0, %v1864
  %v1866 = vpop.f32.mrb[0].mxu0
  %v1867 = vpop.f32.mrb[0].mxu0
  %v1868 = vadd.f32 0.0, %v1867
  %v1869 = vpop.f32.mrb[0].mxu0
  %1870 = vmatprep.mubr.bf16.mxu0 0
  %1871 = vmatmul.mubr.bf16.gmra.mrb[0].mxu0 %v1614
  %v1872 = vpop.f32.mrb[0].mxu0
  %v1873 = vadd.f32 0.0, %v1872
  %v1874 = vpop.f32.mrb[0].mxu0
  %v1875 = vpop.f32.mrb[0].mxu0
  %v1876 = vadd.f32 0.0, %v1875
  %v1877 = vpop.f32.mrb[0].mxu0
  %1878 = vmatprep.mubr.bf16.mxu0 0
  %1879 = vmatmul.mubr.bf16.gmra.mrb[0].mxu0 %v1616
  %v1880 = vpop.f32.mrb[0].mxu0
  %v1881 = vadd.f32 0.0, %v1880
  %v1882 = vpop.f32.mrb[0].mxu0
  %v1883 = vpop.f32.mrb[0].mxu0
  %v1884 = vadd.f32 0.0, %v1883
  %v1885 = vpop.f32.mrb[0].mxu0
  %1886 = vmatprep.mubr.bf16.mxu0 0
  %1887 = vmatmul.mubr.bf16.gmra.mrb[0].mxu0 %v1618
  %v1888 = vpop.f32.mrb[0].mxu0
  %v1889 = vadd.f32 0.0, %v1888
  %v1890 = vpop.f32.mrb[0].mxu0
  %v1891 = vpop.f32.mrb[0].mxu0
  %v1892 = vadd.f32 0.0, %v1891
  %v1893 = vpop.f32.mrb[0].mxu0
  %1894 = vmatprep.mubr.bf16.mxu0 0
  %1895 = vmatmul.mubr.bf16.gmra.mrb[0].mxu0 %v1620
  %v1896 = vpop.f32.mrb[0].mxu0
  %v1897 = vadd.f32 0.0, %v1896
  %v1898 = vpop.f32.mrb[0].mxu0
  %v1899 = vpop.f32.mrb[0].mxu0
  %v1900 = vadd.f32 0.0, %v1899
  %v1901 = vpop.f32.mrb[0].mxu0
  %1902 = vmatprep.mubr.bf16.mxu0 0
  %1903 = vmatmul.mubr.bf16.gmra.mrb[0].mxu0 %v1622
  %v1904 = vpop.f32.mrb[0].mxu0
  %v1905 = vadd.f32 0.0, %v1904
  %v1906 = vpop.f32.mrb[0].mxu0
  %v1907 = vpop.f32.mrb[0].mxu0
  %v1908 = vadd.f32 0.0, %v1907
  %v1909 = vpop.f32.mrb[0].mxu0
  %1910 = vmatprep.mubr.bf16.mxu0 0
  %1911 = vmatmul.mubr.bf16.gmra.mrb[0].mxu0 %v1624
  %v1912 = vpop.f32.mrb[0].mxu0
  %v1913 = vadd.f32 0.0, %v1912
  %v1914 = vpop.f32.mrb[0].mxu0
  %v1915 = vpop.f32.mrb[0].mxu0
  %v1916 = vadd.f32 0.0, %v1915
  %v1917 = vpop.f32.mrb[0].mxu0
  %1918 = vmatprep.mubr.bf16.mxu0 0
  %1919 = vmatmul.mubr.bf16.gmra.mrb[0].mxu0 %v1626
  %v1920 = vpop.f32.mrb[0].mxu0
  %v1921 = vadd.f32 0.0, %v1920
  %v1922 = vpop.f32.mrb[0].mxu0
  %v1923 = vpop.f32.mrb[0].mxu0
  %v1924 = vadd.f32 0.0, %v1923
  %v1925 = vpop.f32.mrb[0].mxu0
  %1926 = vmatprep.mubr.bf16.mxu0 0
  %1927 = vmatmul.mubr.bf16.gmra.mrb[0].mxu0 %v1628
  %v1928 = vpop.f32.mrb[0].mxu0
  %v1929 = vadd.f32 0.0, %v1928
  %v1930 = vpop.f32.mrb[0].mxu0
  %v1931 = vpop.f32.mrb[0].mxu0
  %v1932 = vadd.f32 0.0, %v1931
  %v1933 = vpop.f32.mrb[0].mxu0
  %1934 = vmatprep.mubr.bf16.mxu0 0
  %1935 = vmatmul.mubr.bf16.gmra.mrb[0].mxu0 %v1630
  %v1936 = vpop.f32.mrb[0].mxu0
  %v1937 = vadd.f32 0.0, %v1936
  %v1938 = vpop.f32.mrb[0].mxu0
  %v1939 = vpop.f32.mrb[0].mxu0
  %v1940 = vadd.f32 0.0, %v1939
  %v1941 = vpop.f32.mrb[0].mxu0
  %1942 = vmatprep.mubr.bf16.mxu0 0
  %1943 = vmatmul.mubr.bf16.gmra.mrb[0].mxu0 %v1632
  %v1944 = vpop.f32.mrb[0].mxu0
  %v1945 = vadd.f32 0.0, %v1944
  %v1946 = vpop.f32.mrb[0].mxu0
  %v1947 = vpop.f32.mrb[0].mxu0
  %v1948 = vadd.f32 0.0, %v1947
  %v1949 = vpop.f32.mrb[0].mxu0
  %1950 = vmatprep.mubr.bf16.mxu0 0
  %1951 = vmatmul.mubr.bf16.gmra.mrb[0].mxu0 %v1634
  %v1952 = vpop.f32.mrb[0].mxu0
  %v1953 = vadd.f32 0.0, %v1952
  %v1954 = vpop.f32.mrb[0].mxu0
  %v1955 = vpop.f32.mrb[0].mxu0
  %v1956 = vadd.f32 0.0, %v1955
  %v1957 = vpop.f32.mrb[0].mxu0
  %1958 = vmatprep.mubr.bf16.mxu0 0
  %1959 = vmatmul.mubr.bf16.gmra.mrb[0].mxu0 %v1636
  %v1960 = vpop.f32.mrb[0].mxu0
  %v1961 = vadd.f32 0.0, %v1960
  %v1962 = vpop.f32.mrb[0].mxu0
  %v1963 = vpop.f32.mrb[0].mxu0
  %v1964 = vadd.f32 0.0, %v1963
  %v1965 = vpop.f32.mrb[0].mxu0
  %1966 = vmatprep.mubr.bf16.mxu0 0
  %1967 = vmatmul.mubr.bf16.gmra.mrb[0].mxu0 %v1638
  %v1968 = vpop.f32.mrb[0].mxu0
  %v1969 = vadd.f32 0.0, %v1968
  %v1970 = vpop.f32.mrb[0].mxu0
  %v1971 = vpop.f32.mrb[0].mxu0
  %v1972 = vadd.f32 0.0, %v1971
  %v1973 = vpop.f32.mrb[0].mxu0
  %1974 = vmatprep.mubr.bf16.mxu0 0
  %1975 = vmatmul.mubr.bf16.gmra.mrb[0].mxu0 %v1640
  %v1976 = vpop.f32.mrb[0].mxu0
  %v1977 = vadd.f32 0.0, %v1976
  %v1978 = vpop.f32.mrb[0].mxu0
  %v1979 = vpop.f32.mrb[0].mxu0
  %v1980 = vadd.f32 0.0, %v1979
  %v1981 = vpop.f32.mrb[0].mxu0
  %1982 = vmatprep.mubr.bf16.mxu0 0
  %1983 = vmatmul.mubr.bf16.gmra.mrb[0].mxu0 %v1642
  %v1984 = vpop.f32.mrb[0].mxu0
  %v1985 = vadd.f32 0.0, %v1984
  %v1986 = vpop.f32.mrb[0].mxu0
  %v1987 = vpop.f32.mrb[0].mxu0
  %v1988 = vadd.f32 0.0, %v1987
  %v1989 = vpop.f32.mrb[0].mxu0
  %1990 = vmatprep.mubr.bf16.mxu0 0
  %1991 = vmatmul.mubr.bf16.gmra.mrb[0].mxu0 %v1644
  %v1992 = vpop.f32.mrb[0].mxu0
  %v1993 = vadd.f32 0.0, %v1992
  %v1994 = vpop.f32.mrb[0].mxu0
  %v1995 = vpop.f32.mrb[0].mxu0
  %v1996 = vadd.f32 0.0, %v1995
  %v1997 = vpop.f32.mrb[0].mxu0
  %1998 = vmatprep.mubr.bf16.mxu0 0
  %1999 = vmatmul.mubr.bf16.gmra.mrb[0].mxu0 %v1646
  %v2000 = vpop.f32.mrb[0].mxu0
  %v2001 = vadd.f32 0.0, %v2000
  %v2002 = vpop.f32.mrb[0].mxu0
  %v2003 = vpop.f32.mrb[0].mxu0
  %v2004 = vadd.f32 0.0, %v2003
  %v2005 = vpop.f32.mrb[0].mxu0
  %2006 = vmatprep.mubr.bf16.mxu0 0
  %2007 = vmatmul.mubr.bf16.gmra.mrb[0].mxu0 %v1648
  %v2008 = vpop.f32.mrb[0].mxu0
  %v2009 = vadd.f32 0.0, %v2008
  %v2010 = vpop.f32.mrb[0].mxu0
  %v2011 = vpop.f32.mrb[0].mxu0
  %v2012 = vadd.f32 0.0, %v2011
  %v2013 = vpop.f32.mrb[0].mxu0
  %2014 = vmatprep.mubr.bf16.mxu0 0
  %2015 = vmatmul.mubr.bf16.gmra.mrb[0].mxu0 %v1650
  %v2016 = vpop.f32.mrb[0].mxu0
  %v2017 = vadd.f32 0.0, %v2016
  %v2018 = vpop.f32.mrb[0].mxu0
  %v2019 = vpop.f32.mrb[0].mxu0
  %v2020 = vadd.f32 0.0, %v2019
  %v2021 = vpop.f32.mrb[0].mxu0
  %2022 = vmatprep.mubr.bf16.mxu0 0
  %2023 = vmatmul.mubr.bf16.gmra.mrb[0].mxu0 %v1652
  %v2024 = vpop.f32.mrb[0].mxu0
  %v2025 = vadd.f32 0.0, %v2024
  %v2026 = vpop.f32.mrb[0].mxu0
  %v2027 = vpop.f32.mrb[0].mxu0
  %v2028 = vadd.f32 0.0, %v2027
  %v2029 = vpop.f32.mrb[0].mxu0
  %2030 = vmatprep.mubr.bf16.mxu0 0
  %2031 = vmatmul.mubr.bf16.gmra.mrb[0].mxu0 %v1654
  %v2032 = vpop.f32.mrb[0].mxu0
  %v2033 = vadd.f32 0.0, %v2032
  %v2034 = vpop.f32.mrb[0].mxu0
  %v2035 = vpop.f32.mrb[0].mxu0
  %v2036 = vadd.f32 0.0, %v2035
  %v2037 = vpop.f32.mrb[0].mxu0
  %2038 = vmatprep.mubr.bf16.mxu0 0
  %2039 = vmatmul.mubr.bf16.gmra.mrb[0].mxu0 %v1656
  %v2040 = vpop.f32.mrb[0].mxu0
  %v2041 = vadd.f32 0.0, %v2040
  %v2042 = vpop.f32.mrb[0].mxu0
  %v2043 = vpop.f32.mrb[0].mxu0
  %v2044 = vadd.f32 0.0, %v2043
  %v2045 = vpop.f32.mrb[0].mxu0
  %2046 = vmatprep.mubr.bf16.mxu0 0
  %2047 = vmatmul.mubr.bf16.gmra.mrb[0].mxu0 %v1658
  %v2048 = vpop.f32.mrb[0].mxu0
  %v2049 = vadd.f32 0.0, %v2048
  %v2050 = vpop.f32.mrb[0].mxu0
  %v2051 = vpop.f32.mrb[0].mxu0
  %v2052 = vadd.f32 0.0, %v2051
  %v2053 = vpop.f32.mrb[0].mxu0
  %2054 = vmatprep.mubr.bf16.mxu0 0
  %2055 = vmatmul.mubr.bf16.gmra.mrb[0].mxu0 %v1660
  %v2056 = vpop.f32.mrb[0].mxu0
  %v2057 = vadd.f32 0.0, %v2056
  %v2058 = vpop.f32.mrb[0].mxu0
  %v2059 = vpop.f32.mrb[0].mxu0
  %v2060 = vadd.f32 0.0, %v2059
  %v2061 = vpop.f32.mrb[0].mxu0
  %2062 = vmatprep.mubr.bf16.mxu0 0
  %2063 = vmatmul.mubr.bf16.gmra.mrb[0].mxu0 %v1662
  %v2064 = vpop.f32.mrb[0].mxu0
  %v2065 = vadd.f32 0.0, %v2064
  %v2066 = vpop.f32.mrb[0].mxu0
  %v2067 = vpop.f32.mrb[0].mxu0
  %v2068 = vadd.f32 0.0, %v2067
  %v2069 = vpop.f32.mrb[0].mxu0
  %2070 = vmatprep.mubr.bf16.mxu0 0
  %2071 = vmatmul.mubr.bf16.gmra.mrb[0].mxu0 %v1664
  %v2072 = vpop.f32.mrb[0].mxu0
  %v2073 = vadd.f32 0.0, %v2072
  %v2074 = vpop.f32.mrb[0].mxu0
  %v2075 = vpop.f32.mrb[0].mxu0
  %v2076 = vadd.f32 0.0, %v2075
  %v2077 = vpop.f32.mrb[0].mxu0
  %2078 = vmatprep.mubr.bf16.mxu0 0
  %2079 = vmatmul.mubr.bf16.gmra.mrb[0].mxu0 %v1666
  %v2080 = vpop.f32.mrb[0].mxu0
  %v2081 = vadd.f32 0.0, %v2080
  %v2082 = vpop.f32.mrb[0].mxu0
  %v2083 = vpop.f32.mrb[0].mxu0
  %v2084 = vadd.f32 0.0, %v2083
  %v2085 = vpop.f32.mrb[0].mxu0
  %2086 = vmatprep.mubr.bf16.mxu0 0
  %2087 = vmatmul.mubr.bf16.gmra.mrb[0].mxu0 %v1668
  %v2088 = vpop.f32.mrb[0].mxu0
  %v2089 = vadd.f32 0.0, %v2088
  %v2090 = vpop.f32.mrb[0].mxu0
  %v2091 = vpop.f32.mrb[0].mxu0
  %v2092 = vadd.f32 0.0, %v2091
  %v2093 = vpop.f32.mrb[0].mxu0
  %2094 = vmatprep.mubr.bf16.mxu0 0
  %2095 = vmatmul.mubr.bf16.gmra.mrb[0].mxu0 %v1670
  %v2096 = vpop.f32.mrb[0].mxu0
  %v2097 = vadd.f32 0.0, %v2096
  %v2098 = vpop.f32.mrb[0].mxu0
  %v2099 = vpop.f32.mrb[0].mxu0
  %v2100 = vadd.f32 0.0, %v2099
  %v2101 = vpop.f32.mrb[0].mxu0
  %2102 = vmatprep.mubr.bf16.mxu0 0
  %2103 = vmatmul.mubr.bf16.gmra.mrb[0].mxu0 %v1672
  %v2104 = vpop.f32.mrb[0].mxu0
  %v2105 = vadd.f32 0.0, %v2104
  %v2106 = vpop.f32.mrb[0].mxu0
  %v2107 = vpop.f32.mrb[0].mxu0
  %v2108 = vadd.f32 0.0, %v2107
  %v2109 = vpop.f32.mrb[0].mxu0
  %2110 = vmatprep.mubr.bf16.mxu0 0
  %2111 = vmatmul.mubr.bf16.gmra.mrb[0].mxu0 %v1674
  %v2112 = vpop.f32.mrb[0].mxu0
  %v2113 = vadd.f32 0.0, %v2112
  %v2114 = vpop.f32.mrb[0].mxu0
  %v2115 = vpop.f32.mrb[0].mxu0
  %v2116 = vadd.f32 0.0, %v2115
  %v2117 = vpop.f32.mrb[0].mxu0
  %2118 = vmatprep.mubr.bf16.mxu0 0
  %2119 = vmatmul.mubr.bf16.gmra.mrb[0].mxu0 %v1676
  %v2120 = vpop.f32.mrb[0].mxu0
  %v2121 = vadd.f32 0.0, %v2120
  %v2122 = vpop.f32.mrb[0].mxu0
  %v2123 = vpop.f32.mrb[0].mxu0
  %v2124 = vadd.f32 0.0, %v2123
  %v2125 = vpop.f32.mrb[0].mxu0
  %2126 = vdwg.mxu0
  %v2127 = vadd.f32 %v1246, %v1801
  %v2128 = vadd.f32 %v1249, %v1804
  %v2129 = vadd.f32 %v1254, %v1809
  %v2130 = vadd.f32 %v1257, %v1812
  %v2131 = vadd.f32 %v1262, %v1817
  %v2132 = vadd.f32 %v1265, %v1820
  %v2133 = vadd.f32 %v1270, %v1825
  %v2134 = vadd.f32 %v1273, %v1828
  %v2135 = vadd.f32 %v1278, %v1833
  %v2136 = vadd.f32 %v1281, %v1836
  %v2137 = vadd.f32 %v1286, %v1841
  %v2138 = vadd.f32 %v1289, %v1844
  %v2139 = vadd.f32 %v1294, %v1849
  %v2140 = vadd.f32 %v1297, %v1852
  %v2141 = vadd.f32 %v1302, %v1857
  %v2142 = vadd.f32 %v1305, %v1860
  %v2143 = vadd.f32 %v1310, %v1865
  %v2144 = vadd.f32 %v1313, %v1868
  %v2145 = vadd.f32 %v1318, %v1873
  %v2146 = vadd.f32 %v1321, %v1876
  %v2147 = vadd.f32 %v1326, %v1881
  %v2148 = vadd.f32 %v1329, %v1884
  %v2149 = vadd.f32 %v1334, %v1889
  %v2150 = vadd.f32 %v1337, %v1892
  %v2151 = vadd.f32 %v1342, %v1897
  %v2152 = vadd.f32 %v1345, %v1900
  %v2153 = vadd.f32 %v1350, %v1905
  %v2154 = vadd.f32 %v1353, %v1908
  %v2155 = vadd.f32 %v1358, %v1913
  %v2156 = vadd.f32 %v1361, %v1916
  %v2157 = vadd.f32 %v1366, %v1921
  %v2158 = vadd.f32 %v1369, %v1924
  %v2159 = vadd.f32 %v1374, %v1929
  %v2160 = vadd.f32 %v1377, %v1932
  %v2161 = vadd.f32 %v1382, %v1937
  %v2162 = vadd.f32 %v1385, %v1940
  %v2163 = vadd.f32 %v1390, %v1945
  %v2164 = vadd.f32 %v1393, %v1948
  %v2165 = vadd.f32 %v1398, %v1953
  %v2166 = vadd.f32 %v1401, %v1956
  %v2167 = vadd.f32 %v1406, %v1961
  %v2168 = vadd.f32 %v1409, %v1964
  %v2169 = vadd.f32 %v1414, %v1969
  %v2170 = vadd.f32 %v1417, %v1972
  %v2171 = vadd.f32 %v1422, %v1977
  %v2172 = vadd.f32 %v1425, %v1980
  %v2173 = vadd.f32 %v1430, %v1985
  %v2174 = vadd.f32 %v1433, %v1988
  %v2175 = vadd.f32 %v1438, %v1993
  %v2176 = vadd.f32 %v1441, %v1996
  %v2177 = vadd.f32 %v1446, %v2001
  %v2178 = vadd.f32 %v1449, %v2004
  %v2179 = vadd.f32 %v1454, %v2009
  %v2180 = vadd.f32 %v1457, %v2012
  %v2181 = vadd.f32 %v1462, %v2017
  %v2182 = vadd.f32 %v1465, %v2020
  %v2183 = vadd.f32 %v1470, %v2025
  %v2184 = vadd.f32 %v1473, %v2028
  %v2185 = vadd.f32 %v1478, %v2033
  %v2186 = vadd.f32 %v1481, %v2036
  %v2187 = vadd.f32 %v1486, %v2041
  %v2188 = vadd.f32 %v1489, %v2044
  %v2189 = vadd.f32 %v1494, %v2049
  %v2190 = vadd.f32 %v1497, %v2052
  %v2191 = vadd.f32 %v1502, %v2057
  %v2192 = vadd.f32 %v1505, %v2060
  %v2193 = vadd.f32 %v1510, %v2065
  %v2194 = vadd.f32 %v1513, %v2068
  %v2195 = vadd.f32 %v1518, %v2073
  %v2196 = vadd.f32 %v1521, %v2076
  %v2197 = vadd.f32 %v1526, %v2081
  %v2198 = vadd.f32 %v1529, %v2084
  %v2199 = vadd.f32 %v1534, %v2089
  %v2200 = vadd.f32 %v1537, %v2092
  %v2201 = vadd.f32 %v1542, %v2097
  %v2202 = vadd.f32 %v1545, %v2100
  %v2203 = vadd.f32 %v1550, %v2105
  %v2204 = vadd.f32 %v1553, %v2108
  %v2205 = vadd.f32 %v1558, %v2113
  %v2206 = vadd.f32 %v1561, %v2116
  %v2207 = vadd.f32 %v1566, %v2121
  %v2208 = vadd.f32 %v1569, %v2124
  %v2209 = vld [vmem:[%s0 + $0x8] sm:$0xe]
  %v2210 = vld [vmem:[%s0 + $0xc] sm:$0xf]
  %v2211 = vld [vmem:[%s0 + $0x10] sm:$0xf]
  %v2212 = vld [vmem:[%s0 + $0x14] sm:$0xf]
  %v2213 = vld [vmem:[%s0 + $0x18] sm:$0xf]
  %v2214 = vld [vmem:[%s0 + $0x1c] sm:$0xf]
  %v2215 = vld [vmem:[%s0 + $0x20] sm:$0xf]
  %v2216 = vld [vmem:[%s0 + $0x24] sm:$0xf]
  %v2217 = vld [vmem:[%s0 + $0x28] sm:$0xf]
  %v2218 = vld [vmem:[%s0 + $0x2c] sm:$0xf]
  %v2219 = vld [vmem:[%s0 + $0x30] sm:$0xf]
  %v2220 = vld [vmem:[%s0 + $0x34] sm:$0xf]
  %v2221 = vld [vmem:[%s0 + $0x38] sm:$0xf]
  %v2222 = vld [vmem:[%s0 + $0x3c] sm:$0xf]
  %v2223 = vld [vmem:[%s0 + $0x40] sm:$0xf]
  %v2224 = vld [vmem:[%s0 + $0x44] sm:$0xf]
  %v2225 = vld [vmem:[%s0 + $0x48] sm:$0xf]
  %v2226 = vld [vmem:[%s0 + $0x4c] sm:$0xf]
  %v2227 = vld [vmem:[%s0 + $0x50] sm:$0xf]
  %v2228 = vld [vmem:[%s0 + $0x54] sm:$0xf]
  %v2229 = vld [vmem:[%s0 + $0x58] sm:$0xf]
  %v2230 = vld [vmem:[%s0 + $0x5c] sm:$0xf]
  %v2231 = vld [vmem:[%s0 + $0x60] sm:$0xf]
  %v2232 = vld [vmem:[%s0 + $0x64] sm:$0xf]
  %v2233 = vld [vmem:[%s0 + $0x68] sm:$0xf]
  %v2234 = vld [vmem:[%s0 + $0x6c] sm:$0xf]
  %v2235 = vld [vmem:[%s0 + $0x70] sm:$0xf]
  %v2236 = vld [vmem:[%s0 + $0x74] sm:$0xf]
  %v2237 = vld [vmem:[%s0 + $0x78] sm:$0xf]
  %v2238 = vld [vmem:[%s0 + $0x7c] sm:$0xf]
  %v2239 = vld [vmem:[%s0 + $0x80] sm:$0xf]
  %v2240 = vld [vmem:[%s0 + $0x84] sm:$0xf]
  %v2241 = vld [vmem:[%s0 + $0x88] sm:$0xf]
  %v2242 = vld [vmem:[%s0 + $0x8c] sm:$0xf]
  %v2243 = vld [vmem:[%s0 + $0x90] sm:$0xf]
  %v2244 = vld [vmem:[%s0 + $0x94] sm:$0xf]
  %v2245 = vld [vmem:[%s0 + $0x98] sm:$0xf]
  %v2246 = vld [vmem:[%s0 + $0x9c] sm:$0xf]
  %v2247 = vld [vmem:[%s0 + $0xa0] sm:$0xf]
  %v2248 = vld [vmem:[%s0 + $0xa4] sm:$0xf]
  %v2249 = vld [vmem:[%s0 + $0xa8] sm:$0xf]
  %v2250 = vld [vmem:[%s0 + $0xac] sm:$0xf]
  %v2251 = vld [vmem:[%s0 + $0xb0] sm:$0xf]
  %v2252 = vld [vmem:[%s0 + $0xb4] sm:$0xf]
  %v2253 = vld [vmem:[%s0 + $0xb8] sm:$0xf]
  %v2254 = vld [vmem:[%s0 + $0xbc] sm:$0xf]
  %v2255 = vld [vmem:[%s0 + $0xc0] sm:$0xf]
  %v2256 = vld [vmem:[%s0 + $0xc4] sm:$0xf]
  %v2257 = vld [vmem:[%s0 + $0xc8] sm:$0xf]
  %v2258 = vld [vmem:[%s0 + $0xcc] sm:$0xf]
  %v2259 = vld [vmem:[%s0 + $0xd0] sm:$0xf]
  %v2260 = vld [vmem:[%s0 + $0xd4] sm:$0xf]
  %v2261 = vld [vmem:[%s0 + $0xd8] sm:$0xf]
  %v2262 = vld [vmem:[%s0 + $0xdc] sm:$0xf]
  %v2263 = vld [vmem:[%s0 + $0xe0] sm:$0xf]
  %v2264 = vld [vmem:[%s0 + $0xe4] sm:$0xf]
  %v2265 = vld [vmem:[%s0 + $0xe8] sm:$0xf]
  %v2266 = vld [vmem:[%s0 + $0xec] sm:$0xf]
  %v2267 = vld [vmem:[%s0 + $0xf0] sm:$0xf]
  %v2268 = vld [vmem:[%s0 + $0xf4] sm:$0xf]
  %v2269 = vld [vmem:[%s0 + $0xf8] sm:$0xf]
  %v2270 = vld [vmem:[%s0 + $0xfc] sm:$0xf]
  %v2271 = vld [vmem:[%s0 + $0x100] sm:$0xf]
  %v2272 = vld [vmem:[%s0 + $0x104] sm:$0xf]
  %v2273 = vld [vmem:[%s0 + $0x108] sm:$0xf]
  %v2274 = vld [vmem:[%s0 + $0x10c] sm:$0xf]
  %v2275 = vld [vmem:[%s0 + $0x110] sm:$0xf]
  %v2276 = vld [vmem:[%s0 + $0x114] sm:$0xf]
  %v2277 = vld [vmem:[%s0 + $0x118] sm:$0xf]
  %v2278 = vld [vmem:[%s0 + $0x11c] sm:$0xf]
  %v2279 = vld [vmem:[%s0 + $0x120] sm:$0xf]
  %v2280 = vld [vmem:[%s0 + $0x124] sm:$0xf]
  %v2281 = vld [vmem:[%s0 + $0x128] sm:$0xf]
  %v2282 = vld [vmem:[%s0 + $0x12c] sm:$0xf]
  %v2283 = vld [vmem:[%s0 + $0x130] sm:$0xf]
  %v2284 = vld [vmem:[%s0 + $0x134] sm:$0xf]
  %v2285 = vld [vmem:[%s0 + $0x138] sm:$0xf]
  %v2286 = vld [vmem:[%s0 + $0x13c] sm:$0xf]
  %v2287 = vld [vmem:[%s0 + $0x140] sm:$0xf]
  %v2288 = vld [vmem:[%s0 + $0x144] sm:$0xf]
  %v2289 = vld [vmem:[%s0 + $0x148] sm:$0xf]
  %v2290 = vld [vmem:[%s0 + $0x14c] sm:$0xf]
  %v2291 = vld [vmem:[%s0 + $0x150] sm:$0x1]
  %s2292 = scalar_lea.vmem %s1, 192
  %v2293 = vld [vmem:[%s2292] sm:$0xf]
  %v2294 = vld [vmem:[%s2292 + $0x4] sm:$0xf]
  %v2295 = vld [vmem:[%s2292 + $0x8] sm:$0xf]
  %v2296 = vld [vmem:[%s2292 + $0xc] sm:$0xf]
  %v2297 = vld [vmem:[%s2292 + $0x10] sm:$0xf]
  %v2298 = vld [vmem:[%s2292 + $0x14] sm:$0xf]
  %v2299 = vld [vmem:[%s2292 + $0x18] sm:$0xf]
  %v2300 = vld [vmem:[%s2292 + $0x1c] sm:$0xf]
  %v2301 = vld [vmem:[%s2292 + $0x20] sm:$0xf]
  %v2302 = vld [vmem:[%s2292 + $0x24] sm:$0xf]
  %v2303 = vld [vmem:[%s2292 + $0x28] sm:$0xf]
  %v2304 = vld [vmem:[%s2292 + $0x2c] sm:$0xf]
  %v2305 = vld [vmem:[%s2292 + $0x30] sm:$0xf]
  %v2306 = vld [vmem:[%s2292 + $0x34] sm:$0xf]
  %v2307 = vld [vmem:[%s2292 + $0x38] sm:$0xf]
  %v2308 = vld [vmem:[%s2292 + $0x3c] sm:$0xf]
  %v2392 = vunpack.c.l.b16 %v2209
  %v2393 = vunpack.c.l.b16 %v2210
  %v2394 = vunpack.c.l.b16 %v2211
  %v2395 = vunpack.c.l.b16 %v2212
  %v2396 = vunpack.c.l.b16 %v2213
  %v2397 = vunpack.c.l.b16 %v2214
  %v2398 = vunpack.c.l.b16 %v2215
  %v2399 = vunpack.c.l.b16 %v2216
  %v2400 = vunpack.c.l.b16 %v2217
  %v2401 = vunpack.c.l.b16 %v2218
  %v2402 = vunpack.c.l.b16 %v2219
  %v2403 = vunpack.c.l.b16 %v2220
  %v2404 = vunpack.c.l.b16 %v2221
  %v2405 = vunpack.c.l.b16 %v2222
  %v2406 = vunpack.c.l.b16 %v2223
  %v2407 = vunpack.c.l.b16 %v2224
  %v2408 = vunpack.c.l.b16 %v2225
  %v2409 = vunpack.c.l.b16 %v2226
  %v2410 = vunpack.c.l.b16 %v2227
  %v2411 = vunpack.c.l.b16 %v2228
  %v2412 = vunpack.c.l.b16 %v2229
  %v2413 = vunpack.c.l.b16 %v2230
  %v2414 = vunpack.c.l.b16 %v2231
  %v2415 = vunpack.c.l.b16 %v2232
  %v2416 = vunpack.c.l.b16 %v2233
  %v2417 = vunpack.c.l.b16 %v2234
  %v2418 = vunpack.c.l.b16 %v2235
  %v2419 = vunpack.c.l.b16 %v2236
  %v2420 = vunpack.c.l.b16 %v2237
  %v2421 = vunpack.c.l.b16 %v2238
  %v2422 = vunpack.c.l.b16 %v2239
  %v2423 = vunpack.c.l.b16 %v2240
  %v2424 = vunpack.c.l.b16 %v2241
  %v2425 = vunpack.c.l.b16 %v2242
  %v2426 = vunpack.c.l.b16 %v2243
  %v2427 = vunpack.c.l.b16 %v2244
  %v2428 = vunpack.c.l.b16 %v2245
  %v2429 = vunpack.c.l.b16 %v2246
  %v2430 = vunpack.c.l.b16 %v2247
  %v2431 = vunpack.c.l.b16 %v2248
  %v2432 = vunpack.c.l.b16 %v2249
  %v2433 = vunpack.c.l.b16 %v2250
  %v2434 = vunpack.c.l.b16 %v2251
  %v2435 = vunpack.c.l.b16 %v2252
  %v2436 = vunpack.c.l.b16 %v2253
  %v2437 = vunpack.c.l.b16 %v2254
  %v2438 = vunpack.c.l.b16 %v2255
  %v2439 = vunpack.c.l.b16 %v2256
  %v2440 = vunpack.c.l.b16 %v2257
  %v2441 = vunpack.c.l.b16 %v2258
  %v2442 = vunpack.c.l.b16 %v2259
  %v2443 = vunpack.c.l.b16 %v2260
  %v2444 = vunpack.c.l.b16 %v2261
  %v2445 = vunpack.c.l.b16 %v2262
  %v2446 = vunpack.c.l.b16 %v2263
  %v2447 = vunpack.c.l.b16 %v2264
  %v2448 = vunpack.c.l.b16 %v2265
  %v2449 = vunpack.c.l.b16 %v2266
  %v2450 = vunpack.c.l.b16 %v2267
  %v2451 = vunpack.c.l.b16 %v2268
  %v2452 = vunpack.c.l.b16 %v2269
  %v2453 = vunpack.c.l.b16 %v2270
  %v2454 = vunpack.c.l.b16 %v2271
  %v2455 = vunpack.c.l.b16 %v2272
  %v2456 = vunpack.c.l.b16 %v2273
  %v2457 = vunpack.c.l.b16 %v2274
  %v2458 = vunpack.c.l.b16 %v2275
  %v2459 = vunpack.c.l.b16 %v2276
  %v2460 = vunpack.c.l.b16 %v2277
  %v2461 = vunpack.c.l.b16 %v2278
  %v2462 = vunpack.c.l.b16 %v2279
  %v2463 = vunpack.c.l.b16 %v2280
  %v2464 = vunpack.c.l.b16 %v2281
  %v2465 = vunpack.c.l.b16 %v2282
  %v2466 = vunpack.c.l.b16 %v2283
  %v2467 = vunpack.c.l.b16 %v2284
  %v2468 = vunpack.c.l.b16 %v2285
  %v2469 = vunpack.c.l.b16 %v2286
  %v2470 = vunpack.c.l.b16 %v2287
  %v2471 = vunpack.c.l.b16 %v2288
  %v2472 = vunpack.c.l.b16 %v2289
  %v2473 = vunpack.c.l.b16 %v2290
  %v2474 = vunpack.c.l.b16 %v2291
  %v2475 = vpack.c.b16 %v2393, %v2392
  %v2476 = vpack.c.b16 %v2395, %v2394
  %v2477 = vpack.c.b16 %v2397, %v2396
  %v2478 = vpack.c.b16 %v2399, %v2398
  %v2479 = vpack.c.b16 %v2401, %v2400
  %v2480 = vpack.c.b16 %v2403, %v2402
  %v2481 = vpack.c.b16 %v2405, %v2404
  %v2482 = vpack.c.b16 %v2407, %v2406
  %v2483 = vpack.c.b16 %v2409, %v2408
  %v2484 = vpack.c.b16 %v2411, %v2410
  %v2485 = vpack.c.b16 %v2413, %v2412
  %v2486 = vpack.c.b16 %v2415, %v2414
  %v2487 = vpack.c.b16 %v2417, %v2416
  %v2488 = vpack.c.b16 %v2419, %v2418
  %v2489 = vpack.c.b16 %v2421, %v2420
  %v2490 = vpack.c.b16 %v2423, %v2422
  %v2491 = vpack.c.b16 %v2425, %v2424
  %v2492 = vpack.c.b16 %v2427, %v2426
  %v2493 = vpack.c.b16 %v2429, %v2428
  %v2494 = vpack.c.b16 %v2431, %v2430
  %v2495 = vpack.c.b16 %v2433, %v2432
  %v2496 = vpack.c.b16 %v2435, %v2434
  %v2497 = vpack.c.b16 %v2437, %v2436
  %v2498 = vpack.c.b16 %v2439, %v2438
  %v2499 = vpack.c.b16 %v2441, %v2440
  %v2500 = vpack.c.b16 %v2443, %v2442
  %v2501 = vpack.c.b16 %v2445, %v2444
  %v2502 = vpack.c.b16 %v2447, %v2446
  %v2503 = vpack.c.b16 %v2449, %v2448
  %v2504 = vpack.c.b16 %v2451, %v2450
  %v2505 = vpack.c.b16 %v2453, %v2452
  %v2506 = vpack.c.b16 %v2455, %v2454
  %v2507 = vpack.c.b16 %v2457, %v2456
  %v2508 = vpack.c.b16 %v2459, %v2458
  %v2509 = vpack.c.b16 %v2461, %v2460
  %v2510 = vpack.c.b16 %v2463, %v2462
  %v2511 = vpack.c.b16 %v2465, %v2464
  %v2512 = vpack.c.b16 %v2467, %v2466
  %v2513 = vpack.c.b16 %v2469, %v2468
  %v2514 = vpack.c.b16 %v2471, %v2470
  %v2515 = vpack.c.b16 %v2473, %v2472
  %v2516 = vpack.c.b16 %v2474, %v2474
  %v2517 = vrot.slane %v2475, 1
  %v2518 = vrot.slane %v2476, 1
  %v2519 = vsel %vm1593, %v2517, %v2518
  %v2520 = vrot.slane %v2477, 1
  %v2521 = vsel %vm1593, %v2518, %v2520
  %v2522 = vrot.slane %v2478, 1
  %v2523 = vsel %vm1593, %v2520, %v2522
  %v2524 = vrot.slane %v2479, 1
  %v2525 = vsel %vm1593, %v2522, %v2524
  %v2526 = vrot.slane %v2480, 1
  %v2527 = vsel %vm1593, %v2524, %v2526
  %v2528 = vrot.slane %v2481, 1
  %v2529 = vsel %vm1593, %v2526, %v2528
  %v2530 = vrot.slane %v2482, 1
  %v2531 = vsel %vm1593, %v2528, %v2530
  %v2532 = vrot.slane %v2483, 1
  %v2533 = vsel %vm1593, %v2530, %v2532
  %v2534 = vrot.slane %v2484, 1
  %v2535 = vsel %vm1593, %v2532, %v2534
  %v2536 = vrot.slane %v2485, 1
  %v2537 = vsel %vm1593, %v2534, %v2536
  %v2538 = vrot.slane %v2486, 1
  %v2539 = vsel %vm1593, %v2536, %v2538
  %v2540 = vrot.slane %v2487, 1
  %v2541 = vsel %vm1593, %v2538, %v2540
  %v2542 = vrot.slane %v2488, 1
  %v2543 = vsel %vm1593, %v2540, %v2542
  %v2544 = vrot.slane %v2489, 1
  %v2545 = vsel %vm1593, %v2542, %v2544
  %v2546 = vrot.slane %v2490, 1
  %v2547 = vsel %vm1593, %v2544, %v2546
  %v2548 = vrot.slane %v2491, 1
  %v2549 = vsel %vm1593, %v2546, %v2548
  %v2550 = vrot.slane %v2492, 1
  %v2551 = vsel %vm1593, %v2548, %v2550
  %v2552 = vrot.slane %v2493, 1
  %v2553 = vsel %vm1593, %v2550, %v2552
  %v2554 = vrot.slane %v2494, 1
  %v2555 = vsel %vm1593, %v2552, %v2554
  %v2556 = vrot.slane %v2495, 1
  %v2557 = vsel %vm1593, %v2554, %v2556
  %v2558 = vrot.slane %v2496, 1
  %v2559 = vsel %vm1593, %v2556, %v2558
  %v2560 = vrot.slane %v2497, 1
  %v2561 = vsel %vm1593, %v2558, %v2560
  %v2562 = vrot.slane %v2498, 1
  %v2563 = vsel %vm1593, %v2560, %v2562
  %v2564 = vrot.slane %v2499, 1
  %v2565 = vsel %vm1593, %v2562, %v2564
  %v2566 = vrot.slane %v2500, 1
  %v2567 = vsel %vm1593, %v2564, %v2566
  %v2568 = vrot.slane %v2501, 1
  %v2569 = vsel %vm1593, %v2566, %v2568
  %v2570 = vrot.slane %v2502, 1
  %v2571 = vsel %vm1593, %v2568, %v2570
  %v2572 = vrot.slane %v2503, 1
  %v2573 = vsel %vm1593, %v2570, %v2572
  %v2574 = vrot.slane %v2504, 1
  %v2575 = vsel %vm1593, %v2572, %v2574
  %v2576 = vrot.slane %v2505, 1
  %v2577 = vsel %vm1593, %v2574, %v2576
  %v2578 = vrot.slane %v2506, 1
  %v2579 = vsel %vm1593, %v2576, %v2578
  %v2580 = vrot.slane %v2507, 1
  %v2581 = vsel %vm1593, %v2578, %v2580
  %v2582 = vrot.slane %v2508, 1
  %v2583 = vsel %vm1593, %v2580, %v2582
  %v2584 = vrot.slane %v2509, 1
  %v2585 = vsel %vm1593, %v2582, %v2584
  %v2586 = vrot.slane %v2510, 1
  %v2587 = vsel %vm1593, %v2584, %v2586
  %v2588 = vrot.slane %v2511, 1
  %v2589 = vsel %vm1593, %v2586, %v2588
  %v2590 = vrot.slane %v2512, 1
  %v2591 = vsel %vm1593, %v2588, %v2590
  %v2592 = vrot.slane %v2513, 1
  %v2593 = vsel %vm1593, %v2590, %v2592
  %v2594 = vrot.slane %v2514, 1
  %v2595 = vsel %vm1593, %v2592, %v2594
  %v2596 = vrot.slane %v2515, 1
  %v2597 = vsel %vm1593, %v2594, %v2596
  %v2598 = vrot.slane %v2516, 1
  %v2599 = vsel %vm1593, %v2596, %v2598
  %v2657 = vunpack.c.l.b16 %v2293
  %v2658 = vunpack.c.l.b16 %v2294
  %v2659 = vunpack.c.l.b16 %v2295
  %v2660 = vunpack.c.l.b16 %v2296
  %v2661 = vunpack.c.l.b16 %v2297
  %v2662 = vunpack.c.l.b16 %v2298
  %v2663 = vunpack.c.l.b16 %v2299
  %v2664 = vunpack.c.l.b16 %v2300
  %v2665 = vunpack.c.l.b16 %v2301
  %v2666 = vunpack.c.l.b16 %v2302
  %v2667 = vunpack.c.l.b16 %v2303
  %v2668 = vunpack.c.l.b16 %v2304
  %v2669 = vunpack.c.l.b16 %v2305
  %v2670 = vunpack.c.l.b16 %v2306
  %v2671 = vunpack.c.l.b16 %v2307
  %v2672 = vunpack.c.l.b16 %v2308
  %v2673 = vpack.c.b16 %v2658, %v2657
  %v2674 = vpack.c.b16 %v2660, %v2659
  %v2675 = vpack.c.b16 %v2662, %v2661
  %v2676 = vpack.c.b16 %v2664, %v2663
  %v2677 = vpack.c.b16 %v2666, %v2665
  %v2678 = vpack.c.b16 %v2668, %v2667
  %v2679 = vpack.c.b16 %v2670, %v2669
  %v2680 = vpack.c.b16 %v2672, %v2671
  %2689 = vmatprep.subr.bf16.mxu0 0
  %2690 = vmatpush1.bf16.msra.mxu0 %v2673
  %2691 = vmatprep.subr.bf16.mxu0 0
  %2692 = vmatpush1.bf16.msra.mxu0 %v2674
  %2693 = vmatprep.subr.bf16.mxu0 0
  %2694 = vmatpush1.bf16.msra.mxu0 %v2675
  %2695 = vmatprep.subr.bf16.mxu0 0
  %2696 = vmatpush1.bf16.msra.mxu0 %v2676
  %2697 = vmatprep.subr.bf16.mxu0 0
  %2698 = vmatpush1.bf16.msra.mxu0 %v2677
  %2699 = vmatprep.subr.bf16.mxu0 0
  %2700 = vmatpush1.bf16.msra.mxu0 %v2678
  %2701 = vmatprep.subr.bf16.mxu0 0
  %2702 = vmatpush1.bf16.msra.mxu0 %v2679
  %2703 = vmatprep.subr.bf16.mxu0 0
  %2704 = vmatpush1.bf16.msra.mxu0 %v2680
  %2705 = vmatprep.subr.bf16.mxu0 0
  %2706 = vmatpush1.bf16.msra.mxu0 0
  %2707 = vmatprep.subr.bf16.mxu0 0
  %2708 = vmatpush1.bf16.msra.mxu0 0
  %2709 = vmatprep.subr.bf16.mxu0 0
  %2710 = vmatpush1.bf16.msra.mxu0 0
  %2711 = vmatprep.subr.bf16.mxu0 0
  %2712 = vmatpush1.bf16.msra.mxu0 0
  %2713 = vmatprep.subr.bf16.mxu0 0
  %2714 = vmatpush1.bf16.msra.mxu0 0
  %2715 = vmatprep.subr.bf16.mxu0 0
  %2716 = vmatpush1.bf16.msra.mxu0 0
  %2717 = vmatprep.subr.bf16.mxu0 0
  %2718 = vmatpush1.bf16.msra.mxu0 0
  %2719 = vmatprep.subr.bf16.mxu0 0
  %2720 = vmatpush1.bf16.msra.mxu0 0
  %2721 = vmatprep.mubr.bf16.mxu0 0
  %2722 = vmatmul.mubr.bf16.gmra.mrb[0].mxu0 %v2519
  %v2723 = vpop.f32.mrb[0].mxu0
  %v2724 = vadd.f32 0.0, %v2723
  %v2725 = vpop.f32.mrb[0].mxu0
  %v2726 = vpop.f32.mrb[0].mxu0
  %v2727 = vadd.f32 0.0, %v2726
  %v2728 = vpop.f32.mrb[0].mxu0
  %2729 = vmatprep.mubr.bf16.mxu0 0
  %2730 = vmatmul.mubr.bf16.gmra.mrb[0].mxu0 %v2521
  %v2731 = vpop.f32.mrb[0].mxu0
  %v2732 = vadd.f32 0.0, %v2731
  %v2733 = vpop.f32.mrb[0].mxu0
  %v2734 = vpop.f32.mrb[0].mxu0
  %v2735 = vadd.f32 0.0, %v2734
  %v2736 = vpop.f32.mrb[0].mxu0
  %2737 = vmatprep.mubr.bf16.mxu0 0
  %2738 = vmatmul.mubr.bf16.gmra.mrb[0].mxu0 %v2523
  %v2739 = vpop.f32.mrb[0].mxu0
  %v2740 = vadd.f32 0.0, %v2739
  %v2741 = vpop.f32.mrb[0].mxu0
  %v2742 = vpop.f32.mrb[0].mxu0
  %v2743 = vadd.f32 0.0, %v2742
  %v2744 = vpop.f32.mrb[0].mxu0
  %2745 = vmatprep.mubr.bf16.mxu0 0
  %2746 = vmatmul.mubr.bf16.gmra.mrb[0].mxu0 %v2525
  %v2747 = vpop.f32.mrb[0].mxu0
  %v2748 = vadd.f32 0.0, %v2747
  %v2749 = vpop.f32.mrb[0].mxu0
  %v2750 = vpop.f32.mrb[0].mxu0
  %v2751 = vadd.f32 0.0, %v2750
  %v2752 = vpop.f32.mrb[0].mxu0
  %2753 = vmatprep.mubr.bf16.mxu0 0
  %2754 = vmatmul.mubr.bf16.gmra.mrb[0].mxu0 %v2527
  %v2755 = vpop.f32.mrb[0].mxu0
  %v2756 = vadd.f32 0.0, %v2755
  %v2757 = vpop.f32.mrb[0].mxu0
  %v2758 = vpop.f32.mrb[0].mxu0
  %v2759 = vadd.f32 0.0, %v2758
  %v2760 = vpop.f32.mrb[0].mxu0
  %2761 = vmatprep.mubr.bf16.mxu0 0
  %2762 = vmatmul.mubr.bf16.gmra.mrb[0].mxu0 %v2529
  %v2763 = vpop.f32.mrb[0].mxu0
  %v2764 = vadd.f32 0.0, %v2763
  %v2765 = vpop.f32.mrb[0].mxu0
  %v2766 = vpop.f32.mrb[0].mxu0
  %v2767 = vadd.f32 0.0, %v2766
  %v2768 = vpop.f32.mrb[0].mxu0
  %2769 = vmatprep.mubr.bf16.mxu0 0
  %2770 = vmatmul.mubr.bf16.gmra.mrb[0].mxu0 %v2531
  %v2771 = vpop.f32.mrb[0].mxu0
  %v2772 = vadd.f32 0.0, %v2771
  %v2773 = vpop.f32.mrb[0].mxu0
  %v2774 = vpop.f32.mrb[0].mxu0
  %v2775 = vadd.f32 0.0, %v2774
  %v2776 = vpop.f32.mrb[0].mxu0
  %2777 = vmatprep.mubr.bf16.mxu0 0
  %2778 = vmatmul.mubr.bf16.gmra.mrb[0].mxu0 %v2533
  %v2779 = vpop.f32.mrb[0].mxu0
  %v2780 = vadd.f32 0.0, %v2779
  %v2781 = vpop.f32.mrb[0].mxu0
  %v2782 = vpop.f32.mrb[0].mxu0
  %v2783 = vadd.f32 0.0, %v2782
  %v2784 = vpop.f32.mrb[0].mxu0
  %2785 = vmatprep.mubr.bf16.mxu0 0
  %2786 = vmatmul.mubr.bf16.gmra.mrb[0].mxu0 %v2535
  %v2787 = vpop.f32.mrb[0].mxu0
  %v2788 = vadd.f32 0.0, %v2787
  %v2789 = vpop.f32.mrb[0].mxu0
  %v2790 = vpop.f32.mrb[0].mxu0
  %v2791 = vadd.f32 0.0, %v2790
  %v2792 = vpop.f32.mrb[0].mxu0
  %2793 = vmatprep.mubr.bf16.mxu0 0
  %2794 = vmatmul.mubr.bf16.gmra.mrb[0].mxu0 %v2537
  %v2795 = vpop.f32.mrb[0].mxu0
  %v2796 = vadd.f32 0.0, %v2795
  %v2797 = vpop.f32.mrb[0].mxu0
  %v2798 = vpop.f32.mrb[0].mxu0
  %v2799 = vadd.f32 0.0, %v2798
  %v2800 = vpop.f32.mrb[0].mxu0
  %2801 = vmatprep.mubr.bf16.mxu0 0
  %2802 = vmatmul.mubr.bf16.gmra.mrb[0].mxu0 %v2539
  %v2803 = vpop.f32.mrb[0].mxu0
  %v2804 = vadd.f32 0.0, %v2803
  %v2805 = vpop.f32.mrb[0].mxu0
  %v2806 = vpop.f32.mrb[0].mxu0
  %v2807 = vadd.f32 0.0, %v2806
  %v2808 = vpop.f32.mrb[0].mxu0
  %2809 = vmatprep.mubr.bf16.mxu0 0
  %2810 = vmatmul.mubr.bf16.gmra.mrb[0].mxu0 %v2541
  %v2811 = vpop.f32.mrb[0].mxu0
  %v2812 = vadd.f32 0.0, %v2811
  %v2813 = vpop.f32.mrb[0].mxu0
  %v2814 = vpop.f32.mrb[0].mxu0
  %v2815 = vadd.f32 0.0, %v2814
  %v2816 = vpop.f32.mrb[0].mxu0
  %2817 = vmatprep.mubr.bf16.mxu0 0
  %2818 = vmatmul.mubr.bf16.gmra.mrb[0].mxu0 %v2543
  %v2819 = vpop.f32.mrb[0].mxu0
  %v2820 = vadd.f32 0.0, %v2819
  %v2821 = vpop.f32.mrb[0].mxu0
  %v2822 = vpop.f32.mrb[0].mxu0
  %v2823 = vadd.f32 0.0, %v2822
  %v2824 = vpop.f32.mrb[0].mxu0
  %2825 = vmatprep.mubr.bf16.mxu0 0
  %2826 = vmatmul.mubr.bf16.gmra.mrb[0].mxu0 %v2545
  %v2827 = vpop.f32.mrb[0].mxu0
  %v2828 = vadd.f32 0.0, %v2827
  %v2829 = vpop.f32.mrb[0].mxu0
  %v2830 = vpop.f32.mrb[0].mxu0
  %v2831 = vadd.f32 0.0, %v2830
  %v2832 = vpop.f32.mrb[0].mxu0
  %2833 = vmatprep.mubr.bf16.mxu0 0
  %2834 = vmatmul.mubr.bf16.gmra.mrb[0].mxu0 %v2547
  %v2835 = vpop.f32.mrb[0].mxu0
  %v2836 = vadd.f32 0.0, %v2835
  %v2837 = vpop.f32.mrb[0].mxu0
  %v2838 = vpop.f32.mrb[0].mxu0
  %v2839 = vadd.f32 0.0, %v2838
  %v2840 = vpop.f32.mrb[0].mxu0
  %2841 = vmatprep.mubr.bf16.mxu0 0
  %2842 = vmatmul.mubr.bf16.gmra.mrb[0].mxu0 %v2549
  %v2843 = vpop.f32.mrb[0].mxu0
  %v2844 = vadd.f32 0.0, %v2843
  %v2845 = vpop.f32.mrb[0].mxu0
  %v2846 = vpop.f32.mrb[0].mxu0
  %v2847 = vadd.f32 0.0, %v2846
  %v2848 = vpop.f32.mrb[0].mxu0
  %2849 = vmatprep.mubr.bf16.mxu0 0
  %2850 = vmatmul.mubr.bf16.gmra.mrb[0].mxu0 %v2551
  %v2851 = vpop.f32.mrb[0].mxu0
  %v2852 = vadd.f32 0.0, %v2851
  %v2853 = vpop.f32.mrb[0].mxu0
  %v2854 = vpop.f32.mrb[0].mxu0
  %v2855 = vadd.f32 0.0, %v2854
  %v2856 = vpop.f32.mrb[0].mxu0
  %2857 = vmatprep.mubr.bf16.mxu0 0
  %2858 = vmatmul.mubr.bf16.gmra.mrb[0].mxu0 %v2553
  %v2859 = vpop.f32.mrb[0].mxu0
  %v2860 = vadd.f32 0.0, %v2859
  %v2861 = vpop.f32.mrb[0].mxu0
  %v2862 = vpop.f32.mrb[0].mxu0
  %v2863 = vadd.f32 0.0, %v2862
  %v2864 = vpop.f32.mrb[0].mxu0
  %2865 = vmatprep.mubr.bf16.mxu0 0
  %2866 = vmatmul.mubr.bf16.gmra.mrb[0].mxu0 %v2555
  %v2867 = vpop.f32.mrb[0].mxu0
  %v2868 = vadd.f32 0.0, %v2867
  %v2869 = vpop.f32.mrb[0].mxu0
  %v2870 = vpop.f32.mrb[0].mxu0
  %v2871 = vadd.f32 0.0, %v2870
  %v2872 = vpop.f32.mrb[0].mxu0
  %2873 = vmatprep.mubr.bf16.mxu0 0
  %2874 = vmatmul.mubr.bf16.gmra.mrb[0].mxu0 %v2557
  %v2875 = vpop.f32.mrb[0].mxu0
  %v2876 = vadd.f32 0.0, %v2875
  %v2877 = vpop.f32.mrb[0].mxu0
  %v2878 = vpop.f32.mrb[0].mxu0
  %v2879 = vadd.f32 0.0, %v2878
  %v2880 = vpop.f32.mrb[0].mxu0
  %2881 = vmatprep.mubr.bf16.mxu0 0
  %2882 = vmatmul.mubr.bf16.gmra.mrb[0].mxu0 %v2559
  %v2883 = vpop.f32.mrb[0].mxu0
  %v2884 = vadd.f32 0.0, %v2883
  %v2885 = vpop.f32.mrb[0].mxu0
  %v2886 = vpop.f32.mrb[0].mxu0
  %v2887 = vadd.f32 0.0, %v2886
  %v2888 = vpop.f32.mrb[0].mxu0
  %2889 = vmatprep.mubr.bf16.mxu0 0
  %2890 = vmatmul.mubr.bf16.gmra.mrb[0].mxu0 %v2561
  %v2891 = vpop.f32.mrb[0].mxu0
  %v2892 = vadd.f32 0.0, %v2891
  %v2893 = vpop.f32.mrb[0].mxu0
  %v2894 = vpop.f32.mrb[0].mxu0
  %v2895 = vadd.f32 0.0, %v2894
  %v2896 = vpop.f32.mrb[0].mxu0
  %2897 = vmatprep.mubr.bf16.mxu0 0
  %2898 = vmatmul.mubr.bf16.gmra.mrb[0].mxu0 %v2563
  %v2899 = vpop.f32.mrb[0].mxu0
  %v2900 = vadd.f32 0.0, %v2899
  %v2901 = vpop.f32.mrb[0].mxu0
  %v2902 = vpop.f32.mrb[0].mxu0
  %v2903 = vadd.f32 0.0, %v2902
  %v2904 = vpop.f32.mrb[0].mxu0
  %2905 = vmatprep.mubr.bf16.mxu0 0
  %2906 = vmatmul.mubr.bf16.gmra.mrb[0].mxu0 %v2565
  %v2907 = vpop.f32.mrb[0].mxu0
  %v2908 = vadd.f32 0.0, %v2907
  %v2909 = vpop.f32.mrb[0].mxu0
  %v2910 = vpop.f32.mrb[0].mxu0
  %v2911 = vadd.f32 0.0, %v2910
  %v2912 = vpop.f32.mrb[0].mxu0
  %2913 = vmatprep.mubr.bf16.mxu0 0
  %2914 = vmatmul.mubr.bf16.gmra.mrb[0].mxu0 %v2567
  %v2915 = vpop.f32.mrb[0].mxu0
  %v2916 = vadd.f32 0.0, %v2915
  %v2917 = vpop.f32.mrb[0].mxu0
  %v2918 = vpop.f32.mrb[0].mxu0
  %v2919 = vadd.f32 0.0, %v2918
  %v2920 = vpop.f32.mrb[0].mxu0
  %2921 = vmatprep.mubr.bf16.mxu0 0
  %2922 = vmatmul.mubr.bf16.gmra.mrb[0].mxu0 %v2569
  %v2923 = vpop.f32.mrb[0].mxu0
  %v2924 = vadd.f32 0.0, %v2923
  %v2925 = vpop.f32.mrb[0].mxu0
  %v2926 = vpop.f32.mrb[0].mxu0
  %v2927 = vadd.f32 0.0, %v2926
  %v2928 = vpop.f32.mrb[0].mxu0
  %2929 = vmatprep.mubr.bf16.mxu0 0
  %2930 = vmatmul.mubr.bf16.gmra.mrb[0].mxu0 %v2571
  %v2931 = vpop.f32.mrb[0].mxu0
  %v2932 = vadd.f32 0.0, %v2931
  %v2933 = vpop.f32.mrb[0].mxu0
  %v2934 = vpop.f32.mrb[0].mxu0
  %v2935 = vadd.f32 0.0, %v2934
  %v2936 = vpop.f32.mrb[0].mxu0
  %2937 = vmatprep.mubr.bf16.mxu0 0
  %2938 = vmatmul.mubr.bf16.gmra.mrb[0].mxu0 %v2573
  %v2939 = vpop.f32.mrb[0].mxu0
  %v2940 = vadd.f32 0.0, %v2939
  %v2941 = vpop.f32.mrb[0].mxu0
  %v2942 = vpop.f32.mrb[0].mxu0
  %v2943 = vadd.f32 0.0, %v2942
  %v2944 = vpop.f32.mrb[0].mxu0
  %2945 = vmatprep.mubr.bf16.mxu0 0
  %2946 = vmatmul.mubr.bf16.gmra.mrb[0].mxu0 %v2575
  %v2947 = vpop.f32.mrb[0].mxu0
  %v2948 = vadd.f32 0.0, %v2947
  %v2949 = vpop.f32.mrb[0].mxu0
  %v2950 = vpop.f32.mrb[0].mxu0
  %v2951 = vadd.f32 0.0, %v2950
  %v2952 = vpop.f32.mrb[0].mxu0
  %2953 = vmatprep.mubr.bf16.mxu0 0
  %2954 = vmatmul.mubr.bf16.gmra.mrb[0].mxu0 %v2577
  %v2955 = vpop.f32.mrb[0].mxu0
  %v2956 = vadd.f32 0.0, %v2955
  %v2957 = vpop.f32.mrb[0].mxu0
  %v2958 = vpop.f32.mrb[0].mxu0
  %v2959 = vadd.f32 0.0, %v2958
  %v2960 = vpop.f32.mrb[0].mxu0
  %2961 = vmatprep.mubr.bf16.mxu0 0
  %2962 = vmatmul.mubr.bf16.gmra.mrb[0].mxu0 %v2579
  %v2963 = vpop.f32.mrb[0].mxu0
  %v2964 = vadd.f32 0.0, %v2963
  %v2965 = vpop.f32.mrb[0].mxu0
  %v2966 = vpop.f32.mrb[0].mxu0
  %v2967 = vadd.f32 0.0, %v2966
  %v2968 = vpop.f32.mrb[0].mxu0
  %2969 = vmatprep.mubr.bf16.mxu0 0
  %2970 = vmatmul.mubr.bf16.gmra.mrb[0].mxu0 %v2581
  %v2971 = vpop.f32.mrb[0].mxu0
  %v2972 = vadd.f32 0.0, %v2971
  %v2973 = vpop.f32.mrb[0].mxu0
  %v2974 = vpop.f32.mrb[0].mxu0
  %v2975 = vadd.f32 0.0, %v2974
  %v2976 = vpop.f32.mrb[0].mxu0
  %2977 = vmatprep.mubr.bf16.mxu0 0
  %2978 = vmatmul.mubr.bf16.gmra.mrb[0].mxu0 %v2583
  %v2979 = vpop.f32.mrb[0].mxu0
  %v2980 = vadd.f32 0.0, %v2979
  %v2981 = vpop.f32.mrb[0].mxu0
  %v2982 = vpop.f32.mrb[0].mxu0
  %v2983 = vadd.f32 0.0, %v2982
  %v2984 = vpop.f32.mrb[0].mxu0
  %2985 = vmatprep.mubr.bf16.mxu0 0
  %2986 = vmatmul.mubr.bf16.gmra.mrb[0].mxu0 %v2585
  %v2987 = vpop.f32.mrb[0].mxu0
  %v2988 = vadd.f32 0.0, %v2987
  %v2989 = vpop.f32.mrb[0].mxu0
  %v2990 = vpop.f32.mrb[0].mxu0
  %v2991 = vadd.f32 0.0, %v2990
  %v2992 = vpop.f32.mrb[0].mxu0
  %2993 = vmatprep.mubr.bf16.mxu0 0
  %2994 = vmatmul.mubr.bf16.gmra.mrb[0].mxu0 %v2587
  %v2995 = vpop.f32.mrb[0].mxu0
  %v2996 = vadd.f32 0.0, %v2995
  %v2997 = vpop.f32.mrb[0].mxu0
  %v2998 = vpop.f32.mrb[0].mxu0
  %v2999 = vadd.f32 0.0, %v2998
  %v3000 = vpop.f32.mrb[0].mxu0
  %3001 = vmatprep.mubr.bf16.mxu0 0
  %3002 = vmatmul.mubr.bf16.gmra.mrb[0].mxu0 %v2589
  %v3003 = vpop.f32.mrb[0].mxu0
  %v3004 = vadd.f32 0.0, %v3003
  %v3005 = vpop.f32.mrb[0].mxu0
  %v3006 = vpop.f32.mrb[0].mxu0
  %v3007 = vadd.f32 0.0, %v3006
  %v3008 = vpop.f32.mrb[0].mxu0
  %3009 = vmatprep.mubr.bf16.mxu0 0
  %3010 = vmatmul.mubr.bf16.gmra.mrb[0].mxu0 %v2591
  %v3011 = vpop.f32.mrb[0].mxu0
  %v3012 = vadd.f32 0.0, %v3011
  %v3013 = vpop.f32.mrb[0].mxu0
  %v3014 = vpop.f32.mrb[0].mxu0
  %v3015 = vadd.f32 0.0, %v3014
  %v3016 = vpop.f32.mrb[0].mxu0
  %3017 = vmatprep.mubr.bf16.mxu0 0
  %3018 = vmatmul.mubr.bf16.gmra.mrb[0].mxu0 %v2593
  %v3019 = vpop.f32.mrb[0].mxu0
  %v3020 = vadd.f32 0.0, %v3019
  %v3021 = vpop.f32.mrb[0].mxu0
  %v3022 = vpop.f32.mrb[0].mxu0
  %v3023 = vadd.f32 0.0, %v3022
  %v3024 = vpop.f32.mrb[0].mxu0
  %3025 = vmatprep.mubr.bf16.mxu0 0
  %3026 = vmatmul.mubr.bf16.gmra.mrb[0].mxu0 %v2595
  %v3027 = vpop.f32.mrb[0].mxu0
  %v3028 = vadd.f32 0.0, %v3027
  %v3029 = vpop.f32.mrb[0].mxu0
  %v3030 = vpop.f32.mrb[0].mxu0
  %v3031 = vadd.f32 0.0, %v3030
  %v3032 = vpop.f32.mrb[0].mxu0
  %3033 = vmatprep.mubr.bf16.mxu0 0
  %3034 = vmatmul.mubr.bf16.gmra.mrb[0].mxu0 %v2597
  %v3035 = vpop.f32.mrb[0].mxu0
  %v3036 = vadd.f32 0.0, %v3035
  %v3037 = vpop.f32.mrb[0].mxu0
  %v3038 = vpop.f32.mrb[0].mxu0
  %v3039 = vadd.f32 0.0, %v3038
  %v3040 = vpop.f32.mrb[0].mxu0
  %3041 = vmatprep.mubr.bf16.mxu0 0
  %3042 = vmatmul.mubr.bf16.gmra.mrb[0].mxu0 %v2599
  %v3043 = vpop.f32.mrb[0].mxu0
  %v3044 = vadd.f32 0.0, %v3043
  %v3045 = vpop.f32.mrb[0].mxu0
  %v3046 = vpop.f32.mrb[0].mxu0
  %v3047 = vadd.f32 0.0, %v3046
  %v3048 = vpop.f32.mrb[0].mxu0
  %3049 = vdwg.mxu0
  %v3050 = vadd.f32 %v2127, %v2724
  %v3051 = vadd.f32 %v2128, %v2727
  %v3052 = vadd.f32 %v2129, %v2732
  %v3053 = vadd.f32 %v2130, %v2735
  %v3054 = vadd.f32 %v2131, %v2740
  %v3055 = vadd.f32 %v2132, %v2743
  %v3056 = vadd.f32 %v2133, %v2748
  %v3057 = vadd.f32 %v2134, %v2751
  %v3058 = vadd.f32 %v2135, %v2756
  %v3059 = vadd.f32 %v2136, %v2759
  %v3060 = vadd.f32 %v2137, %v2764
  %v3061 = vadd.f32 %v2138, %v2767
  %v3062 = vadd.f32 %v2139, %v2772
  %v3063 = vadd.f32 %v2140, %v2775
  %v3064 = vadd.f32 %v2141, %v2780
  %v3065 = vadd.f32 %v2142, %v2783
  %v3066 = vadd.f32 %v2143, %v2788
  %v3067 = vadd.f32 %v2144, %v2791
  %v3068 = vadd.f32 %v2145, %v2796
  %v3069 = vadd.f32 %v2146, %v2799
  %v3070 = vadd.f32 %v2147, %v2804
  %v3071 = vadd.f32 %v2148, %v2807
  %v3072 = vadd.f32 %v2149, %v2812
  %v3073 = vadd.f32 %v2150, %v2815
  %v3074 = vadd.f32 %v2151, %v2820
  %v3075 = vadd.f32 %v2152, %v2823
  %v3076 = vadd.f32 %v2153, %v2828
  %v3077 = vadd.f32 %v2154, %v2831
  %v3078 = vadd.f32 %v2155, %v2836
  %v3079 = vadd.f32 %v2156, %v2839
  %v3080 = vadd.f32 %v2157, %v2844
  %v3081 = vadd.f32 %v2158, %v2847
  %v3082 = vadd.f32 %v2159, %v2852
  %v3083 = vadd.f32 %v2160, %v2855
  %v3084 = vadd.f32 %v2161, %v2860
  %v3085 = vadd.f32 %v2162, %v2863
  %v3086 = vadd.f32 %v2163, %v2868
  %v3087 = vadd.f32 %v2164, %v2871
  %v3088 = vadd.f32 %v2165, %v2876
  %v3089 = vadd.f32 %v2166, %v2879
  %v3090 = vadd.f32 %v2167, %v2884
  %v3091 = vadd.f32 %v2168, %v2887
  %v3092 = vadd.f32 %v2169, %v2892
  %v3093 = vadd.f32 %v2170, %v2895
  %v3094 = vadd.f32 %v2171, %v2900
  %v3095 = vadd.f32 %v2172, %v2903
  %v3096 = vadd.f32 %v2173, %v2908
  %v3097 = vadd.f32 %v2174, %v2911
  %v3098 = vadd.f32 %v2175, %v2916
  %v3099 = vadd.f32 %v2176, %v2919
  %v3100 = vadd.f32 %v2177, %v2924
  %v3101 = vadd.f32 %v2178, %v2927
  %v3102 = vadd.f32 %v2179, %v2932
  %v3103 = vadd.f32 %v2180, %v2935
  %v3104 = vadd.f32 %v2181, %v2940
  %v3105 = vadd.f32 %v2182, %v2943
  %v3106 = vadd.f32 %v2183, %v2948
  %v3107 = vadd.f32 %v2184, %v2951
  %v3108 = vadd.f32 %v2185, %v2956
  %v3109 = vadd.f32 %v2186, %v2959
  %v3110 = vadd.f32 %v2187, %v2964
  %v3111 = vadd.f32 %v2188, %v2967
  %v3112 = vadd.f32 %v2189, %v2972
  %v3113 = vadd.f32 %v2190, %v2975
  %v3114 = vadd.f32 %v2191, %v2980
  %v3115 = vadd.f32 %v2192, %v2983
  %v3116 = vadd.f32 %v2193, %v2988
  %v3117 = vadd.f32 %v2194, %v2991
  %v3118 = vadd.f32 %v2195, %v2996
  %v3119 = vadd.f32 %v2196, %v2999
  %v3120 = vadd.f32 %v2197, %v3004
  %v3121 = vadd.f32 %v2198, %v3007
  %v3122 = vadd.f32 %v2199, %v3012
  %v3123 = vadd.f32 %v2200, %v3015
  %v3124 = vadd.f32 %v2201, %v3020
  %v3125 = vadd.f32 %v2202, %v3023
  %v3126 = vadd.f32 %v2203, %v3028
  %v3127 = vadd.f32 %v2204, %v3031
  %v3128 = vadd.f32 %v2205, %v3036
  %v3129 = vadd.f32 %v2206, %v3039
  %v3130 = vadd.f32 %v2207, %v3044
  %v3131 = vadd.f32 %v2208, %v3047
  %v3132 = vld [vmem:[%s0 + $0x150] sm:$0x3]
  %s3133 = scalar_lea.vmem %s1, 256
  %v3134 = vld [vmem:[%s3133] sm:$0xf]
  %v3135 = vld [vmem:[%s3133 + $0x4] sm:$0xf]
  %v3136 = vld [vmem:[%s3133 + $0x8] sm:$0xf]
  %v3137 = vld [vmem:[%s3133 + $0xc] sm:$0xf]
  %v3138 = vld [vmem:[%s3133 + $0x10] sm:$0xf]
  %v3139 = vld [vmem:[%s3133 + $0x14] sm:$0xf]
  %v3140 = vld [vmem:[%s3133 + $0x18] sm:$0xf]
  %v3141 = vld [vmem:[%s3133 + $0x1c] sm:$0xf]
  %v3142 = vld [vmem:[%s3133 + $0x20] sm:$0xf]
  %v3143 = vld [vmem:[%s3133 + $0x24] sm:$0xf]
  %v3144 = vld [vmem:[%s3133 + $0x28] sm:$0xf]
  %v3145 = vld [vmem:[%s3133 + $0x2c] sm:$0xf]
  %v3146 = vld [vmem:[%s3133 + $0x30] sm:$0xf]
  %v3147 = vld [vmem:[%s3133 + $0x34] sm:$0xf]
  %v3148 = vld [vmem:[%s3133 + $0x38] sm:$0xf]
  %v3149 = vld [vmem:[%s3133 + $0x3c] sm:$0xf]
  %v3151 = vunpack.c.l.b16 %v3132
  %v3152 = vpack.c.b16 %v3151, %v3151
  %vm3153 = vsmask.f32 6400
  %v3155 = vshrl.u32 %v2475, 16
  %v3157 = vrot.slane %v3155, 1
  %v3158 = vshll.u32 %v2475, 16
  %v3160 = vrot.slane %v3158, 2
  %v3161 = vor.u32 %v3157, %v3160
  %v3163 = vshrl.u32 %v2476, 16
  %v3165 = vrot.slane %v3163, 1
  %v3166 = vshll.u32 %v2476, 16
  %v3168 = vrot.slane %v3166, 2
  %v3169 = vor.u32 %v3165, %v3168
  %v3170 = vsel %vm3153, %v3161, %v3169
  %v3172 = vshrl.u32 %v2477, 16
  %v3174 = vrot.slane %v3172, 1
  %v3175 = vshll.u32 %v2477, 16
  %v3177 = vrot.slane %v3175, 2
  %v3178 = vor.u32 %v3174, %v3177
  %v3179 = vsel %vm3153, %v3169, %v3178
  %v3181 = vshrl.u32 %v2478, 16
  %v3183 = vrot.slane %v3181, 1
  %v3184 = vshll.u32 %v2478, 16
  %v3186 = vrot.slane %v3184, 2
  %v3187 = vor.u32 %v3183, %v3186
  %v3188 = vsel %vm3153, %v3178, %v3187
  %v3190 = vshrl.u32 %v2479, 16
  %v3192 = vrot.slane %v3190, 1
  %v3193 = vshll.u32 %v2479, 16
  %v3195 = vrot.slane %v3193, 2
  %v3196 = vor.u32 %v3192, %v3195
  %v3197 = vsel %vm3153, %v3187, %v3196
  %v3199 = vshrl.u32 %v2480, 16
  %v3201 = vrot.slane %v3199, 1
  %v3202 = vshll.u32 %v2480, 16
  %v3204 = vrot.slane %v3202, 2
  %v3205 = vor.u32 %v3201, %v3204
  %v3206 = vsel %vm3153, %v3196, %v3205
  %v3208 = vshrl.u32 %v2481, 16
  %v3210 = vrot.slane %v3208, 1
  %v3211 = vshll.u32 %v2481, 16
  %v3213 = vrot.slane %v3211, 2
  %v3214 = vor.u32 %v3210, %v3213
  %v3215 = vsel %vm3153, %v3205, %v3214
  %v3217 = vshrl.u32 %v2482, 16
  %v3219 = vrot.slane %v3217, 1
  %v3220 = vshll.u32 %v2482, 16
  %v3222 = vrot.slane %v3220, 2
  %v3223 = vor.u32 %v3219, %v3222
  %v3224 = vsel %vm3153, %v3214, %v3223
  %v3226 = vshrl.u32 %v2483, 16
  %v3228 = vrot.slane %v3226, 1
  %v3229 = vshll.u32 %v2483, 16
  %v3231 = vrot.slane %v3229, 2
  %v3232 = vor.u32 %v3228, %v3231
  %v3233 = vsel %vm3153, %v3223, %v3232
  %v3235 = vshrl.u32 %v2484, 16
  %v3237 = vrot.slane %v3235, 1
  %v3238 = vshll.u32 %v2484, 16
  %v3240 = vrot.slane %v3238, 2
  %v3241 = vor.u32 %v3237, %v3240
  %v3242 = vsel %vm3153, %v3232, %v3241
  %v3244 = vshrl.u32 %v2485, 16
  %v3246 = vrot.slane %v3244, 1
  %v3247 = vshll.u32 %v2485, 16
  %v3249 = vrot.slane %v3247, 2
  %v3250 = vor.u32 %v3246, %v3249
  %v3251 = vsel %vm3153, %v3241, %v3250
  %v3253 = vshrl.u32 %v2486, 16
  %v3255 = vrot.slane %v3253, 1
  %v3256 = vshll.u32 %v2486, 16
  %v3258 = vrot.slane %v3256, 2
  %v3259 = vor.u32 %v3255, %v3258
  %v3260 = vsel %vm3153, %v3250, %v3259
  %v3262 = vshrl.u32 %v2487, 16
  %v3264 = vrot.slane %v3262, 1
  %v3265 = vshll.u32 %v2487, 16
  %v3267 = vrot.slane %v3265, 2
  %v3268 = vor.u32 %v3264, %v3267
  %v3269 = vsel %vm3153, %v3259, %v3268
  %v3271 = vshrl.u32 %v2488, 16
  %v3273 = vrot.slane %v3271, 1
  %v3274 = vshll.u32 %v2488, 16
  %v3276 = vrot.slane %v3274, 2
  %v3277 = vor.u32 %v3273, %v3276
  %v3278 = vsel %vm3153, %v3268, %v3277
  %v3280 = vshrl.u32 %v2489, 16
  %v3282 = vrot.slane %v3280, 1
  %v3283 = vshll.u32 %v2489, 16
  %v3285 = vrot.slane %v3283, 2
  %v3286 = vor.u32 %v3282, %v3285
  %v3287 = vsel %vm3153, %v3277, %v3286
  %v3289 = vshrl.u32 %v2490, 16
  %v3291 = vrot.slane %v3289, 1
  %v3292 = vshll.u32 %v2490, 16
  %v3294 = vrot.slane %v3292, 2
  %v3295 = vor.u32 %v3291, %v3294
  %v3296 = vsel %vm3153, %v3286, %v3295
  %v3298 = vshrl.u32 %v2491, 16
  %v3300 = vrot.slane %v3298, 1
  %v3301 = vshll.u32 %v2491, 16
  %v3303 = vrot.slane %v3301, 2
  %v3304 = vor.u32 %v3300, %v3303
  %v3305 = vsel %vm3153, %v3295, %v3304
  %v3307 = vshrl.u32 %v2492, 16
  %v3309 = vrot.slane %v3307, 1
  %v3310 = vshll.u32 %v2492, 16
  %v3312 = vrot.slane %v3310, 2
  %v3313 = vor.u32 %v3309, %v3312
  %v3314 = vsel %vm3153, %v3304, %v3313
  %v3316 = vshrl.u32 %v2493, 16
  %v3318 = vrot.slane %v3316, 1
  %v3319 = vshll.u32 %v2493, 16
  %v3321 = vrot.slane %v3319, 2
  %v3322 = vor.u32 %v3318, %v3321
  %v3323 = vsel %vm3153, %v3313, %v3322
  %v3325 = vshrl.u32 %v2494, 16
  %v3327 = vrot.slane %v3325, 1
  %v3328 = vshll.u32 %v2494, 16
  %v3330 = vrot.slane %v3328, 2
  %v3331 = vor.u32 %v3327, %v3330
  %v3332 = vsel %vm3153, %v3322, %v3331
  %v3334 = vshrl.u32 %v2495, 16
  %v3336 = vrot.slane %v3334, 1
  %v3337 = vshll.u32 %v2495, 16
  %v3339 = vrot.slane %v3337, 2
  %v3340 = vor.u32 %v3336, %v3339
  %v3341 = vsel %vm3153, %v3331, %v3340
  %v3343 = vshrl.u32 %v2496, 16
  %v3345 = vrot.slane %v3343, 1
  %v3346 = vshll.u32 %v2496, 16
  %v3348 = vrot.slane %v3346, 2
  %v3349 = vor.u32 %v3345, %v3348
  %v3350 = vsel %vm3153, %v3340, %v3349
  %v3352 = vshrl.u32 %v2497, 16
  %v3354 = vrot.slane %v3352, 1
  %v3355 = vshll.u32 %v2497, 16
  %v3357 = vrot.slane %v3355, 2
  %v3358 = vor.u32 %v3354, %v3357
  %v3359 = vsel %vm3153, %v3349, %v3358
  %v3361 = vshrl.u32 %v2498, 16
  %v3363 = vrot.slane %v3361, 1
  %v3364 = vshll.u32 %v2498, 16
  %v3366 = vrot.slane %v3364, 2
  %v3367 = vor.u32 %v3363, %v3366
  %v3368 = vsel %vm3153, %v3358, %v3367
  %v3370 = vshrl.u32 %v2499, 16
  %v3372 = vrot.slane %v3370, 1
  %v3373 = vshll.u32 %v2499, 16
  %v3375 = vrot.slane %v3373, 2
  %v3376 = vor.u32 %v3372, %v3375
  %v3377 = vsel %vm3153, %v3367, %v3376
  %v3379 = vshrl.u32 %v2500, 16
  %v3381 = vrot.slane %v3379, 1
  %v3382 = vshll.u32 %v2500, 16
  %v3384 = vrot.slane %v3382, 2
  %v3385 = vor.u32 %v3381, %v3384
  %v3386 = vsel %vm3153, %v3376, %v3385
  %v3388 = vshrl.u32 %v2501, 16
  %v3390 = vrot.slane %v3388, 1
  %v3391 = vshll.u32 %v2501, 16
  %v3393 = vrot.slane %v3391, 2
  %v3394 = vor.u32 %v3390, %v3393
  %v3395 = vsel %vm3153, %v3385, %v3394
  %v3397 = vshrl.u32 %v2502, 16
  %v3399 = vrot.slane %v3397, 1
  %v3400 = vshll.u32 %v2502, 16
  %v3402 = vrot.slane %v3400, 2
  %v3403 = vor.u32 %v3399, %v3402
  %v3404 = vsel %vm3153, %v3394, %v3403
  %v3406 = vshrl.u32 %v2503, 16
  %v3408 = vrot.slane %v3406, 1
  %v3409 = vshll.u32 %v2503, 16
  %v3411 = vrot.slane %v3409, 2
  %v3412 = vor.u32 %v3408, %v3411
  %v3413 = vsel %vm3153, %v3403, %v3412
  %v3415 = vshrl.u32 %v2504, 16
  %v3417 = vrot.slane %v3415, 1
  %v3418 = vshll.u32 %v2504, 16
  %v3420 = vrot.slane %v3418, 2
  %v3421 = vor.u32 %v3417, %v3420
  %v3422 = vsel %vm3153, %v3412, %v3421
  %v3424 = vshrl.u32 %v2505, 16
  %v3426 = vrot.slane %v3424, 1
  %v3427 = vshll.u32 %v2505, 16
  %v3429 = vrot.slane %v3427, 2
  %v3430 = vor.u32 %v3426, %v3429
  %v3431 = vsel %vm3153, %v3421, %v3430
  %v3433 = vshrl.u32 %v2506, 16
  %v3435 = vrot.slane %v3433, 1
  %v3436 = vshll.u32 %v2506, 16
  %v3438 = vrot.slane %v3436, 2
  %v3439 = vor.u32 %v3435, %v3438
  %v3440 = vsel %vm3153, %v3430, %v3439
  %v3442 = vshrl.u32 %v2507, 16
  %v3444 = vrot.slane %v3442, 1
  %v3445 = vshll.u32 %v2507, 16
  %v3447 = vrot.slane %v3445, 2
  %v3448 = vor.u32 %v3444, %v3447
  %v3449 = vsel %vm3153, %v3439, %v3448
  %v3451 = vshrl.u32 %v2508, 16
  %v3453 = vrot.slane %v3451, 1
  %v3454 = vshll.u32 %v2508, 16
  %v3456 = vrot.slane %v3454, 2
  %v3457 = vor.u32 %v3453, %v3456
  %v3458 = vsel %vm3153, %v3448, %v3457
  %v3460 = vshrl.u32 %v2509, 16
  %v3462 = vrot.slane %v3460, 1
  %v3463 = vshll.u32 %v2509, 16
  %v3465 = vrot.slane %v3463, 2
  %v3466 = vor.u32 %v3462, %v3465
  %v3467 = vsel %vm3153, %v3457, %v3466
  %v3469 = vshrl.u32 %v2510, 16
  %v3471 = vrot.slane %v3469, 1
  %v3472 = vshll.u32 %v2510, 16
  %v3474 = vrot.slane %v3472, 2
  %v3475 = vor.u32 %v3471, %v3474
  %v3476 = vsel %vm3153, %v3466, %v3475
  %v3478 = vshrl.u32 %v2511, 16
  %v3480 = vrot.slane %v3478, 1
  %v3481 = vshll.u32 %v2511, 16
  %v3483 = vrot.slane %v3481, 2
  %v3484 = vor.u32 %v3480, %v3483
  %v3485 = vsel %vm3153, %v3475, %v3484
  %v3487 = vshrl.u32 %v2512, 16
  %v3489 = vrot.slane %v3487, 1
  %v3490 = vshll.u32 %v2512, 16
  %v3492 = vrot.slane %v3490, 2
  %v3493 = vor.u32 %v3489, %v3492
  %v3494 = vsel %vm3153, %v3484, %v3493
  %v3496 = vshrl.u32 %v2513, 16
  %v3498 = vrot.slane %v3496, 1
  %v3499 = vshll.u32 %v2513, 16
  %v3501 = vrot.slane %v3499, 2
  %v3502 = vor.u32 %v3498, %v3501
  %v3503 = vsel %vm3153, %v3493, %v3502
  %v3505 = vshrl.u32 %v2514, 16
  %v3507 = vrot.slane %v3505, 1
  %v3508 = vshll.u32 %v2514, 16
  %v3510 = vrot.slane %v3508, 2
  %v3511 = vor.u32 %v3507, %v3510
  %v3512 = vsel %vm3153, %v3502, %v3511
  %v3514 = vshrl.u32 %v2515, 16
  %v3516 = vrot.slane %v3514, 1
  %v3517 = vshll.u32 %v2515, 16
  %v3519 = vrot.slane %v3517, 2
  %v3520 = vor.u32 %v3516, %v3519
  %v3521 = vsel %vm3153, %v3511, %v3520
  %v3523 = vshrl.u32 %v3152, 16
  %v3525 = vrot.slane %v3523, 1
  %v3526 = vshll.u32 %v3152, 16
  %v3528 = vrot.slane %v3526, 2
  %v3529 = vor.u32 %v3525, %v3528
  %v3530 = vsel %vm3153, %v3520, %v3529
  %v3588 = vunpack.c.l.b16 %v3134
  %v3589 = vunpack.c.l.b16 %v3135
  %v3590 = vunpack.c.l.b16 %v3136
  %v3591 = vunpack.c.l.b16 %v3137
  %v3592 = vunpack.c.l.b16 %v3138
  %v3593 = vunpack.c.l.b16 %v3139
  %v3594 = vunpack.c.l.b16 %v3140
  %v3595 = vunpack.c.l.b16 %v3141
  %v3596 = vunpack.c.l.b16 %v3142
  %v3597 = vunpack.c.l.b16 %v3143
  %v3598 = vunpack.c.l.b16 %v3144
  %v3599 = vunpack.c.l.b16 %v3145
  %v3600 = vunpack.c.l.b16 %v3146
  %v3601 = vunpack.c.l.b16 %v3147
  %v3602 = vunpack.c.l.b16 %v3148
  %v3603 = vunpack.c.l.b16 %v3149
  %v3604 = vpack.c.b16 %v3589, %v3588
  %v3605 = vpack.c.b16 %v3591, %v3590
  %v3606 = vpack.c.b16 %v3593, %v3592
  %v3607 = vpack.c.b16 %v3595, %v3594
  %v3608 = vpack.c.b16 %v3597, %v3596
  %v3609 = vpack.c.b16 %v3599, %v3598
  %v3610 = vpack.c.b16 %v3601, %v3600
  %v3611 = vpack.c.b16 %v3603, %v3602
  %3620 = vmatprep.subr.bf16.mxu0 0
  %3621 = vmatpush1.bf16.msra.mxu0 %v3604
  %3622 = vmatprep.subr.bf16.mxu0 0
  %3623 = vmatpush1.bf16.msra.mxu0 %v3605
  %3624 = vmatprep.subr.bf16.mxu0 0
  %3625 = vmatpush1.bf16.msra.mxu0 %v3606
  %3626 = vmatprep.subr.bf16.mxu0 0
  %3627 = vmatpush1.bf16.msra.mxu0 %v3607
  %3628 = vmatprep.subr.bf16.mxu0 0
  %3629 = vmatpush1.bf16.msra.mxu0 %v3608
  %3630 = vmatprep.subr.bf16.mxu0 0
  %3631 = vmatpush1.bf16.msra.mxu0 %v3609
  %3632 = vmatprep.subr.bf16.mxu0 0
  %3633 = vmatpush1.bf16.msra.mxu0 %v3610
  %3634 = vmatprep.subr.bf16.mxu0 0
  %3635 = vmatpush1.bf16.msra.mxu0 %v3611
  %3636 = vmatprep.subr.bf16.mxu0 0
  %3637 = vmatpush1.bf16.msra.mxu0 0
  %3638 = vmatprep.subr.bf16.mxu0 0
  %3639 = vmatpush1.bf16.msra.mxu0 0
  %3640 = vmatprep.subr.bf16.mxu0 0
  %3641 = vmatpush1.bf16.msra.mxu0 0
  %3642 = vmatprep.subr.bf16.mxu0 0
  %3643 = vmatpush1.bf16.msra.mxu0 0
  %3644 = vmatprep.subr.bf16.mxu0 0
  %3645 = vmatpush1.bf16.msra.mxu0 0
  %3646 = vmatprep.subr.bf16.mxu0 0
  %3647 = vmatpush1.bf16.msra.mxu0 0
  %3648 = vmatprep.subr.bf16.mxu0 0
  %3649 = vmatpush1.bf16.msra.mxu0 0
  %3650 = vmatprep.subr.bf16.mxu0 0
  %3651 = vmatpush1.bf16.msra.mxu0 0
  %3652 = vmatprep.mubr.bf16.mxu0 0
  %3653 = vmatmul.mubr.bf16.gmra.mrb[0].mxu0 %v3170
  %v3654 = vpop.f32.mrb[0].mxu0
  %v3655 = vadd.f32 0.0, %v3654
  %v3656 = vpop.f32.mrb[0].mxu0
  %v3657 = vpop.f32.mrb[0].mxu0
  %v3658 = vadd.f32 0.0, %v3657
  %v3659 = vpop.f32.mrb[0].mxu0
  %3660 = vmatprep.mubr.bf16.mxu0 0
  %3661 = vmatmul.mubr.bf16.gmra.mrb[0].mxu0 %v3179
  %v3662 = vpop.f32.mrb[0].mxu0
  %v3663 = vadd.f32 0.0, %v3662
  %v3664 = vpop.f32.mrb[0].mxu0
  %v3665 = vpop.f32.mrb[0].mxu0
  %v3666 = vadd.f32 0.0, %v3665
  %v3667 = vpop.f32.mrb[0].mxu0
  %3668 = vmatprep.mubr.bf16.mxu0 0
  %3669 = vmatmul.mubr.bf16.gmra.mrb[0].mxu0 %v3188
  %v3670 = vpop.f32.mrb[0].mxu0
  %v3671 = vadd.f32 0.0, %v3670
  %v3672 = vpop.f32.mrb[0].mxu0
  %v3673 = vpop.f32.mrb[0].mxu0
  %v3674 = vadd.f32 0.0, %v3673
  %v3675 = vpop.f32.mrb[0].mxu0
  %3676 = vmatprep.mubr.bf16.mxu0 0
  %3677 = vmatmul.mubr.bf16.gmra.mrb[0].mxu0 %v3197
  %v3678 = vpop.f32.mrb[0].mxu0
  %v3679 = vadd.f32 0.0, %v3678
  %v3680 = vpop.f32.mrb[0].mxu0
  %v3681 = vpop.f32.mrb[0].mxu0
  %v3682 = vadd.f32 0.0, %v3681
  %v3683 = vpop.f32.mrb[0].mxu0
  %3684 = vmatprep.mubr.bf16.mxu0 0
  %3685 = vmatmul.mubr.bf16.gmra.mrb[0].mxu0 %v3206
  %v3686 = vpop.f32.mrb[0].mxu0
  %v3687 = vadd.f32 0.0, %v3686
  %v3688 = vpop.f32.mrb[0].mxu0
  %v3689 = vpop.f32.mrb[0].mxu0
  %v3690 = vadd.f32 0.0, %v3689
  %v3691 = vpop.f32.mrb[0].mxu0
  %3692 = vmatprep.mubr.bf16.mxu0 0
  %3693 = vmatmul.mubr.bf16.gmra.mrb[0].mxu0 %v3215
  %v3694 = vpop.f32.mrb[0].mxu0
  %v3695 = vadd.f32 0.0, %v3694
  %v3696 = vpop.f32.mrb[0].mxu0
  %v3697 = vpop.f32.mrb[0].mxu0
  %v3698 = vadd.f32 0.0, %v3697
  %v3699 = vpop.f32.mrb[0].mxu0
  %3700 = vmatprep.mubr.bf16.mxu0 0
  %3701 = vmatmul.mubr.bf16.gmra.mrb[0].mxu0 %v3224
  %v3702 = vpop.f32.mrb[0].mxu0
  %v3703 = vadd.f32 0.0, %v3702
  %v3704 = vpop.f32.mrb[0].mxu0
  %v3705 = vpop.f32.mrb[0].mxu0
  %v3706 = vadd.f32 0.0, %v3705
  %v3707 = vpop.f32.mrb[0].mxu0
  %3708 = vmatprep.mubr.bf16.mxu0 0
  %3709 = vmatmul.mubr.bf16.gmra.mrb[0].mxu0 %v3233
  %v3710 = vpop.f32.mrb[0].mxu0
  %v3711 = vadd.f32 0.0, %v3710
  %v3712 = vpop.f32.mrb[0].mxu0
  %v3713 = vpop.f32.mrb[0].mxu0
  %v3714 = vadd.f32 0.0, %v3713
  %v3715 = vpop.f32.mrb[0].mxu0
  %3716 = vmatprep.mubr.bf16.mxu0 0
  %3717 = vmatmul.mubr.bf16.gmra.mrb[0].mxu0 %v3242
  %v3718 = vpop.f32.mrb[0].mxu0
  %v3719 = vadd.f32 0.0, %v3718
  %v3720 = vpop.f32.mrb[0].mxu0
  %v3721 = vpop.f32.mrb[0].mxu0
  %v3722 = vadd.f32 0.0, %v3721
  %v3723 = vpop.f32.mrb[0].mxu0
  %3724 = vmatprep.mubr.bf16.mxu0 0
  %3725 = vmatmul.mubr.bf16.gmra.mrb[0].mxu0 %v3251
  %v3726 = vpop.f32.mrb[0].mxu0
  %v3727 = vadd.f32 0.0, %v3726
  %v3728 = vpop.f32.mrb[0].mxu0
  %v3729 = vpop.f32.mrb[0].mxu0
  %v3730 = vadd.f32 0.0, %v3729
  %v3731 = vpop.f32.mrb[0].mxu0
  %3732 = vmatprep.mubr.bf16.mxu0 0
  %3733 = vmatmul.mubr.bf16.gmra.mrb[0].mxu0 %v3260
  %v3734 = vpop.f32.mrb[0].mxu0
  %v3735 = vadd.f32 0.0, %v3734
  %v3736 = vpop.f32.mrb[0].mxu0
  %v3737 = vpop.f32.mrb[0].mxu0
  %v3738 = vadd.f32 0.0, %v3737
  %v3739 = vpop.f32.mrb[0].mxu0
  %3740 = vmatprep.mubr.bf16.mxu0 0
  %3741 = vmatmul.mubr.bf16.gmra.mrb[0].mxu0 %v3269
  %v3742 = vpop.f32.mrb[0].mxu0
  %v3743 = vadd.f32 0.0, %v3742
  %v3744 = vpop.f32.mrb[0].mxu0
  %v3745 = vpop.f32.mrb[0].mxu0
  %v3746 = vadd.f32 0.0, %v3745
  %v3747 = vpop.f32.mrb[0].mxu0
  %3748 = vmatprep.mubr.bf16.mxu0 0
  %3749 = vmatmul.mubr.bf16.gmra.mrb[0].mxu0 %v3278
  %v3750 = vpop.f32.mrb[0].mxu0
  %v3751 = vadd.f32 0.0, %v3750
  %v3752 = vpop.f32.mrb[0].mxu0
  %v3753 = vpop.f32.mrb[0].mxu0
  %v3754 = vadd.f32 0.0, %v3753
  %v3755 = vpop.f32.mrb[0].mxu0
  %3756 = vmatprep.mubr.bf16.mxu0 0
  %3757 = vmatmul.mubr.bf16.gmra.mrb[0].mxu0 %v3287
  %v3758 = vpop.f32.mrb[0].mxu0
  %v3759 = vadd.f32 0.0, %v3758
  %v3760 = vpop.f32.mrb[0].mxu0
  %v3761 = vpop.f32.mrb[0].mxu0
  %v3762 = vadd.f32 0.0, %v3761
  %v3763 = vpop.f32.mrb[0].mxu0
  %3764 = vmatprep.mubr.bf16.mxu0 0
  %3765 = vmatmul.mubr.bf16.gmra.mrb[0].mxu0 %v3296
  %v3766 = vpop.f32.mrb[0].mxu0
  %v3767 = vadd.f32 0.0, %v3766
  %v3768 = vpop.f32.mrb[0].mxu0
  %v3769 = vpop.f32.mrb[0].mxu0
  %v3770 = vadd.f32 0.0, %v3769
  %v3771 = vpop.f32.mrb[0].mxu0
  %3772 = vmatprep.mubr.bf16.mxu0 0
  %3773 = vmatmul.mubr.bf16.gmra.mrb[0].mxu0 %v3305
  %v3774 = vpop.f32.mrb[0].mxu0
  %v3775 = vadd.f32 0.0, %v3774
  %v3776 = vpop.f32.mrb[0].mxu0
  %v3777 = vpop.f32.mrb[0].mxu0
  %v3778 = vadd.f32 0.0, %v3777
  %v3779 = vpop.f32.mrb[0].mxu0
  %3780 = vmatprep.mubr.bf16.mxu0 0
  %3781 = vmatmul.mubr.bf16.gmra.mrb[0].mxu0 %v3314
  %v3782 = vpop.f32.mrb[0].mxu0
  %v3783 = vadd.f32 0.0, %v3782
  %v3784 = vpop.f32.mrb[0].mxu0
  %v3785 = vpop.f32.mrb[0].mxu0
  %v3786 = vadd.f32 0.0, %v3785
  %v3787 = vpop.f32.mrb[0].mxu0
  %3788 = vmatprep.mubr.bf16.mxu0 0
  %3789 = vmatmul.mubr.bf16.gmra.mrb[0].mxu0 %v3323
  %v3790 = vpop.f32.mrb[0].mxu0
  %v3791 = vadd.f32 0.0, %v3790
  %v3792 = vpop.f32.mrb[0].mxu0
  %v3793 = vpop.f32.mrb[0].mxu0
  %v3794 = vadd.f32 0.0, %v3793
  %v3795 = vpop.f32.mrb[0].mxu0
  %3796 = vmatprep.mubr.bf16.mxu0 0
  %3797 = vmatmul.mubr.bf16.gmra.mrb[0].mxu0 %v3332
  %v3798 = vpop.f32.mrb[0].mxu0
  %v3799 = vadd.f32 0.0, %v3798
  %v3800 = vpop.f32.mrb[0].mxu0
  %v3801 = vpop.f32.mrb[0].mxu0
  %v3802 = vadd.f32 0.0, %v3801
  %v3803 = vpop.f32.mrb[0].mxu0
  %3804 = vmatprep.mubr.bf16.mxu0 0
  %3805 = vmatmul.mubr.bf16.gmra.mrb[0].mxu0 %v3341
  %v3806 = vpop.f32.mrb[0].mxu0
  %v3807 = vadd.f32 0.0, %v3806
  %v3808 = vpop.f32.mrb[0].mxu0
  %v3809 = vpop.f32.mrb[0].mxu0
  %v3810 = vadd.f32 0.0, %v3809
  %v3811 = vpop.f32.mrb[0].mxu0
  %3812 = vmatprep.mubr.bf16.mxu0 0
  %3813 = vmatmul.mubr.bf16.gmra.mrb[0].mxu0 %v3350
  %v3814 = vpop.f32.mrb[0].mxu0
  %v3815 = vadd.f32 0.0, %v3814
  %v3816 = vpop.f32.mrb[0].mxu0
  %v3817 = vpop.f32.mrb[0].mxu0
  %v3818 = vadd.f32 0.0, %v3817
  %v3819 = vpop.f32.mrb[0].mxu0
  %3820 = vmatprep.mubr.bf16.mxu0 0
  %3821 = vmatmul.mubr.bf16.gmra.mrb[0].mxu0 %v3359
  %v3822 = vpop.f32.mrb[0].mxu0
  %v3823 = vadd.f32 0.0, %v3822
  %v3824 = vpop.f32.mrb[0].mxu0
  %v3825 = vpop.f32.mrb[0].mxu0
  %v3826 = vadd.f32 0.0, %v3825
  %v3827 = vpop.f32.mrb[0].mxu0
  %3828 = vmatprep.mubr.bf16.mxu0 0
  %3829 = vmatmul.mubr.bf16.gmra.mrb[0].mxu0 %v3368
  %v3830 = vpop.f32.mrb[0].mxu0
  %v3831 = vadd.f32 0.0, %v3830
  %v3832 = vpop.f32.mrb[0].mxu0
  %v3833 = vpop.f32.mrb[0].mxu0
  %v3834 = vadd.f32 0.0, %v3833
  %v3835 = vpop.f32.mrb[0].mxu0
  %3836 = vmatprep.mubr.bf16.mxu0 0
  %3837 = vmatmul.mubr.bf16.gmra.mrb[0].mxu0 %v3377
  %v3838 = vpop.f32.mrb[0].mxu0
  %v3839 = vadd.f32 0.0, %v3838
  %v3840 = vpop.f32.mrb[0].mxu0
  %v3841 = vpop.f32.mrb[0].mxu0
  %v3842 = vadd.f32 0.0, %v3841
  %v3843 = vpop.f32.mrb[0].mxu0
  %3844 = vmatprep.mubr.bf16.mxu0 0
  %3845 = vmatmul.mubr.bf16.gmra.mrb[0].mxu0 %v3386
  %v3846 = vpop.f32.mrb[0].mxu0
  %v3847 = vadd.f32 0.0, %v3846
  %v3848 = vpop.f32.mrb[0].mxu0
  %v3849 = vpop.f32.mrb[0].mxu0
  %v3850 = vadd.f32 0.0, %v3849
  %v3851 = vpop.f32.mrb[0].mxu0
  %3852 = vmatprep.mubr.bf16.mxu0 0
  %3853 = vmatmul.mubr.bf16.gmra.mrb[0].mxu0 %v3395
  %v3854 = vpop.f32.mrb[0].mxu0
  %v3855 = vadd.f32 0.0, %v3854
  %v3856 = vpop.f32.mrb[0].mxu0
  %v3857 = vpop.f32.mrb[0].mxu0
  %v3858 = vadd.f32 0.0, %v3857
  %v3859 = vpop.f32.mrb[0].mxu0
  %3860 = vmatprep.mubr.bf16.mxu0 0
  %3861 = vmatmul.mubr.bf16.gmra.mrb[0].mxu0 %v3404
  %v3862 = vpop.f32.mrb[0].mxu0
  %v3863 = vadd.f32 0.0, %v3862
  %v3864 = vpop.f32.mrb[0].mxu0
  %v3865 = vpop.f32.mrb[0].mxu0
  %v3866 = vadd.f32 0.0, %v3865
  %v3867 = vpop.f32.mrb[0].mxu0
  %3868 = vmatprep.mubr.bf16.mxu0 0
  %3869 = vmatmul.mubr.bf16.gmra.mrb[0].mxu0 %v3413
  %v3870 = vpop.f32.mrb[0].mxu0
  %v3871 = vadd.f32 0.0, %v3870
  %v3872 = vpop.f32.mrb[0].mxu0
  %v3873 = vpop.f32.mrb[0].mxu0
  %v3874 = vadd.f32 0.0, %v3873
  %v3875 = vpop.f32.mrb[0].mxu0
  %3876 = vmatprep.mubr.bf16.mxu0 0
  %3877 = vmatmul.mubr.bf16.gmra.mrb[0].mxu0 %v3422
  %v3878 = vpop.f32.mrb[0].mxu0
  %v3879 = vadd.f32 0.0, %v3878
  %v3880 = vpop.f32.mrb[0].mxu0
  %v3881 = vpop.f32.mrb[0].mxu0
  %v3882 = vadd.f32 0.0, %v3881
  %v3883 = vpop.f32.mrb[0].mxu0
  %3884 = vmatprep.mubr.bf16.mxu0 0
  %3885 = vmatmul.mubr.bf16.gmra.mrb[0].mxu0 %v3431
  %v3886 = vpop.f32.mrb[0].mxu0
  %v3887 = vadd.f32 0.0, %v3886
  %v3888 = vpop.f32.mrb[0].mxu0
  %v3889 = vpop.f32.mrb[0].mxu0
  %v3890 = vadd.f32 0.0, %v3889
  %v3891 = vpop.f32.mrb[0].mxu0
  %3892 = vmatprep.mubr.bf16.mxu0 0
  %3893 = vmatmul.mubr.bf16.gmra.mrb[0].mxu0 %v3440
  %v3894 = vpop.f32.mrb[0].mxu0
  %v3895 = vadd.f32 0.0, %v3894
  %v3896 = vpop.f32.mrb[0].mxu0
  %v3897 = vpop.f32.mrb[0].mxu0
  %v3898 = vadd.f32 0.0, %v3897
  %v3899 = vpop.f32.mrb[0].mxu0
  %3900 = vmatprep.mubr.bf16.mxu0 0
  %3901 = vmatmul.mubr.bf16.gmra.mrb[0].mxu0 %v3449
  %v3902 = vpop.f32.mrb[0].mxu0
  %v3903 = vadd.f32 0.0, %v3902
  %v3904 = vpop.f32.mrb[0].mxu0
  %v3905 = vpop.f32.mrb[0].mxu0
  %v3906 = vadd.f32 0.0, %v3905
  %v3907 = vpop.f32.mrb[0].mxu0
  %3908 = vmatprep.mubr.bf16.mxu0 0
  %3909 = vmatmul.mubr.bf16.gmra.mrb[0].mxu0 %v3458
  %v3910 = vpop.f32.mrb[0].mxu0
  %v3911 = vadd.f32 0.0, %v3910
  %v3912 = vpop.f32.mrb[0].mxu0
  %v3913 = vpop.f32.mrb[0].mxu0
  %v3914 = vadd.f32 0.0, %v3913
  %v3915 = vpop.f32.mrb[0].mxu0
  %3916 = vmatprep.mubr.bf16.mxu0 0
  %3917 = vmatmul.mubr.bf16.gmra.mrb[0].mxu0 %v3467
  %v3918 = vpop.f32.mrb[0].mxu0
  %v3919 = vadd.f32 0.0, %v3918
  %v3920 = vpop.f32.mrb[0].mxu0
  %v3921 = vpop.f32.mrb[0].mxu0
  %v3922 = vadd.f32 0.0, %v3921
  %v3923 = vpop.f32.mrb[0].mxu0
  %3924 = vmatprep.mubr.bf16.mxu0 0
  %3925 = vmatmul.mubr.bf16.gmra.mrb[0].mxu0 %v3476
  %v3926 = vpop.f32.mrb[0].mxu0
  %v3927 = vadd.f32 0.0, %v3926
  %v3928 = vpop.f32.mrb[0].mxu0
  %v3929 = vpop.f32.mrb[0].mxu0
  %v3930 = vadd.f32 0.0, %v3929
  %v3931 = vpop.f32.mrb[0].mxu0
  %3932 = vmatprep.mubr.bf16.mxu0 0
  %3933 = vmatmul.mubr.bf16.gmra.mrb[0].mxu0 %v3485
  %v3934 = vpop.f32.mrb[0].mxu0
  %v3935 = vadd.f32 0.0, %v3934
  %v3936 = vpop.f32.mrb[0].mxu0
  %v3937 = vpop.f32.mrb[0].mxu0
  %v3938 = vadd.f32 0.0, %v3937
  %v3939 = vpop.f32.mrb[0].mxu0
  %3940 = vmatprep.mubr.bf16.mxu0 0
  %3941 = vmatmul.mubr.bf16.gmra.mrb[0].mxu0 %v3494
  %v3942 = vpop.f32.mrb[0].mxu0
  %v3943 = vadd.f32 0.0, %v3942
  %v3944 = vpop.f32.mrb[0].mxu0
  %v3945 = vpop.f32.mrb[0].mxu0
  %v3946 = vadd.f32 0.0, %v3945
  %v3947 = vpop.f32.mrb[0].mxu0
  %3948 = vmatprep.mubr.bf16.mxu0 0
  %3949 = vmatmul.mubr.bf16.gmra.mrb[0].mxu0 %v3503
  %v3950 = vpop.f32.mrb[0].mxu0
  %v3951 = vadd.f32 0.0, %v3950
  %v3952 = vpop.f32.mrb[0].mxu0
  %v3953 = vpop.f32.mrb[0].mxu0
  %v3954 = vadd.f32 0.0, %v3953
  %v3955 = vpop.f32.mrb[0].mxu0
  %3956 = vmatprep.mubr.bf16.mxu0 0
  %3957 = vmatmul.mubr.bf16.gmra.mrb[0].mxu0 %v3512
  %v3958 = vpop.f32.mrb[0].mxu0
  %v3959 = vadd.f32 0.0, %v3958
  %v3960 = vpop.f32.mrb[0].mxu0
  %v3961 = vpop.f32.mrb[0].mxu0
  %v3962 = vadd.f32 0.0, %v3961
  %v3963 = vpop.f32.mrb[0].mxu0
  %3964 = vmatprep.mubr.bf16.mxu0 0
  %3965 = vmatmul.mubr.bf16.gmra.mrb[0].mxu0 %v3521
  %v3966 = vpop.f32.mrb[0].mxu0
  %v3967 = vadd.f32 0.0, %v3966
  %v3968 = vpop.f32.mrb[0].mxu0
  %v3969 = vpop.f32.mrb[0].mxu0
  %v3970 = vadd.f32 0.0, %v3969
  %v3971 = vpop.f32.mrb[0].mxu0
  %3972 = vmatprep.mubr.bf16.mxu0 0
  %3973 = vmatmul.mubr.bf16.gmra.mrb[0].mxu0 %v3530
  %v3974 = vpop.f32.mrb[0].mxu0
  %v3975 = vadd.f32 0.0, %v3974
  %v3976 = vpop.f32.mrb[0].mxu0
  %v3977 = vpop.f32.mrb[0].mxu0
  %v3978 = vadd.f32 0.0, %v3977
  %v3979 = vpop.f32.mrb[0].mxu0
  %3980 = vdwg.mxu0
  %v3981 = vadd.f32 %v3050, %v3655
  %v3982 = vadd.f32 %v3051, %v3658
  %v3983 = vadd.f32 %v3052, %v3663
  %v3984 = vadd.f32 %v3053, %v3666
  %v3985 = vadd.f32 %v3054, %v3671
  %v3986 = vadd.f32 %v3055, %v3674
  %v3987 = vadd.f32 %v3056, %v3679
  %v3988 = vadd.f32 %v3057, %v3682
  %v3989 = vadd.f32 %v3058, %v3687
  %v3990 = vadd.f32 %v3059, %v3690
  %v3991 = vadd.f32 %v3060, %v3695
  %v3992 = vadd.f32 %v3061, %v3698
  %v3993 = vadd.f32 %v3062, %v3703
  %v3994 = vadd.f32 %v3063, %v3706
  %v3995 = vadd.f32 %v3064, %v3711
  %v3996 = vadd.f32 %v3065, %v3714
  %v3997 = vadd.f32 %v3066, %v3719
  %v3998 = vadd.f32 %v3067, %v3722
  %v3999 = vadd.f32 %v3068, %v3727
  %v4000 = vadd.f32 %v3069, %v3730
  %v4001 = vadd.f32 %v3070, %v3735
  %v4002 = vadd.f32 %v3071, %v3738
  %v4003 = vadd.f32 %v3072, %v3743
  %v4004 = vadd.f32 %v3073, %v3746
  %v4005 = vadd.f32 %v3074, %v3751
  %v4006 = vadd.f32 %v3075, %v3754
  %v4007 = vadd.f32 %v3076, %v3759
  %v4008 = vadd.f32 %v3077, %v3762
  %v4009 = vadd.f32 %v3078, %v3767
  %v4010 = vadd.f32 %v3079, %v3770
  %v4011 = vadd.f32 %v3080, %v3775
  %v4012 = vadd.f32 %v3081, %v3778
  %v4013 = vadd.f32 %v3082, %v3783
  %v4014 = vadd.f32 %v3083, %v3786
  %v4015 = vadd.f32 %v3084, %v3791
  %v4016 = vadd.f32 %v3085, %v3794
  %v4017 = vadd.f32 %v3086, %v3799
  %v4018 = vadd.f32 %v3087, %v3802
  %v4019 = vadd.f32 %v3088, %v3807
  %v4020 = vadd.f32 %v3089, %v3810
  %v4021 = vadd.f32 %v3090, %v3815
  %v4022 = vadd.f32 %v3091, %v3818
  %v4023 = vadd.f32 %v3092, %v3823
  %v4024 = vadd.f32 %v3093, %v3826
  %v4025 = vadd.f32 %v3094, %v3831
  %v4026 = vadd.f32 %v3095, %v3834
  %v4027 = vadd.f32 %v3096, %v3839
  %v4028 = vadd.f32 %v3097, %v3842
  %v4029 = vadd.f32 %v3098, %v3847
  %v4030 = vadd.f32 %v3099, %v3850
  %v4031 = vadd.f32 %v3100, %v3855
  %v4032 = vadd.f32 %v3101, %v3858
  %v4033 = vadd.f32 %v3102, %v3863
  %v4034 = vadd.f32 %v3103, %v3866
  %v4035 = vadd.f32 %v3104, %v3871
  %v4036 = vadd.f32 %v3105, %v3874
  %v4037 = vadd.f32 %v3106, %v3879
  %v4038 = vadd.f32 %v3107, %v3882
  %v4039 = vadd.f32 %v3108, %v3887
  %v4040 = vadd.f32 %v3109, %v3890
  %v4041 = vadd.f32 %v3110, %v3895
  %v4042 = vadd.f32 %v3111, %v3898
  %v4043 = vadd.f32 %v3112, %v3903
  %v4044 = vadd.f32 %v3113, %v3906
  %v4045 = vadd.f32 %v3114, %v3911
  %v4046 = vadd.f32 %v3115, %v3914
  %v4047 = vadd.f32 %v3116, %v3919
  %v4048 = vadd.f32 %v3117, %v3922
  %v4049 = vadd.f32 %v3118, %v3927
  %v4050 = vadd.f32 %v3119, %v3930
  %v4051 = vadd.f32 %v3120, %v3935
  %v4052 = vadd.f32 %v3121, %v3938
  %v4053 = vadd.f32 %v3122, %v3943
  %v4054 = vadd.f32 %v3123, %v3946
  %v4055 = vadd.f32 %v3124, %v3951
  %v4056 = vadd.f32 %v3125, %v3954
  %v4057 = vadd.f32 %v3126, %v3959
  %v4058 = vadd.f32 %v3127, %v3962
  %v4059 = vadd.f32 %v3128, %v3967
  %v4060 = vadd.f32 %v3129, %v3970
  %v4061 = vadd.f32 %v3130, %v3975
  %v4062 = vadd.f32 %v3131, %v3978
  %v4063 = vld [vmem:[%s0 + $0x8] sm:$0xc]
  %s4064 = scalar_lea.vmem %s1, 320
  %v4065 = vld [vmem:[%s4064] sm:$0xf]
  %v4066 = vld [vmem:[%s4064 + $0x4] sm:$0xf]
  %v4067 = vld [vmem:[%s4064 + $0x8] sm:$0xf]
  %v4068 = vld [vmem:[%s4064 + $0xc] sm:$0xf]
  %v4069 = vld [vmem:[%s4064 + $0x10] sm:$0xf]
  %v4070 = vld [vmem:[%s4064 + $0x14] sm:$0xf]
  %v4071 = vld [vmem:[%s4064 + $0x18] sm:$0xf]
  %v4072 = vld [vmem:[%s4064 + $0x1c] sm:$0xf]
  %v4073 = vld [vmem:[%s4064 + $0x20] sm:$0xf]
  %v4074 = vld [vmem:[%s4064 + $0x24] sm:$0xf]
  %v4075 = vld [vmem:[%s4064 + $0x28] sm:$0xf]
  %v4076 = vld [vmem:[%s4064 + $0x2c] sm:$0xf]
  %v4077 = vld [vmem:[%s4064 + $0x30] sm:$0xf]
  %v4078 = vld [vmem:[%s4064 + $0x34] sm:$0xf]
  %v4079 = vld [vmem:[%s4064 + $0x38] sm:$0xf]
  %v4080 = vld [vmem:[%s4064 + $0x3c] sm:$0xf]
  %v4082 = vunpack.c.l.b16 %v4063
  %v4083 = vpack.c.b16 %v2393, %v4082
  %vm4084 = vcmask 1045504
  %v4085 = vrot.slane %v4083, 2
  %v4086 = vrot.slane %v2476, 2
  %v4087 = vsel %vm4084, %v4085, %v4086
  %v4088 = vrot.slane %v2477, 2
  %v4089 = vsel %vm4084, %v4086, %v4088
  %v4090 = vrot.slane %v2478, 2
  %v4091 = vsel %vm4084, %v4088, %v4090
  %v4092 = vrot.slane %v2479, 2
  %v4093 = vsel %vm4084, %v4090, %v4092
  %v4094 = vrot.slane %v2480, 2
  %v4095 = vsel %vm4084, %v4092, %v4094
  %v4096 = vrot.slane %v2481, 2
  %v4097 = vsel %vm4084, %v4094, %v4096
  %v4098 = vrot.slane %v2482, 2
  %v4099 = vsel %vm4084, %v4096, %v4098
  %v4100 = vrot.slane %v2483, 2
  %v4101 = vsel %vm4084, %v4098, %v4100
  %v4102 = vrot.slane %v2484, 2
  %v4103 = vsel %vm4084, %v4100, %v4102
  %v4104 = vrot.slane %v2485, 2
  %v4105 = vsel %vm4084, %v4102, %v4104
  %v4106 = vrot.slane %v2486, 2
  %v4107 = vsel %vm4084, %v4104, %v4106
  %v4108 = vrot.slane %v2487, 2
  %v4109 = vsel %vm4084, %v4106, %v4108
  %v4110 = vrot.slane %v2488, 2
  %v4111 = vsel %vm4084, %v4108, %v4110
  %v4112 = vrot.slane %v2489, 2
  %v4113 = vsel %vm4084, %v4110, %v4112
  %v4114 = vrot.slane %v2490, 2
  %v4115 = vsel %vm4084, %v4112, %v4114
  %v4116 = vrot.slane %v2491, 2
  %v4117 = vsel %vm4084, %v4114, %v4116
  %v4118 = vrot.slane %v2492, 2
  %v4119 = vsel %vm4084, %v4116, %v4118
  %v4120 = vrot.slane %v2493, 2
  %v4121 = vsel %vm4084, %v4118, %v4120
  %v4122 = vrot.slane %v2494, 2
  %v4123 = vsel %vm4084, %v4120, %v4122
  %v4124 = vrot.slane %v2495, 2
  %v4125 = vsel %vm4084, %v4122, %v4124
  %v4126 = vrot.slane %v2496, 2
  %v4127 = vsel %vm4084, %v4124, %v4126
  %v4128 = vrot.slane %v2497, 2
  %v4129 = vsel %vm4084, %v4126, %v4128
  %v4130 = vrot.slane %v2498, 2
  %v4131 = vsel %vm4084, %v4128, %v4130
  %v4132 = vrot.slane %v2499, 2
  %v4133 = vsel %vm4084, %v4130, %v4132
  %v4134 = vrot.slane %v2500, 2
  %v4135 = vsel %vm4084, %v4132, %v4134
  %v4136 = vrot.slane %v2501, 2
  %v4137 = vsel %vm4084, %v4134, %v4136
  %v4138 = vrot.slane %v2502, 2
  %v4139 = vsel %vm4084, %v4136, %v4138
  %v4140 = vrot.slane %v2503, 2
  %v4141 = vsel %vm4084, %v4138, %v4140
  %v4142 = vrot.slane %v2504, 2
  %v4143 = vsel %vm4084, %v4140, %v4142
  %v4144 = vrot.slane %v2505, 2
  %v4145 = vsel %vm4084, %v4142, %v4144
  %v4146 = vrot.slane %v2506, 2
  %v4147 = vsel %vm4084, %v4144, %v4146
  %v4148 = vrot.slane %v2507, 2
  %v4149 = vsel %vm4084, %v4146, %v4148
  %v4150 = vrot.slane %v2508, 2
  %v4151 = vsel %vm4084, %v4148, %v4150
  %v4152 = vrot.slane %v2509, 2
  %v4153 = vsel %vm4084, %v4150, %v4152
  %v4154 = vrot.slane %v2510, 2
  %v4155 = vsel %vm4084, %v4152, %v4154
  %v4156 = vrot.slane %v2511, 2
  %v4157 = vsel %vm4084, %v4154, %v4156
  %v4158 = vrot.slane %v2512, 2
  %v4159 = vsel %vm4084, %v4156, %v4158
  %v4160 = vrot.slane %v2513, 2
  %v4161 = vsel %vm4084, %v4158, %v4160
  %v4162 = vrot.slane %v2514, 2
  %v4163 = vsel %vm4084, %v4160, %v4162
  %v4164 = vrot.slane %v2515, 2
  %v4165 = vsel %vm4084, %v4162, %v4164
  %v4166 = vrot.slane %v3152, 2
  %v4167 = vsel %vm4084, %v4164, %v4166
  %v4225 = vunpack.c.l.b16 %v4065
  %v4226 = vunpack.c.l.b16 %v4066
  %v4227 = vunpack.c.l.b16 %v4067
  %v4228 = vunpack.c.l.b16 %v4068
  %v4229 = vunpack.c.l.b16 %v4069
  %v4230 = vunpack.c.l.b16 %v4070
  %v4231 = vunpack.c.l.b16 %v4071
  %v4232 = vunpack.c.l.b16 %v4072
  %v4233 = vunpack.c.l.b16 %v4073
  %v4234 = vunpack.c.l.b16 %v4074
  %v4235 = vunpack.c.l.b16 %v4075
  %v4236 = vunpack.c.l.b16 %v4076
  %v4237 = vunpack.c.l.b16 %v4077
  %v4238 = vunpack.c.l.b16 %v4078
  %v4239 = vunpack.c.l.b16 %v4079
  %v4240 = vunpack.c.l.b16 %v4080
  %v4241 = vpack.c.b16 %v4226, %v4225
  %v4242 = vpack.c.b16 %v4228, %v4227
  %v4243 = vpack.c.b16 %v4230, %v4229
  %v4244 = vpack.c.b16 %v4232, %v4231
  %v4245 = vpack.c.b16 %v4234, %v4233
  %v4246 = vpack.c.b16 %v4236, %v4235
  %v4247 = vpack.c.b16 %v4238, %v4237
  %v4248 = vpack.c.b16 %v4240, %v4239
  %4257 = vmatprep.subr.bf16.mxu0 0
  %4258 = vmatpush1.bf16.msra.mxu0 %v4241
  %4259 = vmatprep.subr.bf16.mxu0 0
  %4260 = vmatpush1.bf16.msra.mxu0 %v4242
  %4261 = vmatprep.subr.bf16.mxu0 0
  %4262 = vmatpush1.bf16.msra.mxu0 %v4243
  %4263 = vmatprep.subr.bf16.mxu0 0
  %4264 = vmatpush1.bf16.msra.mxu0 %v4244
  %4265 = vmatprep.subr.bf16.mxu0 0
  %4266 = vmatpush1.bf16.msra.mxu0 %v4245
  %4267 = vmatprep.subr.bf16.mxu0 0
  %4268 = vmatpush1.bf16.msra.mxu0 %v4246
  %4269 = vmatprep.subr.bf16.mxu0 0
  %4270 = vmatpush1.bf16.msra.mxu0 %v4247
  %4271 = vmatprep.subr.bf16.mxu0 0
  %4272 = vmatpush1.bf16.msra.mxu0 %v4248
  %4273 = vmatprep.subr.bf16.mxu0 0
  %4274 = vmatpush1.bf16.msra.mxu0 0
  %4275 = vmatprep.subr.bf16.mxu0 0
  %4276 = vmatpush1.bf16.msra.mxu0 0
  %4277 = vmatprep.subr.bf16.mxu0 0
  %4278 = vmatpush1.bf16.msra.mxu0 0
  %4279 = vmatprep.subr.bf16.mxu0 0
  %4280 = vmatpush1.bf16.msra.mxu0 0
  %4281 = vmatprep.subr.bf16.mxu0 0
  %4282 = vmatpush1.bf16.msra.mxu0 0
  %4283 = vmatprep.subr.bf16.mxu0 0
  %4284 = vmatpush1.bf16.msra.mxu0 0
  %4285 = vmatprep.subr.bf16.mxu0 0
  %4286 = vmatpush1.bf16.msra.mxu0 0
  %4287 = vmatprep.subr.bf16.mxu0 0
  %4288 = vmatpush1.bf16.msra.mxu0 0
  %4289 = vmatprep.mubr.bf16.mxu0 0
  %4290 = vmatmul.mubr.bf16.gmra.mrb[0].mxu0 %v4087
  %v4291 = vpop.f32.mrb[0].mxu0
  %v4292 = vadd.f32 0.0, %v4291
  %v4293 = vpop.f32.mrb[0].mxu0
  %v4294 = vpop.f32.mrb[0].mxu0
  %v4295 = vadd.f32 0.0, %v4294
  %v4296 = vpop.f32.mrb[0].mxu0
  %4297 = vmatprep.mubr.bf16.mxu0 0
  %4298 = vmatmul.mubr.bf16.gmra.mrb[0].mxu0 %v4089
  %v4299 = vpop.f32.mrb[0].mxu0
  %v4300 = vadd.f32 0.0, %v4299
  %v4301 = vpop.f32.mrb[0].mxu0
  %v4302 = vpop.f32.mrb[0].mxu0
  %v4303 = vadd.f32 0.0, %v4302
  %v4304 = vpop.f32.mrb[0].mxu0
  %4305 = vmatprep.mubr.bf16.mxu0 0
  %4306 = vmatmul.mubr.bf16.gmra.mrb[0].mxu0 %v4091
  %v4307 = vpop.f32.mrb[0].mxu0
  %v4308 = vadd.f32 0.0, %v4307
  %v4309 = vpop.f32.mrb[0].mxu0
  %v4310 = vpop.f32.mrb[0].mxu0
  %v4311 = vadd.f32 0.0, %v4310
  %v4312 = vpop.f32.mrb[0].mxu0
  %4313 = vmatprep.mubr.bf16.mxu0 0
  %4314 = vmatmul.mubr.bf16.gmra.mrb[0].mxu0 %v4093
  %v4315 = vpop.f32.mrb[0].mxu0
  %v4316 = vadd.f32 0.0, %v4315
  %v4317 = vpop.f32.mrb[0].mxu0
  %v4318 = vpop.f32.mrb[0].mxu0
  %v4319 = vadd.f32 0.0, %v4318
  %v4320 = vpop.f32.mrb[0].mxu0
  %4321 = vmatprep.mubr.bf16.mxu0 0
  %4322 = vmatmul.mubr.bf16.gmra.mrb[0].mxu0 %v4095
  %v4323 = vpop.f32.mrb[0].mxu0
  %v4324 = vadd.f32 0.0, %v4323
  %v4325 = vpop.f32.mrb[0].mxu0
  %v4326 = vpop.f32.mrb[0].mxu0
  %v4327 = vadd.f32 0.0, %v4326
  %v4328 = vpop.f32.mrb[0].mxu0
  %4329 = vmatprep.mubr.bf16.mxu0 0
  %4330 = vmatmul.mubr.bf16.gmra.mrb[0].mxu0 %v4097
  %v4331 = vpop.f32.mrb[0].mxu0
  %v4332 = vadd.f32 0.0, %v4331
  %v4333 = vpop.f32.mrb[0].mxu0
  %v4334 = vpop.f32.mrb[0].mxu0
  %v4335 = vadd.f32 0.0, %v4334
  %v4336 = vpop.f32.mrb[0].mxu0
  %4337 = vmatprep.mubr.bf16.mxu0 0
  %4338 = vmatmul.mubr.bf16.gmra.mrb[0].mxu0 %v4099
  %v4339 = vpop.f32.mrb[0].mxu0
  %v4340 = vadd.f32 0.0, %v4339
  %v4341 = vpop.f32.mrb[0].mxu0
  %v4342 = vpop.f32.mrb[0].mxu0
  %v4343 = vadd.f32 0.0, %v4342
  %v4344 = vpop.f32.mrb[0].mxu0
  %4345 = vmatprep.mubr.bf16.mxu0 0
  %4346 = vmatmul.mubr.bf16.gmra.mrb[0].mxu0 %v4101
  %v4347 = vpop.f32.mrb[0].mxu0
  %v4348 = vadd.f32 0.0, %v4347
  %v4349 = vpop.f32.mrb[0].mxu0
  %v4350 = vpop.f32.mrb[0].mxu0
  %v4351 = vadd.f32 0.0, %v4350
  %v4352 = vpop.f32.mrb[0].mxu0
  %4353 = vmatprep.mubr.bf16.mxu0 0
  %4354 = vmatmul.mubr.bf16.gmra.mrb[0].mxu0 %v4103
  %v4355 = vpop.f32.mrb[0].mxu0
  %v4356 = vadd.f32 0.0, %v4355
  %v4357 = vpop.f32.mrb[0].mxu0
  %v4358 = vpop.f32.mrb[0].mxu0
  %v4359 = vadd.f32 0.0, %v4358
  %v4360 = vpop.f32.mrb[0].mxu0
  %4361 = vmatprep.mubr.bf16.mxu0 0
  %4362 = vmatmul.mubr.bf16.gmra.mrb[0].mxu0 %v4105
  %v4363 = vpop.f32.mrb[0].mxu0
  %v4364 = vadd.f32 0.0, %v4363
  %v4365 = vpop.f32.mrb[0].mxu0
  %v4366 = vpop.f32.mrb[0].mxu0
  %v4367 = vadd.f32 0.0, %v4366
  %v4368 = vpop.f32.mrb[0].mxu0
  %4369 = vmatprep.mubr.bf16.mxu0 0
  %4370 = vmatmul.mubr.bf16.gmra.mrb[0].mxu0 %v4107
  %v4371 = vpop.f32.mrb[0].mxu0
  %v4372 = vadd.f32 0.0, %v4371
  %v4373 = vpop.f32.mrb[0].mxu0
  %v4374 = vpop.f32.mrb[0].mxu0
  %v4375 = vadd.f32 0.0, %v4374
  %v4376 = vpop.f32.mrb[0].mxu0
  %4377 = vmatprep.mubr.bf16.mxu0 0
  %4378 = vmatmul.mubr.bf16.gmra.mrb[0].mxu0 %v4109
  %v4379 = vpop.f32.mrb[0].mxu0
  %v4380 = vadd.f32 0.0, %v4379
  %v4381 = vpop.f32.mrb[0].mxu0
  %v4382 = vpop.f32.mrb[0].mxu0
  %v4383 = vadd.f32 0.0, %v4382
  %v4384 = vpop.f32.mrb[0].mxu0
  %4385 = vmatprep.mubr.bf16.mxu0 0
  %4386 = vmatmul.mubr.bf16.gmra.mrb[0].mxu0 %v4111
  %v4387 = vpop.f32.mrb[0].mxu0
  %v4388 = vadd.f32 0.0, %v4387
  %v4389 = vpop.f32.mrb[0].mxu0
  %v4390 = vpop.f32.mrb[0].mxu0
  %v4391 = vadd.f32 0.0, %v4390
  %v4392 = vpop.f32.mrb[0].mxu0
  %4393 = vmatprep.mubr.bf16.mxu0 0
  %4394 = vmatmul.mubr.bf16.gmra.mrb[0].mxu0 %v4113
  %v4395 = vpop.f32.mrb[0].mxu0
  %v4396 = vadd.f32 0.0, %v4395
  %v4397 = vpop.f32.mrb[0].mxu0
  %v4398 = vpop.f32.mrb[0].mxu0
  %v4399 = vadd.f32 0.0, %v4398
  %v4400 = vpop.f32.mrb[0].mxu0
  %4401 = vmatprep.mubr.bf16.mxu0 0
  %4402 = vmatmul.mubr.bf16.gmra.mrb[0].mxu0 %v4115
  %v4403 = vpop.f32.mrb[0].mxu0
  %v4404 = vadd.f32 0.0, %v4403
  %v4405 = vpop.f32.mrb[0].mxu0
  %v4406 = vpop.f32.mrb[0].mxu0
  %v4407 = vadd.f32 0.0, %v4406
  %v4408 = vpop.f32.mrb[0].mxu0
  %4409 = vmatprep.mubr.bf16.mxu0 0
  %4410 = vmatmul.mubr.bf16.gmra.mrb[0].mxu0 %v4117
  %v4411 = vpop.f32.mrb[0].mxu0
  %v4412 = vadd.f32 0.0, %v4411
  %v4413 = vpop.f32.mrb[0].mxu0
  %v4414 = vpop.f32.mrb[0].mxu0
  %v4415 = vadd.f32 0.0, %v4414
  %v4416 = vpop.f32.mrb[0].mxu0
  %4417 = vmatprep.mubr.bf16.mxu0 0
  %4418 = vmatmul.mubr.bf16.gmra.mrb[0].mxu0 %v4119
  %v4419 = vpop.f32.mrb[0].mxu0
  %v4420 = vadd.f32 0.0, %v4419
  %v4421 = vpop.f32.mrb[0].mxu0
  %v4422 = vpop.f32.mrb[0].mxu0
  %v4423 = vadd.f32 0.0, %v4422
  %v4424 = vpop.f32.mrb[0].mxu0
  %4425 = vmatprep.mubr.bf16.mxu0 0
  %4426 = vmatmul.mubr.bf16.gmra.mrb[0].mxu0 %v4121
  %v4427 = vpop.f32.mrb[0].mxu0
  %v4428 = vadd.f32 0.0, %v4427
  %v4429 = vpop.f32.mrb[0].mxu0
  %v4430 = vpop.f32.mrb[0].mxu0
  %v4431 = vadd.f32 0.0, %v4430
  %v4432 = vpop.f32.mrb[0].mxu0
  %4433 = vmatprep.mubr.bf16.mxu0 0
  %4434 = vmatmul.mubr.bf16.gmra.mrb[0].mxu0 %v4123
  %v4435 = vpop.f32.mrb[0].mxu0
  %v4436 = vadd.f32 0.0, %v4435
  %v4437 = vpop.f32.mrb[0].mxu0
  %v4438 = vpop.f32.mrb[0].mxu0
  %v4439 = vadd.f32 0.0, %v4438
  %v4440 = vpop.f32.mrb[0].mxu0
  %4441 = vmatprep.mubr.bf16.mxu0 0
  %4442 = vmatmul.mubr.bf16.gmra.mrb[0].mxu0 %v4125
  %v4443 = vpop.f32.mrb[0].mxu0
  %v4444 = vadd.f32 0.0, %v4443
  %v4445 = vpop.f32.mrb[0].mxu0
  %v4446 = vpop.f32.mrb[0].mxu0
  %v4447 = vadd.f32 0.0, %v4446
  %v4448 = vpop.f32.mrb[0].mxu0
  %4449 = vmatprep.mubr.bf16.mxu0 0
  %4450 = vmatmul.mubr.bf16.gmra.mrb[0].mxu0 %v4127
  %v4451 = vpop.f32.mrb[0].mxu0
  %v4452 = vadd.f32 0.0, %v4451
  %v4453 = vpop.f32.mrb[0].mxu0
  %v4454 = vpop.f32.mrb[0].mxu0
  %v4455 = vadd.f32 0.0, %v4454
  %v4456 = vpop.f32.mrb[0].mxu0
  %4457 = vmatprep.mubr.bf16.mxu0 0
  %4458 = vmatmul.mubr.bf16.gmra.mrb[0].mxu0 %v4129
  %v4459 = vpop.f32.mrb[0].mxu0
  %v4460 = vadd.f32 0.0, %v4459
  %v4461 = vpop.f32.mrb[0].mxu0
  %v4462 = vpop.f32.mrb[0].mxu0
  %v4463 = vadd.f32 0.0, %v4462
  %v4464 = vpop.f32.mrb[0].mxu0
  %4465 = vmatprep.mubr.bf16.mxu0 0
  %4466 = vmatmul.mubr.bf16.gmra.mrb[0].mxu0 %v4131
  %v4467 = vpop.f32.mrb[0].mxu0
  %v4468 = vadd.f32 0.0, %v4467
  %v4469 = vpop.f32.mrb[0].mxu0
  %v4470 = vpop.f32.mrb[0].mxu0
  %v4471 = vadd.f32 0.0, %v4470
  %v4472 = vpop.f32.mrb[0].mxu0
  %4473 = vmatprep.mubr.bf16.mxu0 0
  %4474 = vmatmul.mubr.bf16.gmra.mrb[0].mxu0 %v4133
  %v4475 = vpop.f32.mrb[0].mxu0
  %v4476 = vadd.f32 0.0, %v4475
  %v4477 = vpop.f32.mrb[0].mxu0
  %v4478 = vpop.f32.mrb[0].mxu0
  %v4479 = vadd.f32 0.0, %v4478
  %v4480 = vpop.f32.mrb[0].mxu0
  %4481 = vmatprep.mubr.bf16.mxu0 0
  %4482 = vmatmul.mubr.bf16.gmra.mrb[0].mxu0 %v4135
  %v4483 = vpop.f32.mrb[0].mxu0
  %v4484 = vadd.f32 0.0, %v4483
  %v4485 = vpop.f32.mrb[0].mxu0
  %v4486 = vpop.f32.mrb[0].mxu0
  %v4487 = vadd.f32 0.0, %v4486
  %v4488 = vpop.f32.mrb[0].mxu0
  %4489 = vmatprep.mubr.bf16.mxu0 0
  %4490 = vmatmul.mubr.bf16.gmra.mrb[0].mxu0 %v4137
  %v4491 = vpop.f32.mrb[0].mxu0
  %v4492 = vadd.f32 0.0, %v4491
  %v4493 = vpop.f32.mrb[0].mxu0
  %v4494 = vpop.f32.mrb[0].mxu0
  %v4495 = vadd.f32 0.0, %v4494
  %v4496 = vpop.f32.mrb[0].mxu0
  %4497 = vmatprep.mubr.bf16.mxu0 0
  %4498 = vmatmul.mubr.bf16.gmra.mrb[0].mxu0 %v4139
  %v4499 = vpop.f32.mrb[0].mxu0
  %v4500 = vadd.f32 0.0, %v4499
  %v4501 = vpop.f32.mrb[0].mxu0
  %v4502 = vpop.f32.mrb[0].mxu0
  %v4503 = vadd.f32 0.0, %v4502
  %v4504 = vpop.f32.mrb[0].mxu0
  %4505 = vmatprep.mubr.bf16.mxu0 0
  %4506 = vmatmul.mubr.bf16.gmra.mrb[0].mxu0 %v4141
  %v4507 = vpop.f32.mrb[0].mxu0
  %v4508 = vadd.f32 0.0, %v4507
  %v4509 = vpop.f32.mrb[0].mxu0
  %v4510 = vpop.f32.mrb[0].mxu0
  %v4511 = vadd.f32 0.0, %v4510
  %v4512 = vpop.f32.mrb[0].mxu0
  %4513 = vmatprep.mubr.bf16.mxu0 0
  %4514 = vmatmul.mubr.bf16.gmra.mrb[0].mxu0 %v4143
  %v4515 = vpop.f32.mrb[0].mxu0
  %v4516 = vadd.f32 0.0, %v4515
  %v4517 = vpop.f32.mrb[0].mxu0
  %v4518 = vpop.f32.mrb[0].mxu0
  %v4519 = vadd.f32 0.0, %v4518
  %v4520 = vpop.f32.mrb[0].mxu0
  %4521 = vmatprep.mubr.bf16.mxu0 0
  %4522 = vmatmul.mubr.bf16.gmra.mrb[0].mxu0 %v4145
  %v4523 = vpop.f32.mrb[0].mxu0
  %v4524 = vadd.f32 0.0, %v4523
  %v4525 = vpop.f32.mrb[0].mxu0
  %v4526 = vpop.f32.mrb[0].mxu0
  %v4527 = vadd.f32 0.0, %v4526
  %v4528 = vpop.f32.mrb[0].mxu0
  %4529 = vmatprep.mubr.bf16.mxu0 0
  %4530 = vmatmul.mubr.bf16.gmra.mrb[0].mxu0 %v4147
  %v4531 = vpop.f32.mrb[0].mxu0
  %v4532 = vadd.f32 0.0, %v4531
  %v4533 = vpop.f32.mrb[0].mxu0
  %v4534 = vpop.f32.mrb[0].mxu0
  %v4535 = vadd.f32 0.0, %v4534
  %v4536 = vpop.f32.mrb[0].mxu0
  %4537 = vmatprep.mubr.bf16.mxu0 0
  %4538 = vmatmul.mubr.bf16.gmra.mrb[0].mxu0 %v4149
  %v4539 = vpop.f32.mrb[0].mxu0
  %v4540 = vadd.f32 0.0, %v4539
  %v4541 = vpop.f32.mrb[0].mxu0
  %v4542 = vpop.f32.mrb[0].mxu0
  %v4543 = vadd.f32 0.0, %v4542
  %v4544 = vpop.f32.mrb[0].mxu0
  %4545 = vmatprep.mubr.bf16.mxu0 0
  %4546 = vmatmul.mubr.bf16.gmra.mrb[0].mxu0 %v4151
  %v4547 = vpop.f32.mrb[0].mxu0
  %v4548 = vadd.f32 0.0, %v4547
  %v4549 = vpop.f32.mrb[0].mxu0
  %v4550 = vpop.f32.mrb[0].mxu0
  %v4551 = vadd.f32 0.0, %v4550
  %v4552 = vpop.f32.mrb[0].mxu0
  %4553 = vmatprep.mubr.bf16.mxu0 0
  %4554 = vmatmul.mubr.bf16.gmra.mrb[0].mxu0 %v4153
  %v4555 = vpop.f32.mrb[0].mxu0
  %v4556 = vadd.f32 0.0, %v4555
  %v4557 = vpop.f32.mrb[0].mxu0
  %v4558 = vpop.f32.mrb[0].mxu0
  %v4559 = vadd.f32 0.0, %v4558
  %v4560 = vpop.f32.mrb[0].mxu0
  %4561 = vmatprep.mubr.bf16.mxu0 0
  %4562 = vmatmul.mubr.bf16.gmra.mrb[0].mxu0 %v4155
  %v4563 = vpop.f32.mrb[0].mxu0
  %v4564 = vadd.f32 0.0, %v4563
  %v4565 = vpop.f32.mrb[0].mxu0
  %v4566 = vpop.f32.mrb[0].mxu0
  %v4567 = vadd.f32 0.0, %v4566
  %v4568 = vpop.f32.mrb[0].mxu0
  %4569 = vmatprep.mubr.bf16.mxu0 0
  %4570 = vmatmul.mubr.bf16.gmra.mrb[0].mxu0 %v4157
  %v4571 = vpop.f32.mrb[0].mxu0
  %v4572 = vadd.f32 0.0, %v4571
  %v4573 = vpop.f32.mrb[0].mxu0
  %v4574 = vpop.f32.mrb[0].mxu0
  %v4575 = vadd.f32 0.0, %v4574
  %v4576 = vpop.f32.mrb[0].mxu0
  %4577 = vmatprep.mubr.bf16.mxu0 0
  %4578 = vmatmul.mubr.bf16.gmra.mrb[0].mxu0 %v4159
  %v4579 = vpop.f32.mrb[0].mxu0
  %v4580 = vadd.f32 0.0, %v4579
  %v4581 = vpop.f32.mrb[0].mxu0
  %v4582 = vpop.f32.mrb[0].mxu0
  %v4583 = vadd.f32 0.0, %v4582
  %v4584 = vpop.f32.mrb[0].mxu0
  %4585 = vmatprep.mubr.bf16.mxu0 0
  %4586 = vmatmul.mubr.bf16.gmra.mrb[0].mxu0 %v4161
  %v4587 = vpop.f32.mrb[0].mxu0
  %v4588 = vadd.f32 0.0, %v4587
  %v4589 = vpop.f32.mrb[0].mxu0
  %v4590 = vpop.f32.mrb[0].mxu0
  %v4591 = vadd.f32 0.0, %v4590
  %v4592 = vpop.f32.mrb[0].mxu0
  %4593 = vmatprep.mubr.bf16.mxu0 0
  %4594 = vmatmul.mubr.bf16.gmra.mrb[0].mxu0 %v4163
  %v4595 = vpop.f32.mrb[0].mxu0
  %v4596 = vadd.f32 0.0, %v4595
  %v4597 = vpop.f32.mrb[0].mxu0
  %v4598 = vpop.f32.mrb[0].mxu0
  %v4599 = vadd.f32 0.0, %v4598
  %v4600 = vpop.f32.mrb[0].mxu0
  %4601 = vmatprep.mubr.bf16.mxu0 0
  %4602 = vmatmul.mubr.bf16.gmra.mrb[0].mxu0 %v4165
  %v4603 = vpop.f32.mrb[0].mxu0
  %v4604 = vadd.f32 0.0, %v4603
  %v4605 = vpop.f32.mrb[0].mxu0
  %v4606 = vpop.f32.mrb[0].mxu0
  %v4607 = vadd.f32 0.0, %v4606
  %v4608 = vpop.f32.mrb[0].mxu0
  %4609 = vmatprep.mubr.bf16.mxu0 0
  %4610 = vmatmul.mubr.bf16.gmra.mrb[0].mxu0 %v4167
  %v4611 = vpop.f32.mrb[0].mxu0
  %v4612 = vadd.f32 0.0, %v4611
  %v4613 = vpop.f32.mrb[0].mxu0
  %v4614 = vpop.f32.mrb[0].mxu0
  %v4615 = vadd.f32 0.0, %v4614
  %v4616 = vpop.f32.mrb[0].mxu0
  %4617 = vdwg.mxu0
  %v4618 = vadd.f32 %v3981, %v4292
  %v4619 = vadd.f32 %v3982, %v4295
  %v4620 = vadd.f32 %v3983, %v4300
  %v4621 = vadd.f32 %v3984, %v4303
  %v4622 = vadd.f32 %v3985, %v4308
  %v4623 = vadd.f32 %v3986, %v4311
  %v4624 = vadd.f32 %v3987, %v4316
  %v4625 = vadd.f32 %v3988, %v4319
  %v4626 = vadd.f32 %v3989, %v4324
  %v4627 = vadd.f32 %v3990, %v4327
  %v4628 = vadd.f32 %v3991, %v4332
  %v4629 = vadd.f32 %v3992, %v4335
  %v4630 = vadd.f32 %v3993, %v4340
  %v4631 = vadd.f32 %v3994, %v4343
  %v4632 = vadd.f32 %v3995, %v4348
  %v4633 = vadd.f32 %v3996, %v4351
  %v4634 = vadd.f32 %v3997, %v4356
  %v4635 = vadd.f32 %v3998, %v4359
  %v4636 = vadd.f32 %v3999, %v4364
  %v4637 = vadd.f32 %v4000, %v4367
  %v4638 = vadd.f32 %v4001, %v4372
  %v4639 = vadd.f32 %v4002, %v4375
  %v4640 = vadd.f32 %v4003, %v4380
  %v4641 = vadd.f32 %v4004, %v4383
  %v4642 = vadd.f32 %v4005, %v4388
  %v4643 = vadd.f32 %v4006, %v4391
  %v4644 = vadd.f32 %v4007, %v4396
  %v4645 = vadd.f32 %v4008, %v4399
  %v4646 = vadd.f32 %v4009, %v4404
  %v4647 = vadd.f32 %v4010, %v4407
  %v4648 = vadd.f32 %v4011, %v4412
  %v4649 = vadd.f32 %v4012, %v4415
  %v4650 = vadd.f32 %v4013, %v4420
  %v4651 = vadd.f32 %v4014, %v4423
  %v4652 = vadd.f32 %v4015, %v4428
  %v4653 = vadd.f32 %v4016, %v4431
  %v4654 = vadd.f32 %v4017, %v4436
  %v4655 = vadd.f32 %v4018, %v4439
  %v4656 = vadd.f32 %v4019, %v4444
  %v4657 = vadd.f32 %v4020, %v4447
  %v4658 = vadd.f32 %v4021, %v4452
  %v4659 = vadd.f32 %v4022, %v4455
  %v4660 = vadd.f32 %v4023, %v4460
  %v4661 = vadd.f32 %v4024, %v4463
  %v4662 = vadd.f32 %v4025, %v4468
  %v4663 = vadd.f32 %v4026, %v4471
  %v4664 = vadd.f32 %v4027, %v4476
  %v4665 = vadd.f32 %v4028, %v4479
  %v4666 = vadd.f32 %v4029, %v4484
  %v4667 = vadd.f32 %v4030, %v4487
  %v4668 = vadd.f32 %v4031, %v4492
  %v4669 = vadd.f32 %v4032, %v4495
  %v4670 = vadd.f32 %v4033, %v4500
  %v4671 = vadd.f32 %v4034, %v4503
  %v4672 = vadd.f32 %v4035, %v4508
  %v4673 = vadd.f32 %v4036, %v4511
  %v4674 = vadd.f32 %v4037, %v4516
  %v4675 = vadd.f32 %v4038, %v4519
  %v4676 = vadd.f32 %v4039, %v4524
  %v4677 = vadd.f32 %v4040, %v4527
  %v4678 = vadd.f32 %v4041, %v4532
  %v4679 = vadd.f32 %v4042, %v4535
  %v4680 = vadd.f32 %v4043, %v4540
  %v4681 = vadd.f32 %v4044, %v4543
  %v4682 = vadd.f32 %v4045, %v4548
  %v4683 = vadd.f32 %v4046, %v4551
  %v4684 = vadd.f32 %v4047, %v4556
  %v4685 = vadd.f32 %v4048, %v4559
  %v4686 = vadd.f32 %v4049, %v4564
  %v4687 = vadd.f32 %v4050, %v4567
  %v4688 = vadd.f32 %v4051, %v4572
  %v4689 = vadd.f32 %v4052, %v4575
  %v4690 = vadd.f32 %v4053, %v4580
  %v4691 = vadd.f32 %v4054, %v4583
  %v4692 = vadd.f32 %v4055, %v4588
  %v4693 = vadd.f32 %v4056, %v4591
  %v4694 = vadd.f32 %v4057, %v4596
  %v4695 = vadd.f32 %v4058, %v4599
  %v4696 = vadd.f32 %v4059, %v4604
  %v4697 = vadd.f32 %v4060, %v4607
  %v4698 = vadd.f32 %v4061, %v4612
  %v4699 = vadd.f32 %v4062, %v4615
  %v4700 = vld [vmem:[%s0 + $0x10] sm:$0xc]
  %v4701 = vld [vmem:[%s0 + $0x14] sm:$0xf]
  %v4702 = vld [vmem:[%s0 + $0x18] sm:$0xf]
  %v4703 = vld [vmem:[%s0 + $0x1c] sm:$0xf]
  %v4704 = vld [vmem:[%s0 + $0x20] sm:$0xf]
  %v4705 = vld [vmem:[%s0 + $0x24] sm:$0xf]
  %v4706 = vld [vmem:[%s0 + $0x28] sm:$0xf]
  %v4707 = vld [vmem:[%s0 + $0x2c] sm:$0xf]
  %v4708 = vld [vmem:[%s0 + $0x30] sm:$0xf]
  %v4709 = vld [vmem:[%s0 + $0x34] sm:$0xf]
  %v4710 = vld [vmem:[%s0 + $0x38] sm:$0xf]
  %v4711 = vld [vmem:[%s0 + $0x3c] sm:$0xf]
  %v4712 = vld [vmem:[%s0 + $0x40] sm:$0xf]
  %v4713 = vld [vmem:[%s0 + $0x44] sm:$0xf]
  %v4714 = vld [vmem:[%s0 + $0x48] sm:$0xf]
  %v4715 = vld [vmem:[%s0 + $0x4c] sm:$0xf]
  %v4716 = vld [vmem:[%s0 + $0x50] sm:$0xf]
  %v4717 = vld [vmem:[%s0 + $0x54] sm:$0xf]
  %v4718 = vld [vmem:[%s0 + $0x58] sm:$0xf]
  %v4719 = vld [vmem:[%s0 + $0x5c] sm:$0xf]
  %v4720 = vld [vmem:[%s0 + $0x60] sm:$0xf]
  %v4721 = vld [vmem:[%s0 + $0x64] sm:$0xf]
  %v4722 = vld [vmem:[%s0 + $0x68] sm:$0xf]
  %v4723 = vld [vmem:[%s0 + $0x6c] sm:$0xf]
  %v4724 = vld [vmem:[%s0 + $0x70] sm:$0xf]
  %v4725 = vld [vmem:[%s0 + $0x74] sm:$0xf]
  %v4726 = vld [vmem:[%s0 + $0x78] sm:$0xf]
  %v4727 = vld [vmem:[%s0 + $0x7c] sm:$0xf]
  %v4728 = vld [vmem:[%s0 + $0x80] sm:$0xf]
  %v4729 = vld [vmem:[%s0 + $0x84] sm:$0xf]
  %v4730 = vld [vmem:[%s0 + $0x88] sm:$0xf]
  %v4731 = vld [vmem:[%s0 + $0x8c] sm:$0xf]
  %v4732 = vld [vmem:[%s0 + $0x90] sm:$0xf]
  %v4733 = vld [vmem:[%s0 + $0x94] sm:$0xf]
  %v4734 = vld [vmem:[%s0 + $0x98] sm:$0xf]
  %v4735 = vld [vmem:[%s0 + $0x9c] sm:$0xf]
  %v4736 = vld [vmem:[%s0 + $0xa0] sm:$0xf]
  %v4737 = vld [vmem:[%s0 + $0xa4] sm:$0xf]
  %v4738 = vld [vmem:[%s0 + $0xa8] sm:$0xf]
  %v4739 = vld [vmem:[%s0 + $0xac] sm:$0xf]
  %v4740 = vld [vmem:[%s0 + $0xb0] sm:$0xf]
  %v4741 = vld [vmem:[%s0 + $0xb4] sm:$0xf]
  %v4742 = vld [vmem:[%s0 + $0xb8] sm:$0xf]
  %v4743 = vld [vmem:[%s0 + $0xbc] sm:$0xf]
  %v4744 = vld [vmem:[%s0 + $0xc0] sm:$0xf]
  %v4745 = vld [vmem:[%s0 + $0xc4] sm:$0xf]
  %v4746 = vld [vmem:[%s0 + $0xc8] sm:$0xf]
  %v4747 = vld [vmem:[%s0 + $0xcc] sm:$0xf]
  %v4748 = vld [vmem:[%s0 + $0xd0] sm:$0xf]
  %v4749 = vld [vmem:[%s0 + $0xd4] sm:$0xf]
  %v4750 = vld [vmem:[%s0 + $0xd8] sm:$0xf]
  %v4751 = vld [vmem:[%s0 + $0xdc] sm:$0xf]
  %v4752 = vld [vmem:[%s0 + $0xe0] sm:$0xf]
  %v4753 = vld [vmem:[%s0 + $0xe4] sm:$0xf]
  %v4754 = vld [vmem:[%s0 + $0xe8] sm:$0xf]
  %v4755 = vld [vmem:[%s0 + $0xec] sm:$0xf]
  %v4756 = vld [vmem:[%s0 + $0xf0] sm:$0xf]
  %v4757 = vld [vmem:[%s0 + $0xf4] sm:$0xf]
  %v4758 = vld [vmem:[%s0 + $0xf8] sm:$0xf]
  %v4759 = vld [vmem:[%s0 + $0xfc] sm:$0xf]
  %v4760 = vld [vmem:[%s0 + $0x100] sm:$0xf]
  %v4761 = vld [vmem:[%s0 + $0x104] sm:$0xf]
  %v4762 = vld [vmem:[%s0 + $0x108] sm:$0xf]
  %v4763 = vld [vmem:[%s0 + $0x10c] sm:$0xf]
  %v4764 = vld [vmem:[%s0 + $0x110] sm:$0xf]
  %v4765 = vld [vmem:[%s0 + $0x114] sm:$0xf]
  %v4766 = vld [vmem:[%s0 + $0x118] sm:$0xf]
  %v4767 = vld [vmem:[%s0 + $0x11c] sm:$0xf]
  %v4768 = vld [vmem:[%s0 + $0x120] sm:$0xf]
  %v4769 = vld [vmem:[%s0 + $0x124] sm:$0xf]
  %v4770 = vld [vmem:[%s0 + $0x128] sm:$0xf]
  %v4771 = vld [vmem:[%s0 + $0x12c] sm:$0xf]
  %v4772 = vld [vmem:[%s0 + $0x130] sm:$0xf]
  %v4773 = vld [vmem:[%s0 + $0x134] sm:$0xf]
  %v4774 = vld [vmem:[%s0 + $0x138] sm:$0xf]
  %v4775 = vld [vmem:[%s0 + $0x13c] sm:$0xf]
  %v4776 = vld [vmem:[%s0 + $0x140] sm:$0xf]
  %v4777 = vld [vmem:[%s0 + $0x144] sm:$0xf]
  %v4778 = vld [vmem:[%s0 + $0x148] sm:$0xf]
  %v4779 = vld [vmem:[%s0 + $0x14c] sm:$0xf]
  %v4780 = vld [vmem:[%s0 + $0x150] sm:$0xf]
  %v4781 = vld [vmem:[%s0 + $0x154] sm:$0xf]
  %v4782 = vld [vmem:[%s0 + $0x158] sm:$0x3]
  %s4783 = scalar_lea.vmem %s1, 384
  %v4784 = vld [vmem:[%s4783] sm:$0xf]
  %v4785 = vld [vmem:[%s4783 + $0x4] sm:$0xf]
  %v4786 = vld [vmem:[%s4783 + $0x8] sm:$0xf]
  %v4787 = vld [vmem:[%s4783 + $0xc] sm:$0xf]
  %v4788 = vld [vmem:[%s4783 + $0x10] sm:$0xf]
  %v4789 = vld [vmem:[%s4783 + $0x14] sm:$0xf]
  %v4790 = vld [vmem:[%s4783 + $0x18] sm:$0xf]
  %v4791 = vld [vmem:[%s4783 + $0x1c] sm:$0xf]
  %v4792 = vld [vmem:[%s4783 + $0x20] sm:$0xf]
  %v4793 = vld [vmem:[%s4783 + $0x24] sm:$0xf]
  %v4794 = vld [vmem:[%s4783 + $0x28] sm:$0xf]
  %v4795 = vld [vmem:[%s4783 + $0x2c] sm:$0xf]
  %v4796 = vld [vmem:[%s4783 + $0x30] sm:$0xf]
  %v4797 = vld [vmem:[%s4783 + $0x34] sm:$0xf]
  %v4798 = vld [vmem:[%s4783 + $0x38] sm:$0xf]
  %v4799 = vld [vmem:[%s4783 + $0x3c] sm:$0xf]
  %v4883 = vunpack.c.l.b16 %v4700
  %v4884 = vunpack.c.l.b16 %v4701
  %v4885 = vunpack.c.l.b16 %v4702
  %v4886 = vunpack.c.l.b16 %v4703
  %v4887 = vunpack.c.l.b16 %v4704
  %v4888 = vunpack.c.l.b16 %v4705
  %v4889 = vunpack.c.l.b16 %v4706
  %v4890 = vunpack.c.l.b16 %v4707
  %v4891 = vunpack.c.l.b16 %v4708
  %v4892 = vunpack.c.l.b16 %v4709
  %v4893 = vunpack.c.l.b16 %v4710
  %v4894 = vunpack.c.l.b16 %v4711
  %v4895 = vunpack.c.l.b16 %v4712
  %v4896 = vunpack.c.l.b16 %v4713
  %v4897 = vunpack.c.l.b16 %v4714
  %v4898 = vunpack.c.l.b16 %v4715
  %v4899 = vunpack.c.l.b16 %v4716
  %v4900 = vunpack.c.l.b16 %v4717
  %v4901 = vunpack.c.l.b16 %v4718
  %v4902 = vunpack.c.l.b16 %v4719
  %v4903 = vunpack.c.l.b16 %v4720
  %v4904 = vunpack.c.l.b16 %v4721
  %v4905 = vunpack.c.l.b16 %v4722
  %v4906 = vunpack.c.l.b16 %v4723
  %v4907 = vunpack.c.l.b16 %v4724
  %v4908 = vunpack.c.l.b16 %v4725
  %v4909 = vunpack.c.l.b16 %v4726
  %v4910 = vunpack.c.l.b16 %v4727
  %v4911 = vunpack.c.l.b16 %v4728
  %v4912 = vunpack.c.l.b16 %v4729
  %v4913 = vunpack.c.l.b16 %v4730
  %v4914 = vunpack.c.l.b16 %v4731
  %v4915 = vunpack.c.l.b16 %v4732
  %v4916 = vunpack.c.l.b16 %v4733
  %v4917 = vunpack.c.l.b16 %v4734
  %v4918 = vunpack.c.l.b16 %v4735
  %v4919 = vunpack.c.l.b16 %v4736
  %v4920 = vunpack.c.l.b16 %v4737
  %v4921 = vunpack.c.l.b16 %v4738
  %v4922 = vunpack.c.l.b16 %v4739
  %v4923 = vunpack.c.l.b16 %v4740
  %v4924 = vunpack.c.l.b16 %v4741
  %v4925 = vunpack.c.l.b16 %v4742
  %v4926 = vunpack.c.l.b16 %v4743
  %v4927 = vunpack.c.l.b16 %v4744
  %v4928 = vunpack.c.l.b16 %v4745
  %v4929 = vunpack.c.l.b16 %v4746
  %v4930 = vunpack.c.l.b16 %v4747
  %v4931 = vunpack.c.l.b16 %v4748
  %v4932 = vunpack.c.l.b16 %v4749
  %v4933 = vunpack.c.l.b16 %v4750
  %v4934 = vunpack.c.l.b16 %v4751
  %v4935 = vunpack.c.l.b16 %v4752
  %v4936 = vunpack.c.l.b16 %v4753
  %v4937 = vunpack.c.l.b16 %v4754
  %v4938 = vunpack.c.l.b16 %v4755
  %v4939 = vunpack.c.l.b16 %v4756
  %v4940 = vunpack.c.l.b16 %v4757
  %v4941 = vunpack.c.l.b16 %v4758
  %v4942 = vunpack.c.l.b16 %v4759
  %v4943 = vunpack.c.l.b16 %v4760
  %v4944 = vunpack.c.l.b16 %v4761
  %v4945 = vunpack.c.l.b16 %v4762
  %v4946 = vunpack.c.l.b16 %v4763
  %v4947 = vunpack.c.l.b16 %v4764
  %v4948 = vunpack.c.l.b16 %v4765
  %v4949 = vunpack.c.l.b16 %v4766
  %v4950 = vunpack.c.l.b16 %v4767
  %v4951 = vunpack.c.l.b16 %v4768
  %v4952 = vunpack.c.l.b16 %v4769
  %v4953 = vunpack.c.l.b16 %v4770
  %v4954 = vunpack.c.l.b16 %v4771
  %v4955 = vunpack.c.l.b16 %v4772
  %v4956 = vunpack.c.l.b16 %v4773
  %v4957 = vunpack.c.l.b16 %v4774
  %v4958 = vunpack.c.l.b16 %v4775
  %v4959 = vunpack.c.l.b16 %v4776
  %v4960 = vunpack.c.l.b16 %v4777
  %v4961 = vunpack.c.l.b16 %v4778
  %v4962 = vunpack.c.l.b16 %v4779
  %v4963 = vunpack.c.l.b16 %v4780
  %v4964 = vunpack.c.l.b16 %v4781
  %v4965 = vunpack.c.l.b16 %v4782
  %v4966 = vpack.c.b16 %v4884, %v4883
  %v4967 = vpack.c.b16 %v4886, %v4885
  %v4968 = vpack.c.b16 %v4888, %v4887
  %v4969 = vpack.c.b16 %v4890, %v4889
  %v4970 = vpack.c.b16 %v4892, %v4891
  %v4971 = vpack.c.b16 %v4894, %v4893
  %v4972 = vpack.c.b16 %v4896, %v4895
  %v4973 = vpack.c.b16 %v4898, %v4897
  %v4974 = vpack.c.b16 %v4900, %v4899
  %v4975 = vpack.c.b16 %v4902, %v4901
  %v4976 = vpack.c.b16 %v4904, %v4903
  %v4977 = vpack.c.b16 %v4906, %v4905
  %v4978 = vpack.c.b16 %v4908, %v4907
  %v4979 = vpack.c.b16 %v4910, %v4909
  %v4980 = vpack.c.b16 %v4912, %v4911
  %v4981 = vpack.c.b16 %v4914, %v4913
  %v4982 = vpack.c.b16 %v4916, %v4915
  %v4983 = vpack.c.b16 %v4918, %v4917
  %v4984 = vpack.c.b16 %v4920, %v4919
  %v4985 = vpack.c.b16 %v4922, %v4921
  %v4986 = vpack.c.b16 %v4924, %v4923
  %v4987 = vpack.c.b16 %v4926, %v4925
  %v4988 = vpack.c.b16 %v4928, %v4927
  %v4989 = vpack.c.b16 %v4930, %v4929
  %v4990 = vpack.c.b16 %v4932, %v4931
  %v4991 = vpack.c.b16 %v4934, %v4933
  %v4992 = vpack.c.b16 %v4936, %v4935
  %v4993 = vpack.c.b16 %v4938, %v4937
  %v4994 = vpack.c.b16 %v4940, %v4939
  %v4995 = vpack.c.b16 %v4942, %v4941
  %v4996 = vpack.c.b16 %v4944, %v4943
  %v4997 = vpack.c.b16 %v4946, %v4945
  %v4998 = vpack.c.b16 %v4948, %v4947
  %v4999 = vpack.c.b16 %v4950, %v4949
  %v5000 = vpack.c.b16 %v4952, %v4951
  %v5001 = vpack.c.b16 %v4954, %v4953
  %v5002 = vpack.c.b16 %v4956, %v4955
  %v5003 = vpack.c.b16 %v4958, %v4957
  %v5004 = vpack.c.b16 %v4960, %v4959
  %v5005 = vpack.c.b16 %v4962, %v4961
  %v5006 = vpack.c.b16 %v4964, %v4963
  %v5007 = vpack.c.b16 %v4965, %v4965
  %v5008 = vrot.slane %v4966, 2
  %v5009 = vrot.slane %v4967, 2
  %v5010 = vsel %vm4084, %v5008, %v5009
  %v5011 = vrot.slane %v4968, 2
  %v5012 = vsel %vm4084, %v5009, %v5011
  %v5013 = vrot.slane %v4969, 2
  %v5014 = vsel %vm4084, %v5011, %v5013
  %v5015 = vrot.slane %v4970, 2
  %v5016 = vsel %vm4084, %v5013, %v5015
  %v5017 = vrot.slane %v4971, 2
  %v5018 = vsel %vm4084, %v5015, %v5017
  %v5019 = vrot.slane %v4972, 2
  %v5020 = vsel %vm4084, %v5017, %v5019
  %v5021 = vrot.slane %v4973, 2
  %v5022 = vsel %vm4084, %v5019, %v5021
  %v5023 = vrot.slane %v4974, 2
  %v5024 = vsel %vm4084, %v5021, %v5023
  %v5025 = vrot.slane %v4975, 2
  %v5026 = vsel %vm4084, %v5023, %v5025
  %v5027 = vrot.slane %v4976, 2
  %v5028 = vsel %vm4084, %v5025, %v5027
  %v5029 = vrot.slane %v4977, 2
  %v5030 = vsel %vm4084, %v5027, %v5029
  %v5031 = vrot.slane %v4978, 2
  %v5032 = vsel %vm4084, %v5029, %v5031
  %v5033 = vrot.slane %v4979, 2
  %v5034 = vsel %vm4084, %v5031, %v5033
  %v5035 = vrot.slane %v4980, 2
  %v5036 = vsel %vm4084, %v5033, %v5035
  %v5037 = vrot.slane %v4981, 2
  %v5038 = vsel %vm4084, %v5035, %v5037
  %v5039 = vrot.slane %v4982, 2
  %v5040 = vsel %vm4084, %v5037, %v5039
  %v5041 = vrot.slane %v4983, 2
  %v5042 = vsel %vm4084, %v5039, %v5041
  %v5043 = vrot.slane %v4984, 2
  %v5044 = vsel %vm4084, %v5041, %v5043
  %v5045 = vrot.slane %v4985, 2
  %v5046 = vsel %vm4084, %v5043, %v5045
  %v5047 = vrot.slane %v4986, 2
  %v5048 = vsel %vm4084, %v5045, %v5047
  %v5049 = vrot.slane %v4987, 2
  %v5050 = vsel %vm4084, %v5047, %v5049
  %v5051 = vrot.slane %v4988, 2
  %v5052 = vsel %vm4084, %v5049, %v5051
  %v5053 = vrot.slane %v4989, 2
  %v5054 = vsel %vm4084, %v5051, %v5053
  %v5055 = vrot.slane %v4990, 2
  %v5056 = vsel %vm4084, %v5053, %v5055
  %v5057 = vrot.slane %v4991, 2
  %v5058 = vsel %vm4084, %v5055, %v5057
  %v5059 = vrot.slane %v4992, 2
  %v5060 = vsel %vm4084, %v5057, %v5059
  %v5061 = vrot.slane %v4993, 2
  %v5062 = vsel %vm4084, %v5059, %v5061
  %v5063 = vrot.slane %v4994, 2
  %v5064 = vsel %vm4084, %v5061, %v5063
  %v5065 = vrot.slane %v4995, 2
  %v5066 = vsel %vm4084, %v5063, %v5065
  %v5067 = vrot.slane %v4996, 2
  %v5068 = vsel %vm4084, %v5065, %v5067
  %v5069 = vrot.slane %v4997, 2
  %v5070 = vsel %vm4084, %v5067, %v5069
  %v5071 = vrot.slane %v4998, 2
  %v5072 = vsel %vm4084, %v5069, %v5071
  %v5073 = vrot.slane %v4999, 2
  %v5074 = vsel %vm4084, %v5071, %v5073
  %v5075 = vrot.slane %v5000, 2
  %v5076 = vsel %vm4084, %v5073, %v5075
  %v5077 = vrot.slane %v5001, 2
  %v5078 = vsel %vm4084, %v5075, %v5077
  %v5079 = vrot.slane %v5002, 2
  %v5080 = vsel %vm4084, %v5077, %v5079
  %v5081 = vrot.slane %v5003, 2
  %v5082 = vsel %vm4084, %v5079, %v5081
  %v5083 = vrot.slane %v5004, 2
  %v5084 = vsel %vm4084, %v5081, %v5083
  %v5085 = vrot.slane %v5005, 2
  %v5086 = vsel %vm4084, %v5083, %v5085
  %v5087 = vrot.slane %v5006, 2
  %v5088 = vsel %vm4084, %v5085, %v5087
  %v5089 = vrot.slane %v5007, 2
  %v5090 = vsel %vm4084, %v5087, %v5089
  %v5148 = vunpack.c.l.b16 %v4784
  %v5149 = vunpack.c.l.b16 %v4785
  %v5150 = vunpack.c.l.b16 %v4786
  %v5151 = vunpack.c.l.b16 %v4787
  %v5152 = vunpack.c.l.b16 %v4788
  %v5153 = vunpack.c.l.b16 %v4789
  %v5154 = vunpack.c.l.b16 %v4790
  %v5155 = vunpack.c.l.b16 %v4791
  %v5156 = vunpack.c.l.b16 %v4792
  %v5157 = vunpack.c.l.b16 %v4793
  %v5158 = vunpack.c.l.b16 %v4794
  %v5159 = vunpack.c.l.b16 %v4795
  %v5160 = vunpack.c.l.b16 %v4796
  %v5161 = vunpack.c.l.b16 %v4797
  %v5162 = vunpack.c.l.b16 %v4798
  %v5163 = vunpack.c.l.b16 %v4799
  %v5164 = vpack.c.b16 %v5149, %v5148
  %v5165 = vpack.c.b16 %v5151, %v5150
  %v5166 = vpack.c.b16 %v5153, %v5152
  %v5167 = vpack.c.b16 %v5155, %v5154
  %v5168 = vpack.c.b16 %v5157, %v5156
  %v5169 = vpack.c.b16 %v5159, %v5158
  %v5170 = vpack.c.b16 %v5161, %v5160
  %v5171 = vpack.c.b16 %v5163, %v5162
  %5180 = vmatprep.subr.bf16.mxu0 0
  %5181 = vmatpush1.bf16.msra.mxu0 %v5164
  %5182 = vmatprep.subr.bf16.mxu0 0
  %5183 = vmatpush1.bf16.msra.mxu0 %v5165
  %5184 = vmatprep.subr.bf16.mxu0 0
  %5185 = vmatpush1.bf16.msra.mxu0 %v5166
  %5186 = vmatprep.subr.bf16.mxu0 0
  %5187 = vmatpush1.bf16.msra.mxu0 %v5167
  %5188 = vmatprep.subr.bf16.mxu0 0
  %5189 = vmatpush1.bf16.msra.mxu0 %v5168
  %5190 = vmatprep.subr.bf16.mxu0 0
  %5191 = vmatpush1.bf16.msra.mxu0 %v5169
  %5192 = vmatprep.subr.bf16.mxu0 0
  %5193 = vmatpush1.bf16.msra.mxu0 %v5170
  %5194 = vmatprep.subr.bf16.mxu0 0
  %5195 = vmatpush1.bf16.msra.mxu0 %v5171
  %5196 = vmatprep.subr.bf16.mxu0 0
  %5197 = vmatpush1.bf16.msra.mxu0 0
  %5198 = vmatprep.subr.bf16.mxu0 0
  %5199 = vmatpush1.bf16.msra.mxu0 0
  %5200 = vmatprep.subr.bf16.mxu0 0
  %5201 = vmatpush1.bf16.msra.mxu0 0
  %5202 = vmatprep.subr.bf16.mxu0 0
  %5203 = vmatpush1.bf16.msra.mxu0 0
  %5204 = vmatprep.subr.bf16.mxu0 0
  %5205 = vmatpush1.bf16.msra.mxu0 0
  %5206 = vmatprep.subr.bf16.mxu0 0
  %5207 = vmatpush1.bf16.msra.mxu0 0
  %5208 = vmatprep.subr.bf16.mxu0 0
  %5209 = vmatpush1.bf16.msra.mxu0 0
  %5210 = vmatprep.subr.bf16.mxu0 0
  %5211 = vmatpush1.bf16.msra.mxu0 0
  %5212 = vmatprep.mubr.bf16.mxu0 0
  %5213 = vmatmul.mubr.bf16.gmra.mrb[0].mxu0 %v5010
  %v5214 = vpop.f32.mrb[0].mxu0
  %v5215 = vadd.f32 0.0, %v5214
  %v5216 = vpop.f32.mrb[0].mxu0
  %v5217 = vpop.f32.mrb[0].mxu0
  %v5218 = vadd.f32 0.0, %v5217
  %v5219 = vpop.f32.mrb[0].mxu0
  %5220 = vmatprep.mubr.bf16.mxu0 0
  %5221 = vmatmul.mubr.bf16.gmra.mrb[0].mxu0 %v5012
  %v5222 = vpop.f32.mrb[0].mxu0
  %v5223 = vadd.f32 0.0, %v5222
  %v5224 = vpop.f32.mrb[0].mxu0
  %v5225 = vpop.f32.mrb[0].mxu0
  %v5226 = vadd.f32 0.0, %v5225
  %v5227 = vpop.f32.mrb[0].mxu0
  %5228 = vmatprep.mubr.bf16.mxu0 0
  %5229 = vmatmul.mubr.bf16.gmra.mrb[0].mxu0 %v5014
  %v5230 = vpop.f32.mrb[0].mxu0
  %v5231 = vadd.f32 0.0, %v5230
  %v5232 = vpop.f32.mrb[0].mxu0
  %v5233 = vpop.f32.mrb[0].mxu0
  %v5234 = vadd.f32 0.0, %v5233
  %v5235 = vpop.f32.mrb[0].mxu0
  %5236 = vmatprep.mubr.bf16.mxu0 0
  %5237 = vmatmul.mubr.bf16.gmra.mrb[0].mxu0 %v5016
  %v5238 = vpop.f32.mrb[0].mxu0
  %v5239 = vadd.f32 0.0, %v5238
  %v5240 = vpop.f32.mrb[0].mxu0
  %v5241 = vpop.f32.mrb[0].mxu0
  %v5242 = vadd.f32 0.0, %v5241
  %v5243 = vpop.f32.mrb[0].mxu0
  %5244 = vmatprep.mubr.bf16.mxu0 0
  %5245 = vmatmul.mubr.bf16.gmra.mrb[0].mxu0 %v5018
  %v5246 = vpop.f32.mrb[0].mxu0
  %v5247 = vadd.f32 0.0, %v5246
  %v5248 = vpop.f32.mrb[0].mxu0
  %v5249 = vpop.f32.mrb[0].mxu0
  %v5250 = vadd.f32 0.0, %v5249
  %v5251 = vpop.f32.mrb[0].mxu0
  %5252 = vmatprep.mubr.bf16.mxu0 0
  %5253 = vmatmul.mubr.bf16.gmra.mrb[0].mxu0 %v5020
  %v5254 = vpop.f32.mrb[0].mxu0
  %v5255 = vadd.f32 0.0, %v5254
  %v5256 = vpop.f32.mrb[0].mxu0
  %v5257 = vpop.f32.mrb[0].mxu0
  %v5258 = vadd.f32 0.0, %v5257
  %v5259 = vpop.f32.mrb[0].mxu0
  %5260 = vmatprep.mubr.bf16.mxu0 0
  %5261 = vmatmul.mubr.bf16.gmra.mrb[0].mxu0 %v5022
  %v5262 = vpop.f32.mrb[0].mxu0
  %v5263 = vadd.f32 0.0, %v5262
  %v5264 = vpop.f32.mrb[0].mxu0
  %v5265 = vpop.f32.mrb[0].mxu0
  %v5266 = vadd.f32 0.0, %v5265
  %v5267 = vpop.f32.mrb[0].mxu0
  %5268 = vmatprep.mubr.bf16.mxu0 0
  %5269 = vmatmul.mubr.bf16.gmra.mrb[0].mxu0 %v5024
  %v5270 = vpop.f32.mrb[0].mxu0
  %v5271 = vadd.f32 0.0, %v5270
  %v5272 = vpop.f32.mrb[0].mxu0
  %v5273 = vpop.f32.mrb[0].mxu0
  %v5274 = vadd.f32 0.0, %v5273
  %v5275 = vpop.f32.mrb[0].mxu0
  %5276 = vmatprep.mubr.bf16.mxu0 0
  %5277 = vmatmul.mubr.bf16.gmra.mrb[0].mxu0 %v5026
  %v5278 = vpop.f32.mrb[0].mxu0
  %v5279 = vadd.f32 0.0, %v5278
  %v5280 = vpop.f32.mrb[0].mxu0
  %v5281 = vpop.f32.mrb[0].mxu0
  %v5282 = vadd.f32 0.0, %v5281
  %v5283 = vpop.f32.mrb[0].mxu0
  %5284 = vmatprep.mubr.bf16.mxu0 0
  %5285 = vmatmul.mubr.bf16.gmra.mrb[0].mxu0 %v5028
  %v5286 = vpop.f32.mrb[0].mxu0
  %v5287 = vadd.f32 0.0, %v5286
  %v5288 = vpop.f32.mrb[0].mxu0
  %v5289 = vpop.f32.mrb[0].mxu0
  %v5290 = vadd.f32 0.0, %v5289
  %v5291 = vpop.f32.mrb[0].mxu0
  %5292 = vmatprep.mubr.bf16.mxu0 0
  %5293 = vmatmul.mubr.bf16.gmra.mrb[0].mxu0 %v5030
  %v5294 = vpop.f32.mrb[0].mxu0
  %v5295 = vadd.f32 0.0, %v5294
  %v5296 = vpop.f32.mrb[0].mxu0
  %v5297 = vpop.f32.mrb[0].mxu0
  %v5298 = vadd.f32 0.0, %v5297
  %v5299 = vpop.f32.mrb[0].mxu0
  %5300 = vmatprep.mubr.bf16.mxu0 0
  %5301 = vmatmul.mubr.bf16.gmra.mrb[0].mxu0 %v5032
  %v5302 = vpop.f32.mrb[0].mxu0
  %v5303 = vadd.f32 0.0, %v5302
  %v5304 = vpop.f32.mrb[0].mxu0
  %v5305 = vpop.f32.mrb[0].mxu0
  %v5306 = vadd.f32 0.0, %v5305
  %v5307 = vpop.f32.mrb[0].mxu0
  %5308 = vmatprep.mubr.bf16.mxu0 0
  %5309 = vmatmul.mubr.bf16.gmra.mrb[0].mxu0 %v5034
  %v5310 = vpop.f32.mrb[0].mxu0
  %v5311 = vadd.f32 0.0, %v5310
  %v5312 = vpop.f32.mrb[0].mxu0
  %v5313 = vpop.f32.mrb[0].mxu0
  %v5314 = vadd.f32 0.0, %v5313
  %v5315 = vpop.f32.mrb[0].mxu0
  %5316 = vmatprep.mubr.bf16.mxu0 0
  %5317 = vmatmul.mubr.bf16.gmra.mrb[0].mxu0 %v5036
  %v5318 = vpop.f32.mrb[0].mxu0
  %v5319 = vadd.f32 0.0, %v5318
  %v5320 = vpop.f32.mrb[0].mxu0
  %v5321 = vpop.f32.mrb[0].mxu0
  %v5322 = vadd.f32 0.0, %v5321
  %v5323 = vpop.f32.mrb[0].mxu0
  %5324 = vmatprep.mubr.bf16.mxu0 0
  %5325 = vmatmul.mubr.bf16.gmra.mrb[0].mxu0 %v5038
  %v5326 = vpop.f32.mrb[0].mxu0
  %v5327 = vadd.f32 0.0, %v5326
  %v5328 = vpop.f32.mrb[0].mxu0
  %v5329 = vpop.f32.mrb[0].mxu0
  %v5330 = vadd.f32 0.0, %v5329
  %v5331 = vpop.f32.mrb[0].mxu0
  %5332 = vmatprep.mubr.bf16.mxu0 0
  %5333 = vmatmul.mubr.bf16.gmra.mrb[0].mxu0 %v5040
  %v5334 = vpop.f32.mrb[0].mxu0
  %v5335 = vadd.f32 0.0, %v5334
  %v5336 = vpop.f32.mrb[0].mxu0
  %v5337 = vpop.f32.mrb[0].mxu0
  %v5338 = vadd.f32 0.0, %v5337
  %v5339 = vpop.f32.mrb[0].mxu0
  %5340 = vmatprep.mubr.bf16.mxu0 0
  %5341 = vmatmul.mubr.bf16.gmra.mrb[0].mxu0 %v5042
  %v5342 = vpop.f32.mrb[0].mxu0
  %v5343 = vadd.f32 0.0, %v5342
  %v5344 = vpop.f32.mrb[0].mxu0
  %v5345 = vpop.f32.mrb[0].mxu0
  %v5346 = vadd.f32 0.0, %v5345
  %v5347 = vpop.f32.mrb[0].mxu0
  %5348 = vmatprep.mubr.bf16.mxu0 0
  %5349 = vmatmul.mubr.bf16.gmra.mrb[0].mxu0 %v5044
  %v5350 = vpop.f32.mrb[0].mxu0
  %v5351 = vadd.f32 0.0, %v5350
  %v5352 = vpop.f32.mrb[0].mxu0
  %v5353 = vpop.f32.mrb[0].mxu0
  %v5354 = vadd.f32 0.0, %v5353
  %v5355 = vpop.f32.mrb[0].mxu0
  %5356 = vmatprep.mubr.bf16.mxu0 0
  %5357 = vmatmul.mubr.bf16.gmra.mrb[0].mxu0 %v5046
  %v5358 = vpop.f32.mrb[0].mxu0
  %v5359 = vadd.f32 0.0, %v5358
  %v5360 = vpop.f32.mrb[0].mxu0
  %v5361 = vpop.f32.mrb[0].mxu0
  %v5362 = vadd.f32 0.0, %v5361
  %v5363 = vpop.f32.mrb[0].mxu0
  %5364 = vmatprep.mubr.bf16.mxu0 0
  %5365 = vmatmul.mubr.bf16.gmra.mrb[0].mxu0 %v5048
  %v5366 = vpop.f32.mrb[0].mxu0
  %v5367 = vadd.f32 0.0, %v5366
  %v5368 = vpop.f32.mrb[0].mxu0
  %v5369 = vpop.f32.mrb[0].mxu0
  %v5370 = vadd.f32 0.0, %v5369
  %v5371 = vpop.f32.mrb[0].mxu0
  %5372 = vmatprep.mubr.bf16.mxu0 0
  %5373 = vmatmul.mubr.bf16.gmra.mrb[0].mxu0 %v5050
  %v5374 = vpop.f32.mrb[0].mxu0
  %v5375 = vadd.f32 0.0, %v5374
  %v5376 = vpop.f32.mrb[0].mxu0
  %v5377 = vpop.f32.mrb[0].mxu0
  %v5378 = vadd.f32 0.0, %v5377
  %v5379 = vpop.f32.mrb[0].mxu0
  %5380 = vmatprep.mubr.bf16.mxu0 0
  %5381 = vmatmul.mubr.bf16.gmra.mrb[0].mxu0 %v5052
  %v5382 = vpop.f32.mrb[0].mxu0
  %v5383 = vadd.f32 0.0, %v5382
  %v5384 = vpop.f32.mrb[0].mxu0
  %v5385 = vpop.f32.mrb[0].mxu0
  %v5386 = vadd.f32 0.0, %v5385
  %v5387 = vpop.f32.mrb[0].mxu0
  %5388 = vmatprep.mubr.bf16.mxu0 0
  %5389 = vmatmul.mubr.bf16.gmra.mrb[0].mxu0 %v5054
  %v5390 = vpop.f32.mrb[0].mxu0
  %v5391 = vadd.f32 0.0, %v5390
  %v5392 = vpop.f32.mrb[0].mxu0
  %v5393 = vpop.f32.mrb[0].mxu0
  %v5394 = vadd.f32 0.0, %v5393
  %v5395 = vpop.f32.mrb[0].mxu0
  %5396 = vmatprep.mubr.bf16.mxu0 0
  %5397 = vmatmul.mubr.bf16.gmra.mrb[0].mxu0 %v5056
  %v5398 = vpop.f32.mrb[0].mxu0
  %v5399 = vadd.f32 0.0, %v5398
  %v5400 = vpop.f32.mrb[0].mxu0
  %v5401 = vpop.f32.mrb[0].mxu0
  %v5402 = vadd.f32 0.0, %v5401
  %v5403 = vpop.f32.mrb[0].mxu0
  %5404 = vmatprep.mubr.bf16.mxu0 0
  %5405 = vmatmul.mubr.bf16.gmra.mrb[0].mxu0 %v5058
  %v5406 = vpop.f32.mrb[0].mxu0
  %v5407 = vadd.f32 0.0, %v5406
  %v5408 = vpop.f32.mrb[0].mxu0
  %v5409 = vpop.f32.mrb[0].mxu0
  %v5410 = vadd.f32 0.0, %v5409
  %v5411 = vpop.f32.mrb[0].mxu0
  %5412 = vmatprep.mubr.bf16.mxu0 0
  %5413 = vmatmul.mubr.bf16.gmra.mrb[0].mxu0 %v5060
  %v5414 = vpop.f32.mrb[0].mxu0
  %v5415 = vadd.f32 0.0, %v5414
  %v5416 = vpop.f32.mrb[0].mxu0
  %v5417 = vpop.f32.mrb[0].mxu0
  %v5418 = vadd.f32 0.0, %v5417
  %v5419 = vpop.f32.mrb[0].mxu0
  %5420 = vmatprep.mubr.bf16.mxu0 0
  %5421 = vmatmul.mubr.bf16.gmra.mrb[0].mxu0 %v5062
  %v5422 = vpop.f32.mrb[0].mxu0
  %v5423 = vadd.f32 0.0, %v5422
  %v5424 = vpop.f32.mrb[0].mxu0
  %v5425 = vpop.f32.mrb[0].mxu0
  %v5426 = vadd.f32 0.0, %v5425
  %v5427 = vpop.f32.mrb[0].mxu0
  %5428 = vmatprep.mubr.bf16.mxu0 0
  %5429 = vmatmul.mubr.bf16.gmra.mrb[0].mxu0 %v5064
  %v5430 = vpop.f32.mrb[0].mxu0
  %v5431 = vadd.f32 0.0, %v5430
  %v5432 = vpop.f32.mrb[0].mxu0
  %v5433 = vpop.f32.mrb[0].mxu0
  %v5434 = vadd.f32 0.0, %v5433
  %v5435 = vpop.f32.mrb[0].mxu0
  %5436 = vmatprep.mubr.bf16.mxu0 0
  %5437 = vmatmul.mubr.bf16.gmra.mrb[0].mxu0 %v5066
  %v5438 = vpop.f32.mrb[0].mxu0
  %v5439 = vadd.f32 0.0, %v5438
  %v5440 = vpop.f32.mrb[0].mxu0
  %v5441 = vpop.f32.mrb[0].mxu0
  %v5442 = vadd.f32 0.0, %v5441
  %v5443 = vpop.f32.mrb[0].mxu0
  %5444 = vmatprep.mubr.bf16.mxu0 0
  %5445 = vmatmul.mubr.bf16.gmra.mrb[0].mxu0 %v5068
  %v5446 = vpop.f32.mrb[0].mxu0
  %v5447 = vadd.f32 0.0, %v5446
  %v5448 = vpop.f32.mrb[0].mxu0
  %v5449 = vpop.f32.mrb[0].mxu0
  %v5450 = vadd.f32 0.0, %v5449
  %v5451 = vpop.f32.mrb[0].mxu0
  %5452 = vmatprep.mubr.bf16.mxu0 0
  %5453 = vmatmul.mubr.bf16.gmra.mrb[0].mxu0 %v5070
  %v5454 = vpop.f32.mrb[0].mxu0
  %v5455 = vadd.f32 0.0, %v5454
  %v5456 = vpop.f32.mrb[0].mxu0
  %v5457 = vpop.f32.mrb[0].mxu0
  %v5458 = vadd.f32 0.0, %v5457
  %v5459 = vpop.f32.mrb[0].mxu0
  %5460 = vmatprep.mubr.bf16.mxu0 0
  %5461 = vmatmul.mubr.bf16.gmra.mrb[0].mxu0 %v5072
  %v5462 = vpop.f32.mrb[0].mxu0
  %v5463 = vadd.f32 0.0, %v5462
  %v5464 = vpop.f32.mrb[0].mxu0
  %v5465 = vpop.f32.mrb[0].mxu0
  %v5466 = vadd.f32 0.0, %v5465
  %v5467 = vpop.f32.mrb[0].mxu0
  %5468 = vmatprep.mubr.bf16.mxu0 0
  %5469 = vmatmul.mubr.bf16.gmra.mrb[0].mxu0 %v5074
  %v5470 = vpop.f32.mrb[0].mxu0
  %v5471 = vadd.f32 0.0, %v5470
  %v5472 = vpop.f32.mrb[0].mxu0
  %v5473 = vpop.f32.mrb[0].mxu0
  %v5474 = vadd.f32 0.0, %v5473
  %v5475 = vpop.f32.mrb[0].mxu0
  %5476 = vmatprep.mubr.bf16.mxu0 0
  %5477 = vmatmul.mubr.bf16.gmra.mrb[0].mxu0 %v5076
  %v5478 = vpop.f32.mrb[0].mxu0
  %v5479 = vadd.f32 0.0, %v5478
  %v5480 = vpop.f32.mrb[0].mxu0
  %v5481 = vpop.f32.mrb[0].mxu0
  %v5482 = vadd.f32 0.0, %v5481
  %v5483 = vpop.f32.mrb[0].mxu0
  %5484 = vmatprep.mubr.bf16.mxu0 0
  %5485 = vmatmul.mubr.bf16.gmra.mrb[0].mxu0 %v5078
  %v5486 = vpop.f32.mrb[0].mxu0
  %v5487 = vadd.f32 0.0, %v5486
  %v5488 = vpop.f32.mrb[0].mxu0
  %v5489 = vpop.f32.mrb[0].mxu0
  %v5490 = vadd.f32 0.0, %v5489
  %v5491 = vpop.f32.mrb[0].mxu0
  %5492 = vmatprep.mubr.bf16.mxu0 0
  %5493 = vmatmul.mubr.bf16.gmra.mrb[0].mxu0 %v5080
  %v5494 = vpop.f32.mrb[0].mxu0
  %v5495 = vadd.f32 0.0, %v5494
  %v5496 = vpop.f32.mrb[0].mxu0
  %v5497 = vpop.f32.mrb[0].mxu0
  %v5498 = vadd.f32 0.0, %v5497
  %v5499 = vpop.f32.mrb[0].mxu0
  %5500 = vmatprep.mubr.bf16.mxu0 0
  %5501 = vmatmul.mubr.bf16.gmra.mrb[0].mxu0 %v5082
  %v5502 = vpop.f32.mrb[0].mxu0
  %v5503 = vadd.f32 0.0, %v5502
  %v5504 = vpop.f32.mrb[0].mxu0
  %v5505 = vpop.f32.mrb[0].mxu0
  %v5506 = vadd.f32 0.0, %v5505
  %v5507 = vpop.f32.mrb[0].mxu0
  %5508 = vmatprep.mubr.bf16.mxu0 0
  %5509 = vmatmul.mubr.bf16.gmra.mrb[0].mxu0 %v5084
  %v5510 = vpop.f32.mrb[0].mxu0
  %v5511 = vadd.f32 0.0, %v5510
  %v5512 = vpop.f32.mrb[0].mxu0
  %v5513 = vpop.f32.mrb[0].mxu0
  %v5514 = vadd.f32 0.0, %v5513
  %v5515 = vpop.f32.mrb[0].mxu0
  %5516 = vmatprep.mubr.bf16.mxu0 0
  %5517 = vmatmul.mubr.bf16.gmra.mrb[0].mxu0 %v5086
  %v5518 = vpop.f32.mrb[0].mxu0
  %v5519 = vadd.f32 0.0, %v5518
  %v5520 = vpop.f32.mrb[0].mxu0
  %v5521 = vpop.f32.mrb[0].mxu0
  %v5522 = vadd.f32 0.0, %v5521
  %v5523 = vpop.f32.mrb[0].mxu0
  %5524 = vmatprep.mubr.bf16.mxu0 0
  %5525 = vmatmul.mubr.bf16.gmra.mrb[0].mxu0 %v5088
  %v5526 = vpop.f32.mrb[0].mxu0
  %v5527 = vadd.f32 0.0, %v5526
  %v5528 = vpop.f32.mrb[0].mxu0
  %v5529 = vpop.f32.mrb[0].mxu0
  %v5530 = vadd.f32 0.0, %v5529
  %v5531 = vpop.f32.mrb[0].mxu0
  %5532 = vmatprep.mubr.bf16.mxu0 0
  %5533 = vmatmul.mubr.bf16.gmra.mrb[0].mxu0 %v5090
  %v5534 = vpop.f32.mrb[0].mxu0
  %v5535 = vadd.f32 0.0, %v5534
  %v5536 = vpop.f32.mrb[0].mxu0
  %v5537 = vpop.f32.mrb[0].mxu0
  %v5538 = vadd.f32 0.0, %v5537
  %v5539 = vpop.f32.mrb[0].mxu0
  %5540 = vdwg.mxu0
  %v5541 = vadd.f32 %v4618, %v5215
  %v5542 = vadd.f32 %v4619, %v5218
  %v5543 = vadd.f32 %v4620, %v5223
  %v5544 = vadd.f32 %v4621, %v5226
  %v5545 = vadd.f32 %v4622, %v5231
  %v5546 = vadd.f32 %v4623, %v5234
  %v5547 = vadd.f32 %v4624, %v5239
  %v5548 = vadd.f32 %v4625, %v5242
  %v5549 = vadd.f32 %v4626, %v5247
  %v5550 = vadd.f32 %v4627, %v5250
  %v5551 = vadd.f32 %v4628, %v5255
  %v5552 = vadd.f32 %v4629, %v5258
  %v5553 = vadd.f32 %v4630, %v5263
  %v5554 = vadd.f32 %v4631, %v5266
  %v5555 = vadd.f32 %v4632, %v5271
  %v5556 = vadd.f32 %v4633, %v5274
  %v5557 = vadd.f32 %v4634, %v5279
  %v5558 = vadd.f32 %v4635, %v5282
  %v5559 = vadd.f32 %v4636, %v5287
  %v5560 = vadd.f32 %v4637, %v5290
  %v5561 = vadd.f32 %v4638, %v5295
  %v5562 = vadd.f32 %v4639, %v5298
  %v5563 = vadd.f32 %v4640, %v5303
  %v5564 = vadd.f32 %v4641, %v5306
  %v5565 = vadd.f32 %v4642, %v5311
  %v5566 = vadd.f32 %v4643, %v5314
  %v5567 = vadd.f32 %v4644, %v5319
  %v5568 = vadd.f32 %v4645, %v5322
  %v5569 = vadd.f32 %v4646, %v5327
  %v5570 = vadd.f32 %v4647, %v5330
  %v5571 = vadd.f32 %v4648, %v5335
  %v5572 = vadd.f32 %v4649, %v5338
  %v5573 = vadd.f32 %v4650, %v5343
  %v5574 = vadd.f32 %v4651, %v5346
  %v5575 = vadd.f32 %v4652, %v5351
  %v5576 = vadd.f32 %v4653, %v5354
  %v5577 = vadd.f32 %v4654, %v5359
  %v5578 = vadd.f32 %v4655, %v5362
  %v5579 = vadd.f32 %v4656, %v5367
  %v5580 = vadd.f32 %v4657, %v5370
  %v5581 = vadd.f32 %v4658, %v5375
  %v5582 = vadd.f32 %v4659, %v5378
  %v5583 = vadd.f32 %v4660, %v5383
  %v5584 = vadd.f32 %v4661, %v5386
  %v5585 = vadd.f32 %v4662, %v5391
  %v5586 = vadd.f32 %v4663, %v5394
  %v5587 = vadd.f32 %v4664, %v5399
  %v5588 = vadd.f32 %v4665, %v5402
  %v5589 = vadd.f32 %v4666, %v5407
  %v5590 = vadd.f32 %v4667, %v5410
  %v5591 = vadd.f32 %v4668, %v5415
  %v5592 = vadd.f32 %v4669, %v5418
  %v5593 = vadd.f32 %v4670, %v5423
  %v5594 = vadd.f32 %v4671, %v5426
  %v5595 = vadd.f32 %v4672, %v5431
  %v5596 = vadd.f32 %v4673, %v5434
  %v5597 = vadd.f32 %v4674, %v5439
  %v5598 = vadd.f32 %v4675, %v5442
  %v5599 = vadd.f32 %v4676, %v5447
  %v5600 = vadd.f32 %v4677, %v5450
  %v5601 = vadd.f32 %v4678, %v5455
  %v5602 = vadd.f32 %v4679, %v5458
  %v5603 = vadd.f32 %v4680, %v5463
  %v5604 = vadd.f32 %v4681, %v5466
  %v5605 = vadd.f32 %v4682, %v5471
  %v5606 = vadd.f32 %v4683, %v5474
  %v5607 = vadd.f32 %v4684, %v5479
  %v5608 = vadd.f32 %v4685, %v5482
  %v5609 = vadd.f32 %v4686, %v5487
  %v5610 = vadd.f32 %v4687, %v5490
  %v5611 = vadd.f32 %v4688, %v5495
  %v5612 = vadd.f32 %v4689, %v5498
  %v5613 = vadd.f32 %v4690, %v5503
  %v5614 = vadd.f32 %v4691, %v5506
  %v5615 = vadd.f32 %v4692, %v5511
  %v5616 = vadd.f32 %v4693, %v5514
  %v5617 = vadd.f32 %v4694, %v5519
  %v5618 = vadd.f32 %v4695, %v5522
  %v5619 = vadd.f32 %v4696, %v5527
  %v5620 = vadd.f32 %v4697, %v5530
  %v5621 = vadd.f32 %v4698, %v5535
  %v5622 = vadd.f32 %v4699, %v5538
  %v5623 = vld [vmem:[%s0 + $0x158] sm:$0x7]
  %s5624 = scalar_lea.vmem %s1, 448
  %v5625 = vld [vmem:[%s5624] sm:$0xf]
  %v5626 = vld [vmem:[%s5624 + $0x4] sm:$0xf]
  %v5627 = vld [vmem:[%s5624 + $0x8] sm:$0xf]
  %v5628 = vld [vmem:[%s5624 + $0xc] sm:$0xf]
  %v5629 = vld [vmem:[%s5624 + $0x10] sm:$0xf]
  %v5630 = vld [vmem:[%s5624 + $0x14] sm:$0xf]
  %v5631 = vld [vmem:[%s5624 + $0x18] sm:$0xf]
  %v5632 = vld [vmem:[%s5624 + $0x1c] sm:$0xf]
  %v5633 = vld [vmem:[%s5624 + $0x20] sm:$0xf]
  %v5634 = vld [vmem:[%s5624 + $0x24] sm:$0xf]
  %v5635 = vld [vmem:[%s5624 + $0x28] sm:$0xf]
  %v5636 = vld [vmem:[%s5624 + $0x2c] sm:$0xf]
  %v5637 = vld [vmem:[%s5624 + $0x30] sm:$0xf]
  %v5638 = vld [vmem:[%s5624 + $0x34] sm:$0xf]
  %v5639 = vld [vmem:[%s5624 + $0x38] sm:$0xf]
  %v5640 = vld [vmem:[%s5624 + $0x3c] sm:$0xf]
  %v5642 = vunpack.c.l.b16 %v5623
  %v5643 = vpack.c.b16 %v5642, %v5642
  %vm5644 = vsmask.f32 5376
  %v5646 = vshrl.u32 %v4966, 16
  %v5648 = vrot.slane %v5646, 2
  %v5649 = vshll.u32 %v4966, 16
  %v5651 = vrot.slane %v5649, 3
  %v5652 = vor.u32 %v5648, %v5651
  %v5654 = vshrl.u32 %v4967, 16
  %v5656 = vrot.slane %v5654, 2
  %v5657 = vshll.u32 %v4967, 16
  %v5659 = vrot.slane %v5657, 3
  %v5660 = vor.u32 %v5656, %v5659
  %v5661 = vsel %vm5644, %v5652, %v5660
  %v5663 = vshrl.u32 %v4968, 16
  %v5665 = vrot.slane %v5663, 2
  %v5666 = vshll.u32 %v4968, 16
  %v5668 = vrot.slane %v5666, 3
  %v5669 = vor.u32 %v5665, %v5668
  %v5670 = vsel %vm5644, %v5660, %v5669
  %v5672 = vshrl.u32 %v4969, 16
  %v5674 = vrot.slane %v5672, 2
  %v5675 = vshll.u32 %v4969, 16
  %v5677 = vrot.slane %v5675, 3
  %v5678 = vor.u32 %v5674, %v5677
  %v5679 = vsel %vm5644, %v5669, %v5678
  %v5681 = vshrl.u32 %v4970, 16
  %v5683 = vrot.slane %v5681, 2
  %v5684 = vshll.u32 %v4970, 16
  %v5686 = vrot.slane %v5684, 3
  %v5687 = vor.u32 %v5683, %v5686
  %v5688 = vsel %vm5644, %v5678, %v5687
  %v5690 = vshrl.u32 %v4971, 16
  %v5692 = vrot.slane %v5690, 2
  %v5693 = vshll.u32 %v4971, 16
  %v5695 = vrot.slane %v5693, 3
  %v5696 = vor.u32 %v5692, %v5695
  %v5697 = vsel %vm5644, %v5687, %v5696
  %v5699 = vshrl.u32 %v4972, 16
  %v5701 = vrot.slane %v5699, 2
  %v5702 = vshll.u32 %v4972, 16
  %v5704 = vrot.slane %v5702, 3
  %v5705 = vor.u32 %v5701, %v5704
  %v5706 = vsel %vm5644, %v5696, %v5705
  %v5708 = vshrl.u32 %v4973, 16
  %v5710 = vrot.slane %v5708, 2
  %v5711 = vshll.u32 %v4973, 16
  %v5713 = vrot.slane %v5711, 3
  %v5714 = vor.u32 %v5710, %v5713
  %v5715 = vsel %vm5644, %v5705, %v5714
  %v5717 = vshrl.u32 %v4974, 16
  %v5719 = vrot.slane %v5717, 2
  %v5720 = vshll.u32 %v4974, 16
  %v5722 = vrot.slane %v5720, 3
  %v5723 = vor.u32 %v5719, %v5722
  %v5724 = vsel %vm5644, %v5714, %v5723
  %v5726 = vshrl.u32 %v4975, 16
  %v5728 = vrot.slane %v5726, 2
  %v5729 = vshll.u32 %v4975, 16
  %v5731 = vrot.slane %v5729, 3
  %v5732 = vor.u32 %v5728, %v5731
  %v5733 = vsel %vm5644, %v5723, %v5732
  %v5735 = vshrl.u32 %v4976, 16
  %v5737 = vrot.slane %v5735, 2
  %v5738 = vshll.u32 %v4976, 16
  %v5740 = vrot.slane %v5738, 3
  %v5741 = vor.u32 %v5737, %v5740
  %v5742 = vsel %vm5644, %v5732, %v5741
  %v5744 = vshrl.u32 %v4977, 16
  %v5746 = vrot.slane %v5744, 2
  %v5747 = vshll.u32 %v4977, 16
  %v5749 = vrot.slane %v5747, 3
  %v5750 = vor.u32 %v5746, %v5749
  %v5751 = vsel %vm5644, %v5741, %v5750
  %v5753 = vshrl.u32 %v4978, 16
  %v5755 = vrot.slane %v5753, 2
  %v5756 = vshll.u32 %v4978, 16
  %v5758 = vrot.slane %v5756, 3
  %v5759 = vor.u32 %v5755, %v5758
  %v5760 = vsel %vm5644, %v5750, %v5759
  %v5762 = vshrl.u32 %v4979, 16
  %v5764 = vrot.slane %v5762, 2
  %v5765 = vshll.u32 %v4979, 16
  %v5767 = vrot.slane %v5765, 3
  %v5768 = vor.u32 %v5764, %v5767
  %v5769 = vsel %vm5644, %v5759, %v5768
  %v5771 = vshrl.u32 %v4980, 16
  %v5773 = vrot.slane %v5771, 2
  %v5774 = vshll.u32 %v4980, 16
  %v5776 = vrot.slane %v5774, 3
  %v5777 = vor.u32 %v5773, %v5776
  %v5778 = vsel %vm5644, %v5768, %v5777
  %v5780 = vshrl.u32 %v4981, 16
  %v5782 = vrot.slane %v5780, 2
  %v5783 = vshll.u32 %v4981, 16
  %v5785 = vrot.slane %v5783, 3
  %v5786 = vor.u32 %v5782, %v5785
  %v5787 = vsel %vm5644, %v5777, %v5786
  %v5789 = vshrl.u32 %v4982, 16
  %v5791 = vrot.slane %v5789, 2
  %v5792 = vshll.u32 %v4982, 16
  %v5794 = vrot.slane %v5792, 3
  %v5795 = vor.u32 %v5791, %v5794
  %v5796 = vsel %vm5644, %v5786, %v5795
  %v5798 = vshrl.u32 %v4983, 16
  %v5800 = vrot.slane %v5798, 2
  %v5801 = vshll.u32 %v4983, 16
  %v5803 = vrot.slane %v5801, 3
  %v5804 = vor.u32 %v5800, %v5803
  %v5805 = vsel %vm5644, %v5795, %v5804
  %v5807 = vshrl.u32 %v4984, 16
  %v5809 = vrot.slane %v5807, 2
  %v5810 = vshll.u32 %v4984, 16
  %v5812 = vrot.slane %v5810, 3
  %v5813 = vor.u32 %v5809, %v5812
  %v5814 = vsel %vm5644, %v5804, %v5813
  %v5816 = vshrl.u32 %v4985, 16
  %v5818 = vrot.slane %v5816, 2
  %v5819 = vshll.u32 %v4985, 16
  %v5821 = vrot.slane %v5819, 3
  %v5822 = vor.u32 %v5818, %v5821
  %v5823 = vsel %vm5644, %v5813, %v5822
  %v5825 = vshrl.u32 %v4986, 16
  %v5827 = vrot.slane %v5825, 2
  %v5828 = vshll.u32 %v4986, 16
  %v5830 = vrot.slane %v5828, 3
  %v5831 = vor.u32 %v5827, %v5830
  %v5832 = vsel %vm5644, %v5822, %v5831
  %v5834 = vshrl.u32 %v4987, 16
  %v5836 = vrot.slane %v5834, 2
  %v5837 = vshll.u32 %v4987, 16
  %v5839 = vrot.slane %v5837, 3
  %v5840 = vor.u32 %v5836, %v5839
  %v5841 = vsel %vm5644, %v5831, %v5840
  %v5843 = vshrl.u32 %v4988, 16
  %v5845 = vrot.slane %v5843, 2
  %v5846 = vshll.u32 %v4988, 16
  %v5848 = vrot.slane %v5846, 3
  %v5849 = vor.u32 %v5845, %v5848
  %v5850 = vsel %vm5644, %v5840, %v5849
  %v5852 = vshrl.u32 %v4989, 16
  %v5854 = vrot.slane %v5852, 2
  %v5855 = vshll.u32 %v4989, 16
  %v5857 = vrot.slane %v5855, 3
  %v5858 = vor.u32 %v5854, %v5857
  %v5859 = vsel %vm5644, %v5849, %v5858
  %v5861 = vshrl.u32 %v4990, 16
  %v5863 = vrot.slane %v5861, 2
  %v5864 = vshll.u32 %v4990, 16
  %v5866 = vrot.slane %v5864, 3
  %v5867 = vor.u32 %v5863, %v5866
  %v5868 = vsel %vm5644, %v5858, %v5867
  %v5870 = vshrl.u32 %v4991, 16
  %v5872 = vrot.slane %v5870, 2
  %v5873 = vshll.u32 %v4991, 16
  %v5875 = vrot.slane %v5873, 3
  %v5876 = vor.u32 %v5872, %v5875
  %v5877 = vsel %vm5644, %v5867, %v5876
  %v5879 = vshrl.u32 %v4992, 16
  %v5881 = vrot.slane %v5879, 2
  %v5882 = vshll.u32 %v4992, 16
  %v5884 = vrot.slane %v5882, 3
  %v5885 = vor.u32 %v5881, %v5884
  %v5886 = vsel %vm5644, %v5876, %v5885
  %v5888 = vshrl.u32 %v4993, 16
  %v5890 = vrot.slane %v5888, 2
  %v5891 = vshll.u32 %v4993, 16
  %v5893 = vrot.slane %v5891, 3
  %v5894 = vor.u32 %v5890, %v5893
  %v5895 = vsel %vm5644, %v5885, %v5894
  %v5897 = vshrl.u32 %v4994, 16
  %v5899 = vrot.slane %v5897, 2
  %v5900 = vshll.u32 %v4994, 16
  %v5902 = vrot.slane %v5900, 3
  %v5903 = vor.u32 %v5899, %v5902
  %v5904 = vsel %vm5644, %v5894, %v5903
  %v5906 = vshrl.u32 %v4995, 16
  %v5908 = vrot.slane %v5906, 2
  %v5909 = vshll.u32 %v4995, 16
  %v5911 = vrot.slane %v5909, 3
  %v5912 = vor.u32 %v5908, %v5911
  %v5913 = vsel %vm5644, %v5903, %v5912
  %v5915 = vshrl.u32 %v4996, 16
  %v5917 = vrot.slane %v5915, 2
  %v5918 = vshll.u32 %v4996, 16
  %v5920 = vrot.slane %v5918, 3
  %v5921 = vor.u32 %v5917, %v5920
  %v5922 = vsel %vm5644, %v5912, %v5921
  %v5924 = vshrl.u32 %v4997, 16
  %v5926 = vrot.slane %v5924, 2
  %v5927 = vshll.u32 %v4997, 16
  %v5929 = vrot.slane %v5927, 3
  %v5930 = vor.u32 %v5926, %v5929
  %v5931 = vsel %vm5644, %v5921, %v5930
  %v5933 = vshrl.u32 %v4998, 16
  %v5935 = vrot.slane %v5933, 2
  %v5936 = vshll.u32 %v4998, 16
  %v5938 = vrot.slane %v5936, 3
  %v5939 = vor.u32 %v5935, %v5938
  %v5940 = vsel %vm5644, %v5930, %v5939
  %v5942 = vshrl.u32 %v4999, 16
  %v5944 = vrot.slane %v5942, 2
  %v5945 = vshll.u32 %v4999, 16
  %v5947 = vrot.slane %v5945, 3
  %v5948 = vor.u32 %v5944, %v5947
  %v5949 = vsel %vm5644, %v5939, %v5948
  %v5951 = vshrl.u32 %v5000, 16
  %v5953 = vrot.slane %v5951, 2
  %v5954 = vshll.u32 %v5000, 16
  %v5956 = vrot.slane %v5954, 3
  %v5957 = vor.u32 %v5953, %v5956
  %v5958 = vsel %vm5644, %v5948, %v5957
  %v5960 = vshrl.u32 %v5001, 16
  %v5962 = vrot.slane %v5960, 2
  %v5963 = vshll.u32 %v5001, 16
  %v5965 = vrot.slane %v5963, 3
  %v5966 = vor.u32 %v5962, %v5965
  %v5967 = vsel %vm5644, %v5957, %v5966
  %v5969 = vshrl.u32 %v5002, 16
  %v5971 = vrot.slane %v5969, 2
  %v5972 = vshll.u32 %v5002, 16
  %v5974 = vrot.slane %v5972, 3
  %v5975 = vor.u32 %v5971, %v5974
  %v5976 = vsel %vm5644, %v5966, %v5975
  %v5978 = vshrl.u32 %v5003, 16
  %v5980 = vrot.slane %v5978, 2
  %v5981 = vshll.u32 %v5003, 16
  %v5983 = vrot.slane %v5981, 3
  %v5984 = vor.u32 %v5980, %v5983
  %v5985 = vsel %vm5644, %v5975, %v5984
  %v5987 = vshrl.u32 %v5004, 16
  %v5989 = vrot.slane %v5987, 2
  %v5990 = vshll.u32 %v5004, 16
  %v5992 = vrot.slane %v5990, 3
  %v5993 = vor.u32 %v5989, %v5992
  %v5994 = vsel %vm5644, %v5984, %v5993
  %v5996 = vshrl.u32 %v5005, 16
  %v5998 = vrot.slane %v5996, 2
  %v5999 = vshll.u32 %v5005, 16
  %v6001 = vrot.slane %v5999, 3
  %v6002 = vor.u32 %v5998, %v6001
  %v6003 = vsel %vm5644, %v5993, %v6002
  %v6005 = vshrl.u32 %v5006, 16
  %v6007 = vrot.slane %v6005, 2
  %v6008 = vshll.u32 %v5006, 16
  %v6010 = vrot.slane %v6008, 3
  %v6011 = vor.u32 %v6007, %v6010
  %v6012 = vsel %vm5644, %v6002, %v6011
  %v6014 = vshrl.u32 %v5643, 16
  %v6016 = vrot.slane %v6014, 2
  %v6017 = vshll.u32 %v5643, 16
  %v6019 = vrot.slane %v6017, 3
  %v6020 = vor.u32 %v6016, %v6019
  %v6021 = vsel %vm5644, %v6011, %v6020
  %v6079 = vunpack.c.l.b16 %v5625
  %v6080 = vunpack.c.l.b16 %v5626
  %v6081 = vunpack.c.l.b16 %v5627
  %v6082 = vunpack.c.l.b16 %v5628
  %v6083 = vunpack.c.l.b16 %v5629
  %v6084 = vunpack.c.l.b16 %v5630
  %v6085 = vunpack.c.l.b16 %v5631
  %v6086 = vunpack.c.l.b16 %v5632
  %v6087 = vunpack.c.l.b16 %v5633
  %v6088 = vunpack.c.l.b16 %v5634
  %v6089 = vunpack.c.l.b16 %v5635
  %v6090 = vunpack.c.l.b16 %v5636
  %v6091 = vunpack.c.l.b16 %v5637
  %v6092 = vunpack.c.l.b16 %v5638
  %v6093 = vunpack.c.l.b16 %v5639
  %v6094 = vunpack.c.l.b16 %v5640
  %v6095 = vpack.c.b16 %v6080, %v6079
  %v6096 = vpack.c.b16 %v6082, %v6081
  %v6097 = vpack.c.b16 %v6084, %v6083
  %v6098 = vpack.c.b16 %v6086, %v6085
  %v6099 = vpack.c.b16 %v6088, %v6087
  %v6100 = vpack.c.b16 %v6090, %v6089
  %v6101 = vpack.c.b16 %v6092, %v6091
  %v6102 = vpack.c.b16 %v6094, %v6093
  %6111 = vmatprep.subr.bf16.mxu0 0
  %6112 = vmatpush1.bf16.msra.mxu0 %v6095
  %6113 = vmatprep.subr.bf16.mxu0 0
  %6114 = vmatpush1.bf16.msra.mxu0 %v6096
  %6115 = vmatprep.subr.bf16.mxu0 0
  %6116 = vmatpush1.bf16.msra.mxu0 %v6097
  %6117 = vmatprep.subr.bf16.mxu0 0
  %6118 = vmatpush1.bf16.msra.mxu0 %v6098
  %6119 = vmatprep.subr.bf16.mxu0 0
  %6120 = vmatpush1.bf16.msra.mxu0 %v6099
  %6121 = vmatprep.subr.bf16.mxu0 0
  %6122 = vmatpush1.bf16.msra.mxu0 %v6100
  %6123 = vmatprep.subr.bf16.mxu0 0
  %6124 = vmatpush1.bf16.msra.mxu0 %v6101
  %6125 = vmatprep.subr.bf16.mxu0 0
  %6126 = vmatpush1.bf16.msra.mxu0 %v6102
  %6127 = vmatprep.subr.bf16.mxu0 0
  %6128 = vmatpush1.bf16.msra.mxu0 0
  %6129 = vmatprep.subr.bf16.mxu0 0
  %6130 = vmatpush1.bf16.msra.mxu0 0
  %6131 = vmatprep.subr.bf16.mxu0 0
  %6132 = vmatpush1.bf16.msra.mxu0 0
  %6133 = vmatprep.subr.bf16.mxu0 0
  %6134 = vmatpush1.bf16.msra.mxu0 0
  %6135 = vmatprep.subr.bf16.mxu0 0
  %6136 = vmatpush1.bf16.msra.mxu0 0
  %6137 = vmatprep.subr.bf16.mxu0 0
  %6138 = vmatpush1.bf16.msra.mxu0 0
  %6139 = vmatprep.subr.bf16.mxu0 0
  %6140 = vmatpush1.bf16.msra.mxu0 0
  %6141 = vmatprep.subr.bf16.mxu0 0
  %6142 = vmatpush1.bf16.msra.mxu0 0
  %6143 = vmatprep.mubr.bf16.mxu0 0
  %6144 = vmatmul.mubr.bf16.gmra.mrb[0].mxu0 %v5661
  %v6145 = vpop.f32.mrb[0].mxu0
  %v6146 = vadd.f32 0.0, %v6145
  %v6147 = vpop.f32.mrb[0].mxu0
  %v6148 = vpop.f32.mrb[0].mxu0
  %v6149 = vadd.f32 0.0, %v6148
  %v6150 = vpop.f32.mrb[0].mxu0
  %6151 = vmatprep.mubr.bf16.mxu0 0
  %6152 = vmatmul.mubr.bf16.gmra.mrb[0].mxu0 %v5670
  %v6153 = vpop.f32.mrb[0].mxu0
  %v6154 = vadd.f32 0.0, %v6153
  %v6155 = vpop.f32.mrb[0].mxu0
  %v6156 = vpop.f32.mrb[0].mxu0
  %v6157 = vadd.f32 0.0, %v6156
  %v6158 = vpop.f32.mrb[0].mxu0
  %6159 = vmatprep.mubr.bf16.mxu0 0
  %6160 = vmatmul.mubr.bf16.gmra.mrb[0].mxu0 %v5679
  %v6161 = vpop.f32.mrb[0].mxu0
  %v6162 = vadd.f32 0.0, %v6161
  %v6163 = vpop.f32.mrb[0].mxu0
  %v6164 = vpop.f32.mrb[0].mxu0
  %v6165 = vadd.f32 0.0, %v6164
  %v6166 = vpop.f32.mrb[0].mxu0
  %6167 = vmatprep.mubr.bf16.mxu0 0
  %6168 = vmatmul.mubr.bf16.gmra.mrb[0].mxu0 %v5688
  %v6169 = vpop.f32.mrb[0].mxu0
  %v6170 = vadd.f32 0.0, %v6169
  %v6171 = vpop.f32.mrb[0].mxu0
  %v6172 = vpop.f32.mrb[0].mxu0
  %v6173 = vadd.f32 0.0, %v6172
  %v6174 = vpop.f32.mrb[0].mxu0
  %6175 = vmatprep.mubr.bf16.mxu0 0
  %6176 = vmatmul.mubr.bf16.gmra.mrb[0].mxu0 %v5697
  %v6177 = vpop.f32.mrb[0].mxu0
  %v6178 = vadd.f32 0.0, %v6177
  %v6179 = vpop.f32.mrb[0].mxu0
  %v6180 = vpop.f32.mrb[0].mxu0
  %v6181 = vadd.f32 0.0, %v6180
  %v6182 = vpop.f32.mrb[0].mxu0
  %6183 = vmatprep.mubr.bf16.mxu0 0
  %6184 = vmatmul.mubr.bf16.gmra.mrb[0].mxu0 %v5706
  %v6185 = vpop.f32.mrb[0].mxu0
  %v6186 = vadd.f32 0.0, %v6185
  %v6187 = vpop.f32.mrb[0].mxu0
  %v6188 = vpop.f32.mrb[0].mxu0
  %v6189 = vadd.f32 0.0, %v6188
  %v6190 = vpop.f32.mrb[0].mxu0
  %6191 = vmatprep.mubr.bf16.mxu0 0
  %6192 = vmatmul.mubr.bf16.gmra.mrb[0].mxu0 %v5715
  %v6193 = vpop.f32.mrb[0].mxu0
  %v6194 = vadd.f32 0.0, %v6193
  %v6195 = vpop.f32.mrb[0].mxu0
  %v6196 = vpop.f32.mrb[0].mxu0
  %v6197 = vadd.f32 0.0, %v6196
  %v6198 = vpop.f32.mrb[0].mxu0
  %6199 = vmatprep.mubr.bf16.mxu0 0
  %6200 = vmatmul.mubr.bf16.gmra.mrb[0].mxu0 %v5724
  %v6201 = vpop.f32.mrb[0].mxu0
  %v6202 = vadd.f32 0.0, %v6201
  %v6203 = vpop.f32.mrb[0].mxu0
  %v6204 = vpop.f32.mrb[0].mxu0
  %v6205 = vadd.f32 0.0, %v6204
  %v6206 = vpop.f32.mrb[0].mxu0
  %6207 = vmatprep.mubr.bf16.mxu0 0
  %6208 = vmatmul.mubr.bf16.gmra.mrb[0].mxu0 %v5733
  %v6209 = vpop.f32.mrb[0].mxu0
  %v6210 = vadd.f32 0.0, %v6209
  %v6211 = vpop.f32.mrb[0].mxu0
  %v6212 = vpop.f32.mrb[0].mxu0
  %v6213 = vadd.f32 0.0, %v6212
  %v6214 = vpop.f32.mrb[0].mxu0
  %6215 = vmatprep.mubr.bf16.mxu0 0
  %6216 = vmatmul.mubr.bf16.gmra.mrb[0].mxu0 %v5742
  %v6217 = vpop.f32.mrb[0].mxu0
  %v6218 = vadd.f32 0.0, %v6217
  %v6219 = vpop.f32.mrb[0].mxu0
  %v6220 = vpop.f32.mrb[0].mxu0
  %v6221 = vadd.f32 0.0, %v6220
  %v6222 = vpop.f32.mrb[0].mxu0
  %6223 = vmatprep.mubr.bf16.mxu0 0
  %6224 = vmatmul.mubr.bf16.gmra.mrb[0].mxu0 %v5751
  %v6225 = vpop.f32.mrb[0].mxu0
  %v6226 = vadd.f32 0.0, %v6225
  %v6227 = vpop.f32.mrb[0].mxu0
  %v6228 = vpop.f32.mrb[0].mxu0
  %v6229 = vadd.f32 0.0, %v6228
  %v6230 = vpop.f32.mrb[0].mxu0
  %6231 = vmatprep.mubr.bf16.mxu0 0
  %6232 = vmatmul.mubr.bf16.gmra.mrb[0].mxu0 %v5760
  %v6233 = vpop.f32.mrb[0].mxu0
  %v6234 = vadd.f32 0.0, %v6233
  %v6235 = vpop.f32.mrb[0].mxu0
  %v6236 = vpop.f32.mrb[0].mxu0
  %v6237 = vadd.f32 0.0, %v6236
  %v6238 = vpop.f32.mrb[0].mxu0
  %6239 = vmatprep.mubr.bf16.mxu0 0
  %6240 = vmatmul.mubr.bf16.gmra.mrb[0].mxu0 %v5769
  %v6241 = vpop.f32.mrb[0].mxu0
  %v6242 = vadd.f32 0.0, %v6241
  %v6243 = vpop.f32.mrb[0].mxu0
  %v6244 = vpop.f32.mrb[0].mxu0
  %v6245 = vadd.f32 0.0, %v6244
  %v6246 = vpop.f32.mrb[0].mxu0
  %6247 = vmatprep.mubr.bf16.mxu0 0
  %6248 = vmatmul.mubr.bf16.gmra.mrb[0].mxu0 %v5778
  %v6249 = vpop.f32.mrb[0].mxu0
  %v6250 = vadd.f32 0.0, %v6249
  %v6251 = vpop.f32.mrb[0].mxu0
  %v6252 = vpop.f32.mrb[0].mxu0
  %v6253 = vadd.f32 0.0, %v6252
  %v6254 = vpop.f32.mrb[0].mxu0
  %6255 = vmatprep.mubr.bf16.mxu0 0
  %6256 = vmatmul.mubr.bf16.gmra.mrb[0].mxu0 %v5787
  %v6257 = vpop.f32.mrb[0].mxu0
  %v6258 = vadd.f32 0.0, %v6257
  %v6259 = vpop.f32.mrb[0].mxu0
  %v6260 = vpop.f32.mrb[0].mxu0
  %v6261 = vadd.f32 0.0, %v6260
  %v6262 = vpop.f32.mrb[0].mxu0
  %6263 = vmatprep.mubr.bf16.mxu0 0
  %6264 = vmatmul.mubr.bf16.gmra.mrb[0].mxu0 %v5796
  %v6265 = vpop.f32.mrb[0].mxu0
  %v6266 = vadd.f32 0.0, %v6265
  %v6267 = vpop.f32.mrb[0].mxu0
  %v6268 = vpop.f32.mrb[0].mxu0
  %v6269 = vadd.f32 0.0, %v6268
  %v6270 = vpop.f32.mrb[0].mxu0
  %6271 = vmatprep.mubr.bf16.mxu0 0
  %6272 = vmatmul.mubr.bf16.gmra.mrb[0].mxu0 %v5805
  %v6273 = vpop.f32.mrb[0].mxu0
  %v6274 = vadd.f32 0.0, %v6273
  %v6275 = vpop.f32.mrb[0].mxu0
  %v6276 = vpop.f32.mrb[0].mxu0
  %v6277 = vadd.f32 0.0, %v6276
  %v6278 = vpop.f32.mrb[0].mxu0
  %6279 = vmatprep.mubr.bf16.mxu0 0
  %6280 = vmatmul.mubr.bf16.gmra.mrb[0].mxu0 %v5814
  %v6281 = vpop.f32.mrb[0].mxu0
  %v6282 = vadd.f32 0.0, %v6281
  %v6283 = vpop.f32.mrb[0].mxu0
  %v6284 = vpop.f32.mrb[0].mxu0
  %v6285 = vadd.f32 0.0, %v6284
  %v6286 = vpop.f32.mrb[0].mxu0
  %6287 = vmatprep.mubr.bf16.mxu0 0
  %6288 = vmatmul.mubr.bf16.gmra.mrb[0].mxu0 %v5823
  %v6289 = vpop.f32.mrb[0].mxu0
  %v6290 = vadd.f32 0.0, %v6289
  %v6291 = vpop.f32.mrb[0].mxu0
  %v6292 = vpop.f32.mrb[0].mxu0
  %v6293 = vadd.f32 0.0, %v6292
  %v6294 = vpop.f32.mrb[0].mxu0
  %6295 = vmatprep.mubr.bf16.mxu0 0
  %6296 = vmatmul.mubr.bf16.gmra.mrb[0].mxu0 %v5832
  %v6297 = vpop.f32.mrb[0].mxu0
  %v6298 = vadd.f32 0.0, %v6297
  %v6299 = vpop.f32.mrb[0].mxu0
  %v6300 = vpop.f32.mrb[0].mxu0
  %v6301 = vadd.f32 0.0, %v6300
  %v6302 = vpop.f32.mrb[0].mxu0
  %6303 = vmatprep.mubr.bf16.mxu0 0
  %6304 = vmatmul.mubr.bf16.gmra.mrb[0].mxu0 %v5841
  %v6305 = vpop.f32.mrb[0].mxu0
  %v6306 = vadd.f32 0.0, %v6305
  %v6307 = vpop.f32.mrb[0].mxu0
  %v6308 = vpop.f32.mrb[0].mxu0
  %v6309 = vadd.f32 0.0, %v6308
  %v6310 = vpop.f32.mrb[0].mxu0
  %6311 = vmatprep.mubr.bf16.mxu0 0
  %6312 = vmatmul.mubr.bf16.gmra.mrb[0].mxu0 %v5850
  %v6313 = vpop.f32.mrb[0].mxu0
  %v6314 = vadd.f32 0.0, %v6313
  %v6315 = vpop.f32.mrb[0].mxu0
  %v6316 = vpop.f32.mrb[0].mxu0
  %v6317 = vadd.f32 0.0, %v6316
  %v6318 = vpop.f32.mrb[0].mxu0
  %6319 = vmatprep.mubr.bf16.mxu0 0
  %6320 = vmatmul.mubr.bf16.gmra.mrb[0].mxu0 %v5859
  %v6321 = vpop.f32.mrb[0].mxu0
  %v6322 = vadd.f32 0.0, %v6321
  %v6323 = vpop.f32.mrb[0].mxu0
  %v6324 = vpop.f32.mrb[0].mxu0
  %v6325 = vadd.f32 0.0, %v6324
  %v6326 = vpop.f32.mrb[0].mxu0
  %6327 = vmatprep.mubr.bf16.mxu0 0
  %6328 = vmatmul.mubr.bf16.gmra.mrb[0].mxu0 %v5868
  %v6329 = vpop.f32.mrb[0].mxu0
  %v6330 = vadd.f32 0.0, %v6329
  %v6331 = vpop.f32.mrb[0].mxu0
  %v6332 = vpop.f32.mrb[0].mxu0
  %v6333 = vadd.f32 0.0, %v6332
  %v6334 = vpop.f32.mrb[0].mxu0
  %6335 = vmatprep.mubr.bf16.mxu0 0
  %6336 = vmatmul.mubr.bf16.gmra.mrb[0].mxu0 %v5877
  %v6337 = vpop.f32.mrb[0].mxu0
  %v6338 = vadd.f32 0.0, %v6337
  %v6339 = vpop.f32.mrb[0].mxu0
  %v6340 = vpop.f32.mrb[0].mxu0
  %v6341 = vadd.f32 0.0, %v6340
  %v6342 = vpop.f32.mrb[0].mxu0
  %6343 = vmatprep.mubr.bf16.mxu0 0
  %6344 = vmatmul.mubr.bf16.gmra.mrb[0].mxu0 %v5886
  %v6345 = vpop.f32.mrb[0].mxu0
  %v6346 = vadd.f32 0.0, %v6345
  %v6347 = vpop.f32.mrb[0].mxu0
  %v6348 = vpop.f32.mrb[0].mxu0
  %v6349 = vadd.f32 0.0, %v6348
  %v6350 = vpop.f32.mrb[0].mxu0
  %6351 = vmatprep.mubr.bf16.mxu0 0
  %6352 = vmatmul.mubr.bf16.gmra.mrb[0].mxu0 %v5895
  %v6353 = vpop.f32.mrb[0].mxu0
  %v6354 = vadd.f32 0.0, %v6353
  %v6355 = vpop.f32.mrb[0].mxu0
  %v6356 = vpop.f32.mrb[0].mxu0
  %v6357 = vadd.f32 0.0, %v6356
  %v6358 = vpop.f32.mrb[0].mxu0
  %6359 = vmatprep.mubr.bf16.mxu0 0
  %6360 = vmatmul.mubr.bf16.gmra.mrb[0].mxu0 %v5904
  %v6361 = vpop.f32.mrb[0].mxu0
  %v6362 = vadd.f32 0.0, %v6361
  %v6363 = vpop.f32.mrb[0].mxu0
  %v6364 = vpop.f32.mrb[0].mxu0
  %v6365 = vadd.f32 0.0, %v6364
  %v6366 = vpop.f32.mrb[0].mxu0
  %6367 = vmatprep.mubr.bf16.mxu0 0
  %6368 = vmatmul.mubr.bf16.gmra.mrb[0].mxu0 %v5913
  %v6369 = vpop.f32.mrb[0].mxu0
  %v6370 = vadd.f32 0.0, %v6369
  %v6371 = vpop.f32.mrb[0].mxu0
  %v6372 = vpop.f32.mrb[0].mxu0
  %v6373 = vadd.f32 0.0, %v6372
  %v6374 = vpop.f32.mrb[0].mxu0
  %6375 = vmatprep.mubr.bf16.mxu0 0
  %6376 = vmatmul.mubr.bf16.gmra.mrb[0].mxu0 %v5922
  %v6377 = vpop.f32.mrb[0].mxu0
  %v6378 = vadd.f32 0.0, %v6377
  %v6379 = vpop.f32.mrb[0].mxu0
  %v6380 = vpop.f32.mrb[0].mxu0
  %v6381 = vadd.f32 0.0, %v6380
  %v6382 = vpop.f32.mrb[0].mxu0
  %6383 = vmatprep.mubr.bf16.mxu0 0
  %6384 = vmatmul.mubr.bf16.gmra.mrb[0].mxu0 %v5931
  %v6385 = vpop.f32.mrb[0].mxu0
  %v6386 = vadd.f32 0.0, %v6385
  %v6387 = vpop.f32.mrb[0].mxu0
  %v6388 = vpop.f32.mrb[0].mxu0
  %v6389 = vadd.f32 0.0, %v6388
  %v6390 = vpop.f32.mrb[0].mxu0
  %6391 = vmatprep.mubr.bf16.mxu0 0
  %6392 = vmatmul.mubr.bf16.gmra.mrb[0].mxu0 %v5940
  %v6393 = vpop.f32.mrb[0].mxu0
  %v6394 = vadd.f32 0.0, %v6393
  %v6395 = vpop.f32.mrb[0].mxu0
  %v6396 = vpop.f32.mrb[0].mxu0
  %v6397 = vadd.f32 0.0, %v6396
  %v6398 = vpop.f32.mrb[0].mxu0
  %6399 = vmatprep.mubr.bf16.mxu0 0
  %6400 = vmatmul.mubr.bf16.gmra.mrb[0].mxu0 %v5949
  %v6401 = vpop.f32.mrb[0].mxu0
  %v6402 = vadd.f32 0.0, %v6401
  %v6403 = vpop.f32.mrb[0].mxu0
  %v6404 = vpop.f32.mrb[0].mxu0
  %v6405 = vadd.f32 0.0, %v6404
  %v6406 = vpop.f32.mrb[0].mxu0
  %6407 = vmatprep.mubr.bf16.mxu0 0
  %6408 = vmatmul.mubr.bf16.gmra.mrb[0].mxu0 %v5958
  %v6409 = vpop.f32.mrb[0].mxu0
  %v6410 = vadd.f32 0.0, %v6409
  %v6411 = vpop.f32.mrb[0].mxu0
  %v6412 = vpop.f32.mrb[0].mxu0
  %v6413 = vadd.f32 0.0, %v6412
  %v6414 = vpop.f32.mrb[0].mxu0
  %6415 = vmatprep.mubr.bf16.mxu0 0
  %6416 = vmatmul.mubr.bf16.gmra.mrb[0].mxu0 %v5967
  %v6417 = vpop.f32.mrb[0].mxu0
  %v6418 = vadd.f32 0.0, %v6417
  %v6419 = vpop.f32.mrb[0].mxu0
  %v6420 = vpop.f32.mrb[0].mxu0
  %v6421 = vadd.f32 0.0, %v6420
  %v6422 = vpop.f32.mrb[0].mxu0
  %6423 = vmatprep.mubr.bf16.mxu0 0
  %6424 = vmatmul.mubr.bf16.gmra.mrb[0].mxu0 %v5976
  %v6425 = vpop.f32.mrb[0].mxu0
  %v6426 = vadd.f32 0.0, %v6425
  %v6427 = vpop.f32.mrb[0].mxu0
  %v6428 = vpop.f32.mrb[0].mxu0
  %v6429 = vadd.f32 0.0, %v6428
  %v6430 = vpop.f32.mrb[0].mxu0
  %6431 = vmatprep.mubr.bf16.mxu0 0
  %6432 = vmatmul.mubr.bf16.gmra.mrb[0].mxu0 %v5985
  %v6433 = vpop.f32.mrb[0].mxu0
  %v6434 = vadd.f32 0.0, %v6433
  %v6435 = vpop.f32.mrb[0].mxu0
  %v6436 = vpop.f32.mrb[0].mxu0
  %v6437 = vadd.f32 0.0, %v6436
  %v6438 = vpop.f32.mrb[0].mxu0
  %6439 = vmatprep.mubr.bf16.mxu0 0
  %6440 = vmatmul.mubr.bf16.gmra.mrb[0].mxu0 %v5994
  %v6441 = vpop.f32.mrb[0].mxu0
  %v6442 = vadd.f32 0.0, %v6441
  %v6443 = vpop.f32.mrb[0].mxu0
  %v6444 = vpop.f32.mrb[0].mxu0
  %v6445 = vadd.f32 0.0, %v6444
  %v6446 = vpop.f32.mrb[0].mxu0
  %6447 = vmatprep.mubr.bf16.mxu0 0
  %6448 = vmatmul.mubr.bf16.gmra.mrb[0].mxu0 %v6003
  %v6449 = vpop.f32.mrb[0].mxu0
  %v6450 = vadd.f32 0.0, %v6449
  %v6451 = vpop.f32.mrb[0].mxu0
  %v6452 = vpop.f32.mrb[0].mxu0
  %v6453 = vadd.f32 0.0, %v6452
  %v6454 = vpop.f32.mrb[0].mxu0
  %6455 = vmatprep.mubr.bf16.mxu0 0
  %6456 = vmatmul.mubr.bf16.gmra.mrb[0].mxu0 %v6012
  %v6457 = vpop.f32.mrb[0].mxu0
  %v6458 = vadd.f32 0.0, %v6457
  %v6459 = vpop.f32.mrb[0].mxu0
  %v6460 = vpop.f32.mrb[0].mxu0
  %v6461 = vadd.f32 0.0, %v6460
  %v6462 = vpop.f32.mrb[0].mxu0
  %6463 = vmatprep.mubr.bf16.mxu0 0
  %6464 = vmatmul.mubr.bf16.gmra.mrb[0].mxu0 %v6021
  %v6465 = vpop.f32.mrb[0].mxu0
  %v6466 = vadd.f32 0.0, %v6465
  %v6467 = vpop.f32.mrb[0].mxu0
  %v6468 = vpop.f32.mrb[0].mxu0
  %v6469 = vadd.f32 0.0, %v6468
  %v6470 = vpop.f32.mrb[0].mxu0
  %6471 = vdwg.mxu0
  %v6472 = vadd.f32 %v5541, %v6146
  %v6473 = vadd.f32 %v5542, %v6149
  %v6474 = vadd.f32 %v5543, %v6154
  %v6475 = vadd.f32 %v5544, %v6157
  %v6476 = vadd.f32 %v5545, %v6162
  %v6477 = vadd.f32 %v5546, %v6165
  %v6478 = vadd.f32 %v5547, %v6170
  %v6479 = vadd.f32 %v5548, %v6173
  %v6480 = vadd.f32 %v5549, %v6178
  %v6481 = vadd.f32 %v5550, %v6181
  %v6482 = vadd.f32 %v5551, %v6186
  %v6483 = vadd.f32 %v5552, %v6189
  %v6484 = vadd.f32 %v5553, %v6194
  %v6485 = vadd.f32 %v5554, %v6197
  %v6486 = vadd.f32 %v5555, %v6202
  %v6487 = vadd.f32 %v5556, %v6205
  %v6488 = vadd.f32 %v5557, %v6210
  %v6489 = vadd.f32 %v5558, %v6213
  %v6490 = vadd.f32 %v5559, %v6218
  %v6491 = vadd.f32 %v5560, %v6221
  %v6492 = vadd.f32 %v5561, %v6226
  %v6493 = vadd.f32 %v5562, %v6229
  %v6494 = vadd.f32 %v5563, %v6234
  %v6495 = vadd.f32 %v5564, %v6237
  %v6496 = vadd.f32 %v5565, %v6242
  %v6497 = vadd.f32 %v5566, %v6245
  %v6498 = vadd.f32 %v5567, %v6250
  %v6499 = vadd.f32 %v5568, %v6253
  %v6500 = vadd.f32 %v5569, %v6258
  %v6501 = vadd.f32 %v5570, %v6261
  %v6502 = vadd.f32 %v5571, %v6266
  %v6503 = vadd.f32 %v5572, %v6269
  %v6504 = vadd.f32 %v5573, %v6274
  %v6505 = vadd.f32 %v5574, %v6277
  %v6506 = vadd.f32 %v5575, %v6282
  %v6507 = vadd.f32 %v5576, %v6285
  %v6508 = vadd.f32 %v5577, %v6290
  %v6509 = vadd.f32 %v5578, %v6293
  %v6510 = vadd.f32 %v5579, %v6298
  %v6511 = vadd.f32 %v5580, %v6301
  %v6512 = vadd.f32 %v5581, %v6306
  %v6513 = vadd.f32 %v5582, %v6309
  %v6514 = vadd.f32 %v5583, %v6314
  %v6515 = vadd.f32 %v5584, %v6317
  %v6516 = vadd.f32 %v5585, %v6322
  %v6517 = vadd.f32 %v5586, %v6325
  %v6518 = vadd.f32 %v5587, %v6330
  %v6519 = vadd.f32 %v5588, %v6333
  %v6520 = vadd.f32 %v5589, %v6338
  %v6521 = vadd.f32 %v5590, %v6341
  %v6522 = vadd.f32 %v5591, %v6346
  %v6523 = vadd.f32 %v5592, %v6349
  %v6524 = vadd.f32 %v5593, %v6354
  %v6525 = vadd.f32 %v5594, %v6357
  %v6526 = vadd.f32 %v5595, %v6362
  %v6527 = vadd.f32 %v5596, %v6365
  %v6528 = vadd.f32 %v5597, %v6370
  %v6529 = vadd.f32 %v5598, %v6373
  %v6530 = vadd.f32 %v5599, %v6378
  %v6531 = vadd.f32 %v5600, %v6381
  %v6532 = vadd.f32 %v5601, %v6386
  %v6533 = vadd.f32 %v5602, %v6389
  %v6534 = vadd.f32 %v5603, %v6394
  %v6535 = vadd.f32 %v5604, %v6397
  %v6536 = vadd.f32 %v5605, %v6402
  %v6537 = vadd.f32 %v5606, %v6405
  %v6538 = vadd.f32 %v5607, %v6410
  %v6539 = vadd.f32 %v5608, %v6413
  %v6540 = vadd.f32 %v5609, %v6418
  %v6541 = vadd.f32 %v5610, %v6421
  %v6542 = vadd.f32 %v5611, %v6426
  %v6543 = vadd.f32 %v5612, %v6429
  %v6544 = vadd.f32 %v5613, %v6434
  %v6545 = vadd.f32 %v5614, %v6437
  %v6546 = vadd.f32 %v5615, %v6442
  %v6547 = vadd.f32 %v5616, %v6445
  %v6548 = vadd.f32 %v5617, %v6450
  %v6549 = vadd.f32 %v5618, %v6453
  %v6550 = vadd.f32 %v5619, %v6458
  %v6551 = vadd.f32 %v5620, %v6461
  %v6552 = vadd.f32 %v5621, %v6466
  %v6553 = vadd.f32 %v5622, %v6469
  %v6554 = vld [vmem:[%s0 + $0x10] sm:$0x8]
  %s6555 = scalar_lea.vmem %s1, 512
  %v6556 = vld [vmem:[%s6555] sm:$0xf]
  %v6557 = vld [vmem:[%s6555 + $0x4] sm:$0xf]
  %v6558 = vld [vmem:[%s6555 + $0x8] sm:$0xf]
  %v6559 = vld [vmem:[%s6555 + $0xc] sm:$0xf]
  %v6560 = vld [vmem:[%s6555 + $0x10] sm:$0xf]
  %v6561 = vld [vmem:[%s6555 + $0x14] sm:$0xf]
  %v6562 = vld [vmem:[%s6555 + $0x18] sm:$0xf]
  %v6563 = vld [vmem:[%s6555 + $0x1c] sm:$0xf]
  %v6564 = vld [vmem:[%s6555 + $0x20] sm:$0xf]
  %v6565 = vld [vmem:[%s6555 + $0x24] sm:$0xf]
  %v6566 = vld [vmem:[%s6555 + $0x28] sm:$0xf]
  %v6567 = vld [vmem:[%s6555 + $0x2c] sm:$0xf]
  %v6568 = vld [vmem:[%s6555 + $0x30] sm:$0xf]
  %v6569 = vld [vmem:[%s6555 + $0x34] sm:$0xf]
  %v6570 = vld [vmem:[%s6555 + $0x38] sm:$0xf]
  %v6571 = vld [vmem:[%s6555 + $0x3c] sm:$0xf]
  %v6573 = vunpack.c.l.b16 %v6554
  %v6574 = vpack.c.b16 %v4884, %v6573
  %vm6575 = vcmask 1044480
  %v6576 = vrot.slane %v6574, 3
  %v6577 = vrot.slane %v4967, 3
  %v6578 = vsel %vm6575, %v6576, %v6577
  %v6579 = vrot.slane %v4968, 3
  %v6580 = vsel %vm6575, %v6577, %v6579
  %v6581 = vrot.slane %v4969, 3
  %v6582 = vsel %vm6575, %v6579, %v6581
  %v6583 = vrot.slane %v4970, 3
  %v6584 = vsel %vm6575, %v6581, %v6583
  %v6585 = vrot.slane %v4971, 3
  %v6586 = vsel %vm6575, %v6583, %v6585
  %v6587 = vrot.slane %v4972, 3
  %v6588 = vsel %vm6575, %v6585, %v6587
  %v6589 = vrot.slane %v4973, 3
  %v6590 = vsel %vm6575, %v6587, %v6589
  %v6591 = vrot.slane %v4974, 3
  %v6592 = vsel %vm6575, %v6589, %v6591
  %v6593 = vrot.slane %v4975, 3
  %v6594 = vsel %vm6575, %v6591, %v6593
  %v6595 = vrot.slane %v4976, 3
  %v6596 = vsel %vm6575, %v6593, %v6595
  %v6597 = vrot.slane %v4977, 3
  %v6598 = vsel %vm6575, %v6595, %v6597
  %v6599 = vrot.slane %v4978, 3
  %v6600 = vsel %vm6575, %v6597, %v6599
  %v6601 = vrot.slane %v4979, 3
  %v6602 = vsel %vm6575, %v6599, %v6601
  %v6603 = vrot.slane %v4980, 3
  %v6604 = vsel %vm6575, %v6601, %v6603
  %v6605 = vrot.slane %v4981, 3
  %v6606 = vsel %vm6575, %v6603, %v6605
  %v6607 = vrot.slane %v4982, 3
  %v6608 = vsel %vm6575, %v6605, %v6607
  %v6609 = vrot.slane %v4983, 3
  %v6610 = vsel %vm6575, %v6607, %v6609
  %v6611 = vrot.slane %v4984, 3
  %v6612 = vsel %vm6575, %v6609, %v6611
  %v6613 = vrot.slane %v4985, 3
  %v6614 = vsel %vm6575, %v6611, %v6613
  %v6615 = vrot.slane %v4986, 3
  %v6616 = vsel %vm6575, %v6613, %v6615
  %v6617 = vrot.slane %v4987, 3
  %v6618 = vsel %vm6575, %v6615, %v6617
  %v6619 = vrot.slane %v4988, 3
  %v6620 = vsel %vm6575, %v6617, %v6619
  %v6621 = vrot.slane %v4989, 3
  %v6622 = vsel %vm6575, %v6619, %v6621
  %v6623 = vrot.slane %v4990, 3
  %v6624 = vsel %vm6575, %v6621, %v6623
  %v6625 = vrot.slane %v4991, 3
  %v6626 = vsel %vm6575, %v6623, %v6625
  %v6627 = vrot.slane %v4992, 3
  %v6628 = vsel %vm6575, %v6625, %v6627
  %v6629 = vrot.slane %v4993, 3
  %v6630 = vsel %vm6575, %v6627, %v6629
  %v6631 = vrot.slane %v4994, 3
  %v6632 = vsel %vm6575, %v6629, %v6631
  %v6633 = vrot.slane %v4995, 3
  %v6634 = vsel %vm6575, %v6631, %v6633
  %v6635 = vrot.slane %v4996, 3
  %v6636 = vsel %vm6575, %v6633, %v6635
  %v6637 = vrot.slane %v4997, 3
  %v6638 = vsel %vm6575, %v6635, %v6637
  %v6639 = vrot.slane %v4998, 3
  %v6640 = vsel %vm6575, %v6637, %v6639
  %v6641 = vrot.slane %v4999, 3
  %v6642 = vsel %vm6575, %v6639, %v6641
  %v6643 = vrot.slane %v5000, 3
  %v6644 = vsel %vm6575, %v6641, %v6643
  %v6645 = vrot.slane %v5001, 3
  %v6646 = vsel %vm6575, %v6643, %v6645
  %v6647 = vrot.slane %v5002, 3
  %v6648 = vsel %vm6575, %v6645, %v6647
  %v6649 = vrot.slane %v5003, 3
  %v6650 = vsel %vm6575, %v6647, %v6649
  %v6651 = vrot.slane %v5004, 3
  %v6652 = vsel %vm6575, %v6649, %v6651
  %v6653 = vrot.slane %v5005, 3
  %v6654 = vsel %vm6575, %v6651, %v6653
  %v6655 = vrot.slane %v5006, 3
  %v6656 = vsel %vm6575, %v6653, %v6655
  %v6657 = vrot.slane %v5643, 3
  %v6658 = vsel %vm6575, %v6655, %v6657
  %v6716 = vunpack.c.l.b16 %v6556
  %v6717 = vunpack.c.l.b16 %v6557
  %v6718 = vunpack.c.l.b16 %v6558
  %v6719 = vunpack.c.l.b16 %v6559
  %v6720 = vunpack.c.l.b16 %v6560
  %v6721 = vunpack.c.l.b16 %v6561
  %v6722 = vunpack.c.l.b16 %v6562
  %v6723 = vunpack.c.l.b16 %v6563
  %v6724 = vunpack.c.l.b16 %v6564
  %v6725 = vunpack.c.l.b16 %v6565
  %v6726 = vunpack.c.l.b16 %v6566
  %v6727 = vunpack.c.l.b16 %v6567
  %v6728 = vunpack.c.l.b16 %v6568
  %v6729 = vunpack.c.l.b16 %v6569
  %v6730 = vunpack.c.l.b16 %v6570
  %v6731 = vunpack.c.l.b16 %v6571
  %v6732 = vpack.c.b16 %v6717, %v6716
  %v6733 = vpack.c.b16 %v6719, %v6718
  %v6734 = vpack.c.b16 %v6721, %v6720
  %v6735 = vpack.c.b16 %v6723, %v6722
  %v6736 = vpack.c.b16 %v6725, %v6724
  %v6737 = vpack.c.b16 %v6727, %v6726
  %v6738 = vpack.c.b16 %v6729, %v6728
  %v6739 = vpack.c.b16 %v6731, %v6730
  %6748 = vmatprep.subr.bf16.mxu0 0
  %6749 = vmatpush1.bf16.msra.mxu0 %v6732
  %6750 = vmatprep.subr.bf16.mxu0 0
  %6751 = vmatpush1.bf16.msra.mxu0 %v6733
  %6752 = vmatprep.subr.bf16.mxu0 0
  %6753 = vmatpush1.bf16.msra.mxu0 %v6734
  %6754 = vmatprep.subr.bf16.mxu0 0
  %6755 = vmatpush1.bf16.msra.mxu0 %v6735
  %6756 = vmatprep.subr.bf16.mxu0 0
  %6757 = vmatpush1.bf16.msra.mxu0 %v6736
  %6758 = vmatprep.subr.bf16.mxu0 0
  %6759 = vmatpush1.bf16.msra.mxu0 %v6737
  %6760 = vmatprep.subr.bf16.mxu0 0
  %6761 = vmatpush1.bf16.msra.mxu0 %v6738
  %6762 = vmatprep.subr.bf16.mxu0 0
  %6763 = vmatpush1.bf16.msra.mxu0 %v6739
  %6764 = vmatprep.subr.bf16.mxu0 0
  %6765 = vmatpush1.bf16.msra.mxu0 0
  %6766 = vmatprep.subr.bf16.mxu0 0
  %6767 = vmatpush1.bf16.msra.mxu0 0
  %6768 = vmatprep.subr.bf16.mxu0 0
  %6769 = vmatpush1.bf16.msra.mxu0 0
  %6770 = vmatprep.subr.bf16.mxu0 0
  %6771 = vmatpush1.bf16.msra.mxu0 0
  %6772 = vmatprep.subr.bf16.mxu0 0
  %6773 = vmatpush1.bf16.msra.mxu0 0
  %6774 = vmatprep.subr.bf16.mxu0 0
  %6775 = vmatpush1.bf16.msra.mxu0 0
  %6776 = vmatprep.subr.bf16.mxu0 0
  %6777 = vmatpush1.bf16.msra.mxu0 0
  %6778 = vmatprep.subr.bf16.mxu0 0
  %6779 = vmatpush1.bf16.msra.mxu0 0
  %6780 = vmatprep.mubr.bf16.mxu0 0
  %6781 = vmatmul.mubr.bf16.gmra.mrb[0].mxu0 %v6578
  %v6782 = vpop.f32.mrb[0].mxu0
  %v6783 = vadd.f32 0.0, %v6782
  %v6784 = vpop.f32.mrb[0].mxu0
  %v6785 = vpop.f32.mrb[0].mxu0
  %v6786 = vadd.f32 0.0, %v6785
  %v6787 = vpop.f32.mrb[0].mxu0
  %6788 = vmatprep.mubr.bf16.mxu0 0
  %6789 = vmatmul.mubr.bf16.gmra.mrb[0].mxu0 %v6580
  %v6790 = vpop.f32.mrb[0].mxu0
  %v6791 = vadd.f32 0.0, %v6790
  %v6792 = vpop.f32.mrb[0].mxu0
  %v6793 = vpop.f32.mrb[0].mxu0
  %v6794 = vadd.f32 0.0, %v6793
  %v6795 = vpop.f32.mrb[0].mxu0
  %6796 = vmatprep.mubr.bf16.mxu0 0
  %6797 = vmatmul.mubr.bf16.gmra.mrb[0].mxu0 %v6582
  %v6798 = vpop.f32.mrb[0].mxu0
  %v6799 = vadd.f32 0.0, %v6798
  %v6800 = vpop.f32.mrb[0].mxu0
  %v6801 = vpop.f32.mrb[0].mxu0
  %v6802 = vadd.f32 0.0, %v6801
  %v6803 = vpop.f32.mrb[0].mxu0
  %6804 = vmatprep.mubr.bf16.mxu0 0
  %6805 = vmatmul.mubr.bf16.gmra.mrb[0].mxu0 %v6584
  %v6806 = vpop.f32.mrb[0].mxu0
  %v6807 = vadd.f32 0.0, %v6806
  %v6808 = vpop.f32.mrb[0].mxu0
  %v6809 = vpop.f32.mrb[0].mxu0
  %v6810 = vadd.f32 0.0, %v6809
  %v6811 = vpop.f32.mrb[0].mxu0
  %6812 = vmatprep.mubr.bf16.mxu0 0
  %6813 = vmatmul.mubr.bf16.gmra.mrb[0].mxu0 %v6586
  %v6814 = vpop.f32.mrb[0].mxu0
  %v6815 = vadd.f32 0.0, %v6814
  %v6816 = vpop.f32.mrb[0].mxu0
  %v6817 = vpop.f32.mrb[0].mxu0
  %v6818 = vadd.f32 0.0, %v6817
  %v6819 = vpop.f32.mrb[0].mxu0
  %6820 = vmatprep.mubr.bf16.mxu0 0
  %6821 = vmatmul.mubr.bf16.gmra.mrb[0].mxu0 %v6588
  %v6822 = vpop.f32.mrb[0].mxu0
  %v6823 = vadd.f32 0.0, %v6822
  %v6824 = vpop.f32.mrb[0].mxu0
  %v6825 = vpop.f32.mrb[0].mxu0
  %v6826 = vadd.f32 0.0, %v6825
  %v6827 = vpop.f32.mrb[0].mxu0
  %6828 = vmatprep.mubr.bf16.mxu0 0
  %6829 = vmatmul.mubr.bf16.gmra.mrb[0].mxu0 %v6590
  %v6830 = vpop.f32.mrb[0].mxu0
  %v6831 = vadd.f32 0.0, %v6830
  %v6832 = vpop.f32.mrb[0].mxu0
  %v6833 = vpop.f32.mrb[0].mxu0
  %v6834 = vadd.f32 0.0, %v6833
  %v6835 = vpop.f32.mrb[0].mxu0
  %6836 = vmatprep.mubr.bf16.mxu0 0
  %6837 = vmatmul.mubr.bf16.gmra.mrb[0].mxu0 %v6592
  %v6838 = vpop.f32.mrb[0].mxu0
  %v6839 = vadd.f32 0.0, %v6838
  %v6840 = vpop.f32.mrb[0].mxu0
  %v6841 = vpop.f32.mrb[0].mxu0
  %v6842 = vadd.f32 0.0, %v6841
  %v6843 = vpop.f32.mrb[0].mxu0
  %6844 = vmatprep.mubr.bf16.mxu0 0
  %6845 = vmatmul.mubr.bf16.gmra.mrb[0].mxu0 %v6594
  %v6846 = vpop.f32.mrb[0].mxu0
  %v6847 = vadd.f32 0.0, %v6846
  %v6848 = vpop.f32.mrb[0].mxu0
  %v6849 = vpop.f32.mrb[0].mxu0
  %v6850 = vadd.f32 0.0, %v6849
  %v6851 = vpop.f32.mrb[0].mxu0
  %6852 = vmatprep.mubr.bf16.mxu0 0
  %6853 = vmatmul.mubr.bf16.gmra.mrb[0].mxu0 %v6596
  %v6854 = vpop.f32.mrb[0].mxu0
  %v6855 = vadd.f32 0.0, %v6854
  %v6856 = vpop.f32.mrb[0].mxu0
  %v6857 = vpop.f32.mrb[0].mxu0
  %v6858 = vadd.f32 0.0, %v6857
  %v6859 = vpop.f32.mrb[0].mxu0
  %6860 = vmatprep.mubr.bf16.mxu0 0
  %6861 = vmatmul.mubr.bf16.gmra.mrb[0].mxu0 %v6598
  %v6862 = vpop.f32.mrb[0].mxu0
  %v6863 = vadd.f32 0.0, %v6862
  %v6864 = vpop.f32.mrb[0].mxu0
  %v6865 = vpop.f32.mrb[0].mxu0
  %v6866 = vadd.f32 0.0, %v6865
  %v6867 = vpop.f32.mrb[0].mxu0
  %6868 = vmatprep.mubr.bf16.mxu0 0
  %6869 = vmatmul.mubr.bf16.gmra.mrb[0].mxu0 %v6600
  %v6870 = vpop.f32.mrb[0].mxu0
  %v6871 = vadd.f32 0.0, %v6870
  %v6872 = vpop.f32.mrb[0].mxu0
  %v6873 = vpop.f32.mrb[0].mxu0
  %v6874 = vadd.f32 0.0, %v6873
  %v6875 = vpop.f32.mrb[0].mxu0
  %6876 = vmatprep.mubr.bf16.mxu0 0
  %6877 = vmatmul.mubr.bf16.gmra.mrb[0].mxu0 %v6602
  %v6878 = vpop.f32.mrb[0].mxu0
  %v6879 = vadd.f32 0.0, %v6878
  %v6880 = vpop.f32.mrb[0].mxu0
  %v6881 = vpop.f32.mrb[0].mxu0
  %v6882 = vadd.f32 0.0, %v6881
  %v6883 = vpop.f32.mrb[0].mxu0
  %6884 = vmatprep.mubr.bf16.mxu0 0
  %6885 = vmatmul.mubr.bf16.gmra.mrb[0].mxu0 %v6604
  %v6886 = vpop.f32.mrb[0].mxu0
  %v6887 = vadd.f32 0.0, %v6886
  %v6888 = vpop.f32.mrb[0].mxu0
  %v6889 = vpop.f32.mrb[0].mxu0
  %v6890 = vadd.f32 0.0, %v6889
  %v6891 = vpop.f32.mrb[0].mxu0
  %6892 = vmatprep.mubr.bf16.mxu0 0
  %6893 = vmatmul.mubr.bf16.gmra.mrb[0].mxu0 %v6606
  %v6894 = vpop.f32.mrb[0].mxu0
  %v6895 = vadd.f32 0.0, %v6894
  %v6896 = vpop.f32.mrb[0].mxu0
  %v6897 = vpop.f32.mrb[0].mxu0
  %v6898 = vadd.f32 0.0, %v6897
  %v6899 = vpop.f32.mrb[0].mxu0
  %6900 = vmatprep.mubr.bf16.mxu0 0
  %6901 = vmatmul.mubr.bf16.gmra.mrb[0].mxu0 %v6608
  %v6902 = vpop.f32.mrb[0].mxu0
  %v6903 = vadd.f32 0.0, %v6902
  %v6904 = vpop.f32.mrb[0].mxu0
  %v6905 = vpop.f32.mrb[0].mxu0
  %v6906 = vadd.f32 0.0, %v6905
  %v6907 = vpop.f32.mrb[0].mxu0
  %6908 = vmatprep.mubr.bf16.mxu0 0
  %6909 = vmatmul.mubr.bf16.gmra.mrb[0].mxu0 %v6610
  %v6910 = vpop.f32.mrb[0].mxu0
  %v6911 = vadd.f32 0.0, %v6910
  %v6912 = vpop.f32.mrb[0].mxu0
  %v6913 = vpop.f32.mrb[0].mxu0
  %v6914 = vadd.f32 0.0, %v6913
  %v6915 = vpop.f32.mrb[0].mxu0
  %6916 = vmatprep.mubr.bf16.mxu0 0
  %6917 = vmatmul.mubr.bf16.gmra.mrb[0].mxu0 %v6612
  %v6918 = vpop.f32.mrb[0].mxu0
  %v6919 = vadd.f32 0.0, %v6918
  %v6920 = vpop.f32.mrb[0].mxu0
  %v6921 = vpop.f32.mrb[0].mxu0
  %v6922 = vadd.f32 0.0, %v6921
  %v6923 = vpop.f32.mrb[0].mxu0
  %6924 = vmatprep.mubr.bf16.mxu0 0
  %6925 = vmatmul.mubr.bf16.gmra.mrb[0].mxu0 %v6614
  %v6926 = vpop.f32.mrb[0].mxu0
  %v6927 = vadd.f32 0.0, %v6926
  %v6928 = vpop.f32.mrb[0].mxu0
  %v6929 = vpop.f32.mrb[0].mxu0
  %v6930 = vadd.f32 0.0, %v6929
  %v6931 = vpop.f32.mrb[0].mxu0
  %6932 = vmatprep.mubr.bf16.mxu0 0
  %6933 = vmatmul.mubr.bf16.gmra.mrb[0].mxu0 %v6616
  %v6934 = vpop.f32.mrb[0].mxu0
  %v6935 = vadd.f32 0.0, %v6934
  %v6936 = vpop.f32.mrb[0].mxu0
  %v6937 = vpop.f32.mrb[0].mxu0
  %v6938 = vadd.f32 0.0, %v6937
  %v6939 = vpop.f32.mrb[0].mxu0
  %6940 = vmatprep.mubr.bf16.mxu0 0
  %6941 = vmatmul.mubr.bf16.gmra.mrb[0].mxu0 %v6618
  %v6942 = vpop.f32.mrb[0].mxu0
  %v6943 = vadd.f32 0.0, %v6942
  %v6944 = vpop.f32.mrb[0].mxu0
  %v6945 = vpop.f32.mrb[0].mxu0
  %v6946 = vadd.f32 0.0, %v6945
  %v6947 = vpop.f32.mrb[0].mxu0
  %6948 = vmatprep.mubr.bf16.mxu0 0
  %6949 = vmatmul.mubr.bf16.gmra.mrb[0].mxu0 %v6620
  %v6950 = vpop.f32.mrb[0].mxu0
  %v6951 = vadd.f32 0.0, %v6950
  %v6952 = vpop.f32.mrb[0].mxu0
  %v6953 = vpop.f32.mrb[0].mxu0
  %v6954 = vadd.f32 0.0, %v6953
  %v6955 = vpop.f32.mrb[0].mxu0
  %6956 = vmatprep.mubr.bf16.mxu0 0
  %6957 = vmatmul.mubr.bf16.gmra.mrb[0].mxu0 %v6622
  %v6958 = vpop.f32.mrb[0].mxu0
  %v6959 = vadd.f32 0.0, %v6958
  %v6960 = vpop.f32.mrb[0].mxu0
  %v6961 = vpop.f32.mrb[0].mxu0
  %v6962 = vadd.f32 0.0, %v6961
  %v6963 = vpop.f32.mrb[0].mxu0
  %6964 = vmatprep.mubr.bf16.mxu0 0
  %6965 = vmatmul.mubr.bf16.gmra.mrb[0].mxu0 %v6624
  %v6966 = vpop.f32.mrb[0].mxu0
  %v6967 = vadd.f32 0.0, %v6966
  %v6968 = vpop.f32.mrb[0].mxu0
  %v6969 = vpop.f32.mrb[0].mxu0
  %v6970 = vadd.f32 0.0, %v6969
  %v6971 = vpop.f32.mrb[0].mxu0
  %6972 = vmatprep.mubr.bf16.mxu0 0
  %6973 = vmatmul.mubr.bf16.gmra.mrb[0].mxu0 %v6626
  %v6974 = vpop.f32.mrb[0].mxu0
  %v6975 = vadd.f32 0.0, %v6974
  %v6976 = vpop.f32.mrb[0].mxu0
  %v6977 = vpop.f32.mrb[0].mxu0
  %v6978 = vadd.f32 0.0, %v6977
  %v6979 = vpop.f32.mrb[0].mxu0
  %6980 = vmatprep.mubr.bf16.mxu0 0
  %6981 = vmatmul.mubr.bf16.gmra.mrb[0].mxu0 %v6628
  %v6982 = vpop.f32.mrb[0].mxu0
  %v6983 = vadd.f32 0.0, %v6982
  %v6984 = vpop.f32.mrb[0].mxu0
  %v6985 = vpop.f32.mrb[0].mxu0
  %v6986 = vadd.f32 0.0, %v6985
  %v6987 = vpop.f32.mrb[0].mxu0
  %6988 = vmatprep.mubr.bf16.mxu0 0
  %6989 = vmatmul.mubr.bf16.gmra.mrb[0].mxu0 %v6630
  %v6990 = vpop.f32.mrb[0].mxu0
  %v6991 = vadd.f32 0.0, %v6990
  %v6992 = vpop.f32.mrb[0].mxu0
  %v6993 = vpop.f32.mrb[0].mxu0
  %v6994 = vadd.f32 0.0, %v6993
  %v6995 = vpop.f32.mrb[0].mxu0
  %6996 = vmatprep.mubr.bf16.mxu0 0
  %6997 = vmatmul.mubr.bf16.gmra.mrb[0].mxu0 %v6632
  %v6998 = vpop.f32.mrb[0].mxu0
  %v6999 = vadd.f32 0.0, %v6998
  %v7000 = vpop.f32.mrb[0].mxu0
  %v7001 = vpop.f32.mrb[0].mxu0
  %v7002 = vadd.f32 0.0, %v7001
  %v7003 = vpop.f32.mrb[0].mxu0
  %7004 = vmatprep.mubr.bf16.mxu0 0
  %7005 = vmatmul.mubr.bf16.gmra.mrb[0].mxu0 %v6634
  %v7006 = vpop.f32.mrb[0].mxu0
  %v7007 = vadd.f32 0.0, %v7006
  %v7008 = vpop.f32.mrb[0].mxu0
  %v7009 = vpop.f32.mrb[0].mxu0
  %v7010 = vadd.f32 0.0, %v7009
  %v7011 = vpop.f32.mrb[0].mxu0
  %7012 = vmatprep.mubr.bf16.mxu0 0
  %7013 = vmatmul.mubr.bf16.gmra.mrb[0].mxu0 %v6636
  %v7014 = vpop.f32.mrb[0].mxu0
  %v7015 = vadd.f32 0.0, %v7014
  %v7016 = vpop.f32.mrb[0].mxu0
  %v7017 = vpop.f32.mrb[0].mxu0
  %v7018 = vadd.f32 0.0, %v7017
  %v7019 = vpop.f32.mrb[0].mxu0
  %7020 = vmatprep.mubr.bf16.mxu0 0
  %7021 = vmatmul.mubr.bf16.gmra.mrb[0].mxu0 %v6638
  %v7022 = vpop.f32.mrb[0].mxu0
  %v7023 = vadd.f32 0.0, %v7022
  %v7024 = vpop.f32.mrb[0].mxu0
  %v7025 = vpop.f32.mrb[0].mxu0
  %v7026 = vadd.f32 0.0, %v7025
  %v7027 = vpop.f32.mrb[0].mxu0
  %7028 = vmatprep.mubr.bf16.mxu0 0
  %7029 = vmatmul.mubr.bf16.gmra.mrb[0].mxu0 %v6640
  %v7030 = vpop.f32.mrb[0].mxu0
  %v7031 = vadd.f32 0.0, %v7030
  %v7032 = vpop.f32.mrb[0].mxu0
  %v7033 = vpop.f32.mrb[0].mxu0
  %v7034 = vadd.f32 0.0, %v7033
  %v7035 = vpop.f32.mrb[0].mxu0
  %7036 = vmatprep.mubr.bf16.mxu0 0
  %7037 = vmatmul.mubr.bf16.gmra.mrb[0].mxu0 %v6642
  %v7038 = vpop.f32.mrb[0].mxu0
  %v7039 = vadd.f32 0.0, %v7038
  %v7040 = vpop.f32.mrb[0].mxu0
  %v7041 = vpop.f32.mrb[0].mxu0
  %v7042 = vadd.f32 0.0, %v7041
  %v7043 = vpop.f32.mrb[0].mxu0
  %7044 = vmatprep.mubr.bf16.mxu0 0
  %7045 = vmatmul.mubr.bf16.gmra.mrb[0].mxu0 %v6644
  %v7046 = vpop.f32.mrb[0].mxu0
  %v7047 = vadd.f32 0.0, %v7046
  %v7048 = vpop.f32.mrb[0].mxu0
  %v7049 = vpop.f32.mrb[0].mxu0
  %v7050 = vadd.f32 0.0, %v7049
  %v7051 = vpop.f32.mrb[0].mxu0
  %7052 = vmatprep.mubr.bf16.mxu0 0
  %7053 = vmatmul.mubr.bf16.gmra.mrb[0].mxu0 %v6646
  %v7054 = vpop.f32.mrb[0].mxu0
  %v7055 = vadd.f32 0.0, %v7054
  %v7056 = vpop.f32.mrb[0].mxu0
  %v7057 = vpop.f32.mrb[0].mxu0
  %v7058 = vadd.f32 0.0, %v7057
  %v7059 = vpop.f32.mrb[0].mxu0
  %7060 = vmatprep.mubr.bf16.mxu0 0
  %7061 = vmatmul.mubr.bf16.gmra.mrb[0].mxu0 %v6648
  %v7062 = vpop.f32.mrb[0].mxu0
  %v7063 = vadd.f32 0.0, %v7062
  %v7064 = vpop.f32.mrb[0].mxu0
  %v7065 = vpop.f32.mrb[0].mxu0
  %v7066 = vadd.f32 0.0, %v7065
  %v7067 = vpop.f32.mrb[0].mxu0
  %7068 = vmatprep.mubr.bf16.mxu0 0
  %7069 = vmatmul.mubr.bf16.gmra.mrb[0].mxu0 %v6650
  %v7070 = vpop.f32.mrb[0].mxu0
  %v7071 = vadd.f32 0.0, %v7070
  %v7072 = vpop.f32.mrb[0].mxu0
  %v7073 = vpop.f32.mrb[0].mxu0
  %v7074 = vadd.f32 0.0, %v7073
  %v7075 = vpop.f32.mrb[0].mxu0
  %7076 = vmatprep.mubr.bf16.mxu0 0
  %7077 = vmatmul.mubr.bf16.gmra.mrb[0].mxu0 %v6652
  %v7078 = vpop.f32.mrb[0].mxu0
  %v7079 = vadd.f32 0.0, %v7078
  %v7080 = vpop.f32.mrb[0].mxu0
  %v7081 = vpop.f32.mrb[0].mxu0
  %v7082 = vadd.f32 0.0, %v7081
  %v7083 = vpop.f32.mrb[0].mxu0
  %7084 = vmatprep.mubr.bf16.mxu0 0
  %7085 = vmatmul.mubr.bf16.gmra.mrb[0].mxu0 %v6654
  %v7086 = vpop.f32.mrb[0].mxu0
  %v7087 = vadd.f32 0.0, %v7086
  %v7088 = vpop.f32.mrb[0].mxu0
  %v7089 = vpop.f32.mrb[0].mxu0
  %v7090 = vadd.f32 0.0, %v7089
  %v7091 = vpop.f32.mrb[0].mxu0
  %7092 = vmatprep.mubr.bf16.mxu0 0
  %7093 = vmatmul.mubr.bf16.gmra.mrb[0].mxu0 %v6656
  %v7094 = vpop.f32.mrb[0].mxu0
  %v7095 = vadd.f32 0.0, %v7094
  %v7096 = vpop.f32.mrb[0].mxu0
  %v7097 = vpop.f32.mrb[0].mxu0
  %v7098 = vadd.f32 0.0, %v7097
  %v7099 = vpop.f32.mrb[0].mxu0
  %7100 = vmatprep.mubr.bf16.mxu0 0
  %7101 = vmatmul.mubr.bf16.gmra.mrb[0].mxu0 %v6658
  %v7102 = vpop.f32.mrb[0].mxu0
  %v7103 = vadd.f32 0.0, %v7102
  %v7104 = vpop.f32.mrb[0].mxu0
  %v7105 = vpop.f32.mrb[0].mxu0
  %v7106 = vadd.f32 0.0, %v7105
  %v7107 = vpop.f32.mrb[0].mxu0
  %7108 = vdwg.mxu0
  %v7109 = vadd.f32 %v6472, %v6783
  %v7110 = vadd.f32 %v6473, %v6786
  %v7111 = vadd.f32 %v6474, %v6791
  %v7112 = vadd.f32 %v6475, %v6794
  %v7113 = vadd.f32 %v6476, %v6799
  %v7114 = vadd.f32 %v6477, %v6802
  %v7115 = vadd.f32 %v6478, %v6807
  %v7116 = vadd.f32 %v6479, %v6810
  %v7117 = vadd.f32 %v6480, %v6815
  %v7118 = vadd.f32 %v6481, %v6818
  %v7119 = vadd.f32 %v6482, %v6823
  %v7120 = vadd.f32 %v6483, %v6826
  %v7121 = vadd.f32 %v6484, %v6831
  %v7122 = vadd.f32 %v6485, %v6834
  %v7123 = vadd.f32 %v6486, %v6839
  %v7124 = vadd.f32 %v6487, %v6842
  %v7125 = vadd.f32 %v6488, %v6847
  %v7126 = vadd.f32 %v6489, %v6850
  %v7127 = vadd.f32 %v6490, %v6855
  %v7128 = vadd.f32 %v6491, %v6858
  %v7129 = vadd.f32 %v6492, %v6863
  %v7130 = vadd.f32 %v6493, %v6866
  %v7131 = vadd.f32 %v6494, %v6871
  %v7132 = vadd.f32 %v6495, %v6874
  %v7133 = vadd.f32 %v6496, %v6879
  %v7134 = vadd.f32 %v6497, %v6882
  %v7135 = vadd.f32 %v6498, %v6887
  %v7136 = vadd.f32 %v6499, %v6890
  %v7137 = vadd.f32 %v6500, %v6895
  %v7138 = vadd.f32 %v6501, %v6898
  %v7139 = vadd.f32 %v6502, %v6903
  %v7140 = vadd.f32 %v6503, %v6906
  %v7141 = vadd.f32 %v6504, %v6911
  %v7142 = vadd.f32 %v6505, %v6914
  %v7143 = vadd.f32 %v6506, %v6919
  %v7144 = vadd.f32 %v6507, %v6922
  %v7145 = vadd.f32 %v6508, %v6927
  %v7146 = vadd.f32 %v6509, %v6930
  %v7147 = vadd.f32 %v6510, %v6935
  %v7148 = vadd.f32 %v6511, %v6938
  %v7149 = vadd.f32 %v6512, %v6943
  %v7150 = vadd.f32 %v6513, %v6946
  %v7151 = vadd.f32 %v6514, %v6951
  %v7152 = vadd.f32 %v6515, %v6954
  %v7153 = vadd.f32 %v6516, %v6959
  %v7154 = vadd.f32 %v6517, %v6962
  %v7155 = vadd.f32 %v6518, %v6967
  %v7156 = vadd.f32 %v6519, %v6970
  %v7157 = vadd.f32 %v6520, %v6975
  %v7158 = vadd.f32 %v6521, %v6978
  %v7159 = vadd.f32 %v6522, %v6983
  %v7160 = vadd.f32 %v6523, %v6986
  %v7161 = vadd.f32 %v6524, %v6991
  %v7162 = vadd.f32 %v6525, %v6994
  %v7163 = vadd.f32 %v6526, %v6999
  %v7164 = vadd.f32 %v6527, %v7002
  %v7165 = vadd.f32 %v6528, %v7007
  %v7166 = vadd.f32 %v6529, %v7010
  %v7167 = vadd.f32 %v6530, %v7015
  %v7168 = vadd.f32 %v6531, %v7018
  %v7169 = vadd.f32 %v6532, %v7023
  %v7170 = vadd.f32 %v6533, %v7026
  %v7171 = vadd.f32 %v6534, %v7031
  %v7172 = vadd.f32 %v6535, %v7034
  %v7173 = vadd.f32 %v6536, %v7039
  %v7174 = vadd.f32 %v6537, %v7042
  %v7175 = vadd.f32 %v6538, %v7047
  %v7176 = vadd.f32 %v6539, %v7050
  %v7177 = vadd.f32 %v6540, %v7055
  %v7178 = vadd.f32 %v6541, %v7058
  %v7179 = vadd.f32 %v6542, %v7063
  %v7180 = vadd.f32 %v6543, %v7066
  %v7181 = vadd.f32 %v6544, %v7071
  %v7182 = vadd.f32 %v6545, %v7074
  %v7183 = vadd.f32 %v6546, %v7079
  %v7184 = vadd.f32 %v6547, %v7082
  %v7185 = vadd.f32 %v6548, %v7087
  %v7186 = vadd.f32 %v6549, %v7090
  %v7187 = vadd.f32 %v6550, %v7095
  %v7188 = vadd.f32 %v6551, %v7098
  %v7189 = vadd.f32 %v6552, %v7103
  %v7190 = vadd.f32 %v6553, %v7106
  %v7191 = vld [vmem:[%s2] sm:$0x1]
  %v7193 = vlaneseq
  %v7194 = vshrl.u32 %v7193, 7
  %v7195 = vsub.s32 0, %v7194
  %v7196 = vrot.slane %v7191, %v7195
  %v7198 = vadd.f32 %v7109, %v7196
  %v7199 = vadd.f32 %v7110, %v7196
  %v7200 = vadd.f32 %v7111, %v7196
  %v7201 = vadd.f32 %v7112, %v7196
  %v7202 = vadd.f32 %v7113, %v7196
  %v7203 = vadd.f32 %v7114, %v7196
  %v7204 = vadd.f32 %v7115, %v7196
  %v7205 = vadd.f32 %v7116, %v7196
  %v7206 = vadd.f32 %v7117, %v7196
  %v7207 = vadd.f32 %v7118, %v7196
  %v7208 = vadd.f32 %v7119, %v7196
  %v7209 = vadd.f32 %v7120, %v7196
  %v7210 = vadd.f32 %v7121, %v7196
  %v7211 = vadd.f32 %v7122, %v7196
  %v7212 = vadd.f32 %v7123, %v7196
  %v7213 = vadd.f32 %v7124, %v7196
  %v7214 = vadd.f32 %v7125, %v7196
  %v7215 = vadd.f32 %v7126, %v7196
  %v7216 = vadd.f32 %v7127, %v7196
  %v7217 = vadd.f32 %v7128, %v7196
  %v7218 = vadd.f32 %v7129, %v7196
  %v7219 = vadd.f32 %v7130, %v7196
  %v7220 = vadd.f32 %v7131, %v7196
  %v7221 = vadd.f32 %v7132, %v7196
  %v7222 = vadd.f32 %v7133, %v7196
  %v7223 = vadd.f32 %v7134, %v7196
  %v7224 = vadd.f32 %v7135, %v7196
  %v7225 = vadd.f32 %v7136, %v7196
  %v7226 = vadd.f32 %v7137, %v7196
  %v7227 = vadd.f32 %v7138, %v7196
  %v7228 = vadd.f32 %v7139, %v7196
  %v7229 = vadd.f32 %v7140, %v7196
  %v7230 = vadd.f32 %v7141, %v7196
  %v7231 = vadd.f32 %v7142, %v7196
  %v7232 = vadd.f32 %v7143, %v7196
  %v7233 = vadd.f32 %v7144, %v7196
  %v7234 = vadd.f32 %v7145, %v7196
  %v7235 = vadd.f32 %v7146, %v7196
  %v7236 = vadd.f32 %v7147, %v7196
  %v7237 = vadd.f32 %v7148, %v7196
  %v7238 = vadd.f32 %v7149, %v7196
  %v7239 = vadd.f32 %v7150, %v7196
  %v7240 = vadd.f32 %v7151, %v7196
  %v7241 = vadd.f32 %v7152, %v7196
  %v7242 = vadd.f32 %v7153, %v7196
  %v7243 = vadd.f32 %v7154, %v7196
  %v7244 = vadd.f32 %v7155, %v7196
  %v7245 = vadd.f32 %v7156, %v7196
  %v7246 = vadd.f32 %v7157, %v7196
  %v7247 = vadd.f32 %v7158, %v7196
  %v7248 = vadd.f32 %v7159, %v7196
  %v7249 = vadd.f32 %v7160, %v7196
  %v7250 = vadd.f32 %v7161, %v7196
  %v7251 = vadd.f32 %v7162, %v7196
  %v7252 = vadd.f32 %v7163, %v7196
  %v7253 = vadd.f32 %v7164, %v7196
  %v7254 = vadd.f32 %v7165, %v7196
  %v7255 = vadd.f32 %v7166, %v7196
  %v7256 = vadd.f32 %v7167, %v7196
  %v7257 = vadd.f32 %v7168, %v7196
  %v7258 = vadd.f32 %v7169, %v7196
  %v7259 = vadd.f32 %v7170, %v7196
  %v7260 = vadd.f32 %v7171, %v7196
  %v7261 = vadd.f32 %v7172, %v7196
  %v7262 = vadd.f32 %v7173, %v7196
  %v7263 = vadd.f32 %v7174, %v7196
  %v7264 = vadd.f32 %v7175, %v7196
  %v7265 = vadd.f32 %v7176, %v7196
  %v7266 = vadd.f32 %v7177, %v7196
  %v7267 = vadd.f32 %v7178, %v7196
  %v7268 = vadd.f32 %v7179, %v7196
  %v7269 = vadd.f32 %v7180, %v7196
  %v7270 = vadd.f32 %v7181, %v7196
  %v7271 = vadd.f32 %v7182, %v7196
  %v7272 = vadd.f32 %v7183, %v7196
  %v7273 = vadd.f32 %v7184, %v7196
  %v7274 = vadd.f32 %v7185, %v7196
  %v7275 = vadd.f32 %v7186, %v7196
  %v7276 = vadd.f32 %v7187, %v7196
  %v7277 = vadd.f32 %v7188, %v7196
  %v7278 = vadd.f32 %v7189, %v7196
  %v7279 = vadd.f32 %v7190, %v7196
  %v7280 = vmax.f32 %v7198, 0.0
  %v7281 = vmax.f32 %v7199, 0.0
  %v7282 = vmax.f32 %v7200, 0.0
  %v7283 = vmax.f32 %v7201, 0.0
  %v7284 = vmax.f32 %v7202, 0.0
  %v7285 = vmax.f32 %v7203, 0.0
  %v7286 = vmax.f32 %v7204, 0.0
  %v7287 = vmax.f32 %v7205, 0.0
  %v7288 = vmax.f32 %v7206, 0.0
  %v7289 = vmax.f32 %v7207, 0.0
  %v7290 = vmax.f32 %v7208, 0.0
  %v7291 = vmax.f32 %v7209, 0.0
  %v7292 = vmax.f32 %v7210, 0.0
  %v7293 = vmax.f32 %v7211, 0.0
  %v7294 = vmax.f32 %v7212, 0.0
  %v7295 = vmax.f32 %v7213, 0.0
  %v7296 = vmax.f32 %v7214, 0.0
  %v7297 = vmax.f32 %v7215, 0.0
  %v7298 = vmax.f32 %v7216, 0.0
  %v7299 = vmax.f32 %v7217, 0.0
  %v7300 = vmax.f32 %v7218, 0.0
  %v7301 = vmax.f32 %v7219, 0.0
  %v7302 = vmax.f32 %v7220, 0.0
  %v7303 = vmax.f32 %v7221, 0.0
  %v7304 = vmax.f32 %v7222, 0.0
  %v7305 = vmax.f32 %v7223, 0.0
  %v7306 = vmax.f32 %v7224, 0.0
  %v7307 = vmax.f32 %v7225, 0.0
  %v7308 = vmax.f32 %v7226, 0.0
  %v7309 = vmax.f32 %v7227, 0.0
  %v7310 = vmax.f32 %v7228, 0.0
  %v7311 = vmax.f32 %v7229, 0.0
  %v7312 = vmax.f32 %v7230, 0.0
  %v7313 = vmax.f32 %v7231, 0.0
  %v7314 = vmax.f32 %v7232, 0.0
  %v7315 = vmax.f32 %v7233, 0.0
  %v7316 = vmax.f32 %v7234, 0.0
  %v7317 = vmax.f32 %v7235, 0.0
  %v7318 = vmax.f32 %v7236, 0.0
  %v7319 = vmax.f32 %v7237, 0.0
  %v7320 = vmax.f32 %v7238, 0.0
  %v7321 = vmax.f32 %v7239, 0.0
  %v7322 = vmax.f32 %v7240, 0.0
  %v7323 = vmax.f32 %v7241, 0.0
  %v7324 = vmax.f32 %v7242, 0.0
  %v7325 = vmax.f32 %v7243, 0.0
  %v7326 = vmax.f32 %v7244, 0.0
  %v7327 = vmax.f32 %v7245, 0.0
  %v7328 = vmax.f32 %v7246, 0.0
  %v7329 = vmax.f32 %v7247, 0.0
  %v7330 = vmax.f32 %v7248, 0.0
  %v7331 = vmax.f32 %v7249, 0.0
  %v7332 = vmax.f32 %v7250, 0.0
  %v7333 = vmax.f32 %v7251, 0.0
  %v7334 = vmax.f32 %v7252, 0.0
  %v7335 = vmax.f32 %v7253, 0.0
  %v7336 = vmax.f32 %v7254, 0.0
  %v7337 = vmax.f32 %v7255, 0.0
  %v7338 = vmax.f32 %v7256, 0.0
  %v7339 = vmax.f32 %v7257, 0.0
  %v7340 = vmax.f32 %v7258, 0.0
  %v7341 = vmax.f32 %v7259, 0.0
  %v7342 = vmax.f32 %v7260, 0.0
  %v7343 = vmax.f32 %v7261, 0.0
  %v7344 = vmax.f32 %v7262, 0.0
  %v7345 = vmax.f32 %v7263, 0.0
  %v7346 = vmax.f32 %v7264, 0.0
  %v7347 = vmax.f32 %v7265, 0.0
  %v7348 = vmax.f32 %v7266, 0.0
  %v7349 = vmax.f32 %v7267, 0.0
  %v7350 = vmax.f32 %v7268, 0.0
  %v7351 = vmax.f32 %v7269, 0.0
  %v7352 = vmax.f32 %v7270, 0.0
  %v7353 = vmax.f32 %v7271, 0.0
  %v7354 = vmax.f32 %v7272, 0.0
  %v7355 = vmax.f32 %v7273, 0.0
  %v7356 = vmax.f32 %v7274, 0.0
  %v7357 = vmax.f32 %v7275, 0.0
  %v7358 = vmax.f32 %v7276, 0.0
  %v7359 = vmax.f32 %v7277, 0.0
  %v7360 = vmax.f32 %v7278, 0.0
  %v7361 = vmax.f32 %v7279, 0.0
  %7362 = vst [vmem:[%s3] sm:$0xff] %v7280
  %7363 = vst [vmem:[%s3 + $0x8] sm:$0xff] %v7281
  %7364 = vst [vmem:[%s3 + $0x10] sm:$0xff] %v7282
  %7365 = vst [vmem:[%s3 + $0x18] sm:$0xff] %v7283
  %7366 = vst [vmem:[%s3 + $0x20] sm:$0xff] %v7284
  %7367 = vst [vmem:[%s3 + $0x28] sm:$0xff] %v7285
  %7368 = vst [vmem:[%s3 + $0x30] sm:$0xff] %v7286
  %7369 = vst [vmem:[%s3 + $0x38] sm:$0xff] %v7287
  %7370 = vst [vmem:[%s3 + $0x40] sm:$0xff] %v7288
  %7371 = vst [vmem:[%s3 + $0x48] sm:$0xff] %v7289
  %7372 = vst [vmem:[%s3 + $0x50] sm:$0xff] %v7290
  %7373 = vst [vmem:[%s3 + $0x58] sm:$0xff] %v7291
  %7374 = vst [vmem:[%s3 + $0x60] sm:$0xff] %v7292
  %7375 = vst [vmem:[%s3 + $0x68] sm:$0xff] %v7293
  %7376 = vst [vmem:[%s3 + $0x70] sm:$0xff] %v7294
  %7377 = vst [vmem:[%s3 + $0x78] sm:$0xff] %v7295
  %7378 = vst [vmem:[%s3 + $0x80] sm:$0xff] %v7296
  %7379 = vst [vmem:[%s3 + $0x88] sm:$0xff] %v7297
  %7380 = vst [vmem:[%s3 + $0x90] sm:$0xff] %v7298
  %7381 = vst [vmem:[%s3 + $0x98] sm:$0xff] %v7299
  %7382 = vst [vmem:[%s3 + $0xa0] sm:$0xff] %v7300
  %7383 = vst [vmem:[%s3 + $0xa8] sm:$0xff] %v7301
  %7384 = vst [vmem:[%s3 + $0xb0] sm:$0xff] %v7302
  %7385 = vst [vmem:[%s3 + $0xb8] sm:$0xff] %v7303
  %7386 = vst [vmem:[%s3 + $0xc0] sm:$0xff] %v7304
  %7387 = vst [vmem:[%s3 + $0xc8] sm:$0xff] %v7305
  %7388 = vst [vmem:[%s3 + $0xd0] sm:$0xff] %v7306
  %7389 = vst [vmem:[%s3 + $0xd8] sm:$0xff] %v7307
  %7390 = vst [vmem:[%s3 + $0xe0] sm:$0xff] %v7308
  %7391 = vst [vmem:[%s3 + $0xe8] sm:$0xff] %v7309
  %7392 = vst [vmem:[%s3 + $0xf0] sm:$0xff] %v7310
  %7393 = vst [vmem:[%s3 + $0xf8] sm:$0xff] %v7311
  %7394 = vst [vmem:[%s3 + $0x100] sm:$0xff] %v7312
  %7395 = vst [vmem:[%s3 + $0x108] sm:$0xff] %v7313
  %7396 = vst [vmem:[%s3 + $0x110] sm:$0xff] %v7314
  %7397 = vst [vmem:[%s3 + $0x118] sm:$0xff] %v7315
  %7398 = vst [vmem:[%s3 + $0x120] sm:$0xff] %v7316
  %7399 = vst [vmem:[%s3 + $0x128] sm:$0xff] %v7317
  %7400 = vst [vmem:[%s3 + $0x130] sm:$0xff] %v7318
  %7401 = vst [vmem:[%s3 + $0x138] sm:$0xff] %v7319
  %7402 = vst [vmem:[%s3 + $0x140] sm:$0xff] %v7320
  %7403 = vst [vmem:[%s3 + $0x148] sm:$0xff] %v7321
  %7404 = vst [vmem:[%s3 + $0x150] sm:$0xff] %v7322
  %7405 = vst [vmem:[%s3 + $0x158] sm:$0xff] %v7323
  %7406 = vst [vmem:[%s3 + $0x160] sm:$0xff] %v7324
  %7407 = vst [vmem:[%s3 + $0x168] sm:$0xff] %v7325
  %7408 = vst [vmem:[%s3 + $0x170] sm:$0xff] %v7326
  %7409 = vst [vmem:[%s3 + $0x178] sm:$0xff] %v7327
  %7410 = vst [vmem:[%s3 + $0x180] sm:$0xff] %v7328
  %7411 = vst [vmem:[%s3 + $0x188] sm:$0xff] %v7329
  %7412 = vst [vmem:[%s3 + $0x190] sm:$0xff] %v7330
  %7413 = vst [vmem:[%s3 + $0x198] sm:$0xff] %v7331
  %7414 = vst [vmem:[%s3 + $0x1a0] sm:$0xff] %v7332
  %7415 = vst [vmem:[%s3 + $0x1a8] sm:$0xff] %v7333
  %7416 = vst [vmem:[%s3 + $0x1b0] sm:$0xff] %v7334
  %7417 = vst [vmem:[%s3 + $0x1b8] sm:$0xff] %v7335
  %7418 = vst [vmem:[%s3 + $0x1c0] sm:$0xff] %v7336
  %7419 = vst [vmem:[%s3 + $0x1c8] sm:$0xff] %v7337
  %7420 = vst [vmem:[%s3 + $0x1d0] sm:$0xff] %v7338
  %7421 = vst [vmem:[%s3 + $0x1d8] sm:$0xff] %v7339
  %7422 = vst [vmem:[%s3 + $0x1e0] sm:$0xff] %v7340
  %7423 = vst [vmem:[%s3 + $0x1e8] sm:$0xff] %v7341
  %7424 = vst [vmem:[%s3 + $0x1f0] sm:$0xff] %v7342
  %7425 = vst [vmem:[%s3 + $0x1f8] sm:$0xff] %v7343
  %7426 = vst [vmem:[%s3 + $0x200] sm:$0xff] %v7344
  %7427 = vst [vmem:[%s3 + $0x208] sm:$0xff] %v7345
  %7428 = vst [vmem:[%s3 + $0x210] sm:$0xff] %v7346
  %7429 = vst [vmem:[%s3 + $0x218] sm:$0xff] %v7347
  %7430 = vst [vmem:[%s3 + $0x220] sm:$0xff] %v7348
  %7431 = vst [vmem:[%s3 + $0x228] sm:$0xff] %v7349
  %7432 = vst [vmem:[%s3 + $0x230] sm:$0xff] %v7350
  %7433 = vst [vmem:[%s3 + $0x238] sm:$0xff] %v7351
  %7434 = vst [vmem:[%s3 + $0x240] sm:$0xff] %v7352
  %7435 = vst [vmem:[%s3 + $0x248] sm:$0xff] %v7353
  %7436 = vst [vmem:[%s3 + $0x250] sm:$0xff] %v7354
  %7437 = vst [vmem:[%s3 + $0x258] sm:$0xff] %v7355
  %7438 = vst [vmem:[%s3 + $0x260] sm:$0xff] %v7356
  %7439 = vst [vmem:[%s3 + $0x268] sm:$0xff] %v7357
  %7440 = vst [vmem:[%s3 + $0x270] sm:$0xff] %v7358
  %7441 = vst [vmem:[%s3 + $0x278] sm:$0xff] %v7359
  %7442 = vst [vmem:[%s3 + $0x280] sm:$0xff] %v7360
  %7443 = vst [vmem:[%s3 + $0x288] sm:$0xff] %v7361
  // Predicated region
  $region14: #{_lambda_.5} parent=0 // pred_check
    _
  $region15: #{_lambda_.5} parent=0 // pred_check_branch
    %7445 = sbr.rel (0) target = $region17
  $region16: #{_lambda_.5} parent=0 // pred_region
    _
  $region17: #{_lambda_.5} parent=0 // pred_fallthru
    _
  // Predicated region
  $region18: #{_lambda_.5} parent=0 // pred_check
    _
  $region19: #{_lambda_.5} parent=0 // pred_check_branch
    %7447 = sbr.rel (0) target = $region21
  $region20: #{_lambda_.5} parent=0 // pred_region
    _
  $region21: #{_lambda_.5} parent=0 // pred_fallthru
    _

</llo_original>
